<compile_context>
chip_gen: v5e
topology: v5e:2x2
jax: 0.10.0
libtpu: 0.0.40
codegen_flags: <defaults>
</compile_context>

<pallas_src>
import jax
import jax.numpy as jnp
from jax.experimental import pallas as pl
from jax.experimental.pallas import tpu as pltpu


NUM_HEADS = 8
D_MODEL = 512
HEAD_DIM = D_MODEL // NUM_HEADS      # 64
D_FFN = 1024
D_IN = 312
PAD_OUT = 128                        # lane-padded width of the final Linear(64, 2)
LN_EPS = 1e-5
BN_EPS = 1e-5


# ------------------------------ fused Pallas kernel ------------------------------

def _disc_kernel(x_ref, w_in_ref, b_in_ref, w_qkv_ref, b_qkv_ref, bo_ref,
                 g1_ref, be1_ref, b_ff1_ref, b_ff2_ref, g2_ref, be2_ref,
                 w3_ref, b3_ref, s3_ref, t3_ref,
                 w4_ref, b4_ref, s4_ref, t4_ref,
                 w5_ref, b5_ref,
                 wo_hbm, wff1_hbm, wff2_hbm,          # HBM (pl.ANY) inputs, manually DMA'd
                 out_ref,
                 o_scr, wo_vmem, f1_vmem, f2_vmem, dma_sem):
    f32, bf16 = jnp.float32, jnp.bfloat16

    # ---- Overlap: start DMA of the late-stage weights (Wo, FFN W1/W2 ~ 2.5 MB bf16) now,
    #      wait right before each stage needs them (hides the DMA behind attention compute).
    cp_wo = pltpu.make_async_copy(wo_hbm, wo_vmem, dma_sem.at[0])
    cp_f1 = pltpu.make_async_copy(wff1_hbm, f1_vmem, dma_sem.at[1])
    cp_f2 = pltpu.make_async_copy(wff2_hbm, f2_vmem, dma_sem.at[2])
    cp_wo.start()
    cp_f1.start()
    cp_f2.start()

    n = x_ref.shape[0]               # == NUM_HEADS (enforced by the wrapper)

    # ---- Linear(312, 512)
    x1 = jnp.dot(x_ref[...].astype(bf16), w_in_ref[...],
                 preferred_element_type=f32) + b_in_ref[...]
    x1b = x1.astype(bf16)

    # ---- fused lane-dense QKV projection: (n,512) @ (512,1536), one bias add
    qkv = jnp.dot(x1b, w_qkv_ref[...], preferred_element_type=f32) + b_qkv_ref[...]

    # ---- per-head masked-softmax attention (static, fully unrolled)
    for a in range(NUM_HEADS):
        q = qkv[:, a * HEAD_DIM:(a + 1) * HEAD_DIM]                          # (n, 64)
        k = qkv[:, D_MODEL + a * HEAD_DIM: D_MODEL + (a + 1) * HEAD_DIM]
        v = qkv[:, 2 * D_MODEL + a * HEAD_DIM: 2 * D_MODEL + (a + 1) * HEAD_DIM]

        # scores = q @ k.T (no 1/sqrt(head_dim) scaling, matching the reference)
        sc = jax.lax.dot_general(q, k, (((1,), (1,)), ((), ())),
                                 preferred_element_type=f32)                 # (n, n)
        if n > 1:  # PyTorch: masked_fill(eye(N) == 1, -inf) only when N > 1
            r = jax.lax.broadcasted_iota(jnp.int32, (n, n), 0)
            c = jax.lax.broadcasted_iota(jnp.int32, (n, n), 1)
            sc = jnp.where(r == c, -jnp.inf, sc)

        sc = sc - jnp.max(sc, axis=-1, keepdims=True)
        p = jnp.exp(sc)
        p = p / jnp.sum(p, axis=-1, keepdims=True)

        oh = jnp.dot(p, v, preferred_element_type=f32)                       # (n, 64)

        # PyTorch quirk Oh.transpose(1,2).view(N, d): with N == h, output row `a`
        # depends only on head `a`.  Emit the row in seq-major order
        # o_scr[a, s*64 + d] = Oh[a, s, d]; the (d, s) -> (s, d) row permutation of
        # Wo is folded into the pre-permuted wo_q weight (see prepare_params).
        for s in range(n):
            o_scr[a:a + 1, s * HEAD_DIM:(s + 1) * HEAD_DIM] = oh[s:s + 1, :]

    # ---- SelfAttention epilogue: LayerNorm(x1 + O @ Wo + bo)
    cp_wo.wait()
    attn = jnp.dot(o_scr[...].astype(bf16), wo_vmem[...],
                   preferred_element_type=f32)
    s1 = x1 + attn + bo_ref[...]
    mu = jnp.mean(s1, axis=-1, keepdims=True)
    var = jnp.mean((s1 - mu) ** 2, axis=-1, keepdims=True)
    x2 = (s1 - mu) * jax.lax.rsqrt(var + LN_EPS) * g1_ref[...] + be1_ref[...]

    # ---- FeedForwardNet: LayerNorm(x2 + relu(x2 W1 + b1) W2 + b2)
    cp_f1.wait()
    cp_f2.wait()
    h1 = jnp.maximum(
        jnp.dot(x2.astype(bf16), f1_vmem[...], preferred_element_type=f32)
        + b_ff1_ref[...], 0.0)
    s2 = x2 + jnp.dot(h1.astype(bf16), f2_vmem[...],
                      preferred_element_type=f32) + b_ff2_ref[...]
    mu2 = jnp.mean(s2, axis=-1, keepdims=True)
    var2 = jnp.mean((s2 - mu2) ** 2, axis=-1, keepdims=True)
    x3 = (s2 - mu2) * jax.lax.rsqrt(var2 + LN_EPS) * g2_ref[...] + be2_ref[...]

    # ---- MLP head: Linear -> BN(eval, folded) -> ReLU -> Linear -> BN -> ReLU -> Linear
    y = jnp.dot(x3.astype(bf16), w3_ref[...], preferred_element_type=f32) + b3_ref[...]
    y = jnp.maximum(y * s3_ref[...] + t3_ref[...], 0.0)
    y = jnp.dot(y.astype(bf16), w4_ref[...], preferred_element_type=f32) + b4_ref[...]
    y = jnp.maximum(y * s4_ref[...] + t4_ref[...], 0.0)
    out_ref[...] = jnp.dot(y.astype(bf16), w5_ref[...],
                           preferred_element_type=f32) + b5_ref[...]


# ------------------------------ pallas_call wrapper ------------------------------

def discriminator_forward(prep, x):
    n = x.shape[0]
    # TODO(synk): the in-kernel reproduction of the Oh.transpose(1,2).view(N,d) quirk is
    # specialized to N == num_heads (head_dim * N == d_model); other batch sizes would need
    # the general relayout path.
    assert n == NUM_HEADS, "fused kernel specializes the PyTorch view-quirk to N == num_heads"

    vmem = pl.BlockSpec(memory_space=pltpu.MemorySpace.VMEM)
    hbm = pl.BlockSpec(memory_space=pl.ANY)

    out = pl.pallas_call(
        _disc_kernel,
        out_shape=jax.ShapeDtypeStruct((n, PAD_OUT), jnp.float32),
        in_specs=[vmem] * 22 + [hbm] * 3,
        out_specs=vmem,
        scratch_shapes=[
            pltpu.VMEM((n, D_MODEL), jnp.float32),          # O in quirk layout
            pltpu.VMEM((D_MODEL, D_MODEL), jnp.bfloat16),   # prefetched Wo (permuted)
            pltpu.VMEM((D_MODEL, D_FFN), jnp.bfloat16),     # prefetched FFN W1
            pltpu.VMEM((D_FFN, D_MODEL), jnp.bfloat16),     # prefetched FFN W2
            pltpu.SemaphoreType.DMA((3,)),
        ],
    )(x, prep['w_in'], prep['b_in'], prep['w_qkv'], prep['b_qkv'], prep['bo'],
      prep['ln1_g'], prep['ln1_b'], prep['b_ff1'], prep['b_ff2'],
      prep['ln2_g'], prep['ln2_b'],
      prep['w3'], prep['b3'], prep['s3'], prep['t3'],
      prep['w4'], prep['b4'], prep['s4'], prep['t4'],
      prep['w5p'], prep['b5p'],
      prep['wo_q'], prep['w_ff1'], prep['w_ff2'])
    return out[:, :2]                                       # drop the lane padding


# ------------------------------ parameters -----------------------------------

def init_params(key):
    """Random parameters in 'PyTorch layout' (all float32, w as (in, out))."""
    ks = iter(jax.random.split(key, 32))

    def dense(din, dout):
        k1, k2 = jax.random.split(next(ks))
        bound = float(din) ** -0.5
        w = jax.random.uniform(k1, (din, dout), jnp.float32, -bound, bound)
        b = jax.random.uniform(k2, (1, dout), jnp.float32, -bound, bound)
        return w, b

    def affine(dim):
        k1, k2 = jax.random.split(next(ks))
        g = jax.random.uniform(k1, (1, dim), jnp.float32, 0.9, 1.1)
        b = jax.random.uniform(k2, (1, dim), jnp.float32, -0.05, 0.05)
        return g, b

    p = {}
    p['w_in'], p['b_in'] = dense(D_IN, D_MODEL)
    p['wq'], p['bq'] = dense(D_MODEL, D_MODEL)
    p['wk'], p['bk'] = dense(D_MODEL, D_MODEL)
    p['wv'], p['bv'] = dense(D_MODEL, D_MODEL)
    p['wo'], p['bo'] = dense(D_MODEL, D_MODEL)
    p['ln1_g'], p['ln1_b'] = affine(D_MODEL)
    p['w_ff1'], p['b_ff1'] = dense(D_MODEL, D_FFN)
    p['w_ff2'], p['b_ff2'] = dense(D_FFN, D_MODEL)
    p['ln2_g'], p['ln2_b'] = affine(D_MODEL)
    p['w3'], p['b3'] = dense(D_MODEL, 256)
    p['bn1_g'], p['bn1_b'] = affine(256)
    p['bn1_rm'] = jnp.zeros((1, 256), jnp.float32)
    p['bn1_rv'] = jnp.ones((1, 256), jnp.float32)
    p['w4'], p['b4'] = dense(256, 64)
    p['bn2_g'], p['bn2_b'] = affine(64)
    p['bn2_rm'] = jnp.zeros((1, 64), jnp.float32)
    p['bn2_rv'] = jnp.ones((1, 64), jnp.float32)
    p['w5'], p['b5'] = dense(64, 2)
    return p


def prepare_params(p):
    """One-time repack (outside the jitted forward): bf16 matmul weights, fused QKV weight,
    quirk-permuted Wo, folded eval-mode BatchNorm, lane-padded final projection."""
    bf16 = jnp.bfloat16
    d, hd, n = D_MODEL, HEAD_DIM, NUM_HEADS   # quirk: N == num_heads

    # fused lane-dense QKV projection weight / bias
    w_qkv = jnp.concatenate([p['wq'], p['wk'], p['wv']], axis=1).astype(bf16)   # (512, 1536)
    b_qkv = jnp.concatenate([p['bq'], p['bk'], p['bv']], axis=1)                # (1, 1536)

    # Fold the Oh.transpose(1,2).view(N,d) quirk into Wo:
    # kernel emits O_easy[a, s*hd + dd] = Oh[a, s, dd] while PyTorch's O[a, dd*N + s] = Oh[a, s, dd],
    # so permute Wo's input rows: wo_q[s*hd + dd, :] = Wo[dd*N + s, :]   (valid because N == h == 8)
    wo_q = jnp.transpose(p['wo'].reshape(hd, n, d), (1, 0, 2)).reshape(d, d).astype(bf16)

    s3 = p['bn1_g'] * jax.lax.rsqrt(p['bn1_rv'] + BN_EPS)
    t3 = p['bn1_b'] - p['bn1_rm'] * s3
    s4 = p['bn2_g'] * jax.lax.rsqrt(p['bn2_rv'] + BN_EPS)
    t4 = p['bn2_b'] - p['bn2_rm'] * s4

    w5p = jnp.zeros((p['w5'].shape[0], PAD_OUT), jnp.float32).at[:, :p['w5'].shape[1]].set(p['w5'])
    b5p = jnp.zeros((1, PAD_OUT), jnp.float32).at[:, :p['b5'].shape[1]].set(p['b5'])

    return dict(
        w_in=p['w_in'].astype(bf16), b_in=p['b_in'],
        w_qkv=w_qkv, b_qkv=b_qkv,
        wo_q=wo_q, bo=p['bo'],
        ln1_g=p['ln1_g'], ln1_b=p['ln1_b'],
        w_ff1=p['w_ff1'].astype(bf16), b_ff1=p['b_ff1'],
        w_ff2=p['w_ff2'].astype(bf16), b_ff2=p['b_ff2'],
        ln2_g=p['ln2_g'], ln2_b=p['ln2_b'],
        w3=p['w3'].astype(bf16), b3=p['b3'], s3=s3, t3=t3,
        w4=p['w4'].astype(bf16), b4=p['b4'], s4=s4, t4=t4,
        w5p=w5p.astype(bf16), b5p=b5p,
    )


# ------------------------------ pure-JAX f32 reference ------------------------

def reference_forward(p, x):
    """Straight f32 JAX transcription of the PyTorch module (eval mode)."""
    h, d = NUM_HEADS, D_MODEL
    hd = d // h
    n = x.shape[0]

    def ln(v, g, b):
        mu = jnp.mean(v, axis=-1, keepdims=True)
        var = jnp.mean((v - mu) ** 2, axis=-1, keepdims=True)
        return (v - mu) * jax.lax.rsqrt(var + LN_EPS) * g + b

    def bn(v, g, b, rm, rv):
        return (v - rm) * jax.lax.rsqrt(rv + BN_EPS) * g + b

    x1 = x @ p['w_in'] + p['b_in']
    q = jnp.transpose((x1 @ p['wq'] + p['bq']).reshape(n, h, hd), (1, 0, 2))
    k = jnp.transpose((x1 @ p['wk'] + p['bk']).reshape(n, h, hd), (1, 0, 2))
    v = jnp.transpose((x1 @ p['wv'] + p['bv']).reshape(n, h, hd), (1, 0, 2))
    a = jnp.einsum('hij,hkj->hik', q, k)
    if n > 1:
        a = jnp.where(jnp.eye(n, dtype=bool), -jnp.inf, a)
    pattn = jax.nn.softmax(a, axis=-1)
    oh = jnp.einsum('hij,hjd->hid', pattn, v)
    o = jnp.transpose(oh, (0, 2, 1)).reshape(n, d)        # PyTorch view quirk
    x2 = ln(x1 + o @ p['wo'] + p['bo'], p['ln1_g'], p['ln1_b'])
    ff = jnp.maximum(x2 @ p['w_ff1'] + p['b_ff1'], 0.0) @ p['w_ff2'] + p['b_ff2']
    x3 = ln(x2 + ff, p['ln2_g'], p['ln2_b'])
    y = jnp.maximum(bn(x3 @ p['w3'] + p['b3'],
                       p['bn1_g'], p['bn1_b'], p['bn1_rm'], p['bn1_rv']), 0.0)
    y = jnp.maximum(bn(y @ p['w4'] + p['b4'],
                       p['bn2_g'], p['bn2_b'], p['bn2_rm'], p['bn2_rv']), 0.0)
    return y @ p['w5'] + p['b5']


# ------------------------------ main ------------------------------------------

if __name__ == "__main__":
    key = jax.random.PRNGKey(0)
    pkey, xkey = jax.random.split(key)
    params = init_params(pkey)
    prep = prepare_params(params)     # one-time weight repack, outside the jitted forward

    N = NUM_HEADS                     # 8: batch size (= the "sequence" the self-attention sees)
    x = jax.random.normal(xkey, (N, D_IN), jnp.float32)

    fwd = jax.jit(discriminator_forward)
    out = fwd(prep, x)
    jax.block_until_ready(out)
    assert out.shape == (N, 2) and out.dtype == jnp.float32
    assert bool(jnp.all(jnp.isfinite(out)))

    # Explicit-tolerance check vs. the f32 reference (kernel weights are bf16 -> loose bound;
    # this catches any error in the fused QKV split or the in-kernel view-quirk permutation).
    ref = reference_forward(params, x)
    assert bool(jnp.allclose(out, ref, rtol=1e-1, atol=1e-1)), (
        f"max abs err {float(jnp.max(jnp.abs(out - ref)))}")

    print("KERNEL_OK")
</pallas_src>

<mosaic_0001>
module attributes {stable_mosaic.version = 11 : i64} {
  func.func @_disc_kernel(%arg0: memref<8x312xf32, #tpu.memory_space<vmem>>, %arg1: memref<312x512xbf16, #tpu.memory_space<vmem>>, %arg2: memref<1x512xf32, #tpu.memory_space<vmem>>, %arg3: memref<512x1536xbf16, #tpu.memory_space<vmem>>, %arg4: memref<1x1536xf32, #tpu.memory_space<vmem>>, %arg5: memref<1x512xf32, #tpu.memory_space<vmem>>, %arg6: memref<1x512xf32, #tpu.memory_space<vmem>>, %arg7: memref<1x512xf32, #tpu.memory_space<vmem>>, %arg8: memref<1x1024xf32, #tpu.memory_space<vmem>>, %arg9: memref<1x512xf32, #tpu.memory_space<vmem>>, %arg10: memref<1x512xf32, #tpu.memory_space<vmem>>, %arg11: memref<1x512xf32, #tpu.memory_space<vmem>>, %arg12: memref<512x256xbf16, #tpu.memory_space<vmem>>, %arg13: memref<1x256xf32, #tpu.memory_space<vmem>>, %arg14: memref<1x256xf32, #tpu.memory_space<vmem>>, %arg15: memref<1x256xf32, #tpu.memory_space<vmem>>, %arg16: memref<256x64xbf16, #tpu.memory_space<vmem>>, %arg17: memref<1x64xf32, #tpu.memory_space<vmem>>, %arg18: memref<1x64xf32, #tpu.memory_space<vmem>>, %arg19: memref<1x64xf32, #tpu.memory_space<vmem>>, %arg20: memref<64x128xbf16, #tpu.memory_space<vmem>>, %arg21: memref<1x128xf32, #tpu.memory_space<vmem>>, %arg22: memref<512x512xbf16, #tpu.memory_space<any>>, %arg23: memref<512x1024xbf16, #tpu.memory_space<any>>, %arg24: memref<1024x512xbf16, #tpu.memory_space<any>>, %arg25: memref<8x128xf32, #tpu.memory_space<vmem>>, %arg26: memref<8x512xf32, #tpu.memory_space<vmem>>, %arg27: memref<512x512xbf16, #tpu.memory_space<vmem>>, %arg28: memref<512x1024xbf16, #tpu.memory_space<vmem>>, %arg29: memref<1024x512xbf16, #tpu.memory_space<vmem>>, %arg30: memref<3x!tpu.dma_semaphore, #tpu.memory_space<semaphore_mem>>) attributes {dimension_semantics = [], scalar_prefetch = 0 : i64, scratch_operands = 5 : i64, tpu.core_type = #tpu.core_type<tc>} {
    %c0_i32 = arith.constant 0 : i32
    %0 = tpu.memref_slice %arg30[%c0_i32] : memref<3x!tpu.dma_semaphore, #tpu.memory_space<semaphore_mem>> -> memref<1x!tpu.dma_semaphore, #tpu.memory_space<semaphore_mem>>
    %1 = tpu.memref_squeeze %0 : memref<1x!tpu.dma_semaphore, #tpu.memory_space<semaphore_mem>> -> memref<!tpu.dma_semaphore, #tpu.memory_space<semaphore_mem>>
    tpu.enqueue_dma source(%arg22 : memref<512x512xbf16, #tpu.memory_space<any>>) target(%arg27 : memref<512x512xbf16, #tpu.memory_space<vmem>>) target_semaphore(%1 : memref<!tpu.dma_semaphore, #tpu.memory_space<semaphore_mem>>)
    %c1_i32 = arith.constant 1 : i32
    %2 = tpu.memref_slice %arg30[%c1_i32] : memref<3x!tpu.dma_semaphore, #tpu.memory_space<semaphore_mem>> -> memref<1x!tpu.dma_semaphore, #tpu.memory_space<semaphore_mem>>
    %3 = tpu.memref_squeeze %2 : memref<1x!tpu.dma_semaphore, #tpu.memory_space<semaphore_mem>> -> memref<!tpu.dma_semaphore, #tpu.memory_space<semaphore_mem>>
    tpu.enqueue_dma source(%arg23 : memref<512x1024xbf16, #tpu.memory_space<any>>) target(%arg28 : memref<512x1024xbf16, #tpu.memory_space<vmem>>) target_semaphore(%3 : memref<!tpu.dma_semaphore, #tpu.memory_space<semaphore_mem>>)
    %c2_i32 = arith.constant 2 : i32
    %4 = tpu.memref_slice %arg30[%c2_i32] : memref<3x!tpu.dma_semaphore, #tpu.memory_space<semaphore_mem>> -> memref<1x!tpu.dma_semaphore, #tpu.memory_space<semaphore_mem>>
    %5 = tpu.memref_squeeze %4 : memref<1x!tpu.dma_semaphore, #tpu.memory_space<semaphore_mem>> -> memref<!tpu.dma_semaphore, #tpu.memory_space<semaphore_mem>>
    tpu.enqueue_dma source(%arg24 : memref<1024x512xbf16, #tpu.memory_space<any>>) target(%arg29 : memref<1024x512xbf16, #tpu.memory_space<vmem>>) target_semaphore(%5 : memref<!tpu.dma_semaphore, #tpu.memory_space<semaphore_mem>>)
    %c0 = arith.constant 0 : index
    %c0_0 = arith.constant 0 : index
    %6 = vector.load %arg0[%c0, %c0_0] : memref<8x312xf32, #tpu.memory_space<vmem>>, vector<8x312xf32>
    %7 = arith.truncf %6 : vector<8x312xf32> to vector<8x312xbf16>
    %c0_1 = arith.constant 0 : index
    %c0_2 = arith.constant 0 : index
    %8 = vector.load %arg1[%c0_1, %c0_2] : memref<312x512xbf16, #tpu.memory_space<vmem>>, vector<312x512xbf16>
    %cst = arith.constant dense<0.000000e+00> : vector<8x512xf32>
    %9 = tpu.matmul %7, %8, %cst {dimension_numbers = #tpu.dot_dimension_numbers<[1], [0], [0], [1], [0, 0, 1, 1], [], []>} : vector<8x312xbf16>, vector<312x512xbf16>, vector<8x512xf32> -> vector<8x512xf32>
    %c0_3 = arith.constant 0 : index
    %c0_4 = arith.constant 0 : index
    %10 = vector.load %arg2[%c0_3, %c0_4] : memref<1x512xf32, #tpu.memory_space<vmem>>, vector<1x512xf32>
    %11 = vector.broadcast %10 : vector<1x512xf32> to vector<8x512xf32>
    %12 = arith.addf %9, %11 : vector<8x512xf32>
    %13 = arith.truncf %12 : vector<8x512xf32> to vector<8x512xbf16>
    %c0_5 = arith.constant 0 : index
    %c0_6 = arith.constant 0 : index
    %14 = vector.load %arg3[%c0_5, %c0_6] : memref<512x1536xbf16, #tpu.memory_space<vmem>>, vector<512x1536xbf16>
    %cst_7 = arith.constant dense<0.000000e+00> : vector<8x1536xf32>
    %15 = tpu.matmul %13, %14, %cst_7 {dimension_numbers = #tpu.dot_dimension_numbers<[1], [0], [0], [1], [0, 0, 1, 1], [], []>} : vector<8x512xbf16>, vector<512x1536xbf16>, vector<8x1536xf32> -> vector<8x1536xf32>
    %c0_8 = arith.constant 0 : index
    %c0_9 = arith.constant 0 : index
    %16 = vector.load %arg4[%c0_8, %c0_9] : memref<1x1536xf32, #tpu.memory_space<vmem>>, vector<1x1536xf32>
    %17 = vector.broadcast %16 : vector<1x1536xf32> to vector<8x1536xf32>
    %18 = arith.addf %15, %17 : vector<8x1536xf32>
    %19 = vector.extract_strided_slice %18 {offsets = [0, 0], sizes = [8, 64], strides = [1, 1]} : vector<8x1536xf32> to vector<8x64xf32>
    %20 = vector.extract_strided_slice %18 {offsets = [0, 512], sizes = [8, 64], strides = [1, 1]} : vector<8x1536xf32> to vector<8x64xf32>
    %21 = vector.extract_strided_slice %18 {offsets = [0, 1024], sizes = [8, 64], strides = [1, 1]} : vector<8x1536xf32> to vector<8x64xf32>
    %cst_10 = arith.constant dense<0.000000e+00> : vector<8x8xf32>
    %22 = tpu.matmul %19, %20, %cst_10 {dimension_numbers = #tpu.dot_dimension_numbers<[1], [1], [0], [0], [0, 0, 1, 0], [], []>} : vector<8x64xf32>, vector<8x64xf32>, vector<8x8xf32> -> vector<8x8xf32>
    %23 = tpu.iota {dimensions = array<i32: 0>} : vector<8x8xi32>
    %24 = tpu.iota {dimensions = array<i32: 1>} : vector<8x8xi32>
    %25 = arith.cmpi eq, %23, %24 : vector<8x8xi32>
    %cst_11 = arith.constant 0xFF800000 : f32
    %26 = vector.broadcast %cst_11 : f32 to vector<8x8xf32>
    %27 = arith.select %25, %26, %22 : vector<8x8xi1>, vector<8x8xf32>
    %cst_12 = arith.constant dense<0xFF800000> : vector<8xf32>
    %28 = vector.multi_reduction <maximumf>, %27, %cst_12 [1] : vector<8x8xf32> to vector<8xf32>
    %29 = vector.shape_cast %28 : vector<8xf32> to vector<8x1xf32>
    %30 = vector.broadcast %29 : vector<8x1xf32> to vector<8x8xf32>
    %31 = arith.subf %27, %30 : vector<8x8xf32>
    %32 = math.exp %31 : vector<8x8xf32>
    %cst_13 = arith.constant dense<0.000000e+00> : vector<8xf32>
    %33 = vector.multi_reduction <add>, %32, %cst_13 [1] : vector<8x8xf32> to vector<8xf32>
    %34 = vector.shape_cast %33 : vector<8xf32> to vector<8x1xf32>
    %35 = vector.broadcast %34 : vector<8x1xf32> to vector<8x8xf32>
    %36 = arith.divf %32, %35 : vector<8x8xf32>
    %cst_14 = arith.constant dense<0.000000e+00> : vector<8x64xf32>
    %37 = tpu.matmul %36, %21, %cst_14 {dimension_numbers = #tpu.dot_dimension_numbers<[1], [0], [0], [1], [0, 0, 1, 1], [], []>} : vector<8x8xf32>, vector<8x64xf32>, vector<8x64xf32> -> vector<8x64xf32>
    %38 = vector.extract_strided_slice %37 {offsets = [0, 0], sizes = [1, 64], strides = [1, 1]} : vector<8x64xf32> to vector<1x64xf32>
    %c0_15 = arith.constant 0 : index
    %c0_16 = arith.constant 0 : index
    %39 = vector.load %arg26[%c0_15, %c0_16] : memref<8x512xf32, #tpu.memory_space<vmem>>, vector<1x64xf32>
    tpu.vector_store %arg26[%c0_15, %c0_16], %38 {strides = array<i32>} : memref<8x512xf32, #tpu.memory_space<vmem>>, vector<1x64xf32>,
    %40 = vector.extract_strided_slice %37 {offsets = [1, 0], sizes = [1, 64], strides = [1, 1]} : vector<8x64xf32> to vector<1x64xf32>
    %c0_17 = arith.constant 0 : index
    %c64 = arith.constant 64 : index
    %41 = vector.load %arg26[%c0_17, %c64] : memref<8x512xf32, #tpu.memory_space<vmem>>, vector<1x64xf32>
    tpu.vector_store %arg26[%c0_17, %c64], %40 {strides = array<i32>} : memref<8x512xf32, #tpu.memory_space<vmem>>, vector<1x64xf32>,
    %42 = vector.extract_strided_slice %37 {offsets = [2, 0], sizes = [1, 64], strides = [1, 1]} : vector<8x64xf32> to vector<1x64xf32>
    %c0_18 = arith.constant 0 : index
    %c128 = arith.constant 128 : index
    %43 = vector.load %arg26[%c0_18, %c128] : memref<8x512xf32, #tpu.memory_space<vmem>>, vector<1x64xf32>
    tpu.vector_store %arg26[%c0_18, %c128], %42 {strides = array<i32>} : memref<8x512xf32, #tpu.memory_space<vmem>>, vector<1x64xf32>,
    %44 = vector.extract_strided_slice %37 {offsets = [3, 0], sizes = [1, 64], strides = [1, 1]} : vector<8x64xf32> to vector<1x64xf32>
    %c0_19 = arith.constant 0 : index
    %c192 = arith.constant 192 : index
    %45 = vector.load %arg26[%c0_19, %c192] : memref<8x512xf32, #tpu.memory_space<vmem>>, vector<1x64xf32>
    tpu.vector_store %arg26[%c0_19, %c192], %44 {strides = array<i32>} : memref<8x512xf32, #tpu.memory_space<vmem>>, vector<1x64xf32>,
    %46 = vector.extract_strided_slice %37 {offsets = [4, 0], sizes = [1, 64], strides = [1, 1]} : vector<8x64xf32> to vector<1x64xf32>
    %c0_20 = arith.constant 0 : index
    %c256 = arith.constant 256 : index
    %47 = vector.load %arg26[%c0_20, %c256] : memref<8x512xf32, #tpu.memory_space<vmem>>, vector<1x64xf32>
    tpu.vector_store %arg26[%c0_20, %c256], %46 {strides = array<i32>} : memref<8x512xf32, #tpu.memory_space<vmem>>, vector<1x64xf32>,
    %48 = vector.extract_strided_slice %37 {offsets = [5, 0], sizes = [1, 64], strides = [1, 1]} : vector<8x64xf32> to vector<1x64xf32>
    %c0_21 = arith.constant 0 : index
    %c320 = arith.constant 320 : index
    %49 = vector.load %arg26[%c0_21, %c320] : memref<8x512xf32, #tpu.memory_space<vmem>>, vector<1x64xf32>
    tpu.vector_store %arg26[%c0_21, %c320], %48 {strides = array<i32>} : memref<8x512xf32, #tpu.memory_space<vmem>>, vector<1x64xf32>,
    %50 = vector.extract_strided_slice %37 {offsets = [6, 0], sizes = [1, 64], strides = [1, 1]} : vector<8x64xf32> to vector<1x64xf32>
    %c0_22 = arith.constant 0 : index
    %c384 = arith.constant 384 : index
    %51 = vector.load %arg26[%c0_22, %c384] : memref<8x512xf32, #tpu.memory_space<vmem>>, vector<1x64xf32>
    tpu.vector_store %arg26[%c0_22, %c384], %50 {strides = array<i32>} : memref<8x512xf32, #tpu.memory_space<vmem>>, vector<1x64xf32>,
    %52 = vector.extract_strided_slice %37 {offsets = [7, 0], sizes = [1, 64], strides = [1, 1]} : vector<8x64xf32> to vector<1x64xf32>
    %c0_23 = arith.constant 0 : index
    %c448 = arith.constant 448 : index
    %53 = vector.load %arg26[%c0_23, %c448] : memref<8x512xf32, #tpu.memory_space<vmem>>, vector<1x64xf32>
    tpu.vector_store %arg26[%c0_23, %c448], %52 {strides = array<i32>} : memref<8x512xf32, #tpu.memory_space<vmem>>, vector<1x64xf32>,
    %54 = vector.extract_strided_slice %18 {offsets = [0, 64], sizes = [8, 64], strides = [1, 1]} : vector<8x1536xf32> to vector<8x64xf32>
    %55 = vector.extract_strided_slice %18 {offsets = [0, 576], sizes = [8, 64], strides = [1, 1]} : vector<8x1536xf32> to vector<8x64xf32>
    %56 = vector.extract_strided_slice %18 {offsets = [0, 1088], sizes = [8, 64], strides = [1, 1]} : vector<8x1536xf32> to vector<8x64xf32>
    %cst_24 = arith.constant dense<0.000000e+00> : vector<8x8xf32>
    %57 = tpu.matmul %54, %55, %cst_24 {dimension_numbers = #tpu.dot_dimension_numbers<[1], [1], [0], [0], [0, 0, 1, 0], [], []>} : vector<8x64xf32>, vector<8x64xf32>, vector<8x8xf32> -> vector<8x8xf32>
    %58 = tpu.iota {dimensions = array<i32: 0>} : vector<8x8xi32>
    %59 = tpu.iota {dimensions = array<i32: 1>} : vector<8x8xi32>
    %60 = arith.cmpi eq, %58, %59 : vector<8x8xi32>
    %cst_25 = arith.constant 0xFF800000 : f32
    %61 = vector.broadcast %cst_25 : f32 to vector<8x8xf32>
    %62 = arith.select %60, %61, %57 : vector<8x8xi1>, vector<8x8xf32>
    %cst_26 = arith.constant dense<0xFF800000> : vector<8xf32>
    %63 = vector.multi_reduction <maximumf>, %62, %cst_26 [1] : vector<8x8xf32> to vector<8xf32>
    %64 = vector.shape_cast %63 : vector<8xf32> to vector<8x1xf32>
    %65 = vector.broadcast %64 : vector<8x1xf32> to vector<8x8xf32>
    %66 = arith.subf %62, %65 : vector<8x8xf32>
    %67 = math.exp %66 : vector<8x8xf32>
    %cst_27 = arith.constant dense<0.000000e+00> : vector<8xf32>
    %68 = vector.multi_reduction <add>, %67, %cst_27 [1] : vector<8x8xf32> to vector<8xf32>
    %69 = vector.shape_cast %68 : vector<8xf32> to vector<8x1xf32>
    %70 = vector.broadcast %69 : vector<8x1xf32> to vector<8x8xf32>
    %71 = arith.divf %67, %70 : vector<8x8xf32>
    %cst_28 = arith.constant dense<0.000000e+00> : vector<8x64xf32>
    %72 = tpu.matmul %71, %56, %cst_28 {dimension_numbers = #tpu.dot_dimension_numbers<[1], [0], [0], [1], [0, 0, 1, 1], [], []>} : vector<8x8xf32>, vector<8x64xf32>, vector<8x64xf32> -> vector<8x64xf32>
    %73 = vector.extract_strided_slice %72 {offsets = [0, 0], sizes = [1, 64], strides = [1, 1]} : vector<8x64xf32> to vector<1x64xf32>
    %c1 = arith.constant 1 : index
    %c0_29 = arith.constant 0 : index
    %74 = vector.load %arg26[%c1, %c0_29] : memref<8x512xf32, #tpu.memory_space<vmem>>, vector<1x64xf32>
    tpu.vector_store %arg26[%c1, %c0_29], %73 {strides = array<i32>} : memref<8x512xf32, #tpu.memory_space<vmem>>, vector<1x64xf32>,
    %75 = vector.extract_strided_slice %72 {offsets = [1, 0], sizes = [1, 64], strides = [1, 1]} : vector<8x64xf32> to vector<1x64xf32>
    %c1_30 = arith.constant 1 : index
    %c64_31 = arith.constant 64 : index
    %76 = vector.load %arg26[%c1_30, %c64_31] : memref<8x512xf32, #tpu.memory_space<vmem>>, vector<1x64xf32>
    tpu.vector_store %arg26[%c1_30, %c64_31], %75 {strides = array<i32>} : memref<8x512xf32, #tpu.memory_space<vmem>>, vector<1x64xf32>,
    %77 = vector.extract_strided_slice %72 {offsets = [2, 0], sizes = [1, 64], strides = [1, 1]} : vector<8x64xf32> to vector<1x64xf32>
    %c1_32 = arith.constant 1 : index
    %c128_33 = arith.constant 128 : index
    %78 = vector.load %arg26[%c1_32, %c128_33] : memref<8x512xf32, #tpu.memory_space<vmem>>, vector<1x64xf32>
    tpu.vector_store %arg26[%c1_32, %c128_33], %77 {strides = array<i32>} : memref<8x512xf32, #tpu.memory_space<vmem>>, vector<1x64xf32>,
    %79 = vector.extract_strided_slice %72 {offsets = [3, 0], sizes = [1, 64], strides = [1, 1]} : vector<8x64xf32> to vector<1x64xf32>
    %c1_34 = arith.constant 1 : index
    %c192_35 = arith.constant 192 : index
    %80 = vector.load %arg26[%c1_34, %c192_35] : memref<8x512xf32, #tpu.memory_space<vmem>>, vector<1x64xf32>
    tpu.vector_store %arg26[%c1_34, %c192_35], %79 {strides = array<i32>} : memref<8x512xf32, #tpu.memory_space<vmem>>, vector<1x64xf32>,
    %81 = vector.extract_strided_slice %72 {offsets = [4, 0], sizes = [1, 64], strides = [1, 1]} : vector<8x64xf32> to vector<1x64xf32>
    %c1_36 = arith.constant 1 : index
    %c256_37 = arith.constant 256 : index
    %82 = vector.load %arg26[%c1_36, %c256_37] : memref<8x512xf32, #tpu.memory_space<vmem>>, vector<1x64xf32>
    tpu.vector_store %arg26[%c1_36, %c256_37], %81 {strides = array<i32>} : memref<8x512xf32, #tpu.memory_space<vmem>>, vector<1x64xf32>,
    %83 = vector.extract_strided_slice %72 {offsets = [5, 0], sizes = [1, 64], strides = [1, 1]} : vector<8x64xf32> to vector<1x64xf32>
    %c1_38 = arith.constant 1 : index
    %c320_39 = arith.constant 320 : index
    %84 = vector.load %arg26[%c1_38, %c320_39] : memref<8x512xf32, #tpu.memory_space<vmem>>, vector<1x64xf32>
    tpu.vector_store %arg26[%c1_38, %c320_39], %83 {strides = array<i32>} : memref<8x512xf32, #tpu.memory_space<vmem>>, vector<1x64xf32>,
    %85 = vector.extract_strided_slice %72 {offsets = [6, 0], sizes = [1, 64], strides = [1, 1]} : vector<8x64xf32> to vector<1x64xf32>
    %c1_40 = arith.constant 1 : index
    %c384_41 = arith.constant 384 : index
    %86 = vector.load %arg26[%c1_40, %c384_41] : memref<8x512xf32, #tpu.memory_space<vmem>>, vector<1x64xf32>
    tpu.vector_store %arg26[%c1_40, %c384_41], %85 {strides = array<i32>} : memref<8x512xf32, #tpu.memory_space<vmem>>, vector<1x64xf32>,
    %87 = vector.extract_strided_slice %72 {offsets = [7, 0], sizes = [1, 64], strides = [1, 1]} : vector<8x64xf32> to vector<1x64xf32>
    %c1_42 = arith.constant 1 : index
    %c448_43 = arith.constant 448 : index
    %88 = vector.load %arg26[%c1_42, %c448_43] : memref<8x512xf32, #tpu.memory_space<vmem>>, vector<1x64xf32>
    tpu.vector_store %arg26[%c1_42, %c448_43], %87 {strides = array<i32>} : memref<8x512xf32, #tpu.memory_space<vmem>>, vector<1x64xf32>,
    %89 = vector.extract_strided_slice %18 {offsets = [0, 128], sizes = [8, 64], strides = [1, 1]} : vector<8x1536xf32> to vector<8x64xf32>
    %90 = vector.extract_strided_slice %18 {offsets = [0, 640], sizes = [8, 64], strides = [1, 1]} : vector<8x1536xf32> to vector<8x64xf32>
    %91 = vector.extract_strided_slice %18 {offsets = [0, 1152], sizes = [8, 64], strides = [1, 1]} : vector<8x1536xf32> to vector<8x64xf32>
    %cst_44 = arith.constant dense<0.000000e+00> : vector<8x8xf32>
    %92 = tpu.matmul %89, %90, %cst_44 {dimension_numbers = #tpu.dot_dimension_numbers<[1], [1], [0], [0], [0, 0, 1, 0], [], []>} : vector<8x64xf32>, vector<8x64xf32>, vector<8x8xf32> -> vector<8x8xf32>
    %93 = tpu.iota {dimensions = array<i32: 0>} : vector<8x8xi32>
    %94 = tpu.iota {dimensions = array<i32: 1>} : vector<8x8xi32>
    %95 = arith.cmpi eq, %93, %94 : vector<8x8xi32>
    %cst_45 = arith.constant 0xFF800000 : f32
    %96 = vector.broadcast %cst_45 : f32 to vector<8x8xf32>
    %97 = arith.select %95, %96, %92 : vector<8x8xi1>, vector<8x8xf32>
    %cst_46 = arith.constant dense<0xFF800000> : vector<8xf32>
    %98 = vector.multi_reduction <maximumf>, %97, %cst_46 [1] : vector<8x8xf32> to vector<8xf32>
    %99 = vector.shape_cast %98 : vector<8xf32> to vector<8x1xf32>
    %100 = vector.broadcast %99 : vector<8x1xf32> to vector<8x8xf32>
    %101 = arith.subf %97, %100 : vector<8x8xf32>
    %102 = math.exp %101 : vector<8x8xf32>
    %cst_47 = arith.constant dense<0.000000e+00> : vector<8xf32>
    %103 = vector.multi_reduction <add>, %102, %cst_47 [1] : vector<8x8xf32> to vector<8xf32>
    %104 = vector.shape_cast %103 : vector<8xf32> to vector<8x1xf32>
    %105 = vector.broadcast %104 : vector<8x1xf32> to vector<8x8xf32>
    %106 = arith.divf %102, %105 : vector<8x8xf32>
    %cst_48 = arith.constant dense<0.000000e+00> : vector<8x64xf32>
    %107 = tpu.matmul %106, %91, %cst_48 {dimension_numbers = #tpu.dot_dimension_numbers<[1], [0], [0], [1], [0, 0, 1, 1], [], []>} : vector<8x8xf32>, vector<8x64xf32>, vector<8x64xf32> -> vector<8x64xf32>
    %108 = vector.extract_strided_slice %107 {offsets = [0, 0], sizes = [1, 64], strides = [1, 1]} : vector<8x64xf32> to vector<1x64xf32>
    %c2 = arith.constant 2 : index
    %c0_49 = arith.constant 0 : index
    %109 = vector.load %arg26[%c2, %c0_49] : memref<8x512xf32, #tpu.memory_space<vmem>>, vector<1x64xf32>
    tpu.vector_store %arg26[%c2, %c0_49], %108 {strides = array<i32>} : memref<8x512xf32, #tpu.memory_space<vmem>>, vector<1x64xf32>,
    %110 = vector.extract_strided_slice %107 {offsets = [1, 0], sizes = [1, 64], strides = [1, 1]} : vector<8x64xf32> to vector<1x64xf32>
    %c2_50 = arith.constant 2 : index
    %c64_51 = arith.constant 64 : index
    %111 = vector.load %arg26[%c2_50, %c64_51] : memref<8x512xf32, #tpu.memory_space<vmem>>, vector<1x64xf32>
    tpu.vector_store %arg26[%c2_50, %c64_51], %110 {strides = array<i32>} : memref<8x512xf32, #tpu.memory_space<vmem>>, vector<1x64xf32>,
    %112 = vector.extract_strided_slice %107 {offsets = [2, 0], sizes = [1, 64], strides = [1, 1]} : vector<8x64xf32> to vector<1x64xf32>
    %c2_52 = arith.constant 2 : index
    %c128_53 = arith.constant 128 : index
    %113 = vector.load %arg26[%c2_52, %c128_53] : memref<8x512xf32, #tpu.memory_space<vmem>>, vector<1x64xf32>
    tpu.vector_store %arg26[%c2_52, %c128_53], %112 {strides = array<i32>} : memref<8x512xf32, #tpu.memory_space<vmem>>, vector<1x64xf32>,
    %114 = vector.extract_strided_slice %107 {offsets = [3, 0], sizes = [1, 64], strides = [1, 1]} : vector<8x64xf32> to vector<1x64xf32>
    %c2_54 = arith.constant 2 : index
    %c192_55 = arith.constant 192 : index
    %115 = vector.load %arg26[%c2_54, %c192_55] : memref<8x512xf32, #tpu.memory_space<vmem>>, vector<1x64xf32>
    tpu.vector_store %arg26[%c2_54, %c192_55], %114 {strides = array<i32>} : memref<8x512xf32, #tpu.memory_space<vmem>>, vector<1x64xf32>,
    %116 = vector.extract_strided_slice %107 {offsets = [4, 0], sizes = [1, 64], strides = [1, 1]} : vector<8x64xf32> to vector<1x64xf32>
    %c2_56 = arith.constant 2 : index
    %c256_57 = arith.constant 256 : index
    %117 = vector.load %arg26[%c2_56, %c256_57] : memref<8x512xf32, #tpu.memory_space<vmem>>, vector<1x64xf32>
    tpu.vector_store %arg26[%c2_56, %c256_57], %116 {strides = array<i32>} : memref<8x512xf32, #tpu.memory_space<vmem>>, vector<1x64xf32>,
    %118 = vector.extract_strided_slice %107 {offsets = [5, 0], sizes = [1, 64], strides = [1, 1]} : vector<8x64xf32> to vector<1x64xf32>
    %c2_58 = arith.constant 2 : index
    %c320_59 = arith.constant 320 : index
    %119 = vector.load %arg26[%c2_58, %c320_59] : memref<8x512xf32, #tpu.memory_space<vmem>>, vector<1x64xf32>
    tpu.vector_store %arg26[%c2_58, %c320_59], %118 {strides = array<i32>} : memref<8x512xf32, #tpu.memory_space<vmem>>, vector<1x64xf32>,
    %120 = vector.extract_strided_slice %107 {offsets = [6, 0], sizes = [1, 64], strides = [1, 1]} : vector<8x64xf32> to vector<1x64xf32>
    %c2_60 = arith.constant 2 : index
    %c384_61 = arith.constant 384 : index
    %121 = vector.load %arg26[%c2_60, %c384_61] : memref<8x512xf32, #tpu.memory_space<vmem>>, vector<1x64xf32>
    tpu.vector_store %arg26[%c2_60, %c384_61], %120 {strides = array<i32>} : memref<8x512xf32, #tpu.memory_space<vmem>>, vector<1x64xf32>,
    %122 = vector.extract_strided_slice %107 {offsets = [7, 0], sizes = [1, 64], strides = [1, 1]} : vector<8x64xf32> to vector<1x64xf32>
    %c2_62 = arith.constant 2 : index
    %c448_63 = arith.constant 448 : index
    %123 = vector.load %arg26[%c2_62, %c448_63] : memref<8x512xf32, #tpu.memory_space<vmem>>, vector<1x64xf32>
    tpu.vector_store %arg26[%c2_62, %c448_63], %122 {strides = array<i32>} : memref<8x512xf32, #tpu.memory_space<vmem>>, vector<1x64xf32>,
    %124 = vector.extract_strided_slice %18 {offsets = [0, 192], sizes = [8, 64], strides = [1, 1]} : vector<8x1536xf32> to vector<8x64xf32>
    %125 = vector.extract_strided_slice %18 {offsets = [0, 704], sizes = [8, 64], strides = [1, 1]} : vector<8x1536xf32> to vector<8x64xf32>
    %126 = vector.extract_strided_slice %18 {offsets = [0, 1216], sizes = [8, 64], strides = [1, 1]} : vector<8x1536xf32> to vector<8x64xf32>
    %cst_64 = arith.constant dense<0.000000e+00> : vector<8x8xf32>
    %127 = tpu.matmul %124, %125, %cst_64 {dimension_numbers = #tpu.dot_dimension_numbers<[1], [1], [0], [0], [0, 0, 1, 0], [], []>} : vector<8x64xf32>, vector<8x64xf32>, vector<8x8xf32> -> vector<8x8xf32>
    %128 = tpu.iota {dimensions = array<i32: 0>} : vector<8x8xi32>
    %129 = tpu.iota {dimensions = array<i32: 1>} : vector<8x8xi32>
    %130 = arith.cmpi eq, %128, %129 : vector<8x8xi32>
    %cst_65 = arith.constant 0xFF800000 : f32
    %131 = vector.broadcast %cst_65 : f32 to vector<8x8xf32>
    %132 = arith.select %130, %131, %127 : vector<8x8xi1>, vector<8x8xf32>
    %cst_66 = arith.constant dense<0xFF800000> : vector<8xf32>
    %133 = vector.multi_reduction <maximumf>, %132, %cst_66 [1] : vector<8x8xf32> to vector<8xf32>
    %134 = vector.shape_cast %133 : vector<8xf32> to vector<8x1xf32>
    %135 = vector.broadcast %134 : vector<8x1xf32> to vector<8x8xf32>
    %136 = arith.subf %132, %135 : vector<8x8xf32>
    %137 = math.exp %136 : vector<8x8xf32>
    %cst_67 = arith.constant dense<0.000000e+00> : vector<8xf32>
    %138 = vector.multi_reduction <add>, %137, %cst_67 [1] : vector<8x8xf32> to vector<8xf32>
    %139 = vector.shape_cast %138 : vector<8xf32> to vector<8x1xf32>
    %140 = vector.broadcast %139 : vector<8x1xf32> to vector<8x8xf32>
    %141 = arith.divf %137, %140 : vector<8x8xf32>
    %cst_68 = arith.constant dense<0.000000e+00> : vector<8x64xf32>
    %142 = tpu.matmul %141, %126, %cst_68 {dimension_numbers = #tpu.dot_dimension_numbers<[1], [0], [0], [1], [0, 0, 1, 1], [], []>} : vector<8x8xf32>, vector<8x64xf32>, vector<8x64xf32> -> vector<8x64xf32>
    %143 = vector.extract_strided_slice %142 {offsets = [0, 0], sizes = [1, 64], strides = [1, 1]} : vector<8x64xf32> to vector<1x64xf32>
    %c3 = arith.constant 3 : index
    %c0_69 = arith.constant 0 : index
    %144 = vector.load %arg26[%c3, %c0_69] : memref<8x512xf32, #tpu.memory_space<vmem>>, vector<1x64xf32>
    tpu.vector_store %arg26[%c3, %c0_69], %143 {strides = array<i32>} : memref<8x512xf32, #tpu.memory_space<vmem>>, vector<1x64xf32>,
    %145 = vector.extract_strided_slice %142 {offsets = [1, 0], sizes = [1, 64], strides = [1, 1]} : vector<8x64xf32> to vector<1x64xf32>
    %c3_70 = arith.constant 3 : index
    %c64_71 = arith.constant 64 : index
    %146 = vector.load %arg26[%c3_70, %c64_71] : memref<8x512xf32, #tpu.memory_space<vmem>>, vector<1x64xf32>
    tpu.vector_store %arg26[%c3_70, %c64_71], %145 {strides = array<i32>} : memref<8x512xf32, #tpu.memory_space<vmem>>, vector<1x64xf32>,
    %147 = vector.extract_strided_slice %142 {offsets = [2, 0], sizes = [1, 64], strides = [1, 1]} : vector<8x64xf32> to vector<1x64xf32>
    %c3_72 = arith.constant 3 : index
    %c128_73 = arith.constant 128 : index
    %148 = vector.load %arg26[%c3_72, %c128_73] : memref<8x512xf32, #tpu.memory_space<vmem>>, vector<1x64xf32>
    tpu.vector_store %arg26[%c3_72, %c128_73], %147 {strides = array<i32>} : memref<8x512xf32, #tpu.memory_space<vmem>>, vector<1x64xf32>,
    %149 = vector.extract_strided_slice %142 {offsets = [3, 0], sizes = [1, 64], strides = [1, 1]} : vector<8x64xf32> to vector<1x64xf32>
    %c3_74 = arith.constant 3 : index
    %c192_75 = arith.constant 192 : index
    %150 = vector.load %arg26[%c3_74, %c192_75] : memref<8x512xf32, #tpu.memory_space<vmem>>, vector<1x64xf32>
    tpu.vector_store %arg26[%c3_74, %c192_75], %149 {strides = array<i32>} : memref<8x512xf32, #tpu.memory_space<vmem>>, vector<1x64xf32>,
    %151 = vector.extract_strided_slice %142 {offsets = [4, 0], sizes = [1, 64], strides = [1, 1]} : vector<8x64xf32> to vector<1x64xf32>
    %c3_76 = arith.constant 3 : index
    %c256_77 = arith.constant 256 : index
    %152 = vector.load %arg26[%c3_76, %c256_77] : memref<8x512xf32, #tpu.memory_space<vmem>>, vector<1x64xf32>
    tpu.vector_store %arg26[%c3_76, %c256_77], %151 {strides = array<i32>} : memref<8x512xf32, #tpu.memory_space<vmem>>, vector<1x64xf32>,
    %153 = vector.extract_strided_slice %142 {offsets = [5, 0], sizes = [1, 64], strides = [1, 1]} : vector<8x64xf32> to vector<1x64xf32>
    %c3_78 = arith.constant 3 : index
    %c320_79 = arith.constant 320 : index
    %154 = vector.load %arg26[%c3_78, %c320_79] : memref<8x512xf32, #tpu.memory_space<vmem>>, vector<1x64xf32>
    tpu.vector_store %arg26[%c3_78, %c320_79], %153 {strides = array<i32>} : memref<8x512xf32, #tpu.memory_space<vmem>>, vector<1x64xf32>,
    %155 = vector.extract_strided_slice %142 {offsets = [6, 0], sizes = [1, 64], strides = [1, 1]} : vector<8x64xf32> to vector<1x64xf32>
    %c3_80 = arith.constant 3 : index
    %c384_81 = arith.constant 384 : index
    %156 = vector.load %arg26[%c3_80, %c384_81] : memref<8x512xf32, #tpu.memory_space<vmem>>, vector<1x64xf32>
    tpu.vector_store %arg26[%c3_80, %c384_81], %155 {strides = array<i32>} : memref<8x512xf32, #tpu.memory_space<vmem>>, vector<1x64xf32>,
    %157 = vector.extract_strided_slice %142 {offsets = [7, 0], sizes = [1, 64], strides = [1, 1]} : vector<8x64xf32> to vector<1x64xf32>
    %c3_82 = arith.constant 3 : index
    %c448_83 = arith.constant 448 : index
    %158 = vector.load %arg26[%c3_82, %c448_83] : memref<8x512xf32, #tpu.memory_space<vmem>>, vector<1x64xf32>
    tpu.vector_store %arg26[%c3_82, %c448_83], %157 {strides = array<i32>} : memref<8x512xf32, #tpu.memory_space<vmem>>, vector<1x64xf32>,
    %159 = vector.extract_strided_slice %18 {offsets = [0, 256], sizes = [8, 64], strides = [1, 1]} : vector<8x1536xf32> to vector<8x64xf32>
    %160 = vector.extract_strided_slice %18 {offsets = [0, 768], sizes = [8, 64], strides = [1, 1]} : vector<8x1536xf32> to vector<8x64xf32>
    %161 = vector.extract_strided_slice %18 {offsets = [0, 1280], sizes = [8, 64], strides = [1, 1]} : vector<8x1536xf32> to vector<8x64xf32>
    %cst_84 = arith.constant dense<0.000000e+00> : vector<8x8xf32>
    %162 = tpu.matmul %159, %160, %cst_84 {dimension_numbers = #tpu.dot_dimension_numbers<[1], [1], [0], [0], [0, 0, 1, 0], [], []>} : vector<8x64xf32>, vector<8x64xf32>, vector<8x8xf32> -> vector<8x8xf32>
    %163 = tpu.iota {dimensions = array<i32: 0>} : vector<8x8xi32>
    %164 = tpu.iota {dimensions = array<i32: 1>} : vector<8x8xi32>
    %165 = arith.cmpi eq, %163, %164 : vector<8x8xi32>
    %cst_85 = arith.constant 0xFF800000 : f32
    %166 = vector.broadcast %cst_85 : f32 to vector<8x8xf32>
    %167 = arith.select %165, %166, %162 : vector<8x8xi1>, vector<8x8xf32>
    %cst_86 = arith.constant dense<0xFF800000> : vector<8xf32>
    %168 = vector.multi_reduction <maximumf>, %167, %cst_86 [1] : vector<8x8xf32> to vector<8xf32>
    %169 = vector.shape_cast %168 : vector<8xf32> to vector<8x1xf32>
    %170 = vector.broadcast %169 : vector<8x1xf32> to vector<8x8xf32>
    %171 = arith.subf %167, %170 : vector<8x8xf32>
    %172 = math.exp %171 : vector<8x8xf32>
    %cst_87 = arith.constant dense<0.000000e+00> : vector<8xf32>
    %173 = vector.multi_reduction <add>, %172, %cst_87 [1] : vector<8x8xf32> to vector<8xf32>
    %174 = vector.shape_cast %173 : vector<8xf32> to vector<8x1xf32>
    %175 = vector.broadcast %174 : vector<8x1xf32> to vector<8x8xf32>
    %176 = arith.divf %172, %175 : vector<8x8xf32>
    %cst_88 = arith.constant dense<0.000000e+00> : vector<8x64xf32>
    %177 = tpu.matmul %176, %161, %cst_88 {dimension_numbers = #tpu.dot_dimension_numbers<[1], [0], [0], [1], [0, 0, 1, 1], [], []>} : vector<8x8xf32>, vector<8x64xf32>, vector<8x64xf32> -> vector<8x64xf32>
    %178 = vector.extract_strided_slice %177 {offsets = [0, 0], sizes = [1, 64], strides = [1, 1]} : vector<8x64xf32> to vector<1x64xf32>
    %c4 = arith.constant 4 : index
    %c0_89 = arith.constant 0 : index
    %179 = vector.load %arg26[%c4, %c0_89] : memref<8x512xf32, #tpu.memory_space<vmem>>, vector<1x64xf32>
    tpu.vector_store %arg26[%c4, %c0_89], %178 {strides = array<i32>} : memref<8x512xf32, #tpu.memory_space<vmem>>, vector<1x64xf32>,
    %180 = vector.extract_strided_slice %177 {offsets = [1, 0], sizes = [1, 64], strides = [1, 1]} : vector<8x64xf32> to vector<1x64xf32>
    %c4_90 = arith.constant 4 : index
    %c64_91 = arith.constant 64 : index
    %181 = vector.load %arg26[%c4_90, %c64_91] : memref<8x512xf32, #tpu.memory_space<vmem>>, vector<1x64xf32>
    tpu.vector_store %arg26[%c4_90, %c64_91], %180 {strides = array<i32>} : memref<8x512xf32, #tpu.memory_space<vmem>>, vector<1x64xf32>,
    %182 = vector.extract_strided_slice %177 {offsets = [2, 0], sizes = [1, 64], strides = [1, 1]} : vector<8x64xf32> to vector<1x64xf32>
    %c4_92 = arith.constant 4 : index
    %c128_93 = arith.constant 128 : index
    %183 = vector.load %arg26[%c4_92, %c128_93] : memref<8x512xf32, #tpu.memory_space<vmem>>, vector<1x64xf32>
    tpu.vector_store %arg26[%c4_92, %c128_93], %182 {strides = array<i32>} : memref<8x512xf32, #tpu.memory_space<vmem>>, vector<1x64xf32>,
    %184 = vector.extract_strided_slice %177 {offsets = [3, 0], sizes = [1, 64], strides = [1, 1]} : vector<8x64xf32> to vector<1x64xf32>
    %c4_94 = arith.constant 4 : index
    %c192_95 = arith.constant 192 : index
    %185 = vector.load %arg26[%c4_94, %c192_95] : memref<8x512xf32, #tpu.memory_space<vmem>>, vector<1x64xf32>
    tpu.vector_store %arg26[%c4_94, %c192_95], %184 {strides = array<i32>} : memref<8x512xf32, #tpu.memory_space<vmem>>, vector<1x64xf32>,
    %186 = vector.extract_strided_slice %177 {offsets = [4, 0], sizes = [1, 64], strides = [1, 1]} : vector<8x64xf32> to vector<1x64xf32>
    %c4_96 = arith.constant 4 : index
    %c256_97 = arith.constant 256 : index
    %187 = vector.load %arg26[%c4_96, %c256_97] : memref<8x512xf32, #tpu.memory_space<vmem>>, vector<1x64xf32>
    tpu.vector_store %arg26[%c4_96, %c256_97], %186 {strides = array<i32>} : memref<8x512xf32, #tpu.memory_space<vmem>>, vector<1x64xf32>,
    %188 = vector.extract_strided_slice %177 {offsets = [5, 0], sizes = [1, 64], strides = [1, 1]} : vector<8x64xf32> to vector<1x64xf32>
    %c4_98 = arith.constant 4 : index
    %c320_99 = arith.constant 320 : index
    %189 = vector.load %arg26[%c4_98, %c320_99] : memref<8x512xf32, #tpu.memory_space<vmem>>, vector<1x64xf32>
    tpu.vector_store %arg26[%c4_98, %c320_99], %188 {strides = array<i32>} : memref<8x512xf32, #tpu.memory_space<vmem>>, vector<1x64xf32>,
    %190 = vector.extract_strided_slice %177 {offsets = [6, 0], sizes = [1, 64], strides = [1, 1]} : vector<8x64xf32> to vector<1x64xf32>
    %c4_100 = arith.constant 4 : index
    %c384_101 = arith.constant 384 : index
    %191 = vector.load %arg26[%c4_100, %c384_101] : memref<8x512xf32, #tpu.memory_space<vmem>>, vector<1x64xf32>
    tpu.vector_store %arg26[%c4_100, %c384_101], %190 {strides = array<i32>} : memref<8x512xf32, #tpu.memory_space<vmem>>, vector<1x64xf32>,
    %192 = vector.extract_strided_slice %177 {offsets = [7, 0], sizes = [1, 64], strides = [1, 1]} : vector<8x64xf32> to vector<1x64xf32>
    %c4_102 = arith.constant 4 : index
    %c448_103 = arith.constant 448 : index
    %193 = vector.load %arg26[%c4_102, %c448_103] : memref<8x512xf32, #tpu.memory_space<vmem>>, vector<1x64xf32>
    tpu.vector_store %arg26[%c4_102, %c448_103], %192 {strides = array<i32>} : memref<8x512xf32, #tpu.memory_space<vmem>>, vector<1x64xf32>,
    %194 = vector.extract_strided_slice %18 {offsets = [0, 320], sizes = [8, 64], strides = [1, 1]} : vector<8x1536xf32> to vector<8x64xf32>
    %195 = vector.extract_strided_slice %18 {offsets = [0, 832], sizes = [8, 64], strides = [1, 1]} : vector<8x1536xf32> to vector<8x64xf32>
    %196 = vector.extract_strided_slice %18 {offsets = [0, 1344], sizes = [8, 64], strides = [1, 1]} : vector<8x1536xf32> to vector<8x64xf32>
    %cst_104 = arith.constant dense<0.000000e+00> : vector<8x8xf32>
    %197 = tpu.matmul %194, %195, %cst_104 {dimension_numbers = #tpu.dot_dimension_numbers<[1], [1], [0], [0], [0, 0, 1, 0], [], []>} : vector<8x64xf32>, vector<8x64xf32>, vector<8x8xf32> -> vector<8x8xf32>
    %198 = tpu.iota {dimensions = array<i32: 0>} : vector<8x8xi32>
    %199 = tpu.iota {dimensions = array<i32: 1>} : vector<8x8xi32>
    %200 = arith.cmpi eq, %198, %199 : vector<8x8xi32>
    %cst_105 = arith.constant 0xFF800000 : f32
    %201 = vector.broadcast %cst_105 : f32 to vector<8x8xf32>
    %202 = arith.select %200, %201, %197 : vector<8x8xi1>, vector<8x8xf32>
    %cst_106 = arith.constant dense<0xFF800000> : vector<8xf32>
    %203 = vector.multi_reduction <maximumf>, %202, %cst_106 [1] : vector<8x8xf32> to vector<8xf32>
    %204 = vector.shape_cast %203 : vector<8xf32> to vector<8x1xf32>
    %205 = vector.broadcast %204 : vector<8x1xf32> to vector<8x8xf32>
    %206 = arith.subf %202, %205 : vector<8x8xf32>
    %207 = math.exp %206 : vector<8x8xf32>
    %cst_107 = arith.constant dense<0.000000e+00> : vector<8xf32>
    %208 = vector.multi_reduction <add>, %207, %cst_107 [1] : vector<8x8xf32> to vector<8xf32>
    %209 = vector.shape_cast %208 : vector<8xf32> to vector<8x1xf32>
    %210 = vector.broadcast %209 : vector<8x1xf32> to vector<8x8xf32>
    %211 = arith.divf %207, %210 : vector<8x8xf32>
    %cst_108 = arith.constant dense<0.000000e+00> : vector<8x64xf32>
    %212 = tpu.matmul %211, %196, %cst_108 {dimension_numbers = #tpu.dot_dimension_numbers<[1], [0], [0], [1], [0, 0, 1, 1], [], []>} : vector<8x8xf32>, vector<8x64xf32>, vector<8x64xf32> -> vector<8x64xf32>
    %213 = vector.extract_strided_slice %212 {offsets = [0, 0], sizes = [1, 64], strides = [1, 1]} : vector<8x64xf32> to vector<1x64xf32>
    %c5 = arith.constant 5 : index
    %c0_109 = arith.constant 0 : index
    %214 = vector.load %arg26[%c5, %c0_109] : memref<8x512xf32, #tpu.memory_space<vmem>>, vector<1x64xf32>
    tpu.vector_store %arg26[%c5, %c0_109], %213 {strides = array<i32>} : memref<8x512xf32, #tpu.memory_space<vmem>>, vector<1x64xf32>,
    %215 = vector.extract_strided_slice %212 {offsets = [1, 0], sizes = [1, 64], strides = [1, 1]} : vector<8x64xf32> to vector<1x64xf32>
    %c5_110 = arith.constant 5 : index
    %c64_111 = arith.constant 64 : index
    %216 = vector.load %arg26[%c5_110, %c64_111] : memref<8x512xf32, #tpu.memory_space<vmem>>, vector<1x64xf32>
    tpu.vector_store %arg26[%c5_110, %c64_111], %215 {strides = array<i32>} : memref<8x512xf32, #tpu.memory_space<vmem>>, vector<1x64xf32>,
    %217 = vector.extract_strided_slice %212 {offsets = [2, 0], sizes = [1, 64], strides = [1, 1]} : vector<8x64xf32> to vector<1x64xf32>
    %c5_112 = arith.constant 5 : index
    %c128_113 = arith.constant 128 : index
    %218 = vector.load %arg26[%c5_112, %c128_113] : memref<8x512xf32, #tpu.memory_space<vmem>>, vector<1x64xf32>
    tpu.vector_store %arg26[%c5_112, %c128_113], %217 {strides = array<i32>} : memref<8x512xf32, #tpu.memory_space<vmem>>, vector<1x64xf32>,
    %219 = vector.extract_strided_slice %212 {offsets = [3, 0], sizes = [1, 64], strides = [1, 1]} : vector<8x64xf32> to vector<1x64xf32>
    %c5_114 = arith.constant 5 : index
    %c192_115 = arith.constant 192 : index
    %220 = vector.load %arg26[%c5_114, %c192_115] : memref<8x512xf32, #tpu.memory_space<vmem>>, vector<1x64xf32>
    tpu.vector_store %arg26[%c5_114, %c192_115], %219 {strides = array<i32>} : memref<8x512xf32, #tpu.memory_space<vmem>>, vector<1x64xf32>,
    %221 = vector.extract_strided_slice %212 {offsets = [4, 0], sizes = [1, 64], strides = [1, 1]} : vector<8x64xf32> to vector<1x64xf32>
    %c5_116 = arith.constant 5 : index
    %c256_117 = arith.constant 256 : index
    %222 = vector.load %arg26[%c5_116, %c256_117] : memref<8x512xf32, #tpu.memory_space<vmem>>, vector<1x64xf32>
    tpu.vector_store %arg26[%c5_116, %c256_117], %221 {strides = array<i32>} : memref<8x512xf32, #tpu.memory_space<vmem>>, vector<1x64xf32>,
    %223 = vector.extract_strided_slice %212 {offsets = [5, 0], sizes = [1, 64], strides = [1, 1]} : vector<8x64xf32> to vector<1x64xf32>
    %c5_118 = arith.constant 5 : index
    %c320_119 = arith.constant 320 : index
    %224 = vector.load %arg26[%c5_118, %c320_119] : memref<8x512xf32, #tpu.memory_space<vmem>>, vector<1x64xf32>
    tpu.vector_store %arg26[%c5_118, %c320_119], %223 {strides = array<i32>} : memref<8x512xf32, #tpu.memory_space<vmem>>, vector<1x64xf32>,
    %225 = vector.extract_strided_slice %212 {offsets = [6, 0], sizes = [1, 64], strides = [1, 1]} : vector<8x64xf32> to vector<1x64xf32>
    %c5_120 = arith.constant 5 : index
    %c384_121 = arith.constant 384 : index
    %226 = vector.load %arg26[%c5_120, %c384_121] : memref<8x512xf32, #tpu.memory_space<vmem>>, vector<1x64xf32>
    tpu.vector_store %arg26[%c5_120, %c384_121], %225 {strides = array<i32>} : memref<8x512xf32, #tpu.memory_space<vmem>>, vector<1x64xf32>,
    %227 = vector.extract_strided_slice %212 {offsets = [7, 0], sizes = [1, 64], strides = [1, 1]} : vector<8x64xf32> to vector<1x64xf32>
    %c5_122 = arith.constant 5 : index
    %c448_123 = arith.constant 448 : index
    %228 = vector.load %arg26[%c5_122, %c448_123] : memref<8x512xf32, #tpu.memory_space<vmem>>, vector<1x64xf32>
    tpu.vector_store %arg26[%c5_122, %c448_123], %227 {strides = array<i32>} : memref<8x512xf32, #tpu.memory_space<vmem>>, vector<1x64xf32>,
    %229 = vector.extract_strided_slice %18 {offsets = [0, 384], sizes = [8, 64], strides = [1, 1]} : vector<8x1536xf32> to vector<8x64xf32>
    %230 = vector.extract_strided_slice %18 {offsets = [0, 896], sizes = [8, 64], strides = [1, 1]} : vector<8x1536xf32> to vector<8x64xf32>
    %231 = vector.extract_strided_slice %18 {offsets = [0, 1408], sizes = [8, 64], strides = [1, 1]} : vector<8x1536xf32> to vector<8x64xf32>
    %cst_124 = arith.constant dense<0.000000e+00> : vector<8x8xf32>
    %232 = tpu.matmul %229, %230, %cst_124 {dimension_numbers = #tpu.dot_dimension_numbers<[1], [1], [0], [0], [0, 0, 1, 0], [], []>} : vector<8x64xf32>, vector<8x64xf32>, vector<8x8xf32> -> vector<8x8xf32>
    %233 = tpu.iota {dimensions = array<i32: 0>} : vector<8x8xi32>
    %234 = tpu.iota {dimensions = array<i32: 1>} : vector<8x8xi32>
    %235 = arith.cmpi eq, %233, %234 : vector<8x8xi32>
    %cst_125 = arith.constant 0xFF800000 : f32
    %236 = vector.broadcast %cst_125 : f32 to vector<8x8xf32>
    %237 = arith.select %235, %236, %232 : vector<8x8xi1>, vector<8x8xf32>
    %cst_126 = arith.constant dense<0xFF800000> : vector<8xf32>
    %238 = vector.multi_reduction <maximumf>, %237, %cst_126 [1] : vector<8x8xf32> to vector<8xf32>
    %239 = vector.shape_cast %238 : vector<8xf32> to vector<8x1xf32>
    %240 = vector.broadcast %239 : vector<8x1xf32> to vector<8x8xf32>
    %241 = arith.subf %237, %240 : vector<8x8xf32>
    %242 = math.exp %241 : vector<8x8xf32>
    %cst_127 = arith.constant dense<0.000000e+00> : vector<8xf32>
    %243 = vector.multi_reduction <add>, %242, %cst_127 [1] : vector<8x8xf32> to vector<8xf32>
    %244 = vector.shape_cast %243 : vector<8xf32> to vector<8x1xf32>
    %245 = vector.broadcast %244 : vector<8x1xf32> to vector<8x8xf32>
    %246 = arith.divf %242, %245 : vector<8x8xf32>
    %cst_128 = arith.constant dense<0.000000e+00> : vector<8x64xf32>
    %247 = tpu.matmul %246, %231, %cst_128 {dimension_numbers = #tpu.dot_dimension_numbers<[1], [0], [0], [1], [0, 0, 1, 1], [], []>} : vector<8x8xf32>, vector<8x64xf32>, vector<8x64xf32> -> vector<8x64xf32>
    %248 = vector.extract_strided_slice %247 {offsets = [0, 0], sizes = [1, 64], strides = [1, 1]} : vector<8x64xf32> to vector<1x64xf32>
    %c6 = arith.constant 6 : index
    %c0_129 = arith.constant 0 : index
    %249 = vector.load %arg26[%c6, %c0_129] : memref<8x512xf32, #tpu.memory_space<vmem>>, vector<1x64xf32>
    tpu.vector_store %arg26[%c6, %c0_129], %248 {strides = array<i32>} : memref<8x512xf32, #tpu.memory_space<vmem>>, vector<1x64xf32>,
    %250 = vector.extract_strided_slice %247 {offsets = [1, 0], sizes = [1, 64], strides = [1, 1]} : vector<8x64xf32> to vector<1x64xf32>
    %c6_130 = arith.constant 6 : index
    %c64_131 = arith.constant 64 : index
    %251 = vector.load %arg26[%c6_130, %c64_131] : memref<8x512xf32, #tpu.memory_space<vmem>>, vector<1x64xf32>
    tpu.vector_store %arg26[%c6_130, %c64_131], %250 {strides = array<i32>} : memref<8x512xf32, #tpu.memory_space<vmem>>, vector<1x64xf32>,
    %252 = vector.extract_strided_slice %247 {offsets = [2, 0], sizes = [1, 64], strides = [1, 1]} : vector<8x64xf32> to vector<1x64xf32>
    %c6_132 = arith.constant 6 : index
    %c128_133 = arith.constant 128 : index
    %253 = vector.load %arg26[%c6_132, %c128_133] : memref<8x512xf32, #tpu.memory_space<vmem>>, vector<1x64xf32>
    tpu.vector_store %arg26[%c6_132, %c128_133], %252 {strides = array<i32>} : memref<8x512xf32, #tpu.memory_space<vmem>>, vector<1x64xf32>,
    %254 = vector.extract_strided_slice %247 {offsets = [3, 0], sizes = [1, 64], strides = [1, 1]} : vector<8x64xf32> to vector<1x64xf32>
    %c6_134 = arith.constant 6 : index
    %c192_135 = arith.constant 192 : index
    %255 = vector.load %arg26[%c6_134, %c192_135] : memref<8x512xf32, #tpu.memory_space<vmem>>, vector<1x64xf32>
    tpu.vector_store %arg26[%c6_134, %c192_135], %254 {strides = array<i32>} : memref<8x512xf32, #tpu.memory_space<vmem>>, vector<1x64xf32>,
    %256 = vector.extract_strided_slice %247 {offsets = [4, 0], sizes = [1, 64], strides = [1, 1]} : vector<8x64xf32> to vector<1x64xf32>
    %c6_136 = arith.constant 6 : index
    %c256_137 = arith.constant 256 : index
    %257 = vector.load %arg26[%c6_136, %c256_137] : memref<8x512xf32, #tpu.memory_space<vmem>>, vector<1x64xf32>
    tpu.vector_store %arg26[%c6_136, %c256_137], %256 {strides = array<i32>} : memref<8x512xf32, #tpu.memory_space<vmem>>, vector<1x64xf32>,
    %258 = vector.extract_strided_slice %247 {offsets = [5, 0], sizes = [1, 64], strides = [1, 1]} : vector<8x64xf32> to vector<1x64xf32>
    %c6_138 = arith.constant 6 : index
    %c320_139 = arith.constant 320 : index
    %259 = vector.load %arg26[%c6_138, %c320_139] : memref<8x512xf32, #tpu.memory_space<vmem>>, vector<1x64xf32>
    tpu.vector_store %arg26[%c6_138, %c320_139], %258 {strides = array<i32>} : memref<8x512xf32, #tpu.memory_space<vmem>>, vector<1x64xf32>,
    %260 = vector.extract_strided_slice %247 {offsets = [6, 0], sizes = [1, 64], strides = [1, 1]} : vector<8x64xf32> to vector<1x64xf32>
    %c6_140 = arith.constant 6 : index
    %c384_141 = arith.constant 384 : index
    %261 = vector.load %arg26[%c6_140, %c384_141] : memref<8x512xf32, #tpu.memory_space<vmem>>, vector<1x64xf32>
    tpu.vector_store %arg26[%c6_140, %c384_141], %260 {strides = array<i32>} : memref<8x512xf32, #tpu.memory_space<vmem>>, vector<1x64xf32>,
    %262 = vector.extract_strided_slice %247 {offsets = [7, 0], sizes = [1, 64], strides = [1, 1]} : vector<8x64xf32> to vector<1x64xf32>
    %c6_142 = arith.constant 6 : index
    %c448_143 = arith.constant 448 : index
    %263 = vector.load %arg26[%c6_142, %c448_143] : memref<8x512xf32, #tpu.memory_space<vmem>>, vector<1x64xf32>
    tpu.vector_store %arg26[%c6_142, %c448_143], %262 {strides = array<i32>} : memref<8x512xf32, #tpu.memory_space<vmem>>, vector<1x64xf32>,
    %264 = vector.extract_strided_slice %18 {offsets = [0, 448], sizes = [8, 64], strides = [1, 1]} : vector<8x1536xf32> to vector<8x64xf32>
    %265 = vector.extract_strided_slice %18 {offsets = [0, 960], sizes = [8, 64], strides = [1, 1]} : vector<8x1536xf32> to vector<8x64xf32>
    %266 = vector.extract_strided_slice %18 {offsets = [0, 1472], sizes = [8, 64], strides = [1, 1]} : vector<8x1536xf32> to vector<8x64xf32>
    %cst_144 = arith.constant dense<0.000000e+00> : vector<8x8xf32>
    %267 = tpu.matmul %264, %265, %cst_144 {dimension_numbers = #tpu.dot_dimension_numbers<[1], [1], [0], [0], [0, 0, 1, 0], [], []>} : vector<8x64xf32>, vector<8x64xf32>, vector<8x8xf32> -> vector<8x8xf32>
    %268 = tpu.iota {dimensions = array<i32: 0>} : vector<8x8xi32>
    %269 = tpu.iota {dimensions = array<i32: 1>} : vector<8x8xi32>
    %270 = arith.cmpi eq, %268, %269 : vector<8x8xi32>
    %cst_145 = arith.constant 0xFF800000 : f32
    %271 = vector.broadcast %cst_145 : f32 to vector<8x8xf32>
    %272 = arith.select %270, %271, %267 : vector<8x8xi1>, vector<8x8xf32>
    %cst_146 = arith.constant dense<0xFF800000> : vector<8xf32>
    %273 = vector.multi_reduction <maximumf>, %272, %cst_146 [1] : vector<8x8xf32> to vector<8xf32>
    %274 = vector.shape_cast %273 : vector<8xf32> to vector<8x1xf32>
    %275 = vector.broadcast %274 : vector<8x1xf32> to vector<8x8xf32>
    %276 = arith.subf %272, %275 : vector<8x8xf32>
    %277 = math.exp %276 : vector<8x8xf32>
    %cst_147 = arith.constant dense<0.000000e+00> : vector<8xf32>
    %278 = vector.multi_reduction <add>, %277, %cst_147 [1] : vector<8x8xf32> to vector<8xf32>
    %279 = vector.shape_cast %278 : vector<8xf32> to vector<8x1xf32>
    %280 = vector.broadcast %279 : vector<8x1xf32> to vector<8x8xf32>
    %281 = arith.divf %277, %280 : vector<8x8xf32>
    %cst_148 = arith.constant dense<0.000000e+00> : vector<8x64xf32>
    %282 = tpu.matmul %281, %266, %cst_148 {dimension_numbers = #tpu.dot_dimension_numbers<[1], [0], [0], [1], [0, 0, 1, 1], [], []>} : vector<8x8xf32>, vector<8x64xf32>, vector<8x64xf32> -> vector<8x64xf32>
    %283 = vector.extract_strided_slice %282 {offsets = [0, 0], sizes = [1, 64], strides = [1, 1]} : vector<8x64xf32> to vector<1x64xf32>
    %c7 = arith.constant 7 : index
    %c0_149 = arith.constant 0 : index
    %284 = vector.load %arg26[%c7, %c0_149] : memref<8x512xf32, #tpu.memory_space<vmem>>, vector<1x64xf32>
    tpu.vector_store %arg26[%c7, %c0_149], %283 {strides = array<i32>} : memref<8x512xf32, #tpu.memory_space<vmem>>, vector<1x64xf32>,
    %285 = vector.extract_strided_slice %282 {offsets = [1, 0], sizes = [1, 64], strides = [1, 1]} : vector<8x64xf32> to vector<1x64xf32>
    %c7_150 = arith.constant 7 : index
    %c64_151 = arith.constant 64 : index
    %286 = vector.load %arg26[%c7_150, %c64_151] : memref<8x512xf32, #tpu.memory_space<vmem>>, vector<1x64xf32>
    tpu.vector_store %arg26[%c7_150, %c64_151], %285 {strides = array<i32>} : memref<8x512xf32, #tpu.memory_space<vmem>>, vector<1x64xf32>,
    %287 = vector.extract_strided_slice %282 {offsets = [2, 0], sizes = [1, 64], strides = [1, 1]} : vector<8x64xf32> to vector<1x64xf32>
    %c7_152 = arith.constant 7 : index
    %c128_153 = arith.constant 128 : index
    %288 = vector.load %arg26[%c7_152, %c128_153] : memref<8x512xf32, #tpu.memory_space<vmem>>, vector<1x64xf32>
    tpu.vector_store %arg26[%c7_152, %c128_153], %287 {strides = array<i32>} : memref<8x512xf32, #tpu.memory_space<vmem>>, vector<1x64xf32>,
    %289 = vector.extract_strided_slice %282 {offsets = [3, 0], sizes = [1, 64], strides = [1, 1]} : vector<8x64xf32> to vector<1x64xf32>
    %c7_154 = arith.constant 7 : index
    %c192_155 = arith.constant 192 : index
    %290 = vector.load %arg26[%c7_154, %c192_155] : memref<8x512xf32, #tpu.memory_space<vmem>>, vector<1x64xf32>
    tpu.vector_store %arg26[%c7_154, %c192_155], %289 {strides = array<i32>} : memref<8x512xf32, #tpu.memory_space<vmem>>, vector<1x64xf32>,
    %291 = vector.extract_strided_slice %282 {offsets = [4, 0], sizes = [1, 64], strides = [1, 1]} : vector<8x64xf32> to vector<1x64xf32>
    %c7_156 = arith.constant 7 : index
    %c256_157 = arith.constant 256 : index
    %292 = vector.load %arg26[%c7_156, %c256_157] : memref<8x512xf32, #tpu.memory_space<vmem>>, vector<1x64xf32>
    tpu.vector_store %arg26[%c7_156, %c256_157], %291 {strides = array<i32>} : memref<8x512xf32, #tpu.memory_space<vmem>>, vector<1x64xf32>,
    %293 = vector.extract_strided_slice %282 {offsets = [5, 0], sizes = [1, 64], strides = [1, 1]} : vector<8x64xf32> to vector<1x64xf32>
    %c7_158 = arith.constant 7 : index
    %c320_159 = arith.constant 320 : index
    %294 = vector.load %arg26[%c7_158, %c320_159] : memref<8x512xf32, #tpu.memory_space<vmem>>, vector<1x64xf32>
    tpu.vector_store %arg26[%c7_158, %c320_159], %293 {strides = array<i32>} : memref<8x512xf32, #tpu.memory_space<vmem>>, vector<1x64xf32>,
    %295 = vector.extract_strided_slice %282 {offsets = [6, 0], sizes = [1, 64], strides = [1, 1]} : vector<8x64xf32> to vector<1x64xf32>
    %c7_160 = arith.constant 7 : index
    %c384_161 = arith.constant 384 : index
    %296 = vector.load %arg26[%c7_160, %c384_161] : memref<8x512xf32, #tpu.memory_space<vmem>>, vector<1x64xf32>
    tpu.vector_store %arg26[%c7_160, %c384_161], %295 {strides = array<i32>} : memref<8x512xf32, #tpu.memory_space<vmem>>, vector<1x64xf32>,
    %297 = vector.extract_strided_slice %282 {offsets = [7, 0], sizes = [1, 64], strides = [1, 1]} : vector<8x64xf32> to vector<1x64xf32>
    %c7_162 = arith.constant 7 : index
    %c448_163 = arith.constant 448 : index
    %298 = vector.load %arg26[%c7_162, %c448_163] : memref<8x512xf32, #tpu.memory_space<vmem>>, vector<1x64xf32>
    tpu.vector_store %arg26[%c7_162, %c448_163], %297 {strides = array<i32>} : memref<8x512xf32, #tpu.memory_space<vmem>>, vector<1x64xf32>,
    %c0_i32_164 = arith.constant 0 : i32
    %299 = tpu.memref_slice %arg30[%c0_i32_164] : memref<3x!tpu.dma_semaphore, #tpu.memory_space<semaphore_mem>> -> memref<1x!tpu.dma_semaphore, #tpu.memory_space<semaphore_mem>>
    %300 = tpu.memref_squeeze %299 : memref<1x!tpu.dma_semaphore, #tpu.memory_space<semaphore_mem>> -> memref<!tpu.dma_semaphore, #tpu.memory_space<semaphore_mem>>
    tpu.wait_dma2 semaphore(%300 : memref<!tpu.dma_semaphore, #tpu.memory_space<semaphore_mem>>) src(%arg22 : memref<512x512xbf16, #tpu.memory_space<any>>) dst(%arg27 : memref<512x512xbf16, #tpu.memory_space<vmem>>)
    %c0_165 = arith.constant 0 : index
    %c0_166 = arith.constant 0 : index
    %301 = vector.load %arg26[%c0_165, %c0_166] : memref<8x512xf32, #tpu.memory_space<vmem>>, vector<8x512xf32>
    %302 = arith.truncf %301 : vector<8x512xf32> to vector<8x512xbf16>
    %c0_167 = arith.constant 0 : index
    %c0_168 = arith.constant 0 : index
    %303 = vector.load %arg27[%c0_167, %c0_168] : memref<512x512xbf16, #tpu.memory_space<vmem>>, vector<512x512xbf16>
    %cst_169 = arith.constant dense<0.000000e+00> : vector<8x512xf32>
    %304 = tpu.matmul %302, %303, %cst_169 {dimension_numbers = #tpu.dot_dimension_numbers<[1], [0], [0], [1], [0, 0, 1, 1], [], []>} : vector<8x512xbf16>, vector<512x512xbf16>, vector<8x512xf32> -> vector<8x512xf32>
    %305 = arith.addf %12, %304 : vector<8x512xf32>
    %c0_170 = arith.constant 0 : index
    %c0_171 = arith.constant 0 : index
    %306 = vector.load %arg5[%c0_170, %c0_171] : memref<1x512xf32, #tpu.memory_space<vmem>>, vector<1x512xf32>
    %307 = vector.broadcast %306 : vector<1x512xf32> to vector<8x512xf32>
    %308 = arith.addf %305, %307 : vector<8x512xf32>
    %cst_172 = arith.constant dense<0.000000e+00> : vector<8xf32>
    %309 = vector.multi_reduction <add>, %308, %cst_172 [1] : vector<8x512xf32> to vector<8xf32>
    %310 = vector.shape_cast %309 : vector<8xf32> to vector<8x1xf32>
    %cst_173 = arith.constant 5.120000e+02 : f32
    %311 = vector.broadcast %cst_173 : f32 to vector<8x1xf32>
    %312 = arith.divf %310, %311 : vector<8x1xf32>
    %313 = vector.broadcast %312 : vector<8x1xf32> to vector<8x512xf32>
    %314 = arith.subf %308, %313 : vector<8x512xf32>
    %315 = arith.mulf %314, %314 : vector<8x512xf32>
    %cst_174 = arith.constant dense<0.000000e+00> : vector<8xf32>
    %316 = vector.multi_reduction <add>, %315, %cst_174 [1] : vector<8x512xf32> to vector<8xf32>
    %317 = vector.shape_cast %316 : vector<8xf32> to vector<8x1xf32>
    %cst_175 = arith.constant 5.120000e+02 : f32
    %318 = vector.broadcast %cst_175 : f32 to vector<8x1xf32>
    %319 = arith.divf %317, %318 : vector<8x1xf32>
    %320 = vector.broadcast %312 : vector<8x1xf32> to vector<8x512xf32>
    %321 = arith.subf %308, %320 : vector<8x512xf32>
    %cst_176 = arith.constant 9.99999974E-6 : f32
    %322 = vector.broadcast %cst_176 : f32 to vector<8x1xf32>
    %323 = arith.addf %319, %322 : vector<8x1xf32>
    %324 = math.rsqrt %323 : vector<8x1xf32>
    %325 = vector.broadcast %324 : vector<8x1xf32> to vector<8x512xf32>
    %326 = arith.mulf %321, %325 : vector<8x512xf32>
    %c0_177 = arith.constant 0 : index
    %c0_178 = arith.constant 0 : index
    %327 = vector.load %arg6[%c0_177, %c0_178] : memref<1x512xf32, #tpu.memory_space<vmem>>, vector<1x512xf32>
    %328 = vector.broadcast %327 : vector<1x512xf32> to vector<8x512xf32>
    %329 = arith.mulf %326, %328 : vector<8x512xf32>
    %c0_179 = arith.constant 0 : index
    %c0_180 = arith.constant 0 : index
    %330 = vector.load %arg7[%c0_179, %c0_180] : memref<1x512xf32, #tpu.memory_space<vmem>>, vector<1x512xf32>
    %331 = vector.broadcast %330 : vector<1x512xf32> to vector<8x512xf32>
    %332 = arith.addf %329, %331 : vector<8x512xf32>
    %c1_i32_181 = arith.constant 1 : i32
    %333 = tpu.memref_slice %arg30[%c1_i32_181] : memref<3x!tpu.dma_semaphore, #tpu.memory_space<semaphore_mem>> -> memref<1x!tpu.dma_semaphore, #tpu.memory_space<semaphore_mem>>
    %334 = tpu.memref_squeeze %333 : memref<1x!tpu.dma_semaphore, #tpu.memory_space<semaphore_mem>> -> memref<!tpu.dma_semaphore, #tpu.memory_space<semaphore_mem>>
    tpu.wait_dma2 semaphore(%334 : memref<!tpu.dma_semaphore, #tpu.memory_space<semaphore_mem>>) src(%arg23 : memref<512x1024xbf16, #tpu.memory_space<any>>) dst(%arg28 : memref<512x1024xbf16, #tpu.memory_space<vmem>>)
    %c2_i32_182 = arith.constant 2 : i32
    %335 = tpu.memref_slice %arg30[%c2_i32_182] : memref<3x!tpu.dma_semaphore, #tpu.memory_space<semaphore_mem>> -> memref<1x!tpu.dma_semaphore, #tpu.memory_space<semaphore_mem>>
    %336 = tpu.memref_squeeze %335 : memref<1x!tpu.dma_semaphore, #tpu.memory_space<semaphore_mem>> -> memref<!tpu.dma_semaphore, #tpu.memory_space<semaphore_mem>>
    tpu.wait_dma2 semaphore(%336 : memref<!tpu.dma_semaphore, #tpu.memory_space<semaphore_mem>>) src(%arg24 : memref<1024x512xbf16, #tpu.memory_space<any>>) dst(%arg29 : memref<1024x512xbf16, #tpu.memory_space<vmem>>)
    %337 = arith.truncf %332 : vector<8x512xf32> to vector<8x512xbf16>
    %c0_183 = arith.constant 0 : index
    %c0_184 = arith.constant 0 : index
    %338 = vector.load %arg28[%c0_183, %c0_184] : memref<512x1024xbf16, #tpu.memory_space<vmem>>, vector<512x1024xbf16>
    %cst_185 = arith.constant dense<0.000000e+00> : vector<8x1024xf32>
    %339 = tpu.matmul %337, %338, %cst_185 {dimension_numbers = #tpu.dot_dimension_numbers<[1], [0], [0], [1], [0, 0, 1, 1], [], []>} : vector<8x512xbf16>, vector<512x1024xbf16>, vector<8x1024xf32> -> vector<8x1024xf32>
    %c0_186 = arith.constant 0 : index
    %c0_187 = arith.constant 0 : index
    %340 = vector.load %arg8[%c0_186, %c0_187] : memref<1x1024xf32, #tpu.memory_space<vmem>>, vector<1x1024xf32>
    %341 = vector.broadcast %340 : vector<1x1024xf32> to vector<8x1024xf32>
    %342 = arith.addf %339, %341 : vector<8x1024xf32>
    %cst_188 = arith.constant 0.000000e+00 : f32
    %343 = vector.broadcast %cst_188 : f32 to vector<8x1024xf32>
    %344 = arith.maximumf %342, %343 : vector<8x1024xf32>
    %345 = arith.truncf %344 : vector<8x1024xf32> to vector<8x1024xbf16>
    %c0_189 = arith.constant 0 : index
    %c0_190 = arith.constant 0 : index
    %346 = vector.load %arg29[%c0_189, %c0_190] : memref<1024x512xbf16, #tpu.memory_space<vmem>>, vector<1024x512xbf16>
    %cst_191 = arith.constant dense<0.000000e+00> : vector<8x512xf32>
    %347 = tpu.matmul %345, %346, %cst_191 {dimension_numbers = #tpu.dot_dimension_numbers<[1], [0], [0], [1], [0, 0, 1, 1], [], []>} : vector<8x1024xbf16>, vector<1024x512xbf16>, vector<8x512xf32> -> vector<8x512xf32>
    %348 = arith.addf %332, %347 : vector<8x512xf32>
    %c0_192 = arith.constant 0 : index
    %c0_193 = arith.constant 0 : index
    %349 = vector.load %arg9[%c0_192, %c0_193] : memref<1x512xf32, #tpu.memory_space<vmem>>, vector<1x512xf32>
    %350 = vector.broadcast %349 : vector<1x512xf32> to vector<8x512xf32>
    %351 = arith.addf %348, %350 : vector<8x512xf32>
    %cst_194 = arith.constant dense<0.000000e+00> : vector<8xf32>
    %352 = vector.multi_reduction <add>, %351, %cst_194 [1] : vector<8x512xf32> to vector<8xf32>
    %353 = vector.shape_cast %352 : vector<8xf32> to vector<8x1xf32>
    %cst_195 = arith.constant 5.120000e+02 : f32
    %354 = vector.broadcast %cst_195 : f32 to vector<8x1xf32>
    %355 = arith.divf %353, %354 : vector<8x1xf32>
    %356 = vector.broadcast %355 : vector<8x1xf32> to vector<8x512xf32>
    %357 = arith.subf %351, %356 : vector<8x512xf32>
    %358 = arith.mulf %357, %357 : vector<8x512xf32>
    %cst_196 = arith.constant dense<0.000000e+00> : vector<8xf32>
    %359 = vector.multi_reduction <add>, %358, %cst_196 [1] : vector<8x512xf32> to vector<8xf32>
    %360 = vector.shape_cast %359 : vector<8xf32> to vector<8x1xf32>
    %cst_197 = arith.constant 5.120000e+02 : f32
    %361 = vector.broadcast %cst_197 : f32 to vector<8x1xf32>
    %362 = arith.divf %360, %361 : vector<8x1xf32>
    %363 = vector.broadcast %355 : vector<8x1xf32> to vector<8x512xf32>
    %364 = arith.subf %351, %363 : vector<8x512xf32>
    %cst_198 = arith.constant 9.99999974E-6 : f32
    %365 = vector.broadcast %cst_198 : f32 to vector<8x1xf32>
    %366 = arith.addf %362, %365 : vector<8x1xf32>
    %367 = math.rsqrt %366 : vector<8x1xf32>
    %368 = vector.broadcast %367 : vector<8x1xf32> to vector<8x512xf32>
    %369 = arith.mulf %364, %368 : vector<8x512xf32>
    %c0_199 = arith.constant 0 : index
    %c0_200 = arith.constant 0 : index
    %370 = vector.load %arg10[%c0_199, %c0_200] : memref<1x512xf32, #tpu.memory_space<vmem>>, vector<1x512xf32>
    %371 = vector.broadcast %370 : vector<1x512xf32> to vector<8x512xf32>
    %372 = arith.mulf %369, %371 : vector<8x512xf32>
    %c0_201 = arith.constant 0 : index
    %c0_202 = arith.constant 0 : index
    %373 = vector.load %arg11[%c0_201, %c0_202] : memref<1x512xf32, #tpu.memory_space<vmem>>, vector<1x512xf32>
    %374 = vector.broadcast %373 : vector<1x512xf32> to vector<8x512xf32>
    %375 = arith.addf %372, %374 : vector<8x512xf32>
    %376 = arith.truncf %375 : vector<8x512xf32> to vector<8x512xbf16>
    %c0_203 = arith.constant 0 : index
    %c0_204 = arith.constant 0 : index
    %377 = vector.load %arg12[%c0_203, %c0_204] : memref<512x256xbf16, #tpu.memory_space<vmem>>, vector<512x256xbf16>
    %cst_205 = arith.constant dense<0.000000e+00> : vector<8x256xf32>
    %378 = tpu.matmul %376, %377, %cst_205 {dimension_numbers = #tpu.dot_dimension_numbers<[1], [0], [0], [1], [0, 0, 1, 1], [], []>} : vector<8x512xbf16>, vector<512x256xbf16>, vector<8x256xf32> -> vector<8x256xf32>
    %c0_206 = arith.constant 0 : index
    %c0_207 = arith.constant 0 : index
    %379 = vector.load %arg13[%c0_206, %c0_207] : memref<1x256xf32, #tpu.memory_space<vmem>>, vector<1x256xf32>
    %380 = vector.broadcast %379 : vector<1x256xf32> to vector<8x256xf32>
    %381 = arith.addf %378, %380 : vector<8x256xf32>
    %c0_208 = arith.constant 0 : index
    %c0_209 = arith.constant 0 : index
    %382 = vector.load %arg14[%c0_208, %c0_209] : memref<1x256xf32, #tpu.memory_space<vmem>>, vector<1x256xf32>
    %383 = vector.broadcast %382 : vector<1x256xf32> to vector<8x256xf32>
    %384 = arith.mulf %381, %383 : vector<8x256xf32>
    %c0_210 = arith.constant 0 : index
    %c0_211 = arith.constant 0 : index
    %385 = vector.load %arg15[%c0_210, %c0_211] : memref<1x256xf32, #tpu.memory_space<vmem>>, vector<1x256xf32>
    %386 = vector.broadcast %385 : vector<1x256xf32> to vector<8x256xf32>
    %387 = arith.addf %384, %386 : vector<8x256xf32>
    %cst_212 = arith.constant 0.000000e+00 : f32
    %388 = vector.broadcast %cst_212 : f32 to vector<8x256xf32>
    %389 = arith.maximumf %387, %388 : vector<8x256xf32>
    %390 = arith.truncf %389 : vector<8x256xf32> to vector<8x256xbf16>
    %c0_213 = arith.constant 0 : index
    %c0_214 = arith.constant 0 : index
    %391 = vector.load %arg16[%c0_213, %c0_214] : memref<256x64xbf16, #tpu.memory_space<vmem>>, vector<256x64xbf16>
    %cst_215 = arith.constant dense<0.000000e+00> : vector<8x64xf32>
    %392 = tpu.matmul %390, %391, %cst_215 {dimension_numbers = #tpu.dot_dimension_numbers<[1], [0], [0], [1], [0, 0, 1, 1], [], []>} : vector<8x256xbf16>, vector<256x64xbf16>, vector<8x64xf32> -> vector<8x64xf32>
    %c0_216 = arith.constant 0 : index
    %c0_217 = arith.constant 0 : index
    %393 = vector.load %arg17[%c0_216, %c0_217] : memref<1x64xf32, #tpu.memory_space<vmem>>, vector<1x64xf32>
    %394 = vector.broadcast %393 : vector<1x64xf32> to vector<8x64xf32>
    %395 = arith.addf %392, %394 : vector<8x64xf32>
    %c0_218 = arith.constant 0 : index
    %c0_219 = arith.constant 0 : index
    %396 = vector.load %arg18[%c0_218, %c0_219] : memref<1x64xf32, #tpu.memory_space<vmem>>, vector<1x64xf32>
    %397 = vector.broadcast %396 : vector<1x64xf32> to vector<8x64xf32>
    %398 = arith.mulf %395, %397 : vector<8x64xf32>
    %c0_220 = arith.constant 0 : index
    %c0_221 = arith.constant 0 : index
    %399 = vector.load %arg19[%c0_220, %c0_221] : memref<1x64xf32, #tpu.memory_space<vmem>>, vector<1x64xf32>
    %400 = vector.broadcast %399 : vector<1x64xf32> to vector<8x64xf32>
    %401 = arith.addf %398, %400 : vector<8x64xf32>
    %cst_222 = arith.constant 0.000000e+00 : f32
    %402 = vector.broadcast %cst_222 : f32 to vector<8x64xf32>
    %403 = arith.maximumf %401, %402 : vector<8x64xf32>
    %404 = arith.truncf %403 : vector<8x64xf32> to vector<8x64xbf16>
    %c0_223 = arith.constant 0 : index
    %c0_224 = arith.constant 0 : index
    %405 = vector.load %arg20[%c0_223, %c0_224] : memref<64x128xbf16, #tpu.memory_space<vmem>>, vector<64x128xbf16>
    %cst_225 = arith.constant dense<0.000000e+00> : vector<8x128xf32>
    %406 = tpu.matmul %404, %405, %cst_225 {dimension_numbers = #tpu.dot_dimension_numbers<[1], [0], [0], [1], [0, 0, 1, 1], [], []>} : vector<8x64xbf16>, vector<64x128xbf16>, vector<8x128xf32> -> vector<8x128xf32>
    %c0_226 = arith.constant 0 : index
    %c0_227 = arith.constant 0 : index
    %407 = vector.load %arg21[%c0_226, %c0_227] : memref<1x128xf32, #tpu.memory_space<vmem>>, vector<1x128xf32>
    %408 = vector.broadcast %407 : vector<1x128xf32> to vector<8x128xf32>
    %409 = arith.addf %406, %408 : vector<8x128xf32>
    %c0_228 = arith.constant 0 : index
    %c0_229 = arith.constant 0 : index
    %410 = vector.load %arg25[%c0_228, %c0_229] : memref<8x128xf32, #tpu.memory_space<vmem>>, vector<8x128xf32>
    tpu.vector_store %arg25[%c0_228, %c0_229], %409 {strides = array<i32>} : memref<8x128xf32, #tpu.memory_space<vmem>>, vector<8x128xf32>,
    return
  }
}

</mosaic_0001>

<llo_original>
// kernel: discriminator_forward.1
$region0: #{discriminator_forward.1}
  #allocation0 [shape = 'u32[]', space=smem, size = 0x4, offset = 0x4, fixed_abs, tag = 'smem constant byte address 0x4 - core index']
  #allocation1 [shape = 'u32[72,128]{1,0:T(1,128)}', space=vmem, size = 0x9000, scoped, tag = 'internal scratch']
  #allocation2 [shape = 'f32[8,512]{1,0:T(8,128)}', space=vmem, size = 0x4000, scoped, tag = 'scratch operand']
  #allocation3 [shape = 'bf16[512,512]{1,0:T(8,128)(2,1)}', space=vmem, size = 0x80000, scoped, tag = 'scratch operand']
  #allocation4 [shape = 'bf16[512,1024]{1,0:T(8,128)(2,1)}', space=vmem, size = 0x100000, scoped, tag = 'scratch operand']
  #allocation5 [shape = 'bf16[1024,512]{1,0:T(8,128)(2,1)}', space=vmem, size = 0x100000, scoped, tag = 'scratch operand']
  #allocation6 [shape = 's32[3]{0}', space=sflag, size = 0xc, scoped, tag = 'scratch operand']
  #allocation39 [shape = 's32[]', space=sflag, size = 0x4, offset = 0, fixed_abs, tag = 'sflag constant byte address 0x0 - dummy sync flag']
  #allocation40 [shape = 's32[]', space=sflag, size = 0x4, offset = 0, fixed_abs, tag = 'sflag constant byte address 0x0 - dummy sync flag']
  #allocation41 [shape = 'u32[]', space=smem, size = 0x4, offset = 0x44, fixed_abs, tag = 'smem constant byte address 0x44 - assertion arg 0']
  #allocation42 [shape = 'u32[]', space=smem, size = 0x4, offset = 0x48, fixed_abs, tag = 'smem constant byte address 0x48 - assertion arg 1']
  #allocation43 [shape = 's32[]', space=sflag, size = 0x4, offset = 0, fixed_abs, tag = 'sflag constant byte address 0x0 - dummy sync flag']
  #allocation44 [shape = 's32[]', space=sflag, size = 0x4, offset = 0, fixed_abs, tag = 'sflag constant byte address 0x0 - dummy sync flag']
  #allocation45 [shape = 's32[]', space=sflag, size = 0x4, offset = 0, fixed_abs, tag = 'sflag constant byte address 0x0 - dummy sync flag']
  #allocation46 [shape = 's32[]', space=sflag, size = 0x4, offset = 0, fixed_abs, tag = 'sflag constant byte address 0x0 - dummy sync flag']
  %s0 = inlined_call_operand.hbm [shape: f32[8,312], index: 0, kind: input, shape index: {}]
  %s1 = inlined_call_operand.hbm [shape: bf16[312,512], index: 1, kind: input, shape index: {}]
  %s2 = inlined_call_operand.hbm [shape: f32[1,512], index: 2, kind: input, shape index: {}]
  %s3 = inlined_call_operand.hbm [shape: bf16[512,1536], index: 3, kind: input, shape index: {}]
  %s4 = inlined_call_operand.hbm [shape: f32[1,1536], index: 4, kind: input, shape index: {}]
  %s5 = inlined_call_operand.hbm [shape: f32[1,512], index: 5, kind: input, shape index: {}]
  %s6 = inlined_call_operand.hbm [shape: f32[1,512], index: 6, kind: input, shape index: {}]
  %s7 = inlined_call_operand.hbm [shape: f32[1,512], index: 7, kind: input, shape index: {}]
  %s8 = inlined_call_operand.hbm [shape: f32[1,1024], index: 8, kind: input, shape index: {}]
  %s9 = inlined_call_operand.hbm [shape: f32[1,512], index: 9, kind: input, shape index: {}]
  %s10 = inlined_call_operand.hbm [shape: f32[1,512], index: 10, kind: input, shape index: {}]
  %s11 = inlined_call_operand.hbm [shape: f32[1,512], index: 11, kind: input, shape index: {}]
  %s12 = inlined_call_operand.hbm [shape: bf16[512,256], index: 12, kind: input, shape index: {}]
  %s13 = inlined_call_operand.hbm [shape: f32[1,256], index: 13, kind: input, shape index: {}]
  %s14 = inlined_call_operand.hbm [shape: f32[1,256], index: 14, kind: input, shape index: {}]
  %s15 = inlined_call_operand.hbm [shape: f32[1,256], index: 15, kind: input, shape index: {}]
  %s16 = inlined_call_operand.vmem [shape: bf16[256,64], index: 16, kind: input, shape index: {}]
  %s17 = inlined_call_operand.hbm [shape: f32[1,64], index: 17, kind: input, shape index: {}]
  %s18 = inlined_call_operand.hbm [shape: f32[1,64], index: 18, kind: input, shape index: {}]
  %s19 = inlined_call_operand.hbm [shape: f32[1,64], index: 19, kind: input, shape index: {}]
  %s20 = inlined_call_operand.hbm [shape: bf16[64,128], index: 20, kind: input, shape index: {}]
  %s21 = inlined_call_operand.hbm [shape: f32[1,128], index: 21, kind: input, shape index: {}]
  %s22 = inlined_call_operand.hbm [shape: bf16[512,512], index: 22, kind: input, shape index: {}]
  %s23 = inlined_call_operand.hbm [shape: bf16[512,1024], index: 23, kind: input, shape index: {}]
  %s24 = inlined_call_operand.hbm [shape: bf16[1024,512], index: 24, kind: input, shape index: {}]
  %s25 = inlined_call_operand.vmem [shape: f32[8,128], index: 25, kind: output, shape index: {}]
  %s26 = sld [smem:[#allocation0]]
  $region194: #{discriminator_forward.1} parent=0
    _
  %s28 = ssub.s32 1, %s26
  %s29 = scalar_select 0, %s28, %s26
  $region1: #{discriminator_forward.1} parent=0
    #allocation7 [shape = 'u8[12288]{0}', space=vmem, size = 0x3000, scoped, tag = 'input window, operand 0, single buffered']
    #allocation8 [shape = 's32[1]{0}', space=sflag, size = 0x4, scoped, tag = 'scoped memory for discriminator_forward.1']
    #allocation9 [shape = 'u8[319488]{0}', space=vmem, size = 0x4e000, scoped, tag = 'input window, operand 1, single buffered']
    #allocation10 [shape = 's32[1]{0}', space=sflag, size = 0x4, scoped, tag = 'scoped memory for discriminator_forward.1']
    #allocation11 [shape = 'u8[2048]{0}', space=vmem, size = 0x800, scoped, tag = 'input window, operand 2, single buffered']
    #allocation12 [shape = 'u8[1572864]{0}', space=vmem, size = 0x180000, scoped, tag = 'input window, operand 3, single buffered']
    #allocation13 [shape = 's32[1]{0}', space=sflag, size = 0x4, scoped, tag = 'scoped memory for discriminator_forward.1']
    #allocation14 [shape = 'u8[6144]{0}', space=vmem, size = 0x1800, scoped, tag = 'input window, operand 4, single buffered']
    #allocation15 [shape = 'u8[2048]{0}', space=vmem, size = 0x800, scoped, tag = 'input window, operand 5, single buffered']
    #allocation16 [shape = 's32[1]{0}', space=sflag, size = 0x4, scoped, tag = 'scoped memory for discriminator_forward.1']
    #allocation17 [shape = 'u8[2048]{0}', space=vmem, size = 0x800, scoped, tag = 'input window, operand 6, single buffered']
    #allocation18 [shape = 'u8[2048]{0}', space=vmem, size = 0x800, scoped, tag = 'input window, operand 7, single buffered']
    #allocation19 [shape = 's32[1]{0}', space=sflag, size = 0x4, scoped, tag = 'scoped memory for discriminator_forward.1']
    #allocation20 [shape = 'u8[4096]{0}', space=vmem, size = 0x1000, scoped, tag = 'input window, operand 8, single buffered']
    #allocation21 [shape = 'u8[2048]{0}', space=vmem, size = 0x800, scoped, tag = 'input window, operand 9, single buffered']
    #allocation22 [shape = 's32[1]{0}', space=sflag, size = 0x4, scoped, tag = 'scoped memory for discriminator_forward.1']
    #allocation23 [shape = 'u8[2048]{0}', space=vmem, size = 0x800, scoped, tag = 'input window, operand 10, single buffered']
    #allocation24 [shape = 'u8[2048]{0}', space=vmem, size = 0x800, scoped, tag = 'input window, operand 11, single buffered']
    #allocation25 [shape = 's32[1]{0}', space=sflag, size = 0x4, scoped, tag = 'scoped memory for discriminator_forward.1']
    #allocation26 [shape = 'u8[262144]{0}', space=vmem, size = 0x40000, scoped, tag = 'input window, operand 12, single buffered']
    #allocation27 [shape = 'u8[1024]{0}', space=vmem, size = 0x400, scoped, tag = 'input window, operand 13, single buffered']
    #allocation28 [shape = 's32[1]{0}', space=sflag, size = 0x4, scoped, tag = 'scoped memory for discriminator_forward.1']
    #allocation29 [shape = 'u8[1024]{0}', space=vmem, size = 0x400, scoped, tag = 'input window, operand 14, single buffered']
    #allocation30 [shape = 'u8[1024]{0}', space=vmem, size = 0x400, scoped, tag = 'input window, operand 15, single buffered']
    #allocation31 [shape = 's32[1]{0}', space=sflag, size = 0x4, scoped, tag = 'scoped memory for discriminator_forward.1']
    #allocation32 [shape = 'u8[512]{0}', space=vmem, size = 0x400, scoped, tag = 'input window, operand 17, single buffered']
    #allocation33 [shape = 'u8[512]{0}', space=vmem, size = 0x400, scoped, tag = 'input window, operand 18, single buffered']
    #allocation34 [shape = 's32[1]{0}', space=sflag, size = 0x4, scoped, tag = 'scoped memory for discriminator_forward.1']
    #allocation35 [shape = 'u8[512]{0}', space=vmem, size = 0x400, scoped, tag = 'input window, operand 19, single buffered']
    #allocation36 [shape = 'u8[16384]{0}', space=vmem, size = 0x4000, scoped, tag = 'input window, operand 20, single buffered']
    #allocation37 [shape = 's32[1]{0}', space=sflag, size = 0x4, scoped, tag = 'scoped memory for discriminator_forward.1']
    #allocation38 [shape = 'u8[512]{0}', space=vmem, size = 0x400, scoped, tag = 'input window, operand 21, single buffered']
    %30 = vsyncpa [#allocation8], 0
    %31 = vsyncpa [#allocation10], 0
    %32 = vsyncpa [#allocation13], 0
    %33 = vsyncpa [#allocation16], 0
    %34 = vsyncpa [#allocation19], 0
    %35 = vsyncpa [#allocation22], 0
    %36 = vsyncpa [#allocation25], 0
    %37 = vsyncpa [#allocation28], 0
    %38 = vsyncpa [#allocation31], 0
    %39 = vsyncpa [#allocation34], 0
    %40 = vsyncpa [#allocation37], 0
    // Predicated region
    $region2: #{discriminator_forward.1} parent=1 // pred_check
      _
    $region3: #{discriminator_forward.1} parent=1 // pred_check_branch
      %42 = sbr.rel (0) target = $region5
    $region4: #{discriminator_forward.1} parent=1 // pred_region
      %44 = vsyncadd [#allocation8], 0
      %s46 = sshll.u32 %s0, 4
      %s47 = int_to_ptr.hbm [resolvable:$true] %s46
      %s48 = sshll.u32 [#allocation7], 4
      %s49 = int_to_ptr.vmem [resolvable:$true] %s48
      %51 = dma.hbm_to_vmem [thread:$0]  %s47, 384, %s49, [#allocation8]
    $region5: #{discriminator_forward.1} parent=1 // pred_fallthru
      _
    // Predicated region
    $region6: #{discriminator_forward.1} parent=1 // pred_check
      _
    $region7: #{discriminator_forward.1} parent=1 // pred_check_branch
      %53 = sbr.rel (0) target = $region9
    $region8: #{discriminator_forward.1} parent=1 // pred_region
      %55 = vsyncadd [#allocation10], 0
      %s56 = sshll.u32 %s1, 4
      %s57 = int_to_ptr.hbm [resolvable:$true] %s56
      %s58 = sshll.u32 [#allocation9], 4
      %s59 = int_to_ptr.vmem [resolvable:$true] %s58
      %64 = dma.hbm_to_vmem [thread:$0]  %s57, 9984, %s59, [#allocation10], 256, 256, 16
    $region9: #{discriminator_forward.1} parent=1 // pred_fallthru
      _
    // Predicated region
    $region10: #{discriminator_forward.1} parent=1 // pred_check
      _
    $region11: #{discriminator_forward.1} parent=1 // pred_check_branch
      %66 = sbr.rel (0) target = $region13
    $region12: #{discriminator_forward.1} parent=1 // pred_region
      %68 = vsyncadd [#allocation10], 0
      %s70 = sshll.u32 %s2, 4
      %s71 = int_to_ptr.hbm [resolvable:$true] %s70
      %s72 = sshll.u32 [#allocation11], 4
      %s73 = int_to_ptr.vmem [resolvable:$true] %s72
      %75 = dma.hbm_to_vmem [thread:$0]  %s71, 64, %s73, [#allocation10]
    $region13: #{discriminator_forward.1} parent=1 // pred_fallthru
      _
    // Predicated region
    $region14: #{discriminator_forward.1} parent=1 // pred_check
      _
    $region15: #{discriminator_forward.1} parent=1 // pred_check_branch
      %77 = sbr.rel (0) target = $region17
    $region16: #{discriminator_forward.1} parent=1 // pred_region
      %79 = vsyncadd [#allocation13], 0
      %s80 = sshll.u32 %s3, 4
      %s81 = int_to_ptr.hbm [resolvable:$true] %s80
      %s82 = sshll.u32 [#allocation12], 4
      %s83 = int_to_ptr.vmem [resolvable:$true] %s82
      %88 = dma.hbm_to_vmem [thread:$0]  %s81, 49152, %s83, [#allocation13], 768, 768, 48
    $region17: #{discriminator_forward.1} parent=1 // pred_fallthru
      _
    // Predicated region
    $region18: #{discriminator_forward.1} parent=1 // pred_check
      _
    $region19: #{discriminator_forward.1} parent=1 // pred_check_branch
      %90 = sbr.rel (0) target = $region21
    $region20: #{discriminator_forward.1} parent=1 // pred_region
      %92 = vsyncadd [#allocation13], 0
      %s94 = sshll.u32 %s4, 4
      %s95 = int_to_ptr.hbm [resolvable:$true] %s94
      %s96 = sshll.u32 [#allocation14], 4
      %s97 = int_to_ptr.vmem [resolvable:$true] %s96
      %99 = dma.hbm_to_vmem [thread:$0]  %s95, 192, %s97, [#allocation13]
    $region21: #{discriminator_forward.1} parent=1 // pred_fallthru
      _
    // Predicated region
    $region22: #{discriminator_forward.1} parent=1 // pred_check
      _
    $region23: #{discriminator_forward.1} parent=1 // pred_check_branch
      %101 = sbr.rel (0) target = $region25
    $region24: #{discriminator_forward.1} parent=1 // pred_region
      %103 = vsyncadd [#allocation16], 0
      %s105 = sshll.u32 %s5, 4
      %s106 = int_to_ptr.hbm [resolvable:$true] %s105
      %s107 = sshll.u32 [#allocation15], 4
      %s108 = int_to_ptr.vmem [resolvable:$true] %s107
      %110 = dma.hbm_to_vmem [thread:$0]  %s106, 64, %s108, [#allocation16]
    $region25: #{discriminator_forward.1} parent=1 // pred_fallthru
      _
    // Predicated region
    $region26: #{discriminator_forward.1} parent=1 // pred_check
      _
    $region27: #{discriminator_forward.1} parent=1 // pred_check_branch
      %112 = sbr.rel (0) target = $region29
    $region28: #{discriminator_forward.1} parent=1 // pred_region
      %114 = vsyncadd [#allocation16], 0
      %s116 = sshll.u32 %s6, 4
      %s117 = int_to_ptr.hbm [resolvable:$true] %s116
      %s118 = sshll.u32 [#allocation17], 4
      %s119 = int_to_ptr.vmem [resolvable:$true] %s118
      %121 = dma.hbm_to_vmem [thread:$0]  %s117, 64, %s119, [#allocation16]
    $region29: #{discriminator_forward.1} parent=1 // pred_fallthru
      _
    // Predicated region
    $region30: #{discriminator_forward.1} parent=1 // pred_check
      _
    $region31: #{discriminator_forward.1} parent=1 // pred_check_branch
      %123 = sbr.rel (0) target = $region33
    $region32: #{discriminator_forward.1} parent=1 // pred_region
      %125 = vsyncadd [#allocation19], 0
      %s127 = sshll.u32 %s7, 4
      %s128 = int_to_ptr.hbm [resolvable:$true] %s127
      %s129 = sshll.u32 [#allocation18], 4
      %s130 = int_to_ptr.vmem [resolvable:$true] %s129
      %132 = dma.hbm_to_vmem [thread:$0]  %s128, 64, %s130, [#allocation19]
    $region33: #{discriminator_forward.1} parent=1 // pred_fallthru
      _
    // Predicated region
    $region34: #{discriminator_forward.1} parent=1 // pred_check
      _
    $region35: #{discriminator_forward.1} parent=1 // pred_check_branch
      %134 = sbr.rel (0) target = $region37
    $region36: #{discriminator_forward.1} parent=1 // pred_region
      %136 = vsyncadd [#allocation19], 0
      %s138 = sshll.u32 %s8, 4
      %s139 = int_to_ptr.hbm [resolvable:$true] %s138
      %s140 = sshll.u32 [#allocation20], 4
      %s141 = int_to_ptr.vmem [resolvable:$true] %s140
      %143 = dma.hbm_to_vmem [thread:$0]  %s139, 128, %s141, [#allocation19]
    $region37: #{discriminator_forward.1} parent=1 // pred_fallthru
      _
    // Predicated region
    $region38: #{discriminator_forward.1} parent=1 // pred_check
      _
    $region39: #{discriminator_forward.1} parent=1 // pred_check_branch
      %145 = sbr.rel (0) target = $region41
    $region40: #{discriminator_forward.1} parent=1 // pred_region
      %147 = vsyncadd [#allocation22], 0
      %s149 = sshll.u32 %s9, 4
      %s150 = int_to_ptr.hbm [resolvable:$true] %s149
      %s151 = sshll.u32 [#allocation21], 4
      %s152 = int_to_ptr.vmem [resolvable:$true] %s151
      %154 = dma.hbm_to_vmem [thread:$0]  %s150, 64, %s152, [#allocation22]
    $region41: #{discriminator_forward.1} parent=1 // pred_fallthru
      _
    // Predicated region
    $region42: #{discriminator_forward.1} parent=1 // pred_check
      _
    $region43: #{discriminator_forward.1} parent=1 // pred_check_branch
      %156 = sbr.rel (0) target = $region45
    $region44: #{discriminator_forward.1} parent=1 // pred_region
      %158 = vsyncadd [#allocation22], 0
      %s160 = sshll.u32 %s10, 4
      %s161 = int_to_ptr.hbm [resolvable:$true] %s160
      %s162 = sshll.u32 [#allocation23], 4
      %s163 = int_to_ptr.vmem [resolvable:$true] %s162
      %165 = dma.hbm_to_vmem [thread:$0]  %s161, 64, %s163, [#allocation22]
    $region45: #{discriminator_forward.1} parent=1 // pred_fallthru
      _
    // Predicated region
    $region46: #{discriminator_forward.1} parent=1 // pred_check
      _
    $region47: #{discriminator_forward.1} parent=1 // pred_check_branch
      %167 = sbr.rel (0) target = $region49
    $region48: #{discriminator_forward.1} parent=1 // pred_region
      %169 = vsyncadd [#allocation25], 0
      %s171 = sshll.u32 %s11, 4
      %s172 = int_to_ptr.hbm [resolvable:$true] %s171
      %s173 = sshll.u32 [#allocation24], 4
      %s174 = int_to_ptr.vmem [resolvable:$true] %s173
      %176 = dma.hbm_to_vmem [thread:$0]  %s172, 64, %s174, [#allocation25]
    $region49: #{discriminator_forward.1} parent=1 // pred_fallthru
      _
    // Predicated region
    $region50: #{discriminator_forward.1} parent=1 // pred_check
      _
    $region51: #{discriminator_forward.1} parent=1 // pred_check_branch
      %178 = sbr.rel (0) target = $region53
    $region52: #{discriminator_forward.1} parent=1 // pred_region
      %180 = vsyncadd [#allocation25], 0
      %s181 = sshll.u32 %s12, 4
      %s182 = int_to_ptr.hbm [resolvable:$true] %s181
      %s183 = sshll.u32 [#allocation26], 4
      %s184 = int_to_ptr.vmem [resolvable:$true] %s183
      %189 = dma.hbm_to_vmem [thread:$0]  %s182, 8192, %s184, [#allocation25], 128, 128, 8
    $region53: #{discriminator_forward.1} parent=1 // pred_fallthru
      _
    // Predicated region
    $region54: #{discriminator_forward.1} parent=1 // pred_check
      _
    $region55: #{discriminator_forward.1} parent=1 // pred_check_branch
      %191 = sbr.rel (0) target = $region57
    $region56: #{discriminator_forward.1} parent=1 // pred_region
      %193 = vsyncadd [#allocation28], 0
      %s195 = sshll.u32 %s13, 4
      %s196 = int_to_ptr.hbm [resolvable:$true] %s195
      %s197 = sshll.u32 [#allocation27], 4
      %s198 = int_to_ptr.vmem [resolvable:$true] %s197
      %200 = dma.hbm_to_vmem [thread:$0]  %s196, 32, %s198, [#allocation28]
    $region57: #{discriminator_forward.1} parent=1 // pred_fallthru
      _
    // Predicated region
    $region58: #{discriminator_forward.1} parent=1 // pred_check
      _
    $region59: #{discriminator_forward.1} parent=1 // pred_check_branch
      %202 = sbr.rel (0) target = $region61
    $region60: #{discriminator_forward.1} parent=1 // pred_region
      %204 = vsyncadd [#allocation28], 0
      %s206 = sshll.u32 %s14, 4
      %s207 = int_to_ptr.hbm [resolvable:$true] %s206
      %s208 = sshll.u32 [#allocation29], 4
      %s209 = int_to_ptr.vmem [resolvable:$true] %s208
      %211 = dma.hbm_to_vmem [thread:$0]  %s207, 32, %s209, [#allocation28]
    $region61: #{discriminator_forward.1} parent=1 // pred_fallthru
      _
    // Predicated region
    $region62: #{discriminator_forward.1} parent=1 // pred_check
      _
    $region63: #{discriminator_forward.1} parent=1 // pred_check_branch
      %213 = sbr.rel (0) target = $region65
    $region64: #{discriminator_forward.1} parent=1 // pred_region
      %215 = vsyncadd [#allocation31], 0
      %s217 = sshll.u32 %s15, 4
      %s218 = int_to_ptr.hbm [resolvable:$true] %s217
      %s219 = sshll.u32 [#allocation30], 4
      %s220 = int_to_ptr.vmem [resolvable:$true] %s219
      %222 = dma.hbm_to_vmem [thread:$0]  %s218, 32, %s220, [#allocation31]
    $region65: #{discriminator_forward.1} parent=1 // pred_fallthru
      _
    // Predicated region
    $region66: #{discriminator_forward.1} parent=1 // pred_check
      _
    $region67: #{discriminator_forward.1} parent=1 // pred_check_branch
      %224 = sbr.rel (0) target = $region69
    $region68: #{discriminator_forward.1} parent=1 // pred_region
      _
    $region69: #{discriminator_forward.1} parent=1 // pred_fallthru
      _
    // Predicated region
    $region70: #{discriminator_forward.1} parent=1 // pred_check
      _
    $region71: #{discriminator_forward.1} parent=1 // pred_check_branch
      %226 = sbr.rel (0) target = $region73
    $region72: #{discriminator_forward.1} parent=1 // pred_region
      %228 = vsyncadd [#allocation31], 0
      %s230 = sshll.u32 %s17, 4
      %s231 = int_to_ptr.hbm [resolvable:$true] %s230
      %s232 = sshll.u32 [#allocation32], 4
      %s233 = int_to_ptr.vmem [resolvable:$true] %s232
      %235 = dma.hbm_to_vmem [thread:$0]  %s231, 16, %s233, [#allocation31]
    $region73: #{discriminator_forward.1} parent=1 // pred_fallthru
      _
    // Predicated region
    $region74: #{discriminator_forward.1} parent=1 // pred_check
      _
    $region75: #{discriminator_forward.1} parent=1 // pred_check_branch
      %237 = sbr.rel (0) target = $region77
    $region76: #{discriminator_forward.1} parent=1 // pred_region
      %239 = vsyncadd [#allocation34], 0
      %s241 = sshll.u32 %s18, 4
      %s242 = int_to_ptr.hbm [resolvable:$true] %s241
      %s243 = sshll.u32 [#allocation33], 4
      %s244 = int_to_ptr.vmem [resolvable:$true] %s243
      %246 = dma.hbm_to_vmem [thread:$0]  %s242, 16, %s244, [#allocation34]
    $region77: #{discriminator_forward.1} parent=1 // pred_fallthru
      _
    // Predicated region
    $region78: #{discriminator_forward.1} parent=1 // pred_check
      _
    $region79: #{discriminator_forward.1} parent=1 // pred_check_branch
      %248 = sbr.rel (0) target = $region81
    $region80: #{discriminator_forward.1} parent=1 // pred_region
      %250 = vsyncadd [#allocation34], 0
      %s252 = sshll.u32 %s19, 4
      %s253 = int_to_ptr.hbm [resolvable:$true] %s252
      %s254 = sshll.u32 [#allocation35], 4
      %s255 = int_to_ptr.vmem [resolvable:$true] %s254
      %257 = dma.hbm_to_vmem [thread:$0]  %s253, 16, %s255, [#allocation34]
    $region81: #{discriminator_forward.1} parent=1 // pred_fallthru
      _
    // Predicated region
    $region82: #{discriminator_forward.1} parent=1 // pred_check
      _
    $region83: #{discriminator_forward.1} parent=1 // pred_check_branch
      %259 = sbr.rel (0) target = $region85
    $region84: #{discriminator_forward.1} parent=1 // pred_region
      %261 = vsyncadd [#allocation37], 0
      %s262 = sshll.u32 %s20, 4
      %s263 = int_to_ptr.hbm [resolvable:$true] %s262
      %s264 = sshll.u32 [#allocation36], 4
      %s265 = int_to_ptr.vmem [resolvable:$true] %s264
      %270 = dma.hbm_to_vmem [thread:$0]  %s263, 512, %s265, [#allocation37], 64, 64, 4
    $region85: #{discriminator_forward.1} parent=1 // pred_fallthru
      _
    // Predicated region
    $region86: #{discriminator_forward.1} parent=1 // pred_check
      _
    $region87: #{discriminator_forward.1} parent=1 // pred_check_branch
      %272 = sbr.rel (0) target = $region89
    $region88: #{discriminator_forward.1} parent=1 // pred_region
      %274 = vsyncadd [#allocation37], 0
      %s276 = sshll.u32 %s21, 4
      %s277 = int_to_ptr.hbm [resolvable:$true] %s276
      %s278 = sshll.u32 [#allocation38], 4
      %s279 = int_to_ptr.vmem [resolvable:$true] %s278
      %281 = dma.hbm_to_vmem [thread:$0]  %s277, 16, %s279, [#allocation37]
    $region89: #{discriminator_forward.1} parent=1 // pred_fallthru
      _
    // Predicated region
    $region90: #{discriminator_forward.1} parent=1 // pred_check
      _
    $region91: #{discriminator_forward.1} parent=1 // pred_check_branch
      %283 = sbr.rel (0) target = $region93
    $region92: #{discriminator_forward.1} parent=1 // pred_region
      %285 = dma.done [#allocation8], 384
    $region93: #{discriminator_forward.1} parent=1 // pred_fallthru
      _
    // Predicated region
    $region94: #{discriminator_forward.1} parent=1 // pred_check
      _
    $region95: #{discriminator_forward.1} parent=1 // pred_check_branch
      %287 = sbr.rel (0) target = $region97
    $region96: #{discriminator_forward.1} parent=1 // pred_region
      %289 = dma.done [#allocation10], 9984
    $region97: #{discriminator_forward.1} parent=1 // pred_fallthru
      _
    // Predicated region
    $region98: #{discriminator_forward.1} parent=1 // pred_check
      _
    $region99: #{discriminator_forward.1} parent=1 // pred_check_branch
      %291 = sbr.rel (0) target = $region101
    $region100: #{discriminator_forward.1} parent=1 // pred_region
      %293 = dma.done [#allocation10], 64
    $region101: #{discriminator_forward.1} parent=1 // pred_fallthru
      _
    // Predicated region
    $region102: #{discriminator_forward.1} parent=1 // pred_check
      _
    $region103: #{discriminator_forward.1} parent=1 // pred_check_branch
      %295 = sbr.rel (0) target = $region105
    $region104: #{discriminator_forward.1} parent=1 // pred_region
      %297 = dma.done [#allocation13], 49152
    $region105: #{discriminator_forward.1} parent=1 // pred_fallthru
      _
    // Predicated region
    $region106: #{discriminator_forward.1} parent=1 // pred_check
      _
    $region107: #{discriminator_forward.1} parent=1 // pred_check_branch
      %299 = sbr.rel (0) target = $region109
    $region108: #{discriminator_forward.1} parent=1 // pred_region
      %301 = dma.done [#allocation13], 192
    $region109: #{discriminator_forward.1} parent=1 // pred_fallthru
      _
    // Predicated region
    $region110: #{discriminator_forward.1} parent=1 // pred_check
      _
    $region111: #{discriminator_forward.1} parent=1 // pred_check_branch
      %303 = sbr.rel (0) target = $region113
    $region112: #{discriminator_forward.1} parent=1 // pred_region
      %305 = dma.done [#allocation16], 64
    $region113: #{discriminator_forward.1} parent=1 // pred_fallthru
      _
    // Predicated region
    $region114: #{discriminator_forward.1} parent=1 // pred_check
      _
    $region115: #{discriminator_forward.1} parent=1 // pred_check_branch
      %307 = sbr.rel (0) target = $region117
    $region116: #{discriminator_forward.1} parent=1 // pred_region
      %309 = dma.done [#allocation16], 64
    $region117: #{discriminator_forward.1} parent=1 // pred_fallthru
      _
    // Predicated region
    $region118: #{discriminator_forward.1} parent=1 // pred_check
      _
    $region119: #{discriminator_forward.1} parent=1 // pred_check_branch
      %311 = sbr.rel (0) target = $region121
    $region120: #{discriminator_forward.1} parent=1 // pred_region
      %313 = dma.done [#allocation19], 64
    $region121: #{discriminator_forward.1} parent=1 // pred_fallthru
      _
    // Predicated region
    $region122: #{discriminator_forward.1} parent=1 // pred_check
      _
    $region123: #{discriminator_forward.1} parent=1 // pred_check_branch
      %315 = sbr.rel (0) target = $region125
    $region124: #{discriminator_forward.1} parent=1 // pred_region
      %317 = dma.done [#allocation19], 128
    $region125: #{discriminator_forward.1} parent=1 // pred_fallthru
      _
    // Predicated region
    $region126: #{discriminator_forward.1} parent=1 // pred_check
      _
    $region127: #{discriminator_forward.1} parent=1 // pred_check_branch
      %319 = sbr.rel (0) target = $region129
    $region128: #{discriminator_forward.1} parent=1 // pred_region
      %321 = dma.done [#allocation22], 64
    $region129: #{discriminator_forward.1} parent=1 // pred_fallthru
      _
    // Predicated region
    $region130: #{discriminator_forward.1} parent=1 // pred_check
      _
    $region131: #{discriminator_forward.1} parent=1 // pred_check_branch
      %323 = sbr.rel (0) target = $region133
    $region132: #{discriminator_forward.1} parent=1 // pred_region
      %325 = dma.done [#allocation22], 64
    $region133: #{discriminator_forward.1} parent=1 // pred_fallthru
      _
    // Predicated region
    $region134: #{discriminator_forward.1} parent=1 // pred_check
      _
    $region135: #{discriminator_forward.1} parent=1 // pred_check_branch
      %327 = sbr.rel (0) target = $region137
    $region136: #{discriminator_forward.1} parent=1 // pred_region
      %329 = dma.done [#allocation25], 64
    $region137: #{discriminator_forward.1} parent=1 // pred_fallthru
      _
    // Predicated region
    $region138: #{discriminator_forward.1} parent=1 // pred_check
      _
    $region139: #{discriminator_forward.1} parent=1 // pred_check_branch
      %331 = sbr.rel (0) target = $region141
    $region140: #{discriminator_forward.1} parent=1 // pred_region
      %333 = dma.done [#allocation25], 8192
    $region141: #{discriminator_forward.1} parent=1 // pred_fallthru
      _
    // Predicated region
    $region142: #{discriminator_forward.1} parent=1 // pred_check
      _
    $region143: #{discriminator_forward.1} parent=1 // pred_check_branch
      %335 = sbr.rel (0) target = $region145
    $region144: #{discriminator_forward.1} parent=1 // pred_region
      %337 = dma.done [#allocation28], 32
    $region145: #{discriminator_forward.1} parent=1 // pred_fallthru
      _
    // Predicated region
    $region146: #{discriminator_forward.1} parent=1 // pred_check
      _
    $region147: #{discriminator_forward.1} parent=1 // pred_check_branch
      %339 = sbr.rel (0) target = $region149
    $region148: #{discriminator_forward.1} parent=1 // pred_region
      %341 = dma.done [#allocation28], 32
    $region149: #{discriminator_forward.1} parent=1 // pred_fallthru
      _
    // Predicated region
    $region150: #{discriminator_forward.1} parent=1 // pred_check
      _
    $region151: #{discriminator_forward.1} parent=1 // pred_check_branch
      %343 = sbr.rel (0) target = $region153
    $region152: #{discriminator_forward.1} parent=1 // pred_region
      %345 = dma.done [#allocation31], 32
    $region153: #{discriminator_forward.1} parent=1 // pred_fallthru
      _
    // Predicated region
    $region154: #{discriminator_forward.1} parent=1 // pred_check
      _
    $region155: #{discriminator_forward.1} parent=1 // pred_check_branch
      %347 = sbr.rel (0) target = $region157
    $region156: #{discriminator_forward.1} parent=1 // pred_region
      %349 = dma.done [#allocation31], 16
    $region157: #{discriminator_forward.1} parent=1 // pred_fallthru
      _
    // Predicated region
    $region158: #{discriminator_forward.1} parent=1 // pred_check
      _
    $region159: #{discriminator_forward.1} parent=1 // pred_check_branch
      %351 = sbr.rel (0) target = $region161
    $region160: #{discriminator_forward.1} parent=1 // pred_region
      %353 = dma.done [#allocation34], 16
    $region161: #{discriminator_forward.1} parent=1 // pred_fallthru
      _
    // Predicated region
    $region162: #{discriminator_forward.1} parent=1 // pred_check
      _
    $region163: #{discriminator_forward.1} parent=1 // pred_check_branch
      %355 = sbr.rel (0) target = $region165
    $region164: #{discriminator_forward.1} parent=1 // pred_region
      %357 = dma.done [#allocation34], 16
    $region165: #{discriminator_forward.1} parent=1 // pred_fallthru
      _
    // Predicated region
    $region166: #{discriminator_forward.1} parent=1 // pred_check
      _
    $region167: #{discriminator_forward.1} parent=1 // pred_check_branch
      %359 = sbr.rel (0) target = $region169
    $region168: #{discriminator_forward.1} parent=1 // pred_region
      %361 = dma.done [#allocation37], 512
    $region169: #{discriminator_forward.1} parent=1 // pred_fallthru
      _
    // Predicated region
    $region170: #{discriminator_forward.1} parent=1 // pred_check
      _
    $region171: #{discriminator_forward.1} parent=1 // pred_check_branch
      %363 = sbr.rel (0) target = $region173
    $region172: #{discriminator_forward.1} parent=1 // pred_region
      %365 = dma.done [#allocation37], 16
    $region173: #{discriminator_forward.1} parent=1 // pred_fallthru
      _
    // Predicated region
    $region174: #{discriminator_forward.1} parent=1 // pred_check
      _
    $region175: #{discriminator_forward.1} parent=1 // pred_check_branch
      %368 = sbr.rel target = $region177
    $region176: #{discriminator_forward.1} parent=1 // pred_region
      %369 = sst [smem:[#allocation41]] [#allocation40]
      %370 = sst [smem:[#allocation42]] [#allocation39]
    $region177: #{discriminator_forward.1} parent=1 // pred_fallthru
      _
    %372 = shalt.err (0)
    %s374 = sshll.u32 %s22, 4
    %s375 = int_to_ptr.hbm [resolvable:$true] %s374
    %s376 = sshll.u32 [#allocation3], 4
    %s377 = int_to_ptr.vmem [resolvable:$true] %s376
    %379 = dma.hbm_to_vmem [thread:$0]  %s375, 16384, %s377, [#allocation6]
    %s380 = scalar_lea.sflag [#allocation6], 1
    // Predicated region
    $region178: #{discriminator_forward.1} parent=1 // pred_check
      _
    $region179: #{discriminator_forward.1} parent=1 // pred_check_branch
      %382 = sbr.rel target = $region181
    $region180: #{discriminator_forward.1} parent=1 // pred_region
      %383 = sst [smem:[#allocation41]] [#allocation44]
      %384 = sst [smem:[#allocation42]] [#allocation43]
    $region181: #{discriminator_forward.1} parent=1 // pred_fallthru
      _
    %386 = shalt.err (0)
    %s388 = sshll.u32 %s23, 4
    %s389 = int_to_ptr.hbm [resolvable:$true] %s388
    %s390 = sshll.u32 [#allocation4], 4
    %s391 = int_to_ptr.vmem [resolvable:$true] %s390
    %393 = dma.hbm_to_vmem [thread:$0]  %s389, 32768, %s391, %s380
    %s394 = scalar_lea.sflag [#allocation6], 2
    // Predicated region
    $region182: #{discriminator_forward.1} parent=1 // pred_check
      _
    $region183: #{discriminator_forward.1} parent=1 // pred_check_branch
      %396 = sbr.rel target = $region185
    $region184: #{discriminator_forward.1} parent=1 // pred_region
      %397 = sst [smem:[#allocation41]] [#allocation46]
      %398 = sst [smem:[#allocation42]] [#allocation45]
    $region185: #{discriminator_forward.1} parent=1 // pred_fallthru
      _
    %400 = shalt.err (0)
    %s402 = sshll.u32 %s24, 4
    %s403 = int_to_ptr.hbm [resolvable:$true] %s402
    %s404 = sshll.u32 [#allocation5], 4
    %s405 = int_to_ptr.vmem [resolvable:$true] %s404
    %407 = dma.hbm_to_vmem [thread:$0]  %s403, 32768, %s405, %s394
    %v408 = vld [vmem:[#allocation7] sm:$0xff]
    %v409 = vld [vmem:[#allocation7 + $0x8] sm:$0xff]
    %v410 = vld [vmem:[#allocation7 + $0x10] sm:$0xff]
    %v411 = vpack.c.bf16 %v408, %v408
    %v412 = vpack.c.bf16 %v409, %v409
    %v413 = vpack.c.bf16 %v410, %v410
    %v414 = vld [vmem:[#allocation9] sm:$0xff]
    %v415 = vld [vmem:[#allocation9 + $0x8] sm:$0xff]
    %v416 = vld [vmem:[#allocation9 + $0x10] sm:$0xff]
    %v417 = vld [vmem:[#allocation9 + $0x18] sm:$0xff]
    %v418 = vld [vmem:[#allocation9 + $0x20] sm:$0xff]
    %v419 = vld [vmem:[#allocation9 + $0x28] sm:$0xff]
    %v420 = vld [vmem:[#allocation9 + $0x30] sm:$0xff]
    %v421 = vld [vmem:[#allocation9 + $0x38] sm:$0xff]
    %v422 = vld [vmem:[#allocation9 + $0x40] sm:$0xff]
    %v423 = vld [vmem:[#allocation9 + $0x48] sm:$0xff]
    %v424 = vld [vmem:[#allocation9 + $0x50] sm:$0xff]
    %v425 = vld [vmem:[#allocation9 + $0x58] sm:$0xff]
    %v426 = vld [vmem:[#allocation9 + $0x60] sm:$0xff]
    %v427 = vld [vmem:[#allocation9 + $0x68] sm:$0xff]
    %v428 = vld [vmem:[#allocation9 + $0x70] sm:$0xff]
    %v429 = vld [vmem:[#allocation9 + $0x78] sm:$0xff]
    %v430 = vld [vmem:[#allocation9 + $0x80] sm:$0xff]
    %v431 = vld [vmem:[#allocation9 + $0x88] sm:$0xff]
    %v432 = vld [vmem:[#allocation9 + $0x90] sm:$0xff]
    %v433 = vld [vmem:[#allocation9 + $0x98] sm:$0xff]
    %v434 = vld [vmem:[#allocation9 + $0xa0] sm:$0xff]
    %v435 = vld [vmem:[#allocation9 + $0xa8] sm:$0xff]
    %v436 = vld [vmem:[#allocation9 + $0xb0] sm:$0xff]
    %v437 = vld [vmem:[#allocation9 + $0xb8] sm:$0xff]
    %v438 = vld [vmem:[#allocation9 + $0xc0] sm:$0xff]
    %v439 = vld [vmem:[#allocation9 + $0xc8] sm:$0xff]
    %v440 = vld [vmem:[#allocation9 + $0xd0] sm:$0xff]
    %v441 = vld [vmem:[#allocation9 + $0xd8] sm:$0xff]
    %v442 = vld [vmem:[#allocation9 + $0xe0] sm:$0xff]
    %v443 = vld [vmem:[#allocation9 + $0xe8] sm:$0xff]
    %v444 = vld [vmem:[#allocation9 + $0xf0] sm:$0xff]
    %v445 = vld [vmem:[#allocation9 + $0xf8] sm:$0xff]
    %v446 = vld [vmem:[#allocation9 + $0x100] sm:$0xff]
    %v447 = vld [vmem:[#allocation9 + $0x108] sm:$0xff]
    %v448 = vld [vmem:[#allocation9 + $0x110] sm:$0xff]
    %v449 = vld [vmem:[#allocation9 + $0x118] sm:$0xff]
    %v450 = vld [vmem:[#allocation9 + $0x120] sm:$0xff]
    %v451 = vld [vmem:[#allocation9 + $0x128] sm:$0xff]
    %v452 = vld [vmem:[#allocation9 + $0x130] sm:$0xff]
    %v453 = vld [vmem:[#allocation9 + $0x138] sm:$0xff]
    %v454 = vld [vmem:[#allocation9 + $0x140] sm:$0xff]
    %v455 = vld [vmem:[#allocation9 + $0x148] sm:$0xff]
    %v456 = vld [vmem:[#allocation9 + $0x150] sm:$0xff]
    %v457 = vld [vmem:[#allocation9 + $0x158] sm:$0xff]
    %v458 = vld [vmem:[#allocation9 + $0x160] sm:$0xff]
    %v459 = vld [vmem:[#allocation9 + $0x168] sm:$0xff]
    %v460 = vld [vmem:[#allocation9 + $0x170] sm:$0xff]
    %v461 = vld [vmem:[#allocation9 + $0x178] sm:$0xff]
    %v462 = vld [vmem:[#allocation9 + $0x180] sm:$0xff]
    %v463 = vld [vmem:[#allocation9 + $0x188] sm:$0xff]
    %v464 = vld [vmem:[#allocation9 + $0x190] sm:$0xff]
    %v465 = vld [vmem:[#allocation9 + $0x198] sm:$0xff]
    %v466 = vld [vmem:[#allocation9 + $0x1a0] sm:$0xff]
    %v467 = vld [vmem:[#allocation9 + $0x1a8] sm:$0xff]
    %v468 = vld [vmem:[#allocation9 + $0x1b0] sm:$0xff]
    %v469 = vld [vmem:[#allocation9 + $0x1b8] sm:$0xff]
    %v470 = vld [vmem:[#allocation9 + $0x1c0] sm:$0xff]
    %v471 = vld [vmem:[#allocation9 + $0x1c8] sm:$0xff]
    %v472 = vld [vmem:[#allocation9 + $0x1d0] sm:$0xff]
    %v473 = vld [vmem:[#allocation9 + $0x1d8] sm:$0xff]
    %v474 = vld [vmem:[#allocation9 + $0x1e0] sm:$0xff]
    %v475 = vld [vmem:[#allocation9 + $0x1e8] sm:$0xff]
    %v476 = vld [vmem:[#allocation9 + $0x1f0] sm:$0xff]
    %v477 = vld [vmem:[#allocation9 + $0x1f8] sm:$0xff]
    %v478 = vld [vmem:[#allocation9 + $0x200] sm:$0xff]
    %v479 = vld [vmem:[#allocation9 + $0x208] sm:$0xff]
    %v480 = vld [vmem:[#allocation9 + $0x210] sm:$0xff]
    %v481 = vld [vmem:[#allocation9 + $0x218] sm:$0xff]
    %v482 = vld [vmem:[#allocation9 + $0x220] sm:$0xff]
    %v483 = vld [vmem:[#allocation9 + $0x228] sm:$0xff]
    %v484 = vld [vmem:[#allocation9 + $0x230] sm:$0xff]
    %v485 = vld [vmem:[#allocation9 + $0x238] sm:$0xff]
    %v486 = vld [vmem:[#allocation9 + $0x240] sm:$0xff]
    %v487 = vld [vmem:[#allocation9 + $0x248] sm:$0xff]
    %v488 = vld [vmem:[#allocation9 + $0x250] sm:$0xff]
    %v489 = vld [vmem:[#allocation9 + $0x258] sm:$0xff]
    %v490 = vld [vmem:[#allocation9 + $0x260] sm:$0xff]
    %v491 = vld [vmem:[#allocation9 + $0x268] sm:$0xff]
    %v492 = vld [vmem:[#allocation11] sm:$0xf]
    %v494 = vperm.slane %v492, 0
    %v495 = vperm.slane %v492, 1
    %v496 = vperm.slane %v492, 2
    %v497 = vperm.slane %v492, 3
    %v580 = vunpack.c.l.b16 %v414
    %v581 = vunpack.c.h.b16 %v414
    %v582 = vunpack.c.l.b16 %v415
    %v583 = vunpack.c.h.b16 %v415
    %v584 = vunpack.c.l.b16 %v416
    %v585 = vunpack.c.h.b16 %v416
    %v586 = vunpack.c.l.b16 %v417
    %v587 = vunpack.c.h.b16 %v417
    %v588 = vunpack.c.l.b16 %v418
    %v589 = vunpack.c.h.b16 %v418
    %v590 = vunpack.c.l.b16 %v419
    %v591 = vunpack.c.h.b16 %v419
    %v592 = vunpack.c.l.b16 %v420
    %v593 = vunpack.c.h.b16 %v420
    %v594 = vunpack.c.l.b16 %v421
    %v595 = vunpack.c.h.b16 %v421
    %v596 = vunpack.c.l.b16 %v422
    %v597 = vunpack.c.h.b16 %v422
    %v598 = vunpack.c.l.b16 %v423
    %v599 = vunpack.c.h.b16 %v423
    %v600 = vunpack.c.l.b16 %v424
    %v601 = vunpack.c.h.b16 %v424
    %v602 = vunpack.c.l.b16 %v425
    %v603 = vunpack.c.h.b16 %v425
    %v604 = vunpack.c.l.b16 %v426
    %v605 = vunpack.c.h.b16 %v426
    %v606 = vunpack.c.l.b16 %v427
    %v607 = vunpack.c.h.b16 %v427
    %v608 = vunpack.c.l.b16 %v428
    %v609 = vunpack.c.h.b16 %v428
    %v610 = vunpack.c.l.b16 %v429
    %v611 = vunpack.c.h.b16 %v429
    %v612 = vunpack.c.l.b16 %v430
    %v613 = vunpack.c.h.b16 %v430
    %v614 = vunpack.c.l.b16 %v431
    %v615 = vunpack.c.h.b16 %v431
    %v616 = vunpack.c.l.b16 %v432
    %v617 = vunpack.c.h.b16 %v432
    %v618 = vunpack.c.l.b16 %v433
    %v619 = vunpack.c.h.b16 %v433
    %v620 = vunpack.c.l.b16 %v434
    %v621 = vunpack.c.h.b16 %v434
    %v622 = vunpack.c.l.b16 %v435
    %v623 = vunpack.c.h.b16 %v435
    %v624 = vunpack.c.l.b16 %v436
    %v625 = vunpack.c.h.b16 %v436
    %v626 = vunpack.c.l.b16 %v437
    %v627 = vunpack.c.h.b16 %v437
    %v628 = vunpack.c.l.b16 %v438
    %v629 = vunpack.c.h.b16 %v438
    %v630 = vunpack.c.l.b16 %v439
    %v631 = vunpack.c.h.b16 %v439
    %v632 = vunpack.c.l.b16 %v440
    %v633 = vunpack.c.h.b16 %v440
    %v634 = vunpack.c.l.b16 %v441
    %v635 = vunpack.c.h.b16 %v441
    %v636 = vunpack.c.l.b16 %v442
    %v637 = vunpack.c.h.b16 %v442
    %v638 = vunpack.c.l.b16 %v443
    %v639 = vunpack.c.h.b16 %v443
    %v640 = vunpack.c.l.b16 %v444
    %v641 = vunpack.c.h.b16 %v444
    %v642 = vunpack.c.l.b16 %v445
    %v643 = vunpack.c.h.b16 %v445
    %v644 = vunpack.c.l.b16 %v446
    %v645 = vunpack.c.h.b16 %v446
    %v646 = vunpack.c.l.b16 %v447
    %v647 = vunpack.c.h.b16 %v447
    %v648 = vunpack.c.l.b16 %v448
    %v649 = vunpack.c.h.b16 %v448
    %v650 = vunpack.c.l.b16 %v449
    %v651 = vunpack.c.h.b16 %v449
    %v652 = vunpack.c.l.b16 %v450
    %v653 = vunpack.c.h.b16 %v450
    %v654 = vunpack.c.l.b16 %v451
    %v655 = vunpack.c.h.b16 %v451
    %v656 = vunpack.c.l.b16 %v452
    %v657 = vunpack.c.h.b16 %v452
    %v658 = vunpack.c.l.b16 %v453
    %v659 = vunpack.c.h.b16 %v453
    %v660 = vunpack.c.l.b16 %v454
    %v661 = vunpack.c.h.b16 %v454
    %v662 = vunpack.c.l.b16 %v455
    %v663 = vunpack.c.h.b16 %v455
    %v664 = vunpack.c.l.b16 %v456
    %v665 = vunpack.c.h.b16 %v456
    %v666 = vunpack.c.l.b16 %v457
    %v667 = vunpack.c.h.b16 %v457
    %v668 = vunpack.c.l.b16 %v458
    %v669 = vunpack.c.h.b16 %v458
    %v670 = vunpack.c.l.b16 %v459
    %v671 = vunpack.c.h.b16 %v459
    %v672 = vunpack.c.l.b16 %v460
    %v673 = vunpack.c.h.b16 %v460
    %v674 = vunpack.c.l.b16 %v461
    %v675 = vunpack.c.h.b16 %v461
    %v676 = vunpack.c.l.b16 %v462
    %v677 = vunpack.c.h.b16 %v462
    %v678 = vunpack.c.l.b16 %v463
    %v679 = vunpack.c.h.b16 %v463
    %v680 = vunpack.c.l.b16 %v464
    %v681 = vunpack.c.h.b16 %v464
    %v682 = vunpack.c.l.b16 %v465
    %v683 = vunpack.c.h.b16 %v465
    %v684 = vunpack.c.l.b16 %v466
    %v685 = vunpack.c.h.b16 %v466
    %v686 = vunpack.c.l.b16 %v467
    %v687 = vunpack.c.h.b16 %v467
    %v688 = vunpack.c.l.b16 %v468
    %v689 = vunpack.c.h.b16 %v468
    %v690 = vunpack.c.l.b16 %v469
    %v691 = vunpack.c.h.b16 %v469
    %v692 = vunpack.c.l.b16 %v470
    %v693 = vunpack.c.h.b16 %v470
    %v694 = vunpack.c.l.b16 %v471
    %v695 = vunpack.c.h.b16 %v471
    %v696 = vunpack.c.l.b16 %v472
    %v697 = vunpack.c.h.b16 %v472
    %v698 = vunpack.c.l.b16 %v473
    %v699 = vunpack.c.h.b16 %v473
    %v700 = vunpack.c.l.b16 %v474
    %v701 = vunpack.c.h.b16 %v474
    %v702 = vunpack.c.l.b16 %v475
    %v703 = vunpack.c.h.b16 %v475
    %v704 = vunpack.c.l.b16 %v476
    %v705 = vunpack.c.h.b16 %v476
    %v706 = vunpack.c.l.b16 %v477
    %v707 = vunpack.c.h.b16 %v477
    %v708 = vunpack.c.l.b16 %v478
    %v709 = vunpack.c.h.b16 %v478
    %v710 = vunpack.c.l.b16 %v479
    %v711 = vunpack.c.h.b16 %v479
    %v712 = vunpack.c.l.b16 %v480
    %v713 = vunpack.c.h.b16 %v480
    %v714 = vunpack.c.l.b16 %v481
    %v715 = vunpack.c.h.b16 %v481
    %v716 = vunpack.c.l.b16 %v482
    %v717 = vunpack.c.h.b16 %v482
    %v718 = vunpack.c.l.b16 %v483
    %v719 = vunpack.c.h.b16 %v483
    %v720 = vunpack.c.l.b16 %v484
    %v721 = vunpack.c.h.b16 %v484
    %v722 = vunpack.c.l.b16 %v485
    %v723 = vunpack.c.h.b16 %v485
    %v724 = vunpack.c.l.b16 %v486
    %v725 = vunpack.c.h.b16 %v486
    %v726 = vunpack.c.l.b16 %v487
    %v727 = vunpack.c.h.b16 %v487
    %v728 = vunpack.c.l.b16 %v488
    %v729 = vunpack.c.h.b16 %v488
    %v730 = vunpack.c.l.b16 %v489
    %v731 = vunpack.c.h.b16 %v489
    %v732 = vunpack.c.l.b16 %v490
    %v733 = vunpack.c.h.b16 %v490
    %v734 = vunpack.c.l.b16 %v491
    %v735 = vunpack.c.h.b16 %v491
    %v736 = vpack.c.b16 %v584, %v580
    %v737 = vpack.c.b16 %v585, %v581
    %v738 = vpack.c.b16 %v586, %v582
    %v739 = vpack.c.b16 %v587, %v583
    %v740 = vpack.c.b16 %v592, %v588
    %v741 = vpack.c.b16 %v593, %v589
    %v742 = vpack.c.b16 %v594, %v590
    %v743 = vpack.c.b16 %v595, %v591
    %v744 = vpack.c.b16 %v600, %v596
    %v745 = vpack.c.b16 %v601, %v597
    %v746 = vpack.c.b16 %v602, %v598
    %v747 = vpack.c.b16 %v603, %v599
    %v748 = vpack.c.b16 %v608, %v604
    %v749 = vpack.c.b16 %v609, %v605
    %v750 = vpack.c.b16 %v610, %v606
    %v751 = vpack.c.b16 %v611, %v607
    %v752 = vpack.c.b16 %v616, %v612
    %v753 = vpack.c.b16 %v617, %v613
    %v754 = vpack.c.b16 %v618, %v614
    %v755 = vpack.c.b16 %v619, %v615
    %v756 = vpack.c.b16 %v624, %v620
    %v757 = vpack.c.b16 %v625, %v621
    %v758 = vpack.c.b16 %v626, %v622
    %v759 = vpack.c.b16 %v627, %v623
    %v760 = vpack.c.b16 %v632, %v628
    %v761 = vpack.c.b16 %v633, %v629
    %v762 = vpack.c.b16 %v634, %v630
    %v763 = vpack.c.b16 %v635, %v631
    %v764 = vpack.c.b16 %v640, %v636
    %v765 = vpack.c.b16 %v641, %v637
    %v766 = vpack.c.b16 %v642, %v638
    %v767 = vpack.c.b16 %v643, %v639
    %v768 = vpack.c.b16 %v648, %v644
    %v769 = vpack.c.b16 %v649, %v645
    %v770 = vpack.c.b16 %v650, %v646
    %v771 = vpack.c.b16 %v651, %v647
    %v772 = vpack.c.b16 %v656, %v652
    %v773 = vpack.c.b16 %v657, %v653
    %v774 = vpack.c.b16 %v658, %v654
    %v775 = vpack.c.b16 %v659, %v655
    %v776 = vpack.c.b16 %v664, %v660
    %v777 = vpack.c.b16 %v665, %v661
    %v778 = vpack.c.b16 %v666, %v662
    %v779 = vpack.c.b16 %v667, %v663
    %v780 = vpack.c.b16 %v672, %v668
    %v781 = vpack.c.b16 %v673, %v669
    %v782 = vpack.c.b16 %v674, %v670
    %v783 = vpack.c.b16 %v675, %v671
    %v784 = vpack.c.b16 %v680, %v676
    %v785 = vpack.c.b16 %v681, %v677
    %v786 = vpack.c.b16 %v682, %v678
    %v787 = vpack.c.b16 %v683, %v679
    %v788 = vpack.c.b16 %v688, %v684
    %v789 = vpack.c.b16 %v689, %v685
    %v790 = vpack.c.b16 %v690, %v686
    %v791 = vpack.c.b16 %v691, %v687
    %v792 = vpack.c.b16 %v696, %v692
    %v793 = vpack.c.b16 %v697, %v693
    %v794 = vpack.c.b16 %v698, %v694
    %v795 = vpack.c.b16 %v699, %v695
    %v796 = vpack.c.b16 %v704, %v700
    %v797 = vpack.c.b16 %v705, %v701
    %v798 = vpack.c.b16 %v706, %v702
    %v799 = vpack.c.b16 %v707, %v703
    %v800 = vpack.c.b16 %v712, %v708
    %v801 = vpack.c.b16 %v713, %v709
    %v802 = vpack.c.b16 %v714, %v710
    %v803 = vpack.c.b16 %v715, %v711
    %v804 = vpack.c.b16 %v720, %v716
    %v805 = vpack.c.b16 %v721, %v717
    %v806 = vpack.c.b16 %v722, %v718
    %v807 = vpack.c.b16 %v723, %v719
    %v808 = vpack.c.b16 %v728, %v724
    %v809 = vpack.c.b16 %v729, %v725
    %v810 = vpack.c.b16 %v730, %v726
    %v811 = vpack.c.b16 %v731, %v727
    %v812 = vpack.c.b16 %v732, %v732
    %v813 = vpack.c.b16 %v733, %v733
    %v814 = vpack.c.b16 %v734, %v734
    %v815 = vpack.c.b16 %v735, %v735
    %vm892 = vcmask 457728
    %v894 = vsel %vm892, %v413, 0
    %vm896 = vcmask 1043456
    %v898 = vsel %vm896, %v812, 0
    %v901 = vsel %vm896, %v813, 0
    %v904 = vsel %vm896, %v814, 0
    %v907 = vsel %vm896, %v815, 0
    %909 = vmatpush.bf16.msra.mxu0 %v764
    %910 = vmatpush.bf16.msra.mxu0 %v760
    %911 = vmatpush.bf16.msra.mxu0 %v756
    %912 = vmatpush.bf16.msra.mxu0 %v752
    %913 = vmatpush.bf16.msra.mxu0 %v748
    %914 = vmatpush.bf16.msra.mxu0 %v744
    %915 = vmatpush.bf16.msra.mxu0 %v740
    %916 = vmatpush.bf16.msra.mxu0 %v736
    %917 = vmatmul.bf16.gmra.mxu0 %v411
    %v918 = vpop.f32.mrf.mxu0
    %v919 = vadd.f32 %v494, %v918
    %v920 = vpop.f32.mrf.mxu0
    %921 = vdwg.mxu0
    %922 = vmatpush.bf16.msra.mxu0 %v796
    %923 = vmatpush.bf16.msra.mxu0 %v792
    %924 = vmatpush.bf16.msra.mxu0 %v788
    %925 = vmatpush.bf16.msra.mxu0 %v784
    %926 = vmatpush.bf16.msra.mxu0 %v780
    %927 = vmatpush.bf16.msra.mxu0 %v776
    %928 = vmatpush.bf16.msra.mxu0 %v772
    %929 = vmatpush.bf16.msra.mxu0 %v768
    %930 = vmatmul.bf16.gmra.mxu0 %v412
    %v931 = vpop.f32.mrf.mxu0
    %v932 = vadd.f32 %v919, %v931
    %v933 = vpop.f32.mrf.mxu0
    %934 = vdwg.mxu0
    %935 = vmatpush.bf16.msra.mxu0 0
    %936 = vmatpush.bf16.msra.mxu0 0
    %937 = vmatpush.bf16.msra.mxu0 0
    %938 = vmatpush.bf16.msra.mxu0 0
    %939 = vmatpush.bf16.msra.mxu0 %v898
    %940 = vmatpush.bf16.msra.mxu0 %v808
    %941 = vmatpush.bf16.msra.mxu0 %v804
    %942 = vmatpush.bf16.msra.mxu0 %v800
    %943 = vmatmul.bf16.gmra.mxu0 %v894
    %v944 = vpop.f32.mrf.mxu0
    %v945 = vadd.f32 %v932, %v944
    %v946 = vpop.f32.mrf.mxu0
    %947 = vdwg.mxu0
    %948 = vmatpush.bf16.msra.mxu0 %v765
    %949 = vmatpush.bf16.msra.mxu0 %v761
    %950 = vmatpush.bf16.msra.mxu0 %v757
    %951 = vmatpush.bf16.msra.mxu0 %v753
    %952 = vmatpush.bf16.msra.mxu0 %v749
    %953 = vmatpush.bf16.msra.mxu0 %v745
    %954 = vmatpush.bf16.msra.mxu0 %v741
    %955 = vmatpush.bf16.msra.mxu0 %v737
    %956 = vmatmul.bf16.gmra.mxu0 %v411
    %v957 = vpop.f32.mrf.mxu0
    %v958 = vadd.f32 %v495, %v957
    %v959 = vpop.f32.mrf.mxu0
    %960 = vdwg.mxu0
    %961 = vmatpush.bf16.msra.mxu0 %v797
    %962 = vmatpush.bf16.msra.mxu0 %v793
    %963 = vmatpush.bf16.msra.mxu0 %v789
    %964 = vmatpush.bf16.msra.mxu0 %v785
    %965 = vmatpush.bf16.msra.mxu0 %v781
    %966 = vmatpush.bf16.msra.mxu0 %v777
    %967 = vmatpush.bf16.msra.mxu0 %v773
    %968 = vmatpush.bf16.msra.mxu0 %v769
    %969 = vmatmul.bf16.gmra.mxu0 %v412
    %v970 = vpop.f32.mrf.mxu0
    %v971 = vadd.f32 %v958, %v970
    %v972 = vpop.f32.mrf.mxu0
    %973 = vdwg.mxu0
    %974 = vmatpush.bf16.msra.mxu0 0
    %975 = vmatpush.bf16.msra.mxu0 0
    %976 = vmatpush.bf16.msra.mxu0 0
    %977 = vmatpush.bf16.msra.mxu0 0
    %978 = vmatpush.bf16.msra.mxu0 %v901
    %979 = vmatpush.bf16.msra.mxu0 %v809
    %980 = vmatpush.bf16.msra.mxu0 %v805
    %981 = vmatpush.bf16.msra.mxu0 %v801
    %982 = vmatmul.bf16.gmra.mxu0 %v894
    %v983 = vpop.f32.mrf.mxu0
    %v984 = vadd.f32 %v971, %v983
    %v985 = vpop.f32.mrf.mxu0
    %986 = vdwg.mxu0
    %987 = vmatpush.bf16.msra.mxu0 %v766
    %988 = vmatpush.bf16.msra.mxu0 %v762
    %989 = vmatpush.bf16.msra.mxu0 %v758
    %990 = vmatpush.bf16.msra.mxu0 %v754
    %991 = vmatpush.bf16.msra.mxu0 %v750
    %992 = vmatpush.bf16.msra.mxu0 %v746
    %993 = vmatpush.bf16.msra.mxu0 %v742
    %994 = vmatpush.bf16.msra.mxu0 %v738
    %995 = vmatmul.bf16.gmra.mxu0 %v411
    %v996 = vpop.f32.mrf.mxu0
    %v997 = vadd.f32 %v496, %v996
    %v998 = vpop.f32.mrf.mxu0
    %999 = vdwg.mxu0
    %1000 = vmatpush.bf16.msra.mxu0 %v798
    %1001 = vmatpush.bf16.msra.mxu0 %v794
    %1002 = vmatpush.bf16.msra.mxu0 %v790
    %1003 = vmatpush.bf16.msra.mxu0 %v786
    %1004 = vmatpush.bf16.msra.mxu0 %v782
    %1005 = vmatpush.bf16.msra.mxu0 %v778
    %1006 = vmatpush.bf16.msra.mxu0 %v774
    %1007 = vmatpush.bf16.msra.mxu0 %v770
    %1008 = vmatmul.bf16.gmra.mxu0 %v412
    %v1009 = vpop.f32.mrf.mxu0
    %v1010 = vadd.f32 %v997, %v1009
    %v1011 = vpop.f32.mrf.mxu0
    %1012 = vdwg.mxu0
    %1013 = vmatpush.bf16.msra.mxu0 0
    %1014 = vmatpush.bf16.msra.mxu0 0
    %1015 = vmatpush.bf16.msra.mxu0 0
    %1016 = vmatpush.bf16.msra.mxu0 0
    %1017 = vmatpush.bf16.msra.mxu0 %v904
    %1018 = vmatpush.bf16.msra.mxu0 %v810
    %1019 = vmatpush.bf16.msra.mxu0 %v806
    %1020 = vmatpush.bf16.msra.mxu0 %v802
    %1021 = vmatmul.bf16.gmra.mxu0 %v894
    %v1022 = vpop.f32.mrf.mxu0
    %v1023 = vadd.f32 %v1010, %v1022
    %v1024 = vpop.f32.mrf.mxu0
    %1025 = vdwg.mxu0
    %1026 = vmatpush.bf16.msra.mxu0 %v767
    %1027 = vmatpush.bf16.msra.mxu0 %v763
    %1028 = vmatpush.bf16.msra.mxu0 %v759
    %1029 = vmatpush.bf16.msra.mxu0 %v755
    %1030 = vmatpush.bf16.msra.mxu0 %v751
    %1031 = vmatpush.bf16.msra.mxu0 %v747
    %1032 = vmatpush.bf16.msra.mxu0 %v743
    %1033 = vmatpush.bf16.msra.mxu0 %v739
    %1034 = vmatmul.bf16.gmra.mxu0 %v411
    %v1035 = vpop.f32.mrf.mxu0
    %v1036 = vadd.f32 %v497, %v1035
    %v1037 = vpop.f32.mrf.mxu0
    %1038 = vdwg.mxu0
    %1039 = vmatpush.bf16.msra.mxu0 %v799
    %1040 = vmatpush.bf16.msra.mxu0 %v795
    %1041 = vmatpush.bf16.msra.mxu0 %v791
    %1042 = vmatpush.bf16.msra.mxu0 %v787
    %1043 = vmatpush.bf16.msra.mxu0 %v783
    %1044 = vmatpush.bf16.msra.mxu0 %v779
    %1045 = vmatpush.bf16.msra.mxu0 %v775
    %1046 = vmatpush.bf16.msra.mxu0 %v771
    %1047 = vmatmul.bf16.gmra.mxu0 %v412
    %v1048 = vpop.f32.mrf.mxu0
    %v1049 = vadd.f32 %v1036, %v1048
    %v1050 = vpop.f32.mrf.mxu0
    %1051 = vdwg.mxu0
    %1052 = vmatpush.bf16.msra.mxu0 0
    %1053 = vmatpush.bf16.msra.mxu0 0
    %1054 = vmatpush.bf16.msra.mxu0 0
    %1055 = vmatpush.bf16.msra.mxu0 0
    %1056 = vmatpush.bf16.msra.mxu0 %v907
    %1057 = vmatpush.bf16.msra.mxu0 %v811
    %1058 = vmatpush.bf16.msra.mxu0 %v807
    %1059 = vmatpush.bf16.msra.mxu0 %v803
    %1060 = vmatmul.bf16.gmra.mxu0 %v894
    %v1061 = vpop.f32.mrf.mxu0
    %v1062 = vadd.f32 %v1049, %v1061
    %v1063 = vpop.f32.mrf.mxu0
    %1064 = vdwg.mxu0
    %v1065 = vpack.c.bf16 %v945, %v945
    %v1066 = vpack.c.bf16 %v984, %v984
    %v1067 = vpack.c.bf16 %v1023, %v1023
    %v1068 = vpack.c.bf16 %v1062, %v1062
    %v1069 = vld [vmem:[#allocation12] sm:$0xff]
    %v1070 = vld [vmem:[#allocation12 + $0x8] sm:$0xff]
    %v1071 = vld [vmem:[#allocation12 + $0x10] sm:$0xff]
    %v1072 = vld [vmem:[#allocation12 + $0x18] sm:$0xff]
    %v1073 = vld [vmem:[#allocation12 + $0x20] sm:$0xff]
    %v1074 = vld [vmem:[#allocation12 + $0x28] sm:$0xff]
    %v1075 = vld [vmem:[#allocation12 + $0x30] sm:$0xff]
    %v1076 = vld [vmem:[#allocation12 + $0x38] sm:$0xff]
    %v1077 = vld [vmem:[#allocation12 + $0x40] sm:$0xff]
    %v1078 = vld [vmem:[#allocation12 + $0x48] sm:$0xff]
    %v1079 = vld [vmem:[#allocation12 + $0x50] sm:$0xff]
    %v1080 = vld [vmem:[#allocation12 + $0x58] sm:$0xff]
    %v1081 = vld [vmem:[#allocation12 + $0x60] sm:$0xff]
    %v1082 = vld [vmem:[#allocation12 + $0x68] sm:$0xff]
    %v1083 = vld [vmem:[#allocation12 + $0x70] sm:$0xff]
    %v1084 = vld [vmem:[#allocation12 + $0x78] sm:$0xff]
    %v1085 = vld [vmem:[#allocation12 + $0x80] sm:$0xff]
    %v1086 = vld [vmem:[#allocation12 + $0x88] sm:$0xff]
    %v1087 = vld [vmem:[#allocation12 + $0x90] sm:$0xff]
    %v1088 = vld [vmem:[#allocation12 + $0x98] sm:$0xff]
    %v1089 = vld [vmem:[#allocation12 + $0xa0] sm:$0xff]
    %v1090 = vld [vmem:[#allocation12 + $0xa8] sm:$0xff]
    %v1091 = vld [vmem:[#allocation12 + $0xb0] sm:$0xff]
    %v1092 = vld [vmem:[#allocation12 + $0xb8] sm:$0xff]
    %v1093 = vld [vmem:[#allocation12 + $0xc0] sm:$0xff]
    %v1094 = vld [vmem:[#allocation12 + $0xc8] sm:$0xff]
    %v1095 = vld [vmem:[#allocation12 + $0xd0] sm:$0xff]
    %v1096 = vld [vmem:[#allocation12 + $0xd8] sm:$0xff]
    %v1097 = vld [vmem:[#allocation12 + $0xe0] sm:$0xff]
    %v1098 = vld [vmem:[#allocation12 + $0xe8] sm:$0xff]
    %v1099 = vld [vmem:[#allocation12 + $0xf0] sm:$0xff]
    %v1100 = vld [vmem:[#allocation12 + $0xf8] sm:$0xff]
    %v1101 = vld [vmem:[#allocation12 + $0x100] sm:$0xff]
    %v1102 = vld [vmem:[#allocation12 + $0x108] sm:$0xff]
    %v1103 = vld [vmem:[#allocation12 + $0x110] sm:$0xff]
    %v1104 = vld [vmem:[#allocation12 + $0x118] sm:$0xff]
    %v1105 = vld [vmem:[#allocation12 + $0x120] sm:$0xff]
    %v1106 = vld [vmem:[#allocation12 + $0x128] sm:$0xff]
    %v1107 = vld [vmem:[#allocation12 + $0x130] sm:$0xff]
    %v1108 = vld [vmem:[#allocation12 + $0x138] sm:$0xff]
    %v1109 = vld [vmem:[#allocation12 + $0x140] sm:$0xff]
    %v1110 = vld [vmem:[#allocation12 + $0x148] sm:$0xff]
    %v1111 = vld [vmem:[#allocation12 + $0x150] sm:$0xff]
    %v1112 = vld [vmem:[#allocation12 + $0x158] sm:$0xff]
    %v1113 = vld [vmem:[#allocation12 + $0x160] sm:$0xff]
    %v1114 = vld [vmem:[#allocation12 + $0x168] sm:$0xff]
    %v1115 = vld [vmem:[#allocation12 + $0x170] sm:$0xff]
    %v1116 = vld [vmem:[#allocation12 + $0x178] sm:$0xff]
    %v1117 = vld [vmem:[#allocation12 + $0x180] sm:$0xff]
    %v1118 = vld [vmem:[#allocation12 + $0x188] sm:$0xff]
    %v1119 = vld [vmem:[#allocation12 + $0x190] sm:$0xff]
    %v1120 = vld [vmem:[#allocation12 + $0x198] sm:$0xff]
    %v1121 = vld [vmem:[#allocation12 + $0x1a0] sm:$0xff]
    %v1122 = vld [vmem:[#allocation12 + $0x1a8] sm:$0xff]
    %v1123 = vld [vmem:[#allocation12 + $0x1b0] sm:$0xff]
    %v1124 = vld [vmem:[#allocation12 + $0x1b8] sm:$0xff]
    %v1125 = vld [vmem:[#allocation12 + $0x1c0] sm:$0xff]
    %v1126 = vld [vmem:[#allocation12 + $0x1c8] sm:$0xff]
    %v1127 = vld [vmem:[#allocation12 + $0x1d0] sm:$0xff]
    %v1128 = vld [vmem:[#allocation12 + $0x1d8] sm:$0xff]
    %v1129 = vld [vmem:[#allocation12 + $0x1e0] sm:$0xff]
    %v1130 = vld [vmem:[#allocation12 + $0x1e8] sm:$0xff]
    %v1131 = vld [vmem:[#allocation12 + $0x1f0] sm:$0xff]
    %v1132 = vld [vmem:[#allocation12 + $0x1f8] sm:$0xff]
    %v1133 = vld [vmem:[#allocation12 + $0x200] sm:$0xff]
    %v1134 = vld [vmem:[#allocation12 + $0x208] sm:$0xff]
    %v1135 = vld [vmem:[#allocation12 + $0x210] sm:$0xff]
    %v1136 = vld [vmem:[#allocation12 + $0x218] sm:$0xff]
    %v1137 = vld [vmem:[#allocation12 + $0x220] sm:$0xff]
    %v1138 = vld [vmem:[#allocation12 + $0x228] sm:$0xff]
    %v1139 = vld [vmem:[#allocation12 + $0x230] sm:$0xff]
    %v1140 = vld [vmem:[#allocation12 + $0x238] sm:$0xff]
    %v1141 = vld [vmem:[#allocation12 + $0x240] sm:$0xff]
    %v1142 = vld [vmem:[#allocation12 + $0x248] sm:$0xff]
    %v1143 = vld [vmem:[#allocation12 + $0x250] sm:$0xff]
    %v1144 = vld [vmem:[#allocation12 + $0x258] sm:$0xff]
    %v1145 = vld [vmem:[#allocation12 + $0x260] sm:$0xff]
    %v1146 = vld [vmem:[#allocation12 + $0x268] sm:$0xff]
    %v1147 = vld [vmem:[#allocation12 + $0x270] sm:$0xff]
    %v1148 = vld [vmem:[#allocation12 + $0x278] sm:$0xff]
    %v1149 = vld [vmem:[#allocation12 + $0x280] sm:$0xff]
    %v1150 = vld [vmem:[#allocation12 + $0x288] sm:$0xff]
    %v1151 = vld [vmem:[#allocation12 + $0x290] sm:$0xff]
    %v1152 = vld [vmem:[#allocation12 + $0x298] sm:$0xff]
    %v1153 = vld [vmem:[#allocation12 + $0x2a0] sm:$0xff]
    %v1154 = vld [vmem:[#allocation12 + $0x2a8] sm:$0xff]
    %v1155 = vld [vmem:[#allocation12 + $0x2b0] sm:$0xff]
    %v1156 = vld [vmem:[#allocation12 + $0x2b8] sm:$0xff]
    %v1157 = vld [vmem:[#allocation12 + $0x2c0] sm:$0xff]
    %v1158 = vld [vmem:[#allocation12 + $0x2c8] sm:$0xff]
    %v1159 = vld [vmem:[#allocation12 + $0x2d0] sm:$0xff]
    %v1160 = vld [vmem:[#allocation12 + $0x2d8] sm:$0xff]
    %v1161 = vld [vmem:[#allocation12 + $0x2e0] sm:$0xff]
    %v1162 = vld [vmem:[#allocation12 + $0x2e8] sm:$0xff]
    %v1163 = vld [vmem:[#allocation12 + $0x2f0] sm:$0xff]
    %v1164 = vld [vmem:[#allocation12 + $0x2f8] sm:$0xff]
    %v1165 = vld [vmem:[#allocation12 + $0x300] sm:$0xff]
    %v1166 = vld [vmem:[#allocation12 + $0x308] sm:$0xff]
    %v1167 = vld [vmem:[#allocation12 + $0x310] sm:$0xff]
    %v1168 = vld [vmem:[#allocation12 + $0x318] sm:$0xff]
    %v1169 = vld [vmem:[#allocation12 + $0x320] sm:$0xff]
    %v1170 = vld [vmem:[#allocation12 + $0x328] sm:$0xff]
    %v1171 = vld [vmem:[#allocation12 + $0x330] sm:$0xff]
    %v1172 = vld [vmem:[#allocation12 + $0x338] sm:$0xff]
    %v1173 = vld [vmem:[#allocation12 + $0x340] sm:$0xff]
    %v1174 = vld [vmem:[#allocation12 + $0x348] sm:$0xff]
    %v1175 = vld [vmem:[#allocation12 + $0x350] sm:$0xff]
    %v1176 = vld [vmem:[#allocation12 + $0x358] sm:$0xff]
    %v1177 = vld [vmem:[#allocation12 + $0x360] sm:$0xff]
    %v1178 = vld [vmem:[#allocation12 + $0x368] sm:$0xff]
    %v1179 = vld [vmem:[#allocation12 + $0x370] sm:$0xff]
    %v1180 = vld [vmem:[#allocation12 + $0x378] sm:$0xff]
    %v1181 = vld [vmem:[#allocation12 + $0x380] sm:$0xff]
    %v1182 = vld [vmem:[#allocation12 + $0x388] sm:$0xff]
    %v1183 = vld [vmem:[#allocation12 + $0x390] sm:$0xff]
    %v1184 = vld [vmem:[#allocation12 + $0x398] sm:$0xff]
    %v1185 = vld [vmem:[#allocation12 + $0x3a0] sm:$0xff]
    %v1186 = vld [vmem:[#allocation12 + $0x3a8] sm:$0xff]
    %v1187 = vld [vmem:[#allocation12 + $0x3b0] sm:$0xff]
    %v1188 = vld [vmem:[#allocation12 + $0x3b8] sm:$0xff]
    %v1189 = vld [vmem:[#allocation12 + $0x3c0] sm:$0xff]
    %v1190 = vld [vmem:[#allocation12 + $0x3c8] sm:$0xff]
    %v1191 = vld [vmem:[#allocation12 + $0x3d0] sm:$0xff]
    %v1192 = vld [vmem:[#allocation12 + $0x3d8] sm:$0xff]
    %v1193 = vld [vmem:[#allocation12 + $0x3e0] sm:$0xff]
    %v1194 = vld [vmem:[#allocation12 + $0x3e8] sm:$0xff]
    %v1195 = vld [vmem:[#allocation12 + $0x3f0] sm:$0xff]
    %v1196 = vld [vmem:[#allocation12 + $0x3f8] sm:$0xff]
    %v1197 = vld [vmem:[#allocation12 + $0x400] sm:$0xff]
    %v1198 = vld [vmem:[#allocation12 + $0x408] sm:$0xff]
    %v1199 = vld [vmem:[#allocation12 + $0x410] sm:$0xff]
    %v1200 = vld [vmem:[#allocation12 + $0x418] sm:$0xff]
    %v1201 = vld [vmem:[#allocation12 + $0x420] sm:$0xff]
    %v1202 = vld [vmem:[#allocation12 + $0x428] sm:$0xff]
    %v1203 = vld [vmem:[#allocation12 + $0x430] sm:$0xff]
    %v1204 = vld [vmem:[#allocation12 + $0x438] sm:$0xff]
    %v1205 = vld [vmem:[#allocation12 + $0x440] sm:$0xff]
    %v1206 = vld [vmem:[#allocation12 + $0x448] sm:$0xff]
    %v1207 = vld [vmem:[#allocation12 + $0x450] sm:$0xff]
    %v1208 = vld [vmem:[#allocation12 + $0x458] sm:$0xff]
    %v1209 = vld [vmem:[#allocation12 + $0x460] sm:$0xff]
    %v1210 = vld [vmem:[#allocation12 + $0x468] sm:$0xff]
    %v1211 = vld [vmem:[#allocation12 + $0x470] sm:$0xff]
    %v1212 = vld [vmem:[#allocation12 + $0x478] sm:$0xff]
    %v1213 = vld [vmem:[#allocation12 + $0x480] sm:$0xff]
    %v1214 = vld [vmem:[#allocation12 + $0x488] sm:$0xff]
    %v1215 = vld [vmem:[#allocation12 + $0x490] sm:$0xff]
    %v1216 = vld [vmem:[#allocation12 + $0x498] sm:$0xff]
    %v1217 = vld [vmem:[#allocation12 + $0x4a0] sm:$0xff]
    %v1218 = vld [vmem:[#allocation12 + $0x4a8] sm:$0xff]
    %v1219 = vld [vmem:[#allocation12 + $0x4b0] sm:$0xff]
    %v1220 = vld [vmem:[#allocation12 + $0x4b8] sm:$0xff]
    %v1221 = vld [vmem:[#allocation12 + $0x4c0] sm:$0xff]
    %v1222 = vld [vmem:[#allocation12 + $0x4c8] sm:$0xff]
    %v1223 = vld [vmem:[#allocation12 + $0x4d0] sm:$0xff]
    %v1224 = vld [vmem:[#allocation12 + $0x4d8] sm:$0xff]
    %v1225 = vld [vmem:[#allocation12 + $0x4e0] sm:$0xff]
    %v1226 = vld [vmem:[#allocation12 + $0x4e8] sm:$0xff]
    %v1227 = vld [vmem:[#allocation12 + $0x4f0] sm:$0xff]
    %v1228 = vld [vmem:[#allocation12 + $0x4f8] sm:$0xff]
    %v1229 = vld [vmem:[#allocation12 + $0x500] sm:$0xff]
    %v1230 = vld [vmem:[#allocation12 + $0x508] sm:$0xff]
    %v1231 = vld [vmem:[#allocation12 + $0x510] sm:$0xff]
    %v1232 = vld [vmem:[#allocation12 + $0x518] sm:$0xff]
    %v1233 = vld [vmem:[#allocation12 + $0x520] sm:$0xff]
    %v1234 = vld [vmem:[#allocation12 + $0x528] sm:$0xff]
    %v1235 = vld [vmem:[#allocation12 + $0x530] sm:$0xff]
    %v1236 = vld [vmem:[#allocation12 + $0x538] sm:$0xff]
    %v1237 = vld [vmem:[#allocation12 + $0x540] sm:$0xff]
    %v1238 = vld [vmem:[#allocation12 + $0x548] sm:$0xff]
    %v1239 = vld [vmem:[#allocation12 + $0x550] sm:$0xff]
    %v1240 = vld [vmem:[#allocation12 + $0x558] sm:$0xff]
    %v1241 = vld [vmem:[#allocation12 + $0x560] sm:$0xff]
    %v1242 = vld [vmem:[#allocation12 + $0x568] sm:$0xff]
    %v1243 = vld [vmem:[#allocation12 + $0x570] sm:$0xff]
    %v1244 = vld [vmem:[#allocation12 + $0x578] sm:$0xff]
    %v1245 = vld [vmem:[#allocation12 + $0x580] sm:$0xff]
    %v1246 = vld [vmem:[#allocation12 + $0x588] sm:$0xff]
    %v1247 = vld [vmem:[#allocation12 + $0x590] sm:$0xff]
    %v1248 = vld [vmem:[#allocation12 + $0x598] sm:$0xff]
    %v1249 = vld [vmem:[#allocation12 + $0x5a0] sm:$0xff]
    %v1250 = vld [vmem:[#allocation12 + $0x5a8] sm:$0xff]
    %v1251 = vld [vmem:[#allocation12 + $0x5b0] sm:$0xff]
    %v1252 = vld [vmem:[#allocation12 + $0x5b8] sm:$0xff]
    %v1253 = vld [vmem:[#allocation12 + $0x5c0] sm:$0xff]
    %v1254 = vld [vmem:[#allocation12 + $0x5c8] sm:$0xff]
    %v1255 = vld [vmem:[#allocation12 + $0x5d0] sm:$0xff]
    %v1256 = vld [vmem:[#allocation12 + $0x5d8] sm:$0xff]
    %v1257 = vld [vmem:[#allocation12 + $0x5e0] sm:$0xff]
    %v1258 = vld [vmem:[#allocation12 + $0x5e8] sm:$0xff]
    %v1259 = vld [vmem:[#allocation12 + $0x5f0] sm:$0xff]
    %v1260 = vld [vmem:[#allocation12 + $0x5f8] sm:$0xff]
    %v1261 = vld [vmem:[#allocation12 + $0x600] sm:$0xff]
    %v1262 = vld [vmem:[#allocation12 + $0x608] sm:$0xff]
    %v1263 = vld [vmem:[#allocation12 + $0x610] sm:$0xff]
    %v1264 = vld [vmem:[#allocation12 + $0x618] sm:$0xff]
    %v1265 = vld [vmem:[#allocation12 + $0x620] sm:$0xff]
    %v1266 = vld [vmem:[#allocation12 + $0x628] sm:$0xff]
    %v1267 = vld [vmem:[#allocation12 + $0x630] sm:$0xff]
    %v1268 = vld [vmem:[#allocation12 + $0x638] sm:$0xff]
    %v1269 = vld [vmem:[#allocation12 + $0x640] sm:$0xff]
    %v1270 = vld [vmem:[#allocation12 + $0x648] sm:$0xff]
    %v1271 = vld [vmem:[#allocation12 + $0x650] sm:$0xff]
    %v1272 = vld [vmem:[#allocation12 + $0x658] sm:$0xff]
    %v1273 = vld [vmem:[#allocation12 + $0x660] sm:$0xff]
    %v1274 = vld [vmem:[#allocation12 + $0x668] sm:$0xff]
    %v1275 = vld [vmem:[#allocation12 + $0x670] sm:$0xff]
    %v1276 = vld [vmem:[#allocation12 + $0x678] sm:$0xff]
    %v1277 = vld [vmem:[#allocation12 + $0x680] sm:$0xff]
    %v1278 = vld [vmem:[#allocation12 + $0x688] sm:$0xff]
    %v1279 = vld [vmem:[#allocation12 + $0x690] sm:$0xff]
    %v1280 = vld [vmem:[#allocation12 + $0x698] sm:$0xff]
    %v1281 = vld [vmem:[#allocation12 + $0x6a0] sm:$0xff]
    %v1282 = vld [vmem:[#allocation12 + $0x6a8] sm:$0xff]
    %v1283 = vld [vmem:[#allocation12 + $0x6b0] sm:$0xff]
    %v1284 = vld [vmem:[#allocation12 + $0x6b8] sm:$0xff]
    %v1285 = vld [vmem:[#allocation12 + $0x6c0] sm:$0xff]
    %v1286 = vld [vmem:[#allocation12 + $0x6c8] sm:$0xff]
    %v1287 = vld [vmem:[#allocation12 + $0x6d0] sm:$0xff]
    %v1288 = vld [vmem:[#allocation12 + $0x6d8] sm:$0xff]
    %v1289 = vld [vmem:[#allocation12 + $0x6e0] sm:$0xff]
    %v1290 = vld [vmem:[#allocation12 + $0x6e8] sm:$0xff]
    %v1291 = vld [vmem:[#allocation12 + $0x6f0] sm:$0xff]
    %v1292 = vld [vmem:[#allocation12 + $0x6f8] sm:$0xff]
    %v1293 = vld [vmem:[#allocation12 + $0x700] sm:$0xff]
    %v1294 = vld [vmem:[#allocation12 + $0x708] sm:$0xff]
    %v1295 = vld [vmem:[#allocation12 + $0x710] sm:$0xff]
    %v1296 = vld [vmem:[#allocation12 + $0x718] sm:$0xff]
    %v1297 = vld [vmem:[#allocation12 + $0x720] sm:$0xff]
    %v1298 = vld [vmem:[#allocation12 + $0x728] sm:$0xff]
    %v1299 = vld [vmem:[#allocation12 + $0x730] sm:$0xff]
    %v1300 = vld [vmem:[#allocation12 + $0x738] sm:$0xff]
    %v1301 = vld [vmem:[#allocation12 + $0x740] sm:$0xff]
    %v1302 = vld [vmem:[#allocation12 + $0x748] sm:$0xff]
    %v1303 = vld [vmem:[#allocation12 + $0x750] sm:$0xff]
    %v1304 = vld [vmem:[#allocation12 + $0x758] sm:$0xff]
    %v1305 = vld [vmem:[#allocation12 + $0x760] sm:$0xff]
    %v1306 = vld [vmem:[#allocation12 + $0x768] sm:$0xff]
    %v1307 = vld [vmem:[#allocation12 + $0x770] sm:$0xff]
    %v1308 = vld [vmem:[#allocation12 + $0x778] sm:$0xff]
    %v1309 = vld [vmem:[#allocation12 + $0x780] sm:$0xff]
    %v1310 = vld [vmem:[#allocation12 + $0x788] sm:$0xff]
    %v1311 = vld [vmem:[#allocation12 + $0x790] sm:$0xff]
    %v1312 = vld [vmem:[#allocation12 + $0x798] sm:$0xff]
    %v1313 = vld [vmem:[#allocation12 + $0x7a0] sm:$0xff]
    %v1314 = vld [vmem:[#allocation12 + $0x7a8] sm:$0xff]
    %v1315 = vld [vmem:[#allocation12 + $0x7b0] sm:$0xff]
    %v1316 = vld [vmem:[#allocation12 + $0x7b8] sm:$0xff]
    %v1317 = vld [vmem:[#allocation12 + $0x7c0] sm:$0xff]
    %v1318 = vld [vmem:[#allocation12 + $0x7c8] sm:$0xff]
    %v1319 = vld [vmem:[#allocation12 + $0x7d0] sm:$0xff]
    %v1320 = vld [vmem:[#allocation12 + $0x7d8] sm:$0xff]
    %v1321 = vld [vmem:[#allocation12 + $0x7e0] sm:$0xff]
    %v1322 = vld [vmem:[#allocation12 + $0x7e8] sm:$0xff]
    %v1323 = vld [vmem:[#allocation12 + $0x7f0] sm:$0xff]
    %v1324 = vld [vmem:[#allocation12 + $0x7f8] sm:$0xff]
    %v1325 = vld [vmem:[#allocation12 + $0x800] sm:$0xff]
    %v1326 = vld [vmem:[#allocation12 + $0x808] sm:$0xff]
    %v1327 = vld [vmem:[#allocation12 + $0x810] sm:$0xff]
    %v1328 = vld [vmem:[#allocation12 + $0x818] sm:$0xff]
    %v1329 = vld [vmem:[#allocation12 + $0x820] sm:$0xff]
    %v1330 = vld [vmem:[#allocation12 + $0x828] sm:$0xff]
    %v1331 = vld [vmem:[#allocation12 + $0x830] sm:$0xff]
    %v1332 = vld [vmem:[#allocation12 + $0x838] sm:$0xff]
    %v1333 = vld [vmem:[#allocation12 + $0x840] sm:$0xff]
    %v1334 = vld [vmem:[#allocation12 + $0x848] sm:$0xff]
    %v1335 = vld [vmem:[#allocation12 + $0x850] sm:$0xff]
    %v1336 = vld [vmem:[#allocation12 + $0x858] sm:$0xff]
    %v1337 = vld [vmem:[#allocation12 + $0x860] sm:$0xff]
    %v1338 = vld [vmem:[#allocation12 + $0x868] sm:$0xff]
    %v1339 = vld [vmem:[#allocation12 + $0x870] sm:$0xff]
    %v1340 = vld [vmem:[#allocation12 + $0x878] sm:$0xff]
    %v1341 = vld [vmem:[#allocation12 + $0x880] sm:$0xff]
    %v1342 = vld [vmem:[#allocation12 + $0x888] sm:$0xff]
    %v1343 = vld [vmem:[#allocation12 + $0x890] sm:$0xff]
    %v1344 = vld [vmem:[#allocation12 + $0x898] sm:$0xff]
    %v1345 = vld [vmem:[#allocation12 + $0x8a0] sm:$0xff]
    %v1346 = vld [vmem:[#allocation12 + $0x8a8] sm:$0xff]
    %v1347 = vld [vmem:[#allocation12 + $0x8b0] sm:$0xff]
    %v1348 = vld [vmem:[#allocation12 + $0x8b8] sm:$0xff]
    %v1349 = vld [vmem:[#allocation12 + $0x8c0] sm:$0xff]
    %v1350 = vld [vmem:[#allocation12 + $0x8c8] sm:$0xff]
    %v1351 = vld [vmem:[#allocation12 + $0x8d0] sm:$0xff]
    %v1352 = vld [vmem:[#allocation12 + $0x8d8] sm:$0xff]
    %v1353 = vld [vmem:[#allocation12 + $0x8e0] sm:$0xff]
    %v1354 = vld [vmem:[#allocation12 + $0x8e8] sm:$0xff]
    %v1355 = vld [vmem:[#allocation12 + $0x8f0] sm:$0xff]
    %v1356 = vld [vmem:[#allocation12 + $0x8f8] sm:$0xff]
    %v1357 = vld [vmem:[#allocation12 + $0x900] sm:$0xff]
    %v1358 = vld [vmem:[#allocation12 + $0x908] sm:$0xff]
    %v1359 = vld [vmem:[#allocation12 + $0x910] sm:$0xff]
    %v1360 = vld [vmem:[#allocation12 + $0x918] sm:$0xff]
    %v1361 = vld [vmem:[#allocation12 + $0x920] sm:$0xff]
    %v1362 = vld [vmem:[#allocation12 + $0x928] sm:$0xff]
    %v1363 = vld [vmem:[#allocation12 + $0x930] sm:$0xff]
    %v1364 = vld [vmem:[#allocation12 + $0x938] sm:$0xff]
    %v1365 = vld [vmem:[#allocation12 + $0x940] sm:$0xff]
    %v1366 = vld [vmem:[#allocation12 + $0x948] sm:$0xff]
    %v1367 = vld [vmem:[#allocation12 + $0x950] sm:$0xff]
    %v1368 = vld [vmem:[#allocation12 + $0x958] sm:$0xff]
    %v1369 = vld [vmem:[#allocation12 + $0x960] sm:$0xff]
    %v1370 = vld [vmem:[#allocation12 + $0x968] sm:$0xff]
    %v1371 = vld [vmem:[#allocation12 + $0x970] sm:$0xff]
    %v1372 = vld [vmem:[#allocation12 + $0x978] sm:$0xff]
    %v1373 = vld [vmem:[#allocation12 + $0x980] sm:$0xff]
    %v1374 = vld [vmem:[#allocation12 + $0x988] sm:$0xff]
    %v1375 = vld [vmem:[#allocation12 + $0x990] sm:$0xff]
    %v1376 = vld [vmem:[#allocation12 + $0x998] sm:$0xff]
    %v1377 = vld [vmem:[#allocation12 + $0x9a0] sm:$0xff]
    %v1378 = vld [vmem:[#allocation12 + $0x9a8] sm:$0xff]
    %v1379 = vld [vmem:[#allocation12 + $0x9b0] sm:$0xff]
    %v1380 = vld [vmem:[#allocation12 + $0x9b8] sm:$0xff]
    %v1381 = vld [vmem:[#allocation12 + $0x9c0] sm:$0xff]
    %v1382 = vld [vmem:[#allocation12 + $0x9c8] sm:$0xff]
    %v1383 = vld [vmem:[#allocation12 + $0x9d0] sm:$0xff]
    %v1384 = vld [vmem:[#allocation12 + $0x9d8] sm:$0xff]
    %v1385 = vld [vmem:[#allocation12 + $0x9e0] sm:$0xff]
    %v1386 = vld [vmem:[#allocation12 + $0x9e8] sm:$0xff]
    %v1387 = vld [vmem:[#allocation12 + $0x9f0] sm:$0xff]
    %v1388 = vld [vmem:[#allocation12 + $0x9f8] sm:$0xff]
    %v1389 = vld [vmem:[#allocation12 + $0xa00] sm:$0xff]
    %v1390 = vld [vmem:[#allocation12 + $0xa08] sm:$0xff]
    %v1391 = vld [vmem:[#allocation12 + $0xa10] sm:$0xff]
    %v1392 = vld [vmem:[#allocation12 + $0xa18] sm:$0xff]
    %v1393 = vld [vmem:[#allocation12 + $0xa20] sm:$0xff]
    %v1394 = vld [vmem:[#allocation12 + $0xa28] sm:$0xff]
    %v1395 = vld [vmem:[#allocation12 + $0xa30] sm:$0xff]
    %v1396 = vld [vmem:[#allocation12 + $0xa38] sm:$0xff]
    %v1397 = vld [vmem:[#allocation12 + $0xa40] sm:$0xff]
    %v1398 = vld [vmem:[#allocation12 + $0xa48] sm:$0xff]
    %v1399 = vld [vmem:[#allocation12 + $0xa50] sm:$0xff]
    %v1400 = vld [vmem:[#allocation12 + $0xa58] sm:$0xff]
    %v1401 = vld [vmem:[#allocation12 + $0xa60] sm:$0xff]
    %v1402 = vld [vmem:[#allocation12 + $0xa68] sm:$0xff]
    %v1403 = vld [vmem:[#allocation12 + $0xa70] sm:$0xff]
    %v1404 = vld [vmem:[#allocation12 + $0xa78] sm:$0xff]
    %v1405 = vld [vmem:[#allocation12 + $0xa80] sm:$0xff]
    %v1406 = vld [vmem:[#allocation12 + $0xa88] sm:$0xff]
    %v1407 = vld [vmem:[#allocation12 + $0xa90] sm:$0xff]
    %v1408 = vld [vmem:[#allocation12 + $0xa98] sm:$0xff]
    %v1409 = vld [vmem:[#allocation12 + $0xaa0] sm:$0xff]
    %v1410 = vld [vmem:[#allocation12 + $0xaa8] sm:$0xff]
    %v1411 = vld [vmem:[#allocation12 + $0xab0] sm:$0xff]
    %v1412 = vld [vmem:[#allocation12 + $0xab8] sm:$0xff]
    %v1413 = vld [vmem:[#allocation12 + $0xac0] sm:$0xff]
    %v1414 = vld [vmem:[#allocation12 + $0xac8] sm:$0xff]
    %v1415 = vld [vmem:[#allocation12 + $0xad0] sm:$0xff]
    %v1416 = vld [vmem:[#allocation12 + $0xad8] sm:$0xff]
    %v1417 = vld [vmem:[#allocation12 + $0xae0] sm:$0xff]
    %v1418 = vld [vmem:[#allocation12 + $0xae8] sm:$0xff]
    %v1419 = vld [vmem:[#allocation12 + $0xaf0] sm:$0xff]
    %v1420 = vld [vmem:[#allocation12 + $0xaf8] sm:$0xff]
    %v1421 = vld [vmem:[#allocation12 + $0xb00] sm:$0xff]
    %v1422 = vld [vmem:[#allocation12 + $0xb08] sm:$0xff]
    %v1423 = vld [vmem:[#allocation12 + $0xb10] sm:$0xff]
    %v1424 = vld [vmem:[#allocation12 + $0xb18] sm:$0xff]
    %v1425 = vld [vmem:[#allocation12 + $0xb20] sm:$0xff]
    %v1426 = vld [vmem:[#allocation12 + $0xb28] sm:$0xff]
    %v1427 = vld [vmem:[#allocation12 + $0xb30] sm:$0xff]
    %v1428 = vld [vmem:[#allocation12 + $0xb38] sm:$0xff]
    %v1429 = vld [vmem:[#allocation12 + $0xb40] sm:$0xff]
    %v1430 = vld [vmem:[#allocation12 + $0xb48] sm:$0xff]
    %v1431 = vld [vmem:[#allocation12 + $0xb50] sm:$0xff]
    %v1432 = vld [vmem:[#allocation12 + $0xb58] sm:$0xff]
    %v1433 = vld [vmem:[#allocation12 + $0xb60] sm:$0xff]
    %v1434 = vld [vmem:[#allocation12 + $0xb68] sm:$0xff]
    %v1435 = vld [vmem:[#allocation12 + $0xb70] sm:$0xff]
    %v1436 = vld [vmem:[#allocation12 + $0xb78] sm:$0xff]
    %v1437 = vld [vmem:[#allocation12 + $0xb80] sm:$0xff]
    %v1438 = vld [vmem:[#allocation12 + $0xb88] sm:$0xff]
    %v1439 = vld [vmem:[#allocation12 + $0xb90] sm:$0xff]
    %v1440 = vld [vmem:[#allocation12 + $0xb98] sm:$0xff]
    %v1441 = vld [vmem:[#allocation12 + $0xba0] sm:$0xff]
    %v1442 = vld [vmem:[#allocation12 + $0xba8] sm:$0xff]
    %v1443 = vld [vmem:[#allocation12 + $0xbb0] sm:$0xff]
    %v1444 = vld [vmem:[#allocation12 + $0xbb8] sm:$0xff]
    %v1445 = vld [vmem:[#allocation12 + $0xbc0] sm:$0xff]
    %v1446 = vld [vmem:[#allocation12 + $0xbc8] sm:$0xff]
    %v1447 = vld [vmem:[#allocation12 + $0xbd0] sm:$0xff]
    %v1448 = vld [vmem:[#allocation12 + $0xbd8] sm:$0xff]
    %v1449 = vld [vmem:[#allocation12 + $0xbe0] sm:$0xff]
    %v1450 = vld [vmem:[#allocation12 + $0xbe8] sm:$0xff]
    %v1451 = vld [vmem:[#allocation12 + $0xbf0] sm:$0xff]
    %v1452 = vld [vmem:[#allocation12 + $0xbf8] sm:$0xff]
    %v1453 = vld [vmem:[#allocation14] sm:$0xff]
    %v1454 = vld [vmem:[#allocation14 + $0x8] sm:$0xf]
    %v1457 = vperm.slane %v1453, 0
    %v1458 = vperm.slane %v1453, 1
    %v1459 = vperm.slane %v1453, 2
    %v1460 = vperm.slane %v1453, 3
    %v1461 = vperm.slane %v1453, 4
    %v1462 = vperm.slane %v1453, 5
    %v1463 = vperm.slane %v1453, 6
    %v1464 = vperm.slane %v1453, 7
    %v1465 = vperm.slane %v1454, 0
    %v1466 = vperm.slane %v1454, 1
    %v1467 = vperm.slane %v1454, 2
    %v1468 = vperm.slane %v1454, 3
    %v1865 = vunpack.c.l.b16 %v1069
    %v1866 = vunpack.c.h.b16 %v1069
    %v1867 = vunpack.c.l.b16 %v1070
    %v1868 = vunpack.c.h.b16 %v1070
    %v1869 = vunpack.c.l.b16 %v1071
    %v1870 = vunpack.c.h.b16 %v1071
    %v1871 = vunpack.c.l.b16 %v1072
    %v1872 = vunpack.c.h.b16 %v1072
    %v1873 = vunpack.c.l.b16 %v1073
    %v1874 = vunpack.c.h.b16 %v1073
    %v1875 = vunpack.c.l.b16 %v1074
    %v1876 = vunpack.c.h.b16 %v1074
    %v1877 = vunpack.c.l.b16 %v1075
    %v1878 = vunpack.c.h.b16 %v1075
    %v1879 = vunpack.c.l.b16 %v1076
    %v1880 = vunpack.c.h.b16 %v1076
    %v1881 = vunpack.c.l.b16 %v1077
    %v1882 = vunpack.c.h.b16 %v1077
    %v1883 = vunpack.c.l.b16 %v1078
    %v1884 = vunpack.c.h.b16 %v1078
    %v1885 = vunpack.c.l.b16 %v1079
    %v1886 = vunpack.c.h.b16 %v1079
    %v1887 = vunpack.c.l.b16 %v1080
    %v1888 = vunpack.c.h.b16 %v1080
    %v1889 = vunpack.c.l.b16 %v1081
    %v1890 = vunpack.c.h.b16 %v1081
    %v1891 = vunpack.c.l.b16 %v1082
    %v1892 = vunpack.c.h.b16 %v1082
    %v1893 = vunpack.c.l.b16 %v1083
    %v1894 = vunpack.c.h.b16 %v1083
    %v1895 = vunpack.c.l.b16 %v1084
    %v1896 = vunpack.c.h.b16 %v1084
    %v1897 = vunpack.c.l.b16 %v1085
    %v1898 = vunpack.c.h.b16 %v1085
    %v1899 = vunpack.c.l.b16 %v1086
    %v1900 = vunpack.c.h.b16 %v1086
    %v1901 = vunpack.c.l.b16 %v1087
    %v1902 = vunpack.c.h.b16 %v1087
    %v1903 = vunpack.c.l.b16 %v1088
    %v1904 = vunpack.c.h.b16 %v1088
    %v1905 = vunpack.c.l.b16 %v1089
    %v1906 = vunpack.c.h.b16 %v1089
    %v1907 = vunpack.c.l.b16 %v1090
    %v1908 = vunpack.c.h.b16 %v1090
    %v1909 = vunpack.c.l.b16 %v1091
    %v1910 = vunpack.c.h.b16 %v1091
    %v1911 = vunpack.c.l.b16 %v1092
    %v1912 = vunpack.c.h.b16 %v1092
    %v1913 = vunpack.c.l.b16 %v1093
    %v1914 = vunpack.c.h.b16 %v1093
    %v1915 = vunpack.c.l.b16 %v1094
    %v1916 = vunpack.c.h.b16 %v1094
    %v1917 = vunpack.c.l.b16 %v1095
    %v1918 = vunpack.c.h.b16 %v1095
    %v1919 = vunpack.c.l.b16 %v1096
    %v1920 = vunpack.c.h.b16 %v1096
    %v1921 = vunpack.c.l.b16 %v1097
    %v1922 = vunpack.c.h.b16 %v1097
    %v1923 = vunpack.c.l.b16 %v1098
    %v1924 = vunpack.c.h.b16 %v1098
    %v1925 = vunpack.c.l.b16 %v1099
    %v1926 = vunpack.c.h.b16 %v1099
    %v1927 = vunpack.c.l.b16 %v1100
    %v1928 = vunpack.c.h.b16 %v1100
    %v1929 = vunpack.c.l.b16 %v1101
    %v1930 = vunpack.c.h.b16 %v1101
    %v1931 = vunpack.c.l.b16 %v1102
    %v1932 = vunpack.c.h.b16 %v1102
    %v1933 = vunpack.c.l.b16 %v1103
    %v1934 = vunpack.c.h.b16 %v1103
    %v1935 = vunpack.c.l.b16 %v1104
    %v1936 = vunpack.c.h.b16 %v1104
    %v1937 = vunpack.c.l.b16 %v1105
    %v1938 = vunpack.c.h.b16 %v1105
    %v1939 = vunpack.c.l.b16 %v1106
    %v1940 = vunpack.c.h.b16 %v1106
    %v1941 = vunpack.c.l.b16 %v1107
    %v1942 = vunpack.c.h.b16 %v1107
    %v1943 = vunpack.c.l.b16 %v1108
    %v1944 = vunpack.c.h.b16 %v1108
    %v1945 = vunpack.c.l.b16 %v1109
    %v1946 = vunpack.c.h.b16 %v1109
    %v1947 = vunpack.c.l.b16 %v1110
    %v1948 = vunpack.c.h.b16 %v1110
    %v1949 = vunpack.c.l.b16 %v1111
    %v1950 = vunpack.c.h.b16 %v1111
    %v1951 = vunpack.c.l.b16 %v1112
    %v1952 = vunpack.c.h.b16 %v1112
    %v1953 = vunpack.c.l.b16 %v1113
    %v1954 = vunpack.c.h.b16 %v1113
    %v1955 = vunpack.c.l.b16 %v1114
    %v1956 = vunpack.c.h.b16 %v1114
    %v1957 = vunpack.c.l.b16 %v1115
    %v1958 = vunpack.c.h.b16 %v1115
    %v1959 = vunpack.c.l.b16 %v1116
    %v1960 = vunpack.c.h.b16 %v1116
    %v1961 = vunpack.c.l.b16 %v1117
    %v1962 = vunpack.c.h.b16 %v1117
    %v1963 = vunpack.c.l.b16 %v1118
    %v1964 = vunpack.c.h.b16 %v1118
    %v1965 = vunpack.c.l.b16 %v1119
    %v1966 = vunpack.c.h.b16 %v1119
    %v1967 = vunpack.c.l.b16 %v1120
    %v1968 = vunpack.c.h.b16 %v1120
    %v1969 = vunpack.c.l.b16 %v1121
    %v1970 = vunpack.c.h.b16 %v1121
    %v1971 = vunpack.c.l.b16 %v1122
    %v1972 = vunpack.c.h.b16 %v1122
    %v1973 = vunpack.c.l.b16 %v1123
    %v1974 = vunpack.c.h.b16 %v1123
    %v1975 = vunpack.c.l.b16 %v1124
    %v1976 = vunpack.c.h.b16 %v1124
    %v1977 = vunpack.c.l.b16 %v1125
    %v1978 = vunpack.c.h.b16 %v1125
    %v1979 = vunpack.c.l.b16 %v1126
    %v1980 = vunpack.c.h.b16 %v1126
    %v1981 = vunpack.c.l.b16 %v1127
    %v1982 = vunpack.c.h.b16 %v1127
    %v1983 = vunpack.c.l.b16 %v1128
    %v1984 = vunpack.c.h.b16 %v1128
    %v1985 = vunpack.c.l.b16 %v1129
    %v1986 = vunpack.c.h.b16 %v1129
    %v1987 = vunpack.c.l.b16 %v1130
    %v1988 = vunpack.c.h.b16 %v1130
    %v1989 = vunpack.c.l.b16 %v1131
    %v1990 = vunpack.c.h.b16 %v1131
    %v1991 = vunpack.c.l.b16 %v1132
    %v1992 = vunpack.c.h.b16 %v1132
    %v1993 = vunpack.c.l.b16 %v1133
    %v1994 = vunpack.c.h.b16 %v1133
    %v1995 = vunpack.c.l.b16 %v1134
    %v1996 = vunpack.c.h.b16 %v1134
    %v1997 = vunpack.c.l.b16 %v1135
    %v1998 = vunpack.c.h.b16 %v1135
    %v1999 = vunpack.c.l.b16 %v1136
    %v2000 = vunpack.c.h.b16 %v1136
    %v2001 = vunpack.c.l.b16 %v1137
    %v2002 = vunpack.c.h.b16 %v1137
    %v2003 = vunpack.c.l.b16 %v1138
    %v2004 = vunpack.c.h.b16 %v1138
    %v2005 = vunpack.c.l.b16 %v1139
    %v2006 = vunpack.c.h.b16 %v1139
    %v2007 = vunpack.c.l.b16 %v1140
    %v2008 = vunpack.c.h.b16 %v1140
    %v2009 = vunpack.c.l.b16 %v1141
    %v2010 = vunpack.c.h.b16 %v1141
    %v2011 = vunpack.c.l.b16 %v1142
    %v2012 = vunpack.c.h.b16 %v1142
    %v2013 = vunpack.c.l.b16 %v1143
    %v2014 = vunpack.c.h.b16 %v1143
    %v2015 = vunpack.c.l.b16 %v1144
    %v2016 = vunpack.c.h.b16 %v1144
    %v2017 = vunpack.c.l.b16 %v1145
    %v2018 = vunpack.c.h.b16 %v1145
    %v2019 = vunpack.c.l.b16 %v1146
    %v2020 = vunpack.c.h.b16 %v1146
    %v2021 = vunpack.c.l.b16 %v1147
    %v2022 = vunpack.c.h.b16 %v1147
    %v2023 = vunpack.c.l.b16 %v1148
    %v2024 = vunpack.c.h.b16 %v1148
    %v2025 = vunpack.c.l.b16 %v1149
    %v2026 = vunpack.c.h.b16 %v1149
    %v2027 = vunpack.c.l.b16 %v1150
    %v2028 = vunpack.c.h.b16 %v1150
    %v2029 = vunpack.c.l.b16 %v1151
    %v2030 = vunpack.c.h.b16 %v1151
    %v2031 = vunpack.c.l.b16 %v1152
    %v2032 = vunpack.c.h.b16 %v1152
    %v2033 = vunpack.c.l.b16 %v1153
    %v2034 = vunpack.c.h.b16 %v1153
    %v2035 = vunpack.c.l.b16 %v1154
    %v2036 = vunpack.c.h.b16 %v1154
    %v2037 = vunpack.c.l.b16 %v1155
    %v2038 = vunpack.c.h.b16 %v1155
    %v2039 = vunpack.c.l.b16 %v1156
    %v2040 = vunpack.c.h.b16 %v1156
    %v2041 = vunpack.c.l.b16 %v1157
    %v2042 = vunpack.c.h.b16 %v1157
    %v2043 = vunpack.c.l.b16 %v1158
    %v2044 = vunpack.c.h.b16 %v1158
    %v2045 = vunpack.c.l.b16 %v1159
    %v2046 = vunpack.c.h.b16 %v1159
    %v2047 = vunpack.c.l.b16 %v1160
    %v2048 = vunpack.c.h.b16 %v1160
    %v2049 = vunpack.c.l.b16 %v1161
    %v2050 = vunpack.c.h.b16 %v1161
    %v2051 = vunpack.c.l.b16 %v1162
    %v2052 = vunpack.c.h.b16 %v1162
    %v2053 = vunpack.c.l.b16 %v1163
    %v2054 = vunpack.c.h.b16 %v1163
    %v2055 = vunpack.c.l.b16 %v1164
    %v2056 = vunpack.c.h.b16 %v1164
    %v2057 = vunpack.c.l.b16 %v1165
    %v2058 = vunpack.c.h.b16 %v1165
    %v2059 = vunpack.c.l.b16 %v1166
    %v2060 = vunpack.c.h.b16 %v1166
    %v2061 = vunpack.c.l.b16 %v1167
    %v2062 = vunpack.c.h.b16 %v1167
    %v2063 = vunpack.c.l.b16 %v1168
    %v2064 = vunpack.c.h.b16 %v1168
    %v2065 = vunpack.c.l.b16 %v1169
    %v2066 = vunpack.c.h.b16 %v1169
    %v2067 = vunpack.c.l.b16 %v1170
    %v2068 = vunpack.c.h.b16 %v1170
    %v2069 = vunpack.c.l.b16 %v1171
    %v2070 = vunpack.c.h.b16 %v1171
    %v2071 = vunpack.c.l.b16 %v1172
    %v2072 = vunpack.c.h.b16 %v1172
    %v2073 = vunpack.c.l.b16 %v1173
    %v2074 = vunpack.c.h.b16 %v1173
    %v2075 = vunpack.c.l.b16 %v1174
    %v2076 = vunpack.c.h.b16 %v1174
    %v2077 = vunpack.c.l.b16 %v1175
    %v2078 = vunpack.c.h.b16 %v1175
    %v2079 = vunpack.c.l.b16 %v1176
    %v2080 = vunpack.c.h.b16 %v1176
    %v2081 = vunpack.c.l.b16 %v1177
    %v2082 = vunpack.c.h.b16 %v1177
    %v2083 = vunpack.c.l.b16 %v1178
    %v2084 = vunpack.c.h.b16 %v1178
    %v2085 = vunpack.c.l.b16 %v1179
    %v2086 = vunpack.c.h.b16 %v1179
    %v2087 = vunpack.c.l.b16 %v1180
    %v2088 = vunpack.c.h.b16 %v1180
    %v2089 = vunpack.c.l.b16 %v1181
    %v2090 = vunpack.c.h.b16 %v1181
    %v2091 = vunpack.c.l.b16 %v1182
    %v2092 = vunpack.c.h.b16 %v1182
    %v2093 = vunpack.c.l.b16 %v1183
    %v2094 = vunpack.c.h.b16 %v1183
    %v2095 = vunpack.c.l.b16 %v1184
    %v2096 = vunpack.c.h.b16 %v1184
    %v2097 = vunpack.c.l.b16 %v1185
    %v2098 = vunpack.c.h.b16 %v1185
    %v2099 = vunpack.c.l.b16 %v1186
    %v2100 = vunpack.c.h.b16 %v1186
    %v2101 = vunpack.c.l.b16 %v1187
    %v2102 = vunpack.c.h.b16 %v1187
    %v2103 = vunpack.c.l.b16 %v1188
    %v2104 = vunpack.c.h.b16 %v1188
    %v2105 = vunpack.c.l.b16 %v1189
    %v2106 = vunpack.c.h.b16 %v1189
    %v2107 = vunpack.c.l.b16 %v1190
    %v2108 = vunpack.c.h.b16 %v1190
    %v2109 = vunpack.c.l.b16 %v1191
    %v2110 = vunpack.c.h.b16 %v1191
    %v2111 = vunpack.c.l.b16 %v1192
    %v2112 = vunpack.c.h.b16 %v1192
    %v2113 = vunpack.c.l.b16 %v1193
    %v2114 = vunpack.c.h.b16 %v1193
    %v2115 = vunpack.c.l.b16 %v1194
    %v2116 = vunpack.c.h.b16 %v1194
    %v2117 = vunpack.c.l.b16 %v1195
    %v2118 = vunpack.c.h.b16 %v1195
    %v2119 = vunpack.c.l.b16 %v1196
    %v2120 = vunpack.c.h.b16 %v1196
    %v2121 = vunpack.c.l.b16 %v1197
    %v2122 = vunpack.c.h.b16 %v1197
    %v2123 = vunpack.c.l.b16 %v1198
    %v2124 = vunpack.c.h.b16 %v1198
    %v2125 = vunpack.c.l.b16 %v1199
    %v2126 = vunpack.c.h.b16 %v1199
    %v2127 = vunpack.c.l.b16 %v1200
    %v2128 = vunpack.c.h.b16 %v1200
    %v2129 = vunpack.c.l.b16 %v1201
    %v2130 = vunpack.c.h.b16 %v1201
    %v2131 = vunpack.c.l.b16 %v1202
    %v2132 = vunpack.c.h.b16 %v1202
    %v2133 = vunpack.c.l.b16 %v1203
    %v2134 = vunpack.c.h.b16 %v1203
    %v2135 = vunpack.c.l.b16 %v1204
    %v2136 = vunpack.c.h.b16 %v1204
    %v2137 = vunpack.c.l.b16 %v1205
    %v2138 = vunpack.c.h.b16 %v1205
    %v2139 = vunpack.c.l.b16 %v1206
    %v2140 = vunpack.c.h.b16 %v1206
    %v2141 = vunpack.c.l.b16 %v1207
    %v2142 = vunpack.c.h.b16 %v1207
    %v2143 = vunpack.c.l.b16 %v1208
    %v2144 = vunpack.c.h.b16 %v1208
    %v2145 = vunpack.c.l.b16 %v1209
    %v2146 = vunpack.c.h.b16 %v1209
    %v2147 = vunpack.c.l.b16 %v1210
    %v2148 = vunpack.c.h.b16 %v1210
    %v2149 = vunpack.c.l.b16 %v1211
    %v2150 = vunpack.c.h.b16 %v1211
    %v2151 = vunpack.c.l.b16 %v1212
    %v2152 = vunpack.c.h.b16 %v1212
    %v2153 = vunpack.c.l.b16 %v1213
    %v2154 = vunpack.c.h.b16 %v1213
    %v2155 = vunpack.c.l.b16 %v1214
    %v2156 = vunpack.c.h.b16 %v1214
    %v2157 = vunpack.c.l.b16 %v1215
    %v2158 = vunpack.c.h.b16 %v1215
    %v2159 = vunpack.c.l.b16 %v1216
    %v2160 = vunpack.c.h.b16 %v1216
    %v2161 = vunpack.c.l.b16 %v1217
    %v2162 = vunpack.c.h.b16 %v1217
    %v2163 = vunpack.c.l.b16 %v1218
    %v2164 = vunpack.c.h.b16 %v1218
    %v2165 = vunpack.c.l.b16 %v1219
    %v2166 = vunpack.c.h.b16 %v1219
    %v2167 = vunpack.c.l.b16 %v1220
    %v2168 = vunpack.c.h.b16 %v1220
    %v2169 = vunpack.c.l.b16 %v1221
    %v2170 = vunpack.c.h.b16 %v1221
    %v2171 = vunpack.c.l.b16 %v1222
    %v2172 = vunpack.c.h.b16 %v1222
    %v2173 = vunpack.c.l.b16 %v1223
    %v2174 = vunpack.c.h.b16 %v1223
    %v2175 = vunpack.c.l.b16 %v1224
    %v2176 = vunpack.c.h.b16 %v1224
    %v2177 = vunpack.c.l.b16 %v1225
    %v2178 = vunpack.c.h.b16 %v1225
    %v2179 = vunpack.c.l.b16 %v1226
    %v2180 = vunpack.c.h.b16 %v1226
    %v2181 = vunpack.c.l.b16 %v1227
    %v2182 = vunpack.c.h.b16 %v1227
    %v2183 = vunpack.c.l.b16 %v1228
    %v2184 = vunpack.c.h.b16 %v1228
    %v2185 = vunpack.c.l.b16 %v1229
    %v2186 = vunpack.c.h.b16 %v1229
    %v2187 = vunpack.c.l.b16 %v1230
    %v2188 = vunpack.c.h.b16 %v1230
    %v2189 = vunpack.c.l.b16 %v1231
    %v2190 = vunpack.c.h.b16 %v1231
    %v2191 = vunpack.c.l.b16 %v1232
    %v2192 = vunpack.c.h.b16 %v1232
    %v2193 = vunpack.c.l.b16 %v1233
    %v2194 = vunpack.c.h.b16 %v1233
    %v2195 = vunpack.c.l.b16 %v1234
    %v2196 = vunpack.c.h.b16 %v1234
    %v2197 = vunpack.c.l.b16 %v1235
    %v2198 = vunpack.c.h.b16 %v1235
    %v2199 = vunpack.c.l.b16 %v1236
    %v2200 = vunpack.c.h.b16 %v1236
    %v2201 = vunpack.c.l.b16 %v1237
    %v2202 = vunpack.c.h.b16 %v1237
    %v2203 = vunpack.c.l.b16 %v1238
    %v2204 = vunpack.c.h.b16 %v1238
    %v2205 = vunpack.c.l.b16 %v1239
    %v2206 = vunpack.c.h.b16 %v1239
    %v2207 = vunpack.c.l.b16 %v1240
    %v2208 = vunpack.c.h.b16 %v1240
    %v2209 = vunpack.c.l.b16 %v1241
    %v2210 = vunpack.c.h.b16 %v1241
    %v2211 = vunpack.c.l.b16 %v1242
    %v2212 = vunpack.c.h.b16 %v1242
    %v2213 = vunpack.c.l.b16 %v1243
    %v2214 = vunpack.c.h.b16 %v1243
    %v2215 = vunpack.c.l.b16 %v1244
    %v2216 = vunpack.c.h.b16 %v1244
    %v2217 = vunpack.c.l.b16 %v1245
    %v2218 = vunpack.c.h.b16 %v1245
    %v2219 = vunpack.c.l.b16 %v1246
    %v2220 = vunpack.c.h.b16 %v1246
    %v2221 = vunpack.c.l.b16 %v1247
    %v2222 = vunpack.c.h.b16 %v1247
    %v2223 = vunpack.c.l.b16 %v1248
    %v2224 = vunpack.c.h.b16 %v1248
    %v2225 = vunpack.c.l.b16 %v1249
    %v2226 = vunpack.c.h.b16 %v1249
    %v2227 = vunpack.c.l.b16 %v1250
    %v2228 = vunpack.c.h.b16 %v1250
    %v2229 = vunpack.c.l.b16 %v1251
    %v2230 = vunpack.c.h.b16 %v1251
    %v2231 = vunpack.c.l.b16 %v1252
    %v2232 = vunpack.c.h.b16 %v1252
    %v2233 = vunpack.c.l.b16 %v1253
    %v2234 = vunpack.c.h.b16 %v1253
    %v2235 = vunpack.c.l.b16 %v1254
    %v2236 = vunpack.c.h.b16 %v1254
    %v2237 = vunpack.c.l.b16 %v1255
    %v2238 = vunpack.c.h.b16 %v1255
    %v2239 = vunpack.c.l.b16 %v1256
    %v2240 = vunpack.c.h.b16 %v1256
    %v2241 = vunpack.c.l.b16 %v1257
    %v2242 = vunpack.c.h.b16 %v1257
    %v2243 = vunpack.c.l.b16 %v1258
    %v2244 = vunpack.c.h.b16 %v1258
    %v2245 = vunpack.c.l.b16 %v1259
    %v2246 = vunpack.c.h.b16 %v1259
    %v2247 = vunpack.c.l.b16 %v1260
    %v2248 = vunpack.c.h.b16 %v1260
    %v2249 = vunpack.c.l.b16 %v1261
    %v2250 = vunpack.c.h.b16 %v1261
    %v2251 = vunpack.c.l.b16 %v1262
    %v2252 = vunpack.c.h.b16 %v1262
    %v2253 = vunpack.c.l.b16 %v1263
    %v2254 = vunpack.c.h.b16 %v1263
    %v2255 = vunpack.c.l.b16 %v1264
    %v2256 = vunpack.c.h.b16 %v1264
    %v2257 = vunpack.c.l.b16 %v1265
    %v2258 = vunpack.c.h.b16 %v1265
    %v2259 = vunpack.c.l.b16 %v1266
    %v2260 = vunpack.c.h.b16 %v1266
    %v2261 = vunpack.c.l.b16 %v1267
    %v2262 = vunpack.c.h.b16 %v1267
    %v2263 = vunpack.c.l.b16 %v1268
    %v2264 = vunpack.c.h.b16 %v1268
    %v2265 = vunpack.c.l.b16 %v1269
    %v2266 = vunpack.c.h.b16 %v1269
    %v2267 = vunpack.c.l.b16 %v1270
    %v2268 = vunpack.c.h.b16 %v1270
    %v2269 = vunpack.c.l.b16 %v1271
    %v2270 = vunpack.c.h.b16 %v1271
    %v2271 = vunpack.c.l.b16 %v1272
    %v2272 = vunpack.c.h.b16 %v1272
    %v2273 = vunpack.c.l.b16 %v1273
    %v2274 = vunpack.c.h.b16 %v1273
    %v2275 = vunpack.c.l.b16 %v1274
    %v2276 = vunpack.c.h.b16 %v1274
    %v2277 = vunpack.c.l.b16 %v1275
    %v2278 = vunpack.c.h.b16 %v1275
    %v2279 = vunpack.c.l.b16 %v1276
    %v2280 = vunpack.c.h.b16 %v1276
    %v2281 = vunpack.c.l.b16 %v1277
    %v2282 = vunpack.c.h.b16 %v1277
    %v2283 = vunpack.c.l.b16 %v1278
    %v2284 = vunpack.c.h.b16 %v1278
    %v2285 = vunpack.c.l.b16 %v1279
    %v2286 = vunpack.c.h.b16 %v1279
    %v2287 = vunpack.c.l.b16 %v1280
    %v2288 = vunpack.c.h.b16 %v1280
    %v2289 = vunpack.c.l.b16 %v1281
    %v2290 = vunpack.c.h.b16 %v1281
    %v2291 = vunpack.c.l.b16 %v1282
    %v2292 = vunpack.c.h.b16 %v1282
    %v2293 = vunpack.c.l.b16 %v1283
    %v2294 = vunpack.c.h.b16 %v1283
    %v2295 = vunpack.c.l.b16 %v1284
    %v2296 = vunpack.c.h.b16 %v1284
    %v2297 = vunpack.c.l.b16 %v1285
    %v2298 = vunpack.c.h.b16 %v1285
    %v2299 = vunpack.c.l.b16 %v1286
    %v2300 = vunpack.c.h.b16 %v1286
    %v2301 = vunpack.c.l.b16 %v1287
    %v2302 = vunpack.c.h.b16 %v1287
    %v2303 = vunpack.c.l.b16 %v1288
    %v2304 = vunpack.c.h.b16 %v1288
    %v2305 = vunpack.c.l.b16 %v1289
    %v2306 = vunpack.c.h.b16 %v1289
    %v2307 = vunpack.c.l.b16 %v1290
    %v2308 = vunpack.c.h.b16 %v1290
    %v2309 = vunpack.c.l.b16 %v1291
    %v2310 = vunpack.c.h.b16 %v1291
    %v2311 = vunpack.c.l.b16 %v1292
    %v2312 = vunpack.c.h.b16 %v1292
    %v2313 = vunpack.c.l.b16 %v1293
    %v2314 = vunpack.c.h.b16 %v1293
    %v2315 = vunpack.c.l.b16 %v1294
    %v2316 = vunpack.c.h.b16 %v1294
    %v2317 = vunpack.c.l.b16 %v1295
    %v2318 = vunpack.c.h.b16 %v1295
    %v2319 = vunpack.c.l.b16 %v1296
    %v2320 = vunpack.c.h.b16 %v1296
    %v2321 = vunpack.c.l.b16 %v1297
    %v2322 = vunpack.c.h.b16 %v1297
    %v2323 = vunpack.c.l.b16 %v1298
    %v2324 = vunpack.c.h.b16 %v1298
    %v2325 = vunpack.c.l.b16 %v1299
    %v2326 = vunpack.c.h.b16 %v1299
    %v2327 = vunpack.c.l.b16 %v1300
    %v2328 = vunpack.c.h.b16 %v1300
    %v2329 = vunpack.c.l.b16 %v1301
    %v2330 = vunpack.c.h.b16 %v1301
    %v2331 = vunpack.c.l.b16 %v1302
    %v2332 = vunpack.c.h.b16 %v1302
    %v2333 = vunpack.c.l.b16 %v1303
    %v2334 = vunpack.c.h.b16 %v1303
    %v2335 = vunpack.c.l.b16 %v1304
    %v2336 = vunpack.c.h.b16 %v1304
    %v2337 = vunpack.c.l.b16 %v1305
    %v2338 = vunpack.c.h.b16 %v1305
    %v2339 = vunpack.c.l.b16 %v1306
    %v2340 = vunpack.c.h.b16 %v1306
    %v2341 = vunpack.c.l.b16 %v1307
    %v2342 = vunpack.c.h.b16 %v1307
    %v2343 = vunpack.c.l.b16 %v1308
    %v2344 = vunpack.c.h.b16 %v1308
    %v2345 = vunpack.c.l.b16 %v1309
    %v2346 = vunpack.c.h.b16 %v1309
    %v2347 = vunpack.c.l.b16 %v1310
    %v2348 = vunpack.c.h.b16 %v1310
    %v2349 = vunpack.c.l.b16 %v1311
    %v2350 = vunpack.c.h.b16 %v1311
    %v2351 = vunpack.c.l.b16 %v1312
    %v2352 = vunpack.c.h.b16 %v1312
    %v2353 = vunpack.c.l.b16 %v1313
    %v2354 = vunpack.c.h.b16 %v1313
    %v2355 = vunpack.c.l.b16 %v1314
    %v2356 = vunpack.c.h.b16 %v1314
    %v2357 = vunpack.c.l.b16 %v1315
    %v2358 = vunpack.c.h.b16 %v1315
    %v2359 = vunpack.c.l.b16 %v1316
    %v2360 = vunpack.c.h.b16 %v1316
    %v2361 = vunpack.c.l.b16 %v1317
    %v2362 = vunpack.c.h.b16 %v1317
    %v2363 = vunpack.c.l.b16 %v1318
    %v2364 = vunpack.c.h.b16 %v1318
    %v2365 = vunpack.c.l.b16 %v1319
    %v2366 = vunpack.c.h.b16 %v1319
    %v2367 = vunpack.c.l.b16 %v1320
    %v2368 = vunpack.c.h.b16 %v1320
    %v2369 = vunpack.c.l.b16 %v1321
    %v2370 = vunpack.c.h.b16 %v1321
    %v2371 = vunpack.c.l.b16 %v1322
    %v2372 = vunpack.c.h.b16 %v1322
    %v2373 = vunpack.c.l.b16 %v1323
    %v2374 = vunpack.c.h.b16 %v1323
    %v2375 = vunpack.c.l.b16 %v1324
    %v2376 = vunpack.c.h.b16 %v1324
    %v2377 = vunpack.c.l.b16 %v1325
    %v2378 = vunpack.c.h.b16 %v1325
    %v2379 = vunpack.c.l.b16 %v1326
    %v2380 = vunpack.c.h.b16 %v1326
    %v2381 = vunpack.c.l.b16 %v1327
    %v2382 = vunpack.c.h.b16 %v1327
    %v2383 = vunpack.c.l.b16 %v1328
    %v2384 = vunpack.c.h.b16 %v1328
    %v2385 = vunpack.c.l.b16 %v1329
    %v2386 = vunpack.c.h.b16 %v1329
    %v2387 = vunpack.c.l.b16 %v1330
    %v2388 = vunpack.c.h.b16 %v1330
    %v2389 = vunpack.c.l.b16 %v1331
    %v2390 = vunpack.c.h.b16 %v1331
    %v2391 = vunpack.c.l.b16 %v1332
    %v2392 = vunpack.c.h.b16 %v1332
    %v2393 = vunpack.c.l.b16 %v1333
    %v2394 = vunpack.c.h.b16 %v1333
    %v2395 = vunpack.c.l.b16 %v1334
    %v2396 = vunpack.c.h.b16 %v1334
    %v2397 = vunpack.c.l.b16 %v1335
    %v2398 = vunpack.c.h.b16 %v1335
    %v2399 = vunpack.c.l.b16 %v1336
    %v2400 = vunpack.c.h.b16 %v1336
    %v2401 = vunpack.c.l.b16 %v1337
    %v2402 = vunpack.c.h.b16 %v1337
    %v2403 = vunpack.c.l.b16 %v1338
    %v2404 = vunpack.c.h.b16 %v1338
    %v2405 = vunpack.c.l.b16 %v1339
    %v2406 = vunpack.c.h.b16 %v1339
    %v2407 = vunpack.c.l.b16 %v1340
    %v2408 = vunpack.c.h.b16 %v1340
    %v2409 = vunpack.c.l.b16 %v1341
    %v2410 = vunpack.c.h.b16 %v1341
    %v2411 = vunpack.c.l.b16 %v1342
    %v2412 = vunpack.c.h.b16 %v1342
    %v2413 = vunpack.c.l.b16 %v1343
    %v2414 = vunpack.c.h.b16 %v1343
    %v2415 = vunpack.c.l.b16 %v1344
    %v2416 = vunpack.c.h.b16 %v1344
    %v2417 = vunpack.c.l.b16 %v1345
    %v2418 = vunpack.c.h.b16 %v1345
    %v2419 = vunpack.c.l.b16 %v1346
    %v2420 = vunpack.c.h.b16 %v1346
    %v2421 = vunpack.c.l.b16 %v1347
    %v2422 = vunpack.c.h.b16 %v1347
    %v2423 = vunpack.c.l.b16 %v1348
    %v2424 = vunpack.c.h.b16 %v1348
    %v2425 = vunpack.c.l.b16 %v1349
    %v2426 = vunpack.c.h.b16 %v1349
    %v2427 = vunpack.c.l.b16 %v1350
    %v2428 = vunpack.c.h.b16 %v1350
    %v2429 = vunpack.c.l.b16 %v1351
    %v2430 = vunpack.c.h.b16 %v1351
    %v2431 = vunpack.c.l.b16 %v1352
    %v2432 = vunpack.c.h.b16 %v1352
    %v2433 = vunpack.c.l.b16 %v1353
    %v2434 = vunpack.c.h.b16 %v1353
    %v2435 = vunpack.c.l.b16 %v1354
    %v2436 = vunpack.c.h.b16 %v1354
    %v2437 = vunpack.c.l.b16 %v1355
    %v2438 = vunpack.c.h.b16 %v1355
    %v2439 = vunpack.c.l.b16 %v1356
    %v2440 = vunpack.c.h.b16 %v1356
    %v2441 = vunpack.c.l.b16 %v1357
    %v2442 = vunpack.c.h.b16 %v1357
    %v2443 = vunpack.c.l.b16 %v1358
    %v2444 = vunpack.c.h.b16 %v1358
    %v2445 = vunpack.c.l.b16 %v1359
    %v2446 = vunpack.c.h.b16 %v1359
    %v2447 = vunpack.c.l.b16 %v1360
    %v2448 = vunpack.c.h.b16 %v1360
    %v2449 = vunpack.c.l.b16 %v1361
    %v2450 = vunpack.c.h.b16 %v1361
    %v2451 = vunpack.c.l.b16 %v1362
    %v2452 = vunpack.c.h.b16 %v1362
    %v2453 = vunpack.c.l.b16 %v1363
    %v2454 = vunpack.c.h.b16 %v1363
    %v2455 = vunpack.c.l.b16 %v1364
    %v2456 = vunpack.c.h.b16 %v1364
    %v2457 = vunpack.c.l.b16 %v1365
    %v2458 = vunpack.c.h.b16 %v1365
    %v2459 = vunpack.c.l.b16 %v1366
    %v2460 = vunpack.c.h.b16 %v1366
    %v2461 = vunpack.c.l.b16 %v1367
    %v2462 = vunpack.c.h.b16 %v1367
    %v2463 = vunpack.c.l.b16 %v1368
    %v2464 = vunpack.c.h.b16 %v1368
    %v2465 = vunpack.c.l.b16 %v1369
    %v2466 = vunpack.c.h.b16 %v1369
    %v2467 = vunpack.c.l.b16 %v1370
    %v2468 = vunpack.c.h.b16 %v1370
    %v2469 = vunpack.c.l.b16 %v1371
    %v2470 = vunpack.c.h.b16 %v1371
    %v2471 = vunpack.c.l.b16 %v1372
    %v2472 = vunpack.c.h.b16 %v1372
    %v2473 = vunpack.c.l.b16 %v1373
    %v2474 = vunpack.c.h.b16 %v1373
    %v2475 = vunpack.c.l.b16 %v1374
    %v2476 = vunpack.c.h.b16 %v1374
    %v2477 = vunpack.c.l.b16 %v1375
    %v2478 = vunpack.c.h.b16 %v1375
    %v2479 = vunpack.c.l.b16 %v1376
    %v2480 = vunpack.c.h.b16 %v1376
    %v2481 = vunpack.c.l.b16 %v1377
    %v2482 = vunpack.c.h.b16 %v1377
    %v2483 = vunpack.c.l.b16 %v1378
    %v2484 = vunpack.c.h.b16 %v1378
    %v2485 = vunpack.c.l.b16 %v1379
    %v2486 = vunpack.c.h.b16 %v1379
    %v2487 = vunpack.c.l.b16 %v1380
    %v2488 = vunpack.c.h.b16 %v1380
    %v2489 = vunpack.c.l.b16 %v1381
    %v2490 = vunpack.c.h.b16 %v1381
    %v2491 = vunpack.c.l.b16 %v1382
    %v2492 = vunpack.c.h.b16 %v1382
    %v2493 = vunpack.c.l.b16 %v1383
    %v2494 = vunpack.c.h.b16 %v1383
    %v2495 = vunpack.c.l.b16 %v1384
    %v2496 = vunpack.c.h.b16 %v1384
    %v2497 = vunpack.c.l.b16 %v1385
    %v2498 = vunpack.c.h.b16 %v1385
    %v2499 = vunpack.c.l.b16 %v1386
    %v2500 = vunpack.c.h.b16 %v1386
    %v2501 = vunpack.c.l.b16 %v1387
    %v2502 = vunpack.c.h.b16 %v1387
    %v2503 = vunpack.c.l.b16 %v1388
    %v2504 = vunpack.c.h.b16 %v1388
    %v2505 = vunpack.c.l.b16 %v1389
    %v2506 = vunpack.c.h.b16 %v1389
    %v2507 = vunpack.c.l.b16 %v1390
    %v2508 = vunpack.c.h.b16 %v1390
    %v2509 = vunpack.c.l.b16 %v1391
    %v2510 = vunpack.c.h.b16 %v1391
    %v2511 = vunpack.c.l.b16 %v1392
    %v2512 = vunpack.c.h.b16 %v1392
    %v2513 = vunpack.c.l.b16 %v1393
    %v2514 = vunpack.c.h.b16 %v1393
    %v2515 = vunpack.c.l.b16 %v1394
    %v2516 = vunpack.c.h.b16 %v1394
    %v2517 = vunpack.c.l.b16 %v1395
    %v2518 = vunpack.c.h.b16 %v1395
    %v2519 = vunpack.c.l.b16 %v1396
    %v2520 = vunpack.c.h.b16 %v1396
    %v2521 = vunpack.c.l.b16 %v1397
    %v2522 = vunpack.c.h.b16 %v1397
    %v2523 = vunpack.c.l.b16 %v1398
    %v2524 = vunpack.c.h.b16 %v1398
    %v2525 = vunpack.c.l.b16 %v1399
    %v2526 = vunpack.c.h.b16 %v1399
    %v2527 = vunpack.c.l.b16 %v1400
    %v2528 = vunpack.c.h.b16 %v1400
    %v2529 = vunpack.c.l.b16 %v1401
    %v2530 = vunpack.c.h.b16 %v1401
    %v2531 = vunpack.c.l.b16 %v1402
    %v2532 = vunpack.c.h.b16 %v1402
    %v2533 = vunpack.c.l.b16 %v1403
    %v2534 = vunpack.c.h.b16 %v1403
    %v2535 = vunpack.c.l.b16 %v1404
    %v2536 = vunpack.c.h.b16 %v1404
    %v2537 = vunpack.c.l.b16 %v1405
    %v2538 = vunpack.c.h.b16 %v1405
    %v2539 = vunpack.c.l.b16 %v1406
    %v2540 = vunpack.c.h.b16 %v1406
    %v2541 = vunpack.c.l.b16 %v1407
    %v2542 = vunpack.c.h.b16 %v1407
    %v2543 = vunpack.c.l.b16 %v1408
    %v2544 = vunpack.c.h.b16 %v1408
    %v2545 = vunpack.c.l.b16 %v1409
    %v2546 = vunpack.c.h.b16 %v1409
    %v2547 = vunpack.c.l.b16 %v1410
    %v2548 = vunpack.c.h.b16 %v1410
    %v2549 = vunpack.c.l.b16 %v1411
    %v2550 = vunpack.c.h.b16 %v1411
    %v2551 = vunpack.c.l.b16 %v1412
    %v2552 = vunpack.c.h.b16 %v1412
    %v2553 = vunpack.c.l.b16 %v1413
    %v2554 = vunpack.c.h.b16 %v1413
    %v2555 = vunpack.c.l.b16 %v1414
    %v2556 = vunpack.c.h.b16 %v1414
    %v2557 = vunpack.c.l.b16 %v1415
    %v2558 = vunpack.c.h.b16 %v1415
    %v2559 = vunpack.c.l.b16 %v1416
    %v2560 = vunpack.c.h.b16 %v1416
    %v2561 = vunpack.c.l.b16 %v1417
    %v2562 = vunpack.c.h.b16 %v1417
    %v2563 = vunpack.c.l.b16 %v1418
    %v2564 = vunpack.c.h.b16 %v1418
    %v2565 = vunpack.c.l.b16 %v1419
    %v2566 = vunpack.c.h.b16 %v1419
    %v2567 = vunpack.c.l.b16 %v1420
    %v2568 = vunpack.c.h.b16 %v1420
    %v2569 = vunpack.c.l.b16 %v1421
    %v2570 = vunpack.c.h.b16 %v1421
    %v2571 = vunpack.c.l.b16 %v1422
    %v2572 = vunpack.c.h.b16 %v1422
    %v2573 = vunpack.c.l.b16 %v1423
    %v2574 = vunpack.c.h.b16 %v1423
    %v2575 = vunpack.c.l.b16 %v1424
    %v2576 = vunpack.c.h.b16 %v1424
    %v2577 = vunpack.c.l.b16 %v1425
    %v2578 = vunpack.c.h.b16 %v1425
    %v2579 = vunpack.c.l.b16 %v1426
    %v2580 = vunpack.c.h.b16 %v1426
    %v2581 = vunpack.c.l.b16 %v1427
    %v2582 = vunpack.c.h.b16 %v1427
    %v2583 = vunpack.c.l.b16 %v1428
    %v2584 = vunpack.c.h.b16 %v1428
    %v2585 = vunpack.c.l.b16 %v1429
    %v2586 = vunpack.c.h.b16 %v1429
    %v2587 = vunpack.c.l.b16 %v1430
    %v2588 = vunpack.c.h.b16 %v1430
    %v2589 = vunpack.c.l.b16 %v1431
    %v2590 = vunpack.c.h.b16 %v1431
    %v2591 = vunpack.c.l.b16 %v1432
    %v2592 = vunpack.c.h.b16 %v1432
    %v2593 = vunpack.c.l.b16 %v1433
    %v2594 = vunpack.c.h.b16 %v1433
    %v2595 = vunpack.c.l.b16 %v1434
    %v2596 = vunpack.c.h.b16 %v1434
    %v2597 = vunpack.c.l.b16 %v1435
    %v2598 = vunpack.c.h.b16 %v1435
    %v2599 = vunpack.c.l.b16 %v1436
    %v2600 = vunpack.c.h.b16 %v1436
    %v2601 = vunpack.c.l.b16 %v1437
    %v2602 = vunpack.c.h.b16 %v1437
    %v2603 = vunpack.c.l.b16 %v1438
    %v2604 = vunpack.c.h.b16 %v1438
    %v2605 = vunpack.c.l.b16 %v1439
    %v2606 = vunpack.c.h.b16 %v1439
    %v2607 = vunpack.c.l.b16 %v1440
    %v2608 = vunpack.c.h.b16 %v1440
    %v2609 = vunpack.c.l.b16 %v1441
    %v2610 = vunpack.c.h.b16 %v1441
    %v2611 = vunpack.c.l.b16 %v1442
    %v2612 = vunpack.c.h.b16 %v1442
    %v2613 = vunpack.c.l.b16 %v1443
    %v2614 = vunpack.c.h.b16 %v1443
    %v2615 = vunpack.c.l.b16 %v1444
    %v2616 = vunpack.c.h.b16 %v1444
    %v2617 = vunpack.c.l.b16 %v1445
    %v2618 = vunpack.c.h.b16 %v1445
    %v2619 = vunpack.c.l.b16 %v1446
    %v2620 = vunpack.c.h.b16 %v1446
    %v2621 = vunpack.c.l.b16 %v1447
    %v2622 = vunpack.c.h.b16 %v1447
    %v2623 = vunpack.c.l.b16 %v1448
    %v2624 = vunpack.c.h.b16 %v1448
    %v2625 = vunpack.c.l.b16 %v1449
    %v2626 = vunpack.c.h.b16 %v1449
    %v2627 = vunpack.c.l.b16 %v1450
    %v2628 = vunpack.c.h.b16 %v1450
    %v2629 = vunpack.c.l.b16 %v1451
    %v2630 = vunpack.c.h.b16 %v1451
    %v2631 = vunpack.c.l.b16 %v1452
    %v2632 = vunpack.c.h.b16 %v1452
    %v2633 = vpack.c.b16 %v1877, %v1865
    %v2634 = vpack.c.b16 %v1878, %v1866
    %v2635 = vpack.c.b16 %v1879, %v1867
    %v2636 = vpack.c.b16 %v1880, %v1868
    %v2637 = vpack.c.b16 %v1881, %v1869
    %v2638 = vpack.c.b16 %v1882, %v1870
    %v2639 = vpack.c.b16 %v1883, %v1871
    %v2640 = vpack.c.b16 %v1884, %v1872
    %v2641 = vpack.c.b16 %v1885, %v1873
    %v2642 = vpack.c.b16 %v1886, %v1874
    %v2643 = vpack.c.b16 %v1887, %v1875
    %v2644 = vpack.c.b16 %v1888, %v1876
    %v2645 = vpack.c.b16 %v1901, %v1889
    %v2646 = vpack.c.b16 %v1902, %v1890
    %v2647 = vpack.c.b16 %v1903, %v1891
    %v2648 = vpack.c.b16 %v1904, %v1892
    %v2649 = vpack.c.b16 %v1905, %v1893
    %v2650 = vpack.c.b16 %v1906, %v1894
    %v2651 = vpack.c.b16 %v1907, %v1895
    %v2652 = vpack.c.b16 %v1908, %v1896
    %v2653 = vpack.c.b16 %v1909, %v1897
    %v2654 = vpack.c.b16 %v1910, %v1898
    %v2655 = vpack.c.b16 %v1911, %v1899
    %v2656 = vpack.c.b16 %v1912, %v1900
    %v2657 = vpack.c.b16 %v1925, %v1913
    %v2658 = vpack.c.b16 %v1926, %v1914
    %v2659 = vpack.c.b16 %v1927, %v1915
    %v2660 = vpack.c.b16 %v1928, %v1916
    %v2661 = vpack.c.b16 %v1929, %v1917
    %v2662 = vpack.c.b16 %v1930, %v1918
    %v2663 = vpack.c.b16 %v1931, %v1919
    %v2664 = vpack.c.b16 %v1932, %v1920
    %v2665 = vpack.c.b16 %v1933, %v1921
    %v2666 = vpack.c.b16 %v1934, %v1922
    %v2667 = vpack.c.b16 %v1935, %v1923
    %v2668 = vpack.c.b16 %v1936, %v1924
    %v2669 = vpack.c.b16 %v1949, %v1937
    %v2670 = vpack.c.b16 %v1950, %v1938
    %v2671 = vpack.c.b16 %v1951, %v1939
    %v2672 = vpack.c.b16 %v1952, %v1940
    %v2673 = vpack.c.b16 %v1953, %v1941
    %v2674 = vpack.c.b16 %v1954, %v1942
    %v2675 = vpack.c.b16 %v1955, %v1943
    %v2676 = vpack.c.b16 %v1956, %v1944
    %v2677 = vpack.c.b16 %v1957, %v1945
    %v2678 = vpack.c.b16 %v1958, %v1946
    %v2679 = vpack.c.b16 %v1959, %v1947
    %v2680 = vpack.c.b16 %v1960, %v1948
    %v2681 = vpack.c.b16 %v1973, %v1961
    %v2682 = vpack.c.b16 %v1974, %v1962
    %v2683 = vpack.c.b16 %v1975, %v1963
    %v2684 = vpack.c.b16 %v1976, %v1964
    %v2685 = vpack.c.b16 %v1977, %v1965
    %v2686 = vpack.c.b16 %v1978, %v1966
    %v2687 = vpack.c.b16 %v1979, %v1967
    %v2688 = vpack.c.b16 %v1980, %v1968
    %v2689 = vpack.c.b16 %v1981, %v1969
    %v2690 = vpack.c.b16 %v1982, %v1970
    %v2691 = vpack.c.b16 %v1983, %v1971
    %v2692 = vpack.c.b16 %v1984, %v1972
    %v2693 = vpack.c.b16 %v1997, %v1985
    %v2694 = vpack.c.b16 %v1998, %v1986
    %v2695 = vpack.c.b16 %v1999, %v1987
    %v2696 = vpack.c.b16 %v2000, %v1988
    %v2697 = vpack.c.b16 %v2001, %v1989
    %v2698 = vpack.c.b16 %v2002, %v1990
    %v2699 = vpack.c.b16 %v2003, %v1991
    %v2700 = vpack.c.b16 %v2004, %v1992
    %v2701 = vpack.c.b16 %v2005, %v1993
    %v2702 = vpack.c.b16 %v2006, %v1994
    %v2703 = vpack.c.b16 %v2007, %v1995
    %v2704 = vpack.c.b16 %v2008, %v1996
    %v2705 = vpack.c.b16 %v2021, %v2009
    %v2706 = vpack.c.b16 %v2022, %v2010
    %v2707 = vpack.c.b16 %v2023, %v2011
    %v2708 = vpack.c.b16 %v2024, %v2012
    %v2709 = vpack.c.b16 %v2025, %v2013
    %v2710 = vpack.c.b16 %v2026, %v2014
    %v2711 = vpack.c.b16 %v2027, %v2015
    %v2712 = vpack.c.b16 %v2028, %v2016
    %v2713 = vpack.c.b16 %v2029, %v2017
    %v2714 = vpack.c.b16 %v2030, %v2018
    %v2715 = vpack.c.b16 %v2031, %v2019
    %v2716 = vpack.c.b16 %v2032, %v2020
    %v2717 = vpack.c.b16 %v2045, %v2033
    %v2718 = vpack.c.b16 %v2046, %v2034
    %v2719 = vpack.c.b16 %v2047, %v2035
    %v2720 = vpack.c.b16 %v2048, %v2036
    %v2721 = vpack.c.b16 %v2049, %v2037
    %v2722 = vpack.c.b16 %v2050, %v2038
    %v2723 = vpack.c.b16 %v2051, %v2039
    %v2724 = vpack.c.b16 %v2052, %v2040
    %v2725 = vpack.c.b16 %v2053, %v2041
    %v2726 = vpack.c.b16 %v2054, %v2042
    %v2727 = vpack.c.b16 %v2055, %v2043
    %v2728 = vpack.c.b16 %v2056, %v2044
    %v2729 = vpack.c.b16 %v2069, %v2057
    %v2730 = vpack.c.b16 %v2070, %v2058
    %v2731 = vpack.c.b16 %v2071, %v2059
    %v2732 = vpack.c.b16 %v2072, %v2060
    %v2733 = vpack.c.b16 %v2073, %v2061
    %v2734 = vpack.c.b16 %v2074, %v2062
    %v2735 = vpack.c.b16 %v2075, %v2063
    %v2736 = vpack.c.b16 %v2076, %v2064
    %v2737 = vpack.c.b16 %v2077, %v2065
    %v2738 = vpack.c.b16 %v2078, %v2066
    %v2739 = vpack.c.b16 %v2079, %v2067
    %v2740 = vpack.c.b16 %v2080, %v2068
    %v2741 = vpack.c.b16 %v2093, %v2081
    %v2742 = vpack.c.b16 %v2094, %v2082
    %v2743 = vpack.c.b16 %v2095, %v2083
    %v2744 = vpack.c.b16 %v2096, %v2084
    %v2745 = vpack.c.b16 %v2097, %v2085
    %v2746 = vpack.c.b16 %v2098, %v2086
    %v2747 = vpack.c.b16 %v2099, %v2087
    %v2748 = vpack.c.b16 %v2100, %v2088
    %v2749 = vpack.c.b16 %v2101, %v2089
    %v2750 = vpack.c.b16 %v2102, %v2090
    %v2751 = vpack.c.b16 %v2103, %v2091
    %v2752 = vpack.c.b16 %v2104, %v2092
    %v2753 = vpack.c.b16 %v2117, %v2105
    %v2754 = vpack.c.b16 %v2118, %v2106
    %v2755 = vpack.c.b16 %v2119, %v2107
    %v2756 = vpack.c.b16 %v2120, %v2108
    %v2757 = vpack.c.b16 %v2121, %v2109
    %v2758 = vpack.c.b16 %v2122, %v2110
    %v2759 = vpack.c.b16 %v2123, %v2111
    %v2760 = vpack.c.b16 %v2124, %v2112
    %v2761 = vpack.c.b16 %v2125, %v2113
    %v2762 = vpack.c.b16 %v2126, %v2114
    %v2763 = vpack.c.b16 %v2127, %v2115
    %v2764 = vpack.c.b16 %v2128, %v2116
    %v2765 = vpack.c.b16 %v2141, %v2129
    %v2766 = vpack.c.b16 %v2142, %v2130
    %v2767 = vpack.c.b16 %v2143, %v2131
    %v2768 = vpack.c.b16 %v2144, %v2132
    %v2769 = vpack.c.b16 %v2145, %v2133
    %v2770 = vpack.c.b16 %v2146, %v2134
    %v2771 = vpack.c.b16 %v2147, %v2135
    %v2772 = vpack.c.b16 %v2148, %v2136
    %v2773 = vpack.c.b16 %v2149, %v2137
    %v2774 = vpack.c.b16 %v2150, %v2138
    %v2775 = vpack.c.b16 %v2151, %v2139
    %v2776 = vpack.c.b16 %v2152, %v2140
    %v2777 = vpack.c.b16 %v2165, %v2153
    %v2778 = vpack.c.b16 %v2166, %v2154
    %v2779 = vpack.c.b16 %v2167, %v2155
    %v2780 = vpack.c.b16 %v2168, %v2156
    %v2781 = vpack.c.b16 %v2169, %v2157
    %v2782 = vpack.c.b16 %v2170, %v2158
    %v2783 = vpack.c.b16 %v2171, %v2159
    %v2784 = vpack.c.b16 %v2172, %v2160
    %v2785 = vpack.c.b16 %v2173, %v2161
    %v2786 = vpack.c.b16 %v2174, %v2162
    %v2787 = vpack.c.b16 %v2175, %v2163
    %v2788 = vpack.c.b16 %v2176, %v2164
    %v2789 = vpack.c.b16 %v2189, %v2177
    %v2790 = vpack.c.b16 %v2190, %v2178
    %v2791 = vpack.c.b16 %v2191, %v2179
    %v2792 = vpack.c.b16 %v2192, %v2180
    %v2793 = vpack.c.b16 %v2193, %v2181
    %v2794 = vpack.c.b16 %v2194, %v2182
    %v2795 = vpack.c.b16 %v2195, %v2183
    %v2796 = vpack.c.b16 %v2196, %v2184
    %v2797 = vpack.c.b16 %v2197, %v2185
    %v2798 = vpack.c.b16 %v2198, %v2186
    %v2799 = vpack.c.b16 %v2199, %v2187
    %v2800 = vpack.c.b16 %v2200, %v2188
    %v2801 = vpack.c.b16 %v2213, %v2201
    %v2802 = vpack.c.b16 %v2214, %v2202
    %v2803 = vpack.c.b16 %v2215, %v2203
    %v2804 = vpack.c.b16 %v2216, %v2204
    %v2805 = vpack.c.b16 %v2217, %v2205
    %v2806 = vpack.c.b16 %v2218, %v2206
    %v2807 = vpack.c.b16 %v2219, %v2207
    %v2808 = vpack.c.b16 %v2220, %v2208
    %v2809 = vpack.c.b16 %v2221, %v2209
    %v2810 = vpack.c.b16 %v2222, %v2210
    %v2811 = vpack.c.b16 %v2223, %v2211
    %v2812 = vpack.c.b16 %v2224, %v2212
    %v2813 = vpack.c.b16 %v2237, %v2225
    %v2814 = vpack.c.b16 %v2238, %v2226
    %v2815 = vpack.c.b16 %v2239, %v2227
    %v2816 = vpack.c.b16 %v2240, %v2228
    %v2817 = vpack.c.b16 %v2241, %v2229
    %v2818 = vpack.c.b16 %v2242, %v2230
    %v2819 = vpack.c.b16 %v2243, %v2231
    %v2820 = vpack.c.b16 %v2244, %v2232
    %v2821 = vpack.c.b16 %v2245, %v2233
    %v2822 = vpack.c.b16 %v2246, %v2234
    %v2823 = vpack.c.b16 %v2247, %v2235
    %v2824 = vpack.c.b16 %v2248, %v2236
    %v2825 = vpack.c.b16 %v2261, %v2249
    %v2826 = vpack.c.b16 %v2262, %v2250
    %v2827 = vpack.c.b16 %v2263, %v2251
    %v2828 = vpack.c.b16 %v2264, %v2252
    %v2829 = vpack.c.b16 %v2265, %v2253
    %v2830 = vpack.c.b16 %v2266, %v2254
    %v2831 = vpack.c.b16 %v2267, %v2255
    %v2832 = vpack.c.b16 %v2268, %v2256
    %v2833 = vpack.c.b16 %v2269, %v2257
    %v2834 = vpack.c.b16 %v2270, %v2258
    %v2835 = vpack.c.b16 %v2271, %v2259
    %v2836 = vpack.c.b16 %v2272, %v2260
    %v2837 = vpack.c.b16 %v2285, %v2273
    %v2838 = vpack.c.b16 %v2286, %v2274
    %v2839 = vpack.c.b16 %v2287, %v2275
    %v2840 = vpack.c.b16 %v2288, %v2276
    %v2841 = vpack.c.b16 %v2289, %v2277
    %v2842 = vpack.c.b16 %v2290, %v2278
    %v2843 = vpack.c.b16 %v2291, %v2279
    %v2844 = vpack.c.b16 %v2292, %v2280
    %v2845 = vpack.c.b16 %v2293, %v2281
    %v2846 = vpack.c.b16 %v2294, %v2282
    %v2847 = vpack.c.b16 %v2295, %v2283
    %v2848 = vpack.c.b16 %v2296, %v2284
    %v2849 = vpack.c.b16 %v2309, %v2297
    %v2850 = vpack.c.b16 %v2310, %v2298
    %v2851 = vpack.c.b16 %v2311, %v2299
    %v2852 = vpack.c.b16 %v2312, %v2300
    %v2853 = vpack.c.b16 %v2313, %v2301
    %v2854 = vpack.c.b16 %v2314, %v2302
    %v2855 = vpack.c.b16 %v2315, %v2303
    %v2856 = vpack.c.b16 %v2316, %v2304
    %v2857 = vpack.c.b16 %v2317, %v2305
    %v2858 = vpack.c.b16 %v2318, %v2306
    %v2859 = vpack.c.b16 %v2319, %v2307
    %v2860 = vpack.c.b16 %v2320, %v2308
    %v2861 = vpack.c.b16 %v2333, %v2321
    %v2862 = vpack.c.b16 %v2334, %v2322
    %v2863 = vpack.c.b16 %v2335, %v2323
    %v2864 = vpack.c.b16 %v2336, %v2324
    %v2865 = vpack.c.b16 %v2337, %v2325
    %v2866 = vpack.c.b16 %v2338, %v2326
    %v2867 = vpack.c.b16 %v2339, %v2327
    %v2868 = vpack.c.b16 %v2340, %v2328
    %v2869 = vpack.c.b16 %v2341, %v2329
    %v2870 = vpack.c.b16 %v2342, %v2330
    %v2871 = vpack.c.b16 %v2343, %v2331
    %v2872 = vpack.c.b16 %v2344, %v2332
    %v2873 = vpack.c.b16 %v2357, %v2345
    %v2874 = vpack.c.b16 %v2358, %v2346
    %v2875 = vpack.c.b16 %v2359, %v2347
    %v2876 = vpack.c.b16 %v2360, %v2348
    %v2877 = vpack.c.b16 %v2361, %v2349
    %v2878 = vpack.c.b16 %v2362, %v2350
    %v2879 = vpack.c.b16 %v2363, %v2351
    %v2880 = vpack.c.b16 %v2364, %v2352
    %v2881 = vpack.c.b16 %v2365, %v2353
    %v2882 = vpack.c.b16 %v2366, %v2354
    %v2883 = vpack.c.b16 %v2367, %v2355
    %v2884 = vpack.c.b16 %v2368, %v2356
    %v2885 = vpack.c.b16 %v2381, %v2369
    %v2886 = vpack.c.b16 %v2382, %v2370
    %v2887 = vpack.c.b16 %v2383, %v2371
    %v2888 = vpack.c.b16 %v2384, %v2372
    %v2889 = vpack.c.b16 %v2385, %v2373
    %v2890 = vpack.c.b16 %v2386, %v2374
    %v2891 = vpack.c.b16 %v2387, %v2375
    %v2892 = vpack.c.b16 %v2388, %v2376
    %v2893 = vpack.c.b16 %v2389, %v2377
    %v2894 = vpack.c.b16 %v2390, %v2378
    %v2895 = vpack.c.b16 %v2391, %v2379
    %v2896 = vpack.c.b16 %v2392, %v2380
    %v2897 = vpack.c.b16 %v2405, %v2393
    %v2898 = vpack.c.b16 %v2406, %v2394
    %v2899 = vpack.c.b16 %v2407, %v2395
    %v2900 = vpack.c.b16 %v2408, %v2396
    %v2901 = vpack.c.b16 %v2409, %v2397
    %v2902 = vpack.c.b16 %v2410, %v2398
    %v2903 = vpack.c.b16 %v2411, %v2399
    %v2904 = vpack.c.b16 %v2412, %v2400
    %v2905 = vpack.c.b16 %v2413, %v2401
    %v2906 = vpack.c.b16 %v2414, %v2402
    %v2907 = vpack.c.b16 %v2415, %v2403
    %v2908 = vpack.c.b16 %v2416, %v2404
    %v2909 = vpack.c.b16 %v2429, %v2417
    %v2910 = vpack.c.b16 %v2430, %v2418
    %v2911 = vpack.c.b16 %v2431, %v2419
    %v2912 = vpack.c.b16 %v2432, %v2420
    %v2913 = vpack.c.b16 %v2433, %v2421
    %v2914 = vpack.c.b16 %v2434, %v2422
    %v2915 = vpack.c.b16 %v2435, %v2423
    %v2916 = vpack.c.b16 %v2436, %v2424
    %v2917 = vpack.c.b16 %v2437, %v2425
    %v2918 = vpack.c.b16 %v2438, %v2426
    %v2919 = vpack.c.b16 %v2439, %v2427
    %v2920 = vpack.c.b16 %v2440, %v2428
    %v2921 = vpack.c.b16 %v2453, %v2441
    %v2922 = vpack.c.b16 %v2454, %v2442
    %v2923 = vpack.c.b16 %v2455, %v2443
    %v2924 = vpack.c.b16 %v2456, %v2444
    %v2925 = vpack.c.b16 %v2457, %v2445
    %v2926 = vpack.c.b16 %v2458, %v2446
    %v2927 = vpack.c.b16 %v2459, %v2447
    %v2928 = vpack.c.b16 %v2460, %v2448
    %v2929 = vpack.c.b16 %v2461, %v2449
    %v2930 = vpack.c.b16 %v2462, %v2450
    %v2931 = vpack.c.b16 %v2463, %v2451
    %v2932 = vpack.c.b16 %v2464, %v2452
    %v2933 = vpack.c.b16 %v2477, %v2465
    %v2934 = vpack.c.b16 %v2478, %v2466
    %v2935 = vpack.c.b16 %v2479, %v2467
    %v2936 = vpack.c.b16 %v2480, %v2468
    %v2937 = vpack.c.b16 %v2481, %v2469
    %v2938 = vpack.c.b16 %v2482, %v2470
    %v2939 = vpack.c.b16 %v2483, %v2471
    %v2940 = vpack.c.b16 %v2484, %v2472
    %v2941 = vpack.c.b16 %v2485, %v2473
    %v2942 = vpack.c.b16 %v2486, %v2474
    %v2943 = vpack.c.b16 %v2487, %v2475
    %v2944 = vpack.c.b16 %v2488, %v2476
    %v2945 = vpack.c.b16 %v2501, %v2489
    %v2946 = vpack.c.b16 %v2502, %v2490
    %v2947 = vpack.c.b16 %v2503, %v2491
    %v2948 = vpack.c.b16 %v2504, %v2492
    %v2949 = vpack.c.b16 %v2505, %v2493
    %v2950 = vpack.c.b16 %v2506, %v2494
    %v2951 = vpack.c.b16 %v2507, %v2495
    %v2952 = vpack.c.b16 %v2508, %v2496
    %v2953 = vpack.c.b16 %v2509, %v2497
    %v2954 = vpack.c.b16 %v2510, %v2498
    %v2955 = vpack.c.b16 %v2511, %v2499
    %v2956 = vpack.c.b16 %v2512, %v2500
    %v2957 = vpack.c.b16 %v2525, %v2513
    %v2958 = vpack.c.b16 %v2526, %v2514
    %v2959 = vpack.c.b16 %v2527, %v2515
    %v2960 = vpack.c.b16 %v2528, %v2516
    %v2961 = vpack.c.b16 %v2529, %v2517
    %v2962 = vpack.c.b16 %v2530, %v2518
    %v2963 = vpack.c.b16 %v2531, %v2519
    %v2964 = vpack.c.b16 %v2532, %v2520
    %v2965 = vpack.c.b16 %v2533, %v2521
    %v2966 = vpack.c.b16 %v2534, %v2522
    %v2967 = vpack.c.b16 %v2535, %v2523
    %v2968 = vpack.c.b16 %v2536, %v2524
    %v2969 = vpack.c.b16 %v2549, %v2537
    %v2970 = vpack.c.b16 %v2550, %v2538
    %v2971 = vpack.c.b16 %v2551, %v2539
    %v2972 = vpack.c.b16 %v2552, %v2540
    %v2973 = vpack.c.b16 %v2553, %v2541
    %v2974 = vpack.c.b16 %v2554, %v2542
    %v2975 = vpack.c.b16 %v2555, %v2543
    %v2976 = vpack.c.b16 %v2556, %v2544
    %v2977 = vpack.c.b16 %v2557, %v2545
    %v2978 = vpack.c.b16 %v2558, %v2546
    %v2979 = vpack.c.b16 %v2559, %v2547
    %v2980 = vpack.c.b16 %v2560, %v2548
    %v2981 = vpack.c.b16 %v2573, %v2561
    %v2982 = vpack.c.b16 %v2574, %v2562
    %v2983 = vpack.c.b16 %v2575, %v2563
    %v2984 = vpack.c.b16 %v2576, %v2564
    %v2985 = vpack.c.b16 %v2577, %v2565
    %v2986 = vpack.c.b16 %v2578, %v2566
    %v2987 = vpack.c.b16 %v2579, %v2567
    %v2988 = vpack.c.b16 %v2580, %v2568
    %v2989 = vpack.c.b16 %v2581, %v2569
    %v2990 = vpack.c.b16 %v2582, %v2570
    %v2991 = vpack.c.b16 %v2583, %v2571
    %v2992 = vpack.c.b16 %v2584, %v2572
    %v2993 = vpack.c.b16 %v2597, %v2585
    %v2994 = vpack.c.b16 %v2598, %v2586
    %v2995 = vpack.c.b16 %v2599, %v2587
    %v2996 = vpack.c.b16 %v2600, %v2588
    %v2997 = vpack.c.b16 %v2601, %v2589
    %v2998 = vpack.c.b16 %v2602, %v2590
    %v2999 = vpack.c.b16 %v2603, %v2591
    %v3000 = vpack.c.b16 %v2604, %v2592
    %v3001 = vpack.c.b16 %v2605, %v2593
    %v3002 = vpack.c.b16 %v2606, %v2594
    %v3003 = vpack.c.b16 %v2607, %v2595
    %v3004 = vpack.c.b16 %v2608, %v2596
    %v3005 = vpack.c.b16 %v2621, %v2609
    %v3006 = vpack.c.b16 %v2622, %v2610
    %v3007 = vpack.c.b16 %v2623, %v2611
    %v3008 = vpack.c.b16 %v2624, %v2612
    %v3009 = vpack.c.b16 %v2625, %v2613
    %v3010 = vpack.c.b16 %v2626, %v2614
    %v3011 = vpack.c.b16 %v2627, %v2615
    %v3012 = vpack.c.b16 %v2628, %v2616
    %v3013 = vpack.c.b16 %v2629, %v2617
    %v3014 = vpack.c.b16 %v2630, %v2618
    %v3015 = vpack.c.b16 %v2631, %v2619
    %v3016 = vpack.c.b16 %v2632, %v2620
    %3401 = vmatpush.bf16.msra.mxu0 %v2717
    %3402 = vmatpush.bf16.msra.mxu0 %v2705
    %3403 = vmatpush.bf16.msra.mxu0 %v2693
    %3404 = vmatpush.bf16.msra.mxu0 %v2681
    %3405 = vmatpush.bf16.msra.mxu0 %v2669
    %3406 = vmatpush.bf16.msra.mxu0 %v2657
    %3407 = vmatpush.bf16.msra.mxu0 %v2645
    %3408 = vmatpush.bf16.msra.mxu0 %v2633
    %3409 = vmatmul.bf16.gmra.mxu0 %v1065
    %v3410 = vpop.f32.mrf.mxu0
    %v3411 = vadd.f32 %v1457, %v3410
    %v3412 = vpop.f32.mrf.mxu0
    %3413 = vdwg.mxu0
    %3414 = vmatpush.bf16.msra.mxu0 %v2813
    %3415 = vmatpush.bf16.msra.mxu0 %v2801
    %3416 = vmatpush.bf16.msra.mxu0 %v2789
    %3417 = vmatpush.bf16.msra.mxu0 %v2777
    %3418 = vmatpush.bf16.msra.mxu0 %v2765
    %3419 = vmatpush.bf16.msra.mxu0 %v2753
    %3420 = vmatpush.bf16.msra.mxu0 %v2741
    %3421 = vmatpush.bf16.msra.mxu0 %v2729
    %3422 = vmatmul.bf16.gmra.mxu0 %v1066
    %v3423 = vpop.f32.mrf.mxu0
    %v3424 = vadd.f32 %v3411, %v3423
    %v3425 = vpop.f32.mrf.mxu0
    %3426 = vdwg.mxu0
    %3427 = vmatpush.bf16.msra.mxu0 %v2909
    %3428 = vmatpush.bf16.msra.mxu0 %v2897
    %3429 = vmatpush.bf16.msra.mxu0 %v2885
    %3430 = vmatpush.bf16.msra.mxu0 %v2873
    %3431 = vmatpush.bf16.msra.mxu0 %v2861
    %3432 = vmatpush.bf16.msra.mxu0 %v2849
    %3433 = vmatpush.bf16.msra.mxu0 %v2837
    %3434 = vmatpush.bf16.msra.mxu0 %v2825
    %3435 = vmatmul.bf16.gmra.mxu0 %v1067
    %v3436 = vpop.f32.mrf.mxu0
    %v3437 = vadd.f32 %v3424, %v3436
    %v3438 = vpop.f32.mrf.mxu0
    %3439 = vdwg.mxu0
    %3440 = vmatpush.bf16.msra.mxu0 %v3005
    %3441 = vmatpush.bf16.msra.mxu0 %v2993
    %3442 = vmatpush.bf16.msra.mxu0 %v2981
    %3443 = vmatpush.bf16.msra.mxu0 %v2969
    %3444 = vmatpush.bf16.msra.mxu0 %v2957
    %3445 = vmatpush.bf16.msra.mxu0 %v2945
    %3446 = vmatpush.bf16.msra.mxu0 %v2933
    %3447 = vmatpush.bf16.msra.mxu0 %v2921
    %3448 = vmatmul.bf16.gmra.mxu0 %v1068
    %v3449 = vpop.f32.mrf.mxu0
    %v3450 = vadd.f32 %v3437, %v3449
    %v3451 = vpop.f32.mrf.mxu0
    %3452 = vdwg.mxu0
    %3453 = vmatpush.bf16.msra.mxu0 %v2718
    %3454 = vmatpush.bf16.msra.mxu0 %v2706
    %3455 = vmatpush.bf16.msra.mxu0 %v2694
    %3456 = vmatpush.bf16.msra.mxu0 %v2682
    %3457 = vmatpush.bf16.msra.mxu0 %v2670
    %3458 = vmatpush.bf16.msra.mxu0 %v2658
    %3459 = vmatpush.bf16.msra.mxu0 %v2646
    %3460 = vmatpush.bf16.msra.mxu0 %v2634
    %3461 = vmatmul.bf16.gmra.mxu0 %v1065
    %v3462 = vpop.f32.mrf.mxu0
    %v3463 = vadd.f32 %v1458, %v3462
    %v3464 = vpop.f32.mrf.mxu0
    %3465 = vdwg.mxu0
    %3466 = vmatpush.bf16.msra.mxu0 %v2814
    %3467 = vmatpush.bf16.msra.mxu0 %v2802
    %3468 = vmatpush.bf16.msra.mxu0 %v2790
    %3469 = vmatpush.bf16.msra.mxu0 %v2778
    %3470 = vmatpush.bf16.msra.mxu0 %v2766
    %3471 = vmatpush.bf16.msra.mxu0 %v2754
    %3472 = vmatpush.bf16.msra.mxu0 %v2742
    %3473 = vmatpush.bf16.msra.mxu0 %v2730
    %3474 = vmatmul.bf16.gmra.mxu0 %v1066
    %v3475 = vpop.f32.mrf.mxu0
    %v3476 = vadd.f32 %v3463, %v3475
    %v3477 = vpop.f32.mrf.mxu0
    %3478 = vdwg.mxu0
    %3479 = vmatpush.bf16.msra.mxu0 %v2910
    %3480 = vmatpush.bf16.msra.mxu0 %v2898
    %3481 = vmatpush.bf16.msra.mxu0 %v2886
    %3482 = vmatpush.bf16.msra.mxu0 %v2874
    %3483 = vmatpush.bf16.msra.mxu0 %v2862
    %3484 = vmatpush.bf16.msra.mxu0 %v2850
    %3485 = vmatpush.bf16.msra.mxu0 %v2838
    %3486 = vmatpush.bf16.msra.mxu0 %v2826
    %3487 = vmatmul.bf16.gmra.mxu0 %v1067
    %v3488 = vpop.f32.mrf.mxu0
    %v3489 = vadd.f32 %v3476, %v3488
    %v3490 = vpop.f32.mrf.mxu0
    %3491 = vdwg.mxu0
    %3492 = vmatpush.bf16.msra.mxu0 %v3006
    %3493 = vmatpush.bf16.msra.mxu0 %v2994
    %3494 = vmatpush.bf16.msra.mxu0 %v2982
    %3495 = vmatpush.bf16.msra.mxu0 %v2970
    %3496 = vmatpush.bf16.msra.mxu0 %v2958
    %3497 = vmatpush.bf16.msra.mxu0 %v2946
    %3498 = vmatpush.bf16.msra.mxu0 %v2934
    %3499 = vmatpush.bf16.msra.mxu0 %v2922
    %3500 = vmatmul.bf16.gmra.mxu0 %v1068
    %v3501 = vpop.f32.mrf.mxu0
    %v3502 = vadd.f32 %v3489, %v3501
    %v3503 = vpop.f32.mrf.mxu0
    %3504 = vdwg.mxu0
    %3505 = vmatpush.bf16.msra.mxu0 %v2719
    %3506 = vmatpush.bf16.msra.mxu0 %v2707
    %3507 = vmatpush.bf16.msra.mxu0 %v2695
    %3508 = vmatpush.bf16.msra.mxu0 %v2683
    %3509 = vmatpush.bf16.msra.mxu0 %v2671
    %3510 = vmatpush.bf16.msra.mxu0 %v2659
    %3511 = vmatpush.bf16.msra.mxu0 %v2647
    %3512 = vmatpush.bf16.msra.mxu0 %v2635
    %3513 = vmatmul.bf16.gmra.mxu0 %v1065
    %v3514 = vpop.f32.mrf.mxu0
    %v3515 = vadd.f32 %v1459, %v3514
    %v3516 = vpop.f32.mrf.mxu0
    %3517 = vdwg.mxu0
    %3518 = vmatpush.bf16.msra.mxu0 %v2815
    %3519 = vmatpush.bf16.msra.mxu0 %v2803
    %3520 = vmatpush.bf16.msra.mxu0 %v2791
    %3521 = vmatpush.bf16.msra.mxu0 %v2779
    %3522 = vmatpush.bf16.msra.mxu0 %v2767
    %3523 = vmatpush.bf16.msra.mxu0 %v2755
    %3524 = vmatpush.bf16.msra.mxu0 %v2743
    %3525 = vmatpush.bf16.msra.mxu0 %v2731
    %3526 = vmatmul.bf16.gmra.mxu0 %v1066
    %v3527 = vpop.f32.mrf.mxu0
    %v3528 = vadd.f32 %v3515, %v3527
    %v3529 = vpop.f32.mrf.mxu0
    %3530 = vdwg.mxu0
    %3531 = vmatpush.bf16.msra.mxu0 %v2911
    %3532 = vmatpush.bf16.msra.mxu0 %v2899
    %3533 = vmatpush.bf16.msra.mxu0 %v2887
    %3534 = vmatpush.bf16.msra.mxu0 %v2875
    %3535 = vmatpush.bf16.msra.mxu0 %v2863
    %3536 = vmatpush.bf16.msra.mxu0 %v2851
    %3537 = vmatpush.bf16.msra.mxu0 %v2839
    %3538 = vmatpush.bf16.msra.mxu0 %v2827
    %3539 = vmatmul.bf16.gmra.mxu0 %v1067
    %v3540 = vpop.f32.mrf.mxu0
    %v3541 = vadd.f32 %v3528, %v3540
    %v3542 = vpop.f32.mrf.mxu0
    %3543 = vdwg.mxu0
    %3544 = vmatpush.bf16.msra.mxu0 %v3007
    %3545 = vmatpush.bf16.msra.mxu0 %v2995
    %3546 = vmatpush.bf16.msra.mxu0 %v2983
    %3547 = vmatpush.bf16.msra.mxu0 %v2971
    %3548 = vmatpush.bf16.msra.mxu0 %v2959
    %3549 = vmatpush.bf16.msra.mxu0 %v2947
    %3550 = vmatpush.bf16.msra.mxu0 %v2935
    %3551 = vmatpush.bf16.msra.mxu0 %v2923
    %3552 = vmatmul.bf16.gmra.mxu0 %v1068
    %v3553 = vpop.f32.mrf.mxu0
    %v3554 = vadd.f32 %v3541, %v3553
    %v3555 = vpop.f32.mrf.mxu0
    %3556 = vdwg.mxu0
    %3557 = vmatpush.bf16.msra.mxu0 %v2720
    %3558 = vmatpush.bf16.msra.mxu0 %v2708
    %3559 = vmatpush.bf16.msra.mxu0 %v2696
    %3560 = vmatpush.bf16.msra.mxu0 %v2684
    %3561 = vmatpush.bf16.msra.mxu0 %v2672
    %3562 = vmatpush.bf16.msra.mxu0 %v2660
    %3563 = vmatpush.bf16.msra.mxu0 %v2648
    %3564 = vmatpush.bf16.msra.mxu0 %v2636
    %3565 = vmatmul.bf16.gmra.mxu0 %v1065
    %v3566 = vpop.f32.mrf.mxu0
    %v3567 = vadd.f32 %v1460, %v3566
    %v3568 = vpop.f32.mrf.mxu0
    %3569 = vdwg.mxu0
    %3570 = vmatpush.bf16.msra.mxu0 %v2816
    %3571 = vmatpush.bf16.msra.mxu0 %v2804
    %3572 = vmatpush.bf16.msra.mxu0 %v2792
    %3573 = vmatpush.bf16.msra.mxu0 %v2780
    %3574 = vmatpush.bf16.msra.mxu0 %v2768
    %3575 = vmatpush.bf16.msra.mxu0 %v2756
    %3576 = vmatpush.bf16.msra.mxu0 %v2744
    %3577 = vmatpush.bf16.msra.mxu0 %v2732
    %3578 = vmatmul.bf16.gmra.mxu0 %v1066
    %v3579 = vpop.f32.mrf.mxu0
    %v3580 = vadd.f32 %v3567, %v3579
    %v3581 = vpop.f32.mrf.mxu0
    %3582 = vdwg.mxu0
    %3583 = vmatpush.bf16.msra.mxu0 %v2912
    %3584 = vmatpush.bf16.msra.mxu0 %v2900
    %3585 = vmatpush.bf16.msra.mxu0 %v2888
    %3586 = vmatpush.bf16.msra.mxu0 %v2876
    %3587 = vmatpush.bf16.msra.mxu0 %v2864
    %3588 = vmatpush.bf16.msra.mxu0 %v2852
    %3589 = vmatpush.bf16.msra.mxu0 %v2840
    %3590 = vmatpush.bf16.msra.mxu0 %v2828
    %3591 = vmatmul.bf16.gmra.mxu0 %v1067
    %v3592 = vpop.f32.mrf.mxu0
    %v3593 = vadd.f32 %v3580, %v3592
    %v3594 = vpop.f32.mrf.mxu0
    %3595 = vdwg.mxu0
    %3596 = vmatpush.bf16.msra.mxu0 %v3008
    %3597 = vmatpush.bf16.msra.mxu0 %v2996
    %3598 = vmatpush.bf16.msra.mxu0 %v2984
    %3599 = vmatpush.bf16.msra.mxu0 %v2972
    %3600 = vmatpush.bf16.msra.mxu0 %v2960
    %3601 = vmatpush.bf16.msra.mxu0 %v2948
    %3602 = vmatpush.bf16.msra.mxu0 %v2936
    %3603 = vmatpush.bf16.msra.mxu0 %v2924
    %3604 = vmatmul.bf16.gmra.mxu0 %v1068
    %v3605 = vpop.f32.mrf.mxu0
    %v3606 = vadd.f32 %v3593, %v3605
    %v3607 = vpop.f32.mrf.mxu0
    %3608 = vdwg.mxu0
    %3609 = vmatpush.bf16.msra.mxu0 %v2721
    %3610 = vmatpush.bf16.msra.mxu0 %v2709
    %3611 = vmatpush.bf16.msra.mxu0 %v2697
    %3612 = vmatpush.bf16.msra.mxu0 %v2685
    %3613 = vmatpush.bf16.msra.mxu0 %v2673
    %3614 = vmatpush.bf16.msra.mxu0 %v2661
    %3615 = vmatpush.bf16.msra.mxu0 %v2649
    %3616 = vmatpush.bf16.msra.mxu0 %v2637
    %3617 = vmatmul.bf16.gmra.mxu0 %v1065
    %v3618 = vpop.f32.mrf.mxu0
    %v3619 = vadd.f32 %v1461, %v3618
    %v3620 = vpop.f32.mrf.mxu0
    %3621 = vdwg.mxu0
    %3622 = vmatpush.bf16.msra.mxu0 %v2817
    %3623 = vmatpush.bf16.msra.mxu0 %v2805
    %3624 = vmatpush.bf16.msra.mxu0 %v2793
    %3625 = vmatpush.bf16.msra.mxu0 %v2781
    %3626 = vmatpush.bf16.msra.mxu0 %v2769
    %3627 = vmatpush.bf16.msra.mxu0 %v2757
    %3628 = vmatpush.bf16.msra.mxu0 %v2745
    %3629 = vmatpush.bf16.msra.mxu0 %v2733
    %3630 = vmatmul.bf16.gmra.mxu0 %v1066
    %v3631 = vpop.f32.mrf.mxu0
    %v3632 = vadd.f32 %v3619, %v3631
    %v3633 = vpop.f32.mrf.mxu0
    %3634 = vdwg.mxu0
    %3635 = vmatpush.bf16.msra.mxu0 %v2913
    %3636 = vmatpush.bf16.msra.mxu0 %v2901
    %3637 = vmatpush.bf16.msra.mxu0 %v2889
    %3638 = vmatpush.bf16.msra.mxu0 %v2877
    %3639 = vmatpush.bf16.msra.mxu0 %v2865
    %3640 = vmatpush.bf16.msra.mxu0 %v2853
    %3641 = vmatpush.bf16.msra.mxu0 %v2841
    %3642 = vmatpush.bf16.msra.mxu0 %v2829
    %3643 = vmatmul.bf16.gmra.mxu0 %v1067
    %v3644 = vpop.f32.mrf.mxu0
    %v3645 = vadd.f32 %v3632, %v3644
    %v3646 = vpop.f32.mrf.mxu0
    %3647 = vdwg.mxu0
    %3648 = vmatpush.bf16.msra.mxu0 %v3009
    %3649 = vmatpush.bf16.msra.mxu0 %v2997
    %3650 = vmatpush.bf16.msra.mxu0 %v2985
    %3651 = vmatpush.bf16.msra.mxu0 %v2973
    %3652 = vmatpush.bf16.msra.mxu0 %v2961
    %3653 = vmatpush.bf16.msra.mxu0 %v2949
    %3654 = vmatpush.bf16.msra.mxu0 %v2937
    %3655 = vmatpush.bf16.msra.mxu0 %v2925
    %3656 = vmatmul.bf16.gmra.mxu0 %v1068
    %v3657 = vpop.f32.mrf.mxu0
    %v3658 = vadd.f32 %v3645, %v3657
    %v3659 = vpop.f32.mrf.mxu0
    %3660 = vdwg.mxu0
    %3661 = vmatpush.bf16.msra.mxu0 %v2722
    %3662 = vmatpush.bf16.msra.mxu0 %v2710
    %3663 = vmatpush.bf16.msra.mxu0 %v2698
    %3664 = vmatpush.bf16.msra.mxu0 %v2686
    %3665 = vmatpush.bf16.msra.mxu0 %v2674
    %3666 = vmatpush.bf16.msra.mxu0 %v2662
    %3667 = vmatpush.bf16.msra.mxu0 %v2650
    %3668 = vmatpush.bf16.msra.mxu0 %v2638
    %3669 = vmatmul.bf16.gmra.mxu0 %v1065
    %v3670 = vpop.f32.mrf.mxu0
    %v3671 = vadd.f32 %v1462, %v3670
    %v3672 = vpop.f32.mrf.mxu0
    %3673 = vdwg.mxu0
    %3674 = vmatpush.bf16.msra.mxu0 %v2818
    %3675 = vmatpush.bf16.msra.mxu0 %v2806
    %3676 = vmatpush.bf16.msra.mxu0 %v2794
    %3677 = vmatpush.bf16.msra.mxu0 %v2782
    %3678 = vmatpush.bf16.msra.mxu0 %v2770
    %3679 = vmatpush.bf16.msra.mxu0 %v2758
    %3680 = vmatpush.bf16.msra.mxu0 %v2746
    %3681 = vmatpush.bf16.msra.mxu0 %v2734
    %3682 = vmatmul.bf16.gmra.mxu0 %v1066
    %v3683 = vpop.f32.mrf.mxu0
    %v3684 = vadd.f32 %v3671, %v3683
    %v3685 = vpop.f32.mrf.mxu0
    %3686 = vdwg.mxu0
    %3687 = vmatpush.bf16.msra.mxu0 %v2914
    %3688 = vmatpush.bf16.msra.mxu0 %v2902
    %3689 = vmatpush.bf16.msra.mxu0 %v2890
    %3690 = vmatpush.bf16.msra.mxu0 %v2878
    %3691 = vmatpush.bf16.msra.mxu0 %v2866
    %3692 = vmatpush.bf16.msra.mxu0 %v2854
    %3693 = vmatpush.bf16.msra.mxu0 %v2842
    %3694 = vmatpush.bf16.msra.mxu0 %v2830
    %3695 = vmatmul.bf16.gmra.mxu0 %v1067
    %v3696 = vpop.f32.mrf.mxu0
    %v3697 = vadd.f32 %v3684, %v3696
    %v3698 = vpop.f32.mrf.mxu0
    %3699 = vdwg.mxu0
    %3700 = vmatpush.bf16.msra.mxu0 %v3010
    %3701 = vmatpush.bf16.msra.mxu0 %v2998
    %3702 = vmatpush.bf16.msra.mxu0 %v2986
    %3703 = vmatpush.bf16.msra.mxu0 %v2974
    %3704 = vmatpush.bf16.msra.mxu0 %v2962
    %3705 = vmatpush.bf16.msra.mxu0 %v2950
    %3706 = vmatpush.bf16.msra.mxu0 %v2938
    %3707 = vmatpush.bf16.msra.mxu0 %v2926
    %3708 = vmatmul.bf16.gmra.mxu0 %v1068
    %v3709 = vpop.f32.mrf.mxu0
    %v3710 = vadd.f32 %v3697, %v3709
    %v3711 = vpop.f32.mrf.mxu0
    %3712 = vdwg.mxu0
    %3713 = vmatpush.bf16.msra.mxu0 %v2723
    %3714 = vmatpush.bf16.msra.mxu0 %v2711
    %3715 = vmatpush.bf16.msra.mxu0 %v2699
    %3716 = vmatpush.bf16.msra.mxu0 %v2687
    %3717 = vmatpush.bf16.msra.mxu0 %v2675
    %3718 = vmatpush.bf16.msra.mxu0 %v2663
    %3719 = vmatpush.bf16.msra.mxu0 %v2651
    %3720 = vmatpush.bf16.msra.mxu0 %v2639
    %3721 = vmatmul.bf16.gmra.mxu0 %v1065
    %v3722 = vpop.f32.mrf.mxu0
    %v3723 = vadd.f32 %v1463, %v3722
    %v3724 = vpop.f32.mrf.mxu0
    %3725 = vdwg.mxu0
    %3726 = vmatpush.bf16.msra.mxu0 %v2819
    %3727 = vmatpush.bf16.msra.mxu0 %v2807
    %3728 = vmatpush.bf16.msra.mxu0 %v2795
    %3729 = vmatpush.bf16.msra.mxu0 %v2783
    %3730 = vmatpush.bf16.msra.mxu0 %v2771
    %3731 = vmatpush.bf16.msra.mxu0 %v2759
    %3732 = vmatpush.bf16.msra.mxu0 %v2747
    %3733 = vmatpush.bf16.msra.mxu0 %v2735
    %3734 = vmatmul.bf16.gmra.mxu0 %v1066
    %v3735 = vpop.f32.mrf.mxu0
    %v3736 = vadd.f32 %v3723, %v3735
    %v3737 = vpop.f32.mrf.mxu0
    %3738 = vdwg.mxu0
    %3739 = vmatpush.bf16.msra.mxu0 %v2915
    %3740 = vmatpush.bf16.msra.mxu0 %v2903
    %3741 = vmatpush.bf16.msra.mxu0 %v2891
    %3742 = vmatpush.bf16.msra.mxu0 %v2879
    %3743 = vmatpush.bf16.msra.mxu0 %v2867
    %3744 = vmatpush.bf16.msra.mxu0 %v2855
    %3745 = vmatpush.bf16.msra.mxu0 %v2843
    %3746 = vmatpush.bf16.msra.mxu0 %v2831
    %3747 = vmatmul.bf16.gmra.mxu0 %v1067
    %v3748 = vpop.f32.mrf.mxu0
    %v3749 = vadd.f32 %v3736, %v3748
    %v3750 = vpop.f32.mrf.mxu0
    %3751 = vdwg.mxu0
    %3752 = vmatpush.bf16.msra.mxu0 %v3011
    %3753 = vmatpush.bf16.msra.mxu0 %v2999
    %3754 = vmatpush.bf16.msra.mxu0 %v2987
    %3755 = vmatpush.bf16.msra.mxu0 %v2975
    %3756 = vmatpush.bf16.msra.mxu0 %v2963
    %3757 = vmatpush.bf16.msra.mxu0 %v2951
    %3758 = vmatpush.bf16.msra.mxu0 %v2939
    %3759 = vmatpush.bf16.msra.mxu0 %v2927
    %3760 = vmatmul.bf16.gmra.mxu0 %v1068
    %v3761 = vpop.f32.mrf.mxu0
    %v3762 = vadd.f32 %v3749, %v3761
    %v3763 = vpop.f32.mrf.mxu0
    %3764 = vdwg.mxu0
    %3765 = vmatpush.bf16.msra.mxu0 %v2724
    %3766 = vmatpush.bf16.msra.mxu0 %v2712
    %3767 = vmatpush.bf16.msra.mxu0 %v2700
    %3768 = vmatpush.bf16.msra.mxu0 %v2688
    %3769 = vmatpush.bf16.msra.mxu0 %v2676
    %3770 = vmatpush.bf16.msra.mxu0 %v2664
    %3771 = vmatpush.bf16.msra.mxu0 %v2652
    %3772 = vmatpush.bf16.msra.mxu0 %v2640
    %3773 = vmatmul.bf16.gmra.mxu0 %v1065
    %v3774 = vpop.f32.mrf.mxu0
    %v3775 = vadd.f32 %v1464, %v3774
    %v3776 = vpop.f32.mrf.mxu0
    %3777 = vdwg.mxu0
    %3778 = vmatpush.bf16.msra.mxu0 %v2820
    %3779 = vmatpush.bf16.msra.mxu0 %v2808
    %3780 = vmatpush.bf16.msra.mxu0 %v2796
    %3781 = vmatpush.bf16.msra.mxu0 %v2784
    %3782 = vmatpush.bf16.msra.mxu0 %v2772
    %3783 = vmatpush.bf16.msra.mxu0 %v2760
    %3784 = vmatpush.bf16.msra.mxu0 %v2748
    %3785 = vmatpush.bf16.msra.mxu0 %v2736
    %3786 = vmatmul.bf16.gmra.mxu0 %v1066
    %v3787 = vpop.f32.mrf.mxu0
    %v3788 = vadd.f32 %v3775, %v3787
    %v3789 = vpop.f32.mrf.mxu0
    %3790 = vdwg.mxu0
    %3791 = vmatpush.bf16.msra.mxu0 %v2916
    %3792 = vmatpush.bf16.msra.mxu0 %v2904
    %3793 = vmatpush.bf16.msra.mxu0 %v2892
    %3794 = vmatpush.bf16.msra.mxu0 %v2880
    %3795 = vmatpush.bf16.msra.mxu0 %v2868
    %3796 = vmatpush.bf16.msra.mxu0 %v2856
    %3797 = vmatpush.bf16.msra.mxu0 %v2844
    %3798 = vmatpush.bf16.msra.mxu0 %v2832
    %3799 = vmatmul.bf16.gmra.mxu0 %v1067
    %v3800 = vpop.f32.mrf.mxu0
    %v3801 = vadd.f32 %v3788, %v3800
    %v3802 = vpop.f32.mrf.mxu0
    %3803 = vdwg.mxu0
    %3804 = vmatpush.bf16.msra.mxu0 %v3012
    %3805 = vmatpush.bf16.msra.mxu0 %v3000
    %3806 = vmatpush.bf16.msra.mxu0 %v2988
    %3807 = vmatpush.bf16.msra.mxu0 %v2976
    %3808 = vmatpush.bf16.msra.mxu0 %v2964
    %3809 = vmatpush.bf16.msra.mxu0 %v2952
    %3810 = vmatpush.bf16.msra.mxu0 %v2940
    %3811 = vmatpush.bf16.msra.mxu0 %v2928
    %3812 = vmatmul.bf16.gmra.mxu0 %v1068
    %v3813 = vpop.f32.mrf.mxu0
    %v3814 = vadd.f32 %v3801, %v3813
    %v3815 = vpop.f32.mrf.mxu0
    %3816 = vdwg.mxu0
    %3817 = vmatpush.bf16.msra.mxu0 %v2725
    %3818 = vmatpush.bf16.msra.mxu0 %v2713
    %3819 = vmatpush.bf16.msra.mxu0 %v2701
    %3820 = vmatpush.bf16.msra.mxu0 %v2689
    %3821 = vmatpush.bf16.msra.mxu0 %v2677
    %3822 = vmatpush.bf16.msra.mxu0 %v2665
    %3823 = vmatpush.bf16.msra.mxu0 %v2653
    %3824 = vmatpush.bf16.msra.mxu0 %v2641
    %3825 = vmatmul.bf16.gmra.mxu0 %v1065
    %v3826 = vpop.f32.mrf.mxu0
    %v3827 = vadd.f32 %v1465, %v3826
    %v3828 = vpop.f32.mrf.mxu0
    %3829 = vdwg.mxu0
    %3830 = vmatpush.bf16.msra.mxu0 %v2821
    %3831 = vmatpush.bf16.msra.mxu0 %v2809
    %3832 = vmatpush.bf16.msra.mxu0 %v2797
    %3833 = vmatpush.bf16.msra.mxu0 %v2785
    %3834 = vmatpush.bf16.msra.mxu0 %v2773
    %3835 = vmatpush.bf16.msra.mxu0 %v2761
    %3836 = vmatpush.bf16.msra.mxu0 %v2749
    %3837 = vmatpush.bf16.msra.mxu0 %v2737
    %3838 = vmatmul.bf16.gmra.mxu0 %v1066
    %v3839 = vpop.f32.mrf.mxu0
    %v3840 = vadd.f32 %v3827, %v3839
    %v3841 = vpop.f32.mrf.mxu0
    %3842 = vdwg.mxu0
    %3843 = vmatpush.bf16.msra.mxu0 %v2917
    %3844 = vmatpush.bf16.msra.mxu0 %v2905
    %3845 = vmatpush.bf16.msra.mxu0 %v2893
    %3846 = vmatpush.bf16.msra.mxu0 %v2881
    %3847 = vmatpush.bf16.msra.mxu0 %v2869
    %3848 = vmatpush.bf16.msra.mxu0 %v2857
    %3849 = vmatpush.bf16.msra.mxu0 %v2845
    %3850 = vmatpush.bf16.msra.mxu0 %v2833
    %3851 = vmatmul.bf16.gmra.mxu0 %v1067
    %v3852 = vpop.f32.mrf.mxu0
    %v3853 = vadd.f32 %v3840, %v3852
    %v3854 = vpop.f32.mrf.mxu0
    %3855 = vdwg.mxu0
    %3856 = vmatpush.bf16.msra.mxu0 %v3013
    %3857 = vmatpush.bf16.msra.mxu0 %v3001
    %3858 = vmatpush.bf16.msra.mxu0 %v2989
    %3859 = vmatpush.bf16.msra.mxu0 %v2977
    %3860 = vmatpush.bf16.msra.mxu0 %v2965
    %3861 = vmatpush.bf16.msra.mxu0 %v2953
    %3862 = vmatpush.bf16.msra.mxu0 %v2941
    %3863 = vmatpush.bf16.msra.mxu0 %v2929
    %3864 = vmatmul.bf16.gmra.mxu0 %v1068
    %v3865 = vpop.f32.mrf.mxu0
    %v3866 = vadd.f32 %v3853, %v3865
    %v3867 = vpop.f32.mrf.mxu0
    %3868 = vdwg.mxu0
    %3869 = vmatpush.bf16.msra.mxu0 %v2726
    %3870 = vmatpush.bf16.msra.mxu0 %v2714
    %3871 = vmatpush.bf16.msra.mxu0 %v2702
    %3872 = vmatpush.bf16.msra.mxu0 %v2690
    %3873 = vmatpush.bf16.msra.mxu0 %v2678
    %3874 = vmatpush.bf16.msra.mxu0 %v2666
    %3875 = vmatpush.bf16.msra.mxu0 %v2654
    %3876 = vmatpush.bf16.msra.mxu0 %v2642
    %3877 = vmatmul.bf16.gmra.mxu0 %v1065
    %v3878 = vpop.f32.mrf.mxu0
    %v3879 = vadd.f32 %v1466, %v3878
    %v3880 = vpop.f32.mrf.mxu0
    %3881 = vdwg.mxu0
    %3882 = vmatpush.bf16.msra.mxu0 %v2822
    %3883 = vmatpush.bf16.msra.mxu0 %v2810
    %3884 = vmatpush.bf16.msra.mxu0 %v2798
    %3885 = vmatpush.bf16.msra.mxu0 %v2786
    %3886 = vmatpush.bf16.msra.mxu0 %v2774
    %3887 = vmatpush.bf16.msra.mxu0 %v2762
    %3888 = vmatpush.bf16.msra.mxu0 %v2750
    %3889 = vmatpush.bf16.msra.mxu0 %v2738
    %3890 = vmatmul.bf16.gmra.mxu0 %v1066
    %v3891 = vpop.f32.mrf.mxu0
    %v3892 = vadd.f32 %v3879, %v3891
    %v3893 = vpop.f32.mrf.mxu0
    %3894 = vdwg.mxu0
    %3895 = vmatpush.bf16.msra.mxu0 %v2918
    %3896 = vmatpush.bf16.msra.mxu0 %v2906
    %3897 = vmatpush.bf16.msra.mxu0 %v2894
    %3898 = vmatpush.bf16.msra.mxu0 %v2882
    %3899 = vmatpush.bf16.msra.mxu0 %v2870
    %3900 = vmatpush.bf16.msra.mxu0 %v2858
    %3901 = vmatpush.bf16.msra.mxu0 %v2846
    %3902 = vmatpush.bf16.msra.mxu0 %v2834
    %3903 = vmatmul.bf16.gmra.mxu0 %v1067
    %v3904 = vpop.f32.mrf.mxu0
    %v3905 = vadd.f32 %v3892, %v3904
    %v3906 = vpop.f32.mrf.mxu0
    %3907 = vdwg.mxu0
    %3908 = vmatpush.bf16.msra.mxu0 %v3014
    %3909 = vmatpush.bf16.msra.mxu0 %v3002
    %3910 = vmatpush.bf16.msra.mxu0 %v2990
    %3911 = vmatpush.bf16.msra.mxu0 %v2978
    %3912 = vmatpush.bf16.msra.mxu0 %v2966
    %3913 = vmatpush.bf16.msra.mxu0 %v2954
    %3914 = vmatpush.bf16.msra.mxu0 %v2942
    %3915 = vmatpush.bf16.msra.mxu0 %v2930
    %3916 = vmatmul.bf16.gmra.mxu0 %v1068
    %v3917 = vpop.f32.mrf.mxu0
    %v3918 = vadd.f32 %v3905, %v3917
    %v3919 = vpop.f32.mrf.mxu0
    %3920 = vdwg.mxu0
    %3921 = vmatpush.bf16.msra.mxu0 %v2727
    %3922 = vmatpush.bf16.msra.mxu0 %v2715
    %3923 = vmatpush.bf16.msra.mxu0 %v2703
    %3924 = vmatpush.bf16.msra.mxu0 %v2691
    %3925 = vmatpush.bf16.msra.mxu0 %v2679
    %3926 = vmatpush.bf16.msra.mxu0 %v2667
    %3927 = vmatpush.bf16.msra.mxu0 %v2655
    %3928 = vmatpush.bf16.msra.mxu0 %v2643
    %3929 = vmatmul.bf16.gmra.mxu0 %v1065
    %v3930 = vpop.f32.mrf.mxu0
    %v3931 = vadd.f32 %v1467, %v3930
    %v3932 = vpop.f32.mrf.mxu0
    %3933 = vdwg.mxu0
    %3934 = vmatpush.bf16.msra.mxu0 %v2823
    %3935 = vmatpush.bf16.msra.mxu0 %v2811
    %3936 = vmatpush.bf16.msra.mxu0 %v2799
    %3937 = vmatpush.bf16.msra.mxu0 %v2787
    %3938 = vmatpush.bf16.msra.mxu0 %v2775
    %3939 = vmatpush.bf16.msra.mxu0 %v2763
    %3940 = vmatpush.bf16.msra.mxu0 %v2751
    %3941 = vmatpush.bf16.msra.mxu0 %v2739
    %3942 = vmatmul.bf16.gmra.mxu0 %v1066
    %v3943 = vpop.f32.mrf.mxu0
    %v3944 = vadd.f32 %v3931, %v3943
    %v3945 = vpop.f32.mrf.mxu0
    %3946 = vdwg.mxu0
    %3947 = vmatpush.bf16.msra.mxu0 %v2919
    %3948 = vmatpush.bf16.msra.mxu0 %v2907
    %3949 = vmatpush.bf16.msra.mxu0 %v2895
    %3950 = vmatpush.bf16.msra.mxu0 %v2883
    %3951 = vmatpush.bf16.msra.mxu0 %v2871
    %3952 = vmatpush.bf16.msra.mxu0 %v2859
    %3953 = vmatpush.bf16.msra.mxu0 %v2847
    %3954 = vmatpush.bf16.msra.mxu0 %v2835
    %3955 = vmatmul.bf16.gmra.mxu0 %v1067
    %v3956 = vpop.f32.mrf.mxu0
    %v3957 = vadd.f32 %v3944, %v3956
    %v3958 = vpop.f32.mrf.mxu0
    %3959 = vdwg.mxu0
    %3960 = vmatpush.bf16.msra.mxu0 %v3015
    %3961 = vmatpush.bf16.msra.mxu0 %v3003
    %3962 = vmatpush.bf16.msra.mxu0 %v2991
    %3963 = vmatpush.bf16.msra.mxu0 %v2979
    %3964 = vmatpush.bf16.msra.mxu0 %v2967
    %3965 = vmatpush.bf16.msra.mxu0 %v2955
    %3966 = vmatpush.bf16.msra.mxu0 %v2943
    %3967 = vmatpush.bf16.msra.mxu0 %v2931
    %3968 = vmatmul.bf16.gmra.mxu0 %v1068
    %v3969 = vpop.f32.mrf.mxu0
    %v3970 = vadd.f32 %v3957, %v3969
    %v3971 = vpop.f32.mrf.mxu0
    %3972 = vdwg.mxu0
    %3973 = vmatpush.bf16.msra.mxu0 %v2728
    %3974 = vmatpush.bf16.msra.mxu0 %v2716
    %3975 = vmatpush.bf16.msra.mxu0 %v2704
    %3976 = vmatpush.bf16.msra.mxu0 %v2692
    %3977 = vmatpush.bf16.msra.mxu0 %v2680
    %3978 = vmatpush.bf16.msra.mxu0 %v2668
    %3979 = vmatpush.bf16.msra.mxu0 %v2656
    %3980 = vmatpush.bf16.msra.mxu0 %v2644
    %3981 = vmatmul.bf16.gmra.mxu0 %v1065
    %v3982 = vpop.f32.mrf.mxu0
    %v3983 = vadd.f32 %v1468, %v3982
    %v3984 = vpop.f32.mrf.mxu0
    %3985 = vdwg.mxu0
    %3986 = vmatpush.bf16.msra.mxu0 %v2824
    %3987 = vmatpush.bf16.msra.mxu0 %v2812
    %3988 = vmatpush.bf16.msra.mxu0 %v2800
    %3989 = vmatpush.bf16.msra.mxu0 %v2788
    %3990 = vmatpush.bf16.msra.mxu0 %v2776
    %3991 = vmatpush.bf16.msra.mxu0 %v2764
    %3992 = vmatpush.bf16.msra.mxu0 %v2752
    %3993 = vmatpush.bf16.msra.mxu0 %v2740
    %3994 = vmatmul.bf16.gmra.mxu0 %v1066
    %v3995 = vpop.f32.mrf.mxu0
    %v3996 = vadd.f32 %v3983, %v3995
    %v3997 = vpop.f32.mrf.mxu0
    %3998 = vdwg.mxu0
    %3999 = vmatpush.bf16.msra.mxu0 %v2920
    %4000 = vmatpush.bf16.msra.mxu0 %v2908
    %4001 = vmatpush.bf16.msra.mxu0 %v2896
    %4002 = vmatpush.bf16.msra.mxu0 %v2884
    %4003 = vmatpush.bf16.msra.mxu0 %v2872
    %4004 = vmatpush.bf16.msra.mxu0 %v2860
    %4005 = vmatpush.bf16.msra.mxu0 %v2848
    %4006 = vmatpush.bf16.msra.mxu0 %v2836
    %4007 = vmatmul.bf16.gmra.mxu0 %v1067
    %v4008 = vpop.f32.mrf.mxu0
    %v4009 = vadd.f32 %v3996, %v4008
    %v4010 = vpop.f32.mrf.mxu0
    %4011 = vdwg.mxu0
    %4012 = vmatpush.bf16.msra.mxu0 %v3016
    %4013 = vmatpush.bf16.msra.mxu0 %v3004
    %4014 = vmatpush.bf16.msra.mxu0 %v2992
    %4015 = vmatpush.bf16.msra.mxu0 %v2980
    %4016 = vmatpush.bf16.msra.mxu0 %v2968
    %4017 = vmatpush.bf16.msra.mxu0 %v2956
    %4018 = vmatpush.bf16.msra.mxu0 %v2944
    %4019 = vmatpush.bf16.msra.mxu0 %v2932
    %4020 = vmatmul.bf16.gmra.mxu0 %v1068
    %v4021 = vpop.f32.mrf.mxu0
    %v4022 = vadd.f32 %v4009, %v4021
    %v4023 = vpop.f32.mrf.mxu0
    %4024 = vdwg.mxu0
    %vm4025 = vcmask 523264
    %v4027 = vsel %vm4025, %v3450, 0
    %v4030 = vsel %vm4025, %v3658, 0
    %4032 = vmatpush.xpose.msra.mxu0 0.0
    %4033 = vmatpush.xpose.msra.mxu0 0.0
    %4034 = vmatpush.xpose.msra.mxu0 0.0
    %4035 = vmatpush.xpose.msra.mxu0 0.0
    %4036 = vmatpush.xpose.msra.mxu0 0.0
    %4037 = vmatpush.xpose.msra.mxu0 0.0
    %4038 = vmatpush.xpose.msra.mxu0 0.0
    %4039 = vmatpush.xpose.msra.mxu0 0.0
    %4040 = vmatpush.xpose.msra.mxu0 0.0
    %4041 = vmatpush.xpose.msra.mxu0 0.0
    %4042 = vmatpush.xpose.msra.mxu0 0.0
    %4043 = vmatpush.xpose.msra.mxu0 0.0
    %4044 = vmatpush.xpose.msra.mxu0 0.0
    %4045 = vmatpush.xpose.msra.mxu0 0.0
    %4046 = vmatpush.xpose.msra.mxu0 0.0
    %4047 = vmatpush.xpose.msra.mxu0 %v4030
    %4048 = vmatmul.f32.gmra.mxu0 %v4027
    %v4049 = vpop.f32.mrf.mxu0
    %v4050 = vadd.f32 0.0, %v4049
    %4051 = vdwg.mxu0
    %v4052 = vlaneseq
    %v4053 = vshrl.u32 %v4052, 7
    %v4054 = vlaneseq
    %v4055 = vand.u32 %v4054, 127
    %vm4056 = vcmp.eq.s32.totalorder %v4053, %v4055
    %v4057 = vsel %vm4056, -inf, %v4050
    %vm4058 = vcmask 64512
    %v4059 = vsel %vm4058, %v4057, -inf
    %4060 = vmax.xlane.f32.xlu0 %v4059
    %v4061 = vpop.xlane.xlu0 %4060
    %v4062 = vsub.f32 %v4057, %v4061
    %v4063 = vmul.f32 %v4062, 1.442695
    %v4064 = vpow.pop %v4063
    %v4065 = vsel %vm4058, %v4064, 0.0
    %4066 = vadd.xlane.f32.xlu0 %v4065
    %v4067 = vpop.xlane.xlu0 %4066
    %v4068 = vrcp.pop %v4067
    %v4069 = vmul.f32 %v4067, %v4068
    %v4070 = vsub.f32 1.0, %v4069
    %v4071 = vmul.f32 %v4068, %v4070
    %v4072 = vadd.f32 %v4068, %v4071
    %vm4073 = vweird.f32 %v4067
    %vm4074 = vweird.f32 %v4068
    %vm4075 = vmor %vm4073, %vm4074
    %v4076 = vsel %vm4075, %v4068, %v4072
    %v4077 = vand.u32 2147483647, %v4067
    %vm4078 = vcmp.eq.f32.partialorder %v4077, 8.507059e+37
    %v4079 = vand.u32 %v4067, 2147483648
    %v4080 = vor.u32 1.1754944e-38, %v4079
    %v4081 = vsel %vm4078, %v4080, %v4076
    %v4082 = vmul.f32 %v4064, %v4081
    %v4084 = vsel %vm4058, %v4082, 0
    %4086 = vmatpush.msra.mxu0 0.0
    %4087 = vmatpush.msra.mxu0 0.0
    %4088 = vmatpush.msra.mxu0 0.0
    %4089 = vmatpush.msra.mxu0 0.0
    %4090 = vmatpush.msra.mxu0 0.0
    %4091 = vmatpush.msra.mxu0 0.0
    %4092 = vmatpush.msra.mxu0 0.0
    %4093 = vmatpush.msra.mxu0 0.0
    %4094 = vmatpush.msra.mxu0 0.0
    %4095 = vmatpush.msra.mxu0 0.0
    %4096 = vmatpush.msra.mxu0 0.0
    %4097 = vmatpush.msra.mxu0 0.0
    %4098 = vmatpush.msra.mxu0 0.0
    %4099 = vmatpush.msra.mxu0 0.0
    %4100 = vmatpush.msra.mxu0 0.0
    %4101 = vmatpush.msra.mxu0 %v3866
    %4102 = vmatmul.f32.gmra.mxu0 %v4084
    %v4103 = vpop.f32.mrf.mxu0
    %v4104 = vadd.f32 0.0, %v4103
    %4105 = vdwg.mxu0
    %vm4106 = vcmask 516096
    %4107 = vst.msk [vmem:[#allocation2] sm:$0x1] %vm4106, %v4104
    %v4109 = vrot.slane %v4104, 1
    %4110 = vrot.lane.b32.xlu0 %v4109, 64
    %v4111 = vpop.permute.xlu0 %4110
    %vm4113 = vcmask 1040896
    %4114 = vst.msk [vmem:[#allocation2] sm:$0x1] %vm4113, %v4111
    %v4115 = vrot.slane %v4104, 2
    %4117 = vst.msk [vmem:[#allocation2 + $0x8] sm:$0x1] %vm4106, %v4115
    %v4118 = vrot.slane %v4104, 3
    %4119 = vrot.lane.b32.xlu0 %v4118, 64
    %v4120 = vpop.permute.xlu0 %4119
    %4122 = vst.msk [vmem:[#allocation2 + $0x8] sm:$0x1] %vm4113, %v4120
    %v4123 = vrot.slane %v4104, 4
    %4125 = vst.msk [vmem:[#allocation2 + $0x10] sm:$0x1] %vm4106, %v4123
    %v4126 = vrot.slane %v4104, 5
    %4127 = vrot.lane.b32.xlu0 %v4126, 64
    %v4128 = vpop.permute.xlu0 %4127
    %4130 = vst.msk [vmem:[#allocation2 + $0x10] sm:$0x1] %vm4113, %v4128
    %v4131 = vrot.slane %v4104, 6
    %4133 = vst.msk [vmem:[#allocation2 + $0x18] sm:$0x1] %vm4106, %v4131
    %v4134 = vrot.slane %v4104, 7
    %4135 = vrot.lane.b32.xlu0 %v4134, 64
    %v4136 = vpop.permute.xlu0 %4135
    %4138 = vst.msk [vmem:[#allocation2 + $0x18] sm:$0x1] %vm4113, %v4136
    %4139 = vrot.lane.b32.xlu0 %v3450, 64
    %v4140 = vpop.permute.xlu0 %4139
    %4141 = vrot.lane.b32.xlu0 %v3658, 64
    %v4142 = vpop.permute.xlu0 %4141
    %v4143 = vsel %vm4025, %v4140, 0
    %v4145 = vsel %vm4025, %v4142, 0
    %4147 = vmatpush.xpose.msra.mxu0 0.0
    %4148 = vmatpush.xpose.msra.mxu0 0.0
    %4149 = vmatpush.xpose.msra.mxu0 0.0
    %4150 = vmatpush.xpose.msra.mxu0 0.0
    %4151 = vmatpush.xpose.msra.mxu0 0.0
    %4152 = vmatpush.xpose.msra.mxu0 0.0
    %4153 = vmatpush.xpose.msra.mxu0 0.0
    %4154 = vmatpush.xpose.msra.mxu0 0.0
    %4155 = vmatpush.xpose.msra.mxu0 0.0
    %4156 = vmatpush.xpose.msra.mxu0 0.0
    %4157 = vmatpush.xpose.msra.mxu0 0.0
    %4158 = vmatpush.xpose.msra.mxu0 0.0
    %4159 = vmatpush.xpose.msra.mxu0 0.0
    %4160 = vmatpush.xpose.msra.mxu0 0.0
    %4161 = vmatpush.xpose.msra.mxu0 0.0
    %4162 = vmatpush.xpose.msra.mxu0 %v4145
    %4163 = vmatmul.f32.gmra.mxu0 %v4143
    %v4164 = vpop.f32.mrf.mxu0
    %v4165 = vadd.f32 0.0, %v4164
    %4166 = vdwg.mxu0
    %v4167 = vsel %vm4056, -inf, %v4165
    %v4168 = vsel %vm4058, %v4167, -inf
    %4169 = vmax.xlane.f32.xlu0 %v4168
    %v4170 = vpop.xlane.xlu0 %4169
    %v4171 = vsub.f32 %v4167, %v4170
    %v4172 = vmul.f32 %v4171, 1.442695
    %v4173 = vpow.pop %v4172
    %v4174 = vsel %vm4058, %v4173, 0.0
    %4175 = vadd.xlane.f32.xlu0 %v4174
    %v4176 = vpop.xlane.xlu0 %4175
    %v4177 = vrcp.pop %v4176
    %v4178 = vmul.f32 %v4176, %v4177
    %v4179 = vsub.f32 1.0, %v4178
    %v4180 = vmul.f32 %v4177, %v4179
    %v4181 = vadd.f32 %v4177, %v4180
    %vm4182 = vweird.f32 %v4176
    %vm4183 = vweird.f32 %v4177
    %vm4184 = vmor %vm4182, %vm4183
    %v4185 = vsel %vm4184, %v4177, %v4181
    %v4186 = vand.u32 2147483647, %v4176
    %vm4187 = vcmp.eq.f32.partialorder %v4186, 8.507059e+37
    %v4188 = vand.u32 %v4176, 2147483648
    %v4189 = vor.u32 1.1754944e-38, %v4188
    %v4190 = vsel %vm4187, %v4189, %v4185
    %v4191 = vmul.f32 %v4173, %v4190
    %4193 = vrot.lane.b32.xlu0 %v3866, 64
    %v4194 = vpop.permute.xlu0 %4193
    %v4197 = vsel %vm4058, %v4191, 0
    %4199 = vmatpush.msra.mxu0 0.0
    %4200 = vmatpush.msra.mxu0 0.0
    %4201 = vmatpush.msra.mxu0 0.0
    %4202 = vmatpush.msra.mxu0 0.0
    %4203 = vmatpush.msra.mxu0 0.0
    %4204 = vmatpush.msra.mxu0 0.0
    %4205 = vmatpush.msra.mxu0 0.0
    %4206 = vmatpush.msra.mxu0 0.0
    %4207 = vmatpush.msra.mxu0 0.0
    %4208 = vmatpush.msra.mxu0 0.0
    %4209 = vmatpush.msra.mxu0 0.0
    %4210 = vmatpush.msra.mxu0 0.0
    %4211 = vmatpush.msra.mxu0 0.0
    %4212 = vmatpush.msra.mxu0 0.0
    %4213 = vmatpush.msra.mxu0 0.0
    %4214 = vmatpush.msra.mxu0 %v4194
    %4215 = vmatmul.f32.gmra.mxu0 %v4197
    %v4216 = vpop.f32.mrf.mxu0
    %v4217 = vadd.f32 0.0, %v4216
    %4218 = vdwg.mxu0
    %4219 = vst.msk [vmem:[#allocation2 + $0x1] sm:$0x1] %vm4106, %v4217
    %v4221 = vrot.slane %v4217, 1
    %4222 = vrot.lane.b32.xlu0 %v4221, 64
    %v4223 = vpop.permute.xlu0 %4222
    %4225 = vst.msk [vmem:[#allocation2 + $0x1] sm:$0x1] %vm4113, %v4223
    %v4226 = vrot.slane %v4217, 2
    %4228 = vst.msk [vmem:[#allocation2 + $0x9] sm:$0x1] %vm4106, %v4226
    %v4229 = vrot.slane %v4217, 3
    %4230 = vrot.lane.b32.xlu0 %v4229, 64
    %v4231 = vpop.permute.xlu0 %4230
    %4233 = vst.msk [vmem:[#allocation2 + $0x9] sm:$0x1] %vm4113, %v4231
    %v4234 = vrot.slane %v4217, 4
    %4236 = vst.msk [vmem:[#allocation2 + $0x11] sm:$0x1] %vm4106, %v4234
    %v4237 = vrot.slane %v4217, 5
    %4238 = vrot.lane.b32.xlu0 %v4237, 64
    %v4239 = vpop.permute.xlu0 %4238
    %4241 = vst.msk [vmem:[#allocation2 + $0x11] sm:$0x1] %vm4113, %v4239
    %v4242 = vrot.slane %v4217, 6
    %4244 = vst.msk [vmem:[#allocation2 + $0x19] sm:$0x1] %vm4106, %v4242
    %v4245 = vrot.slane %v4217, 7
    %4246 = vrot.lane.b32.xlu0 %v4245, 64
    %v4247 = vpop.permute.xlu0 %4246
    %4249 = vst.msk [vmem:[#allocation2 + $0x19] sm:$0x1] %vm4113, %v4247
    %v4251 = vsel %vm4025, %v3502, 0
    %v4254 = vsel %vm4025, %v3710, 0
    %4256 = vmatpush.xpose.msra.mxu0 0.0
    %4257 = vmatpush.xpose.msra.mxu0 0.0
    %4258 = vmatpush.xpose.msra.mxu0 0.0
    %4259 = vmatpush.xpose.msra.mxu0 0.0
    %4260 = vmatpush.xpose.msra.mxu0 0.0
    %4261 = vmatpush.xpose.msra.mxu0 0.0
    %4262 = vmatpush.xpose.msra.mxu0 0.0
    %4263 = vmatpush.xpose.msra.mxu0 0.0
    %4264 = vmatpush.xpose.msra.mxu0 0.0
    %4265 = vmatpush.xpose.msra.mxu0 0.0
    %4266 = vmatpush.xpose.msra.mxu0 0.0
    %4267 = vmatpush.xpose.msra.mxu0 0.0
    %4268 = vmatpush.xpose.msra.mxu0 0.0
    %4269 = vmatpush.xpose.msra.mxu0 0.0
    %4270 = vmatpush.xpose.msra.mxu0 0.0
    %4271 = vmatpush.xpose.msra.mxu0 %v4254
    %4272 = vmatmul.f32.gmra.mxu0 %v4251
    %v4273 = vpop.f32.mrf.mxu0
    %v4274 = vadd.f32 0.0, %v4273
    %4275 = vdwg.mxu0
    %v4276 = vsel %vm4056, -inf, %v4274
    %v4277 = vsel %vm4058, %v4276, -inf
    %4278 = vmax.xlane.f32.xlu0 %v4277
    %v4279 = vpop.xlane.xlu0 %4278
    %v4280 = vsub.f32 %v4276, %v4279
    %v4281 = vmul.f32 %v4280, 1.442695
    %v4282 = vpow.pop %v4281
    %v4283 = vsel %vm4058, %v4282, 0.0
    %4284 = vadd.xlane.f32.xlu0 %v4283
    %v4285 = vpop.xlane.xlu0 %4284
    %v4286 = vrcp.pop %v4285
    %v4287 = vmul.f32 %v4285, %v4286
    %v4288 = vsub.f32 1.0, %v4287
    %v4289 = vmul.f32 %v4286, %v4288
    %v4290 = vadd.f32 %v4286, %v4289
    %vm4291 = vweird.f32 %v4285
    %vm4292 = vweird.f32 %v4286
    %vm4293 = vmor %vm4291, %vm4292
    %v4294 = vsel %vm4293, %v4286, %v4290
    %v4295 = vand.u32 2147483647, %v4285
    %vm4296 = vcmp.eq.f32.partialorder %v4295, 8.507059e+37
    %v4297 = vand.u32 %v4285, 2147483648
    %v4298 = vor.u32 1.1754944e-38, %v4297
    %v4299 = vsel %vm4296, %v4298, %v4294
    %v4300 = vmul.f32 %v4282, %v4299
    %v4302 = vsel %vm4058, %v4300, 0
    %4304 = vmatpush.msra.mxu0 0.0
    %4305 = vmatpush.msra.mxu0 0.0
    %4306 = vmatpush.msra.mxu0 0.0
    %4307 = vmatpush.msra.mxu0 0.0
    %4308 = vmatpush.msra.mxu0 0.0
    %4309 = vmatpush.msra.mxu0 0.0
    %4310 = vmatpush.msra.mxu0 0.0
    %4311 = vmatpush.msra.mxu0 0.0
    %4312 = vmatpush.msra.mxu0 0.0
    %4313 = vmatpush.msra.mxu0 0.0
    %4314 = vmatpush.msra.mxu0 0.0
    %4315 = vmatpush.msra.mxu0 0.0
    %4316 = vmatpush.msra.mxu0 0.0
    %4317 = vmatpush.msra.mxu0 0.0
    %4318 = vmatpush.msra.mxu0 0.0
    %4319 = vmatpush.msra.mxu0 %v3918
    %4320 = vmatmul.f32.gmra.mxu0 %v4302
    %v4321 = vpop.f32.mrf.mxu0
    %v4322 = vadd.f32 0.0, %v4321
    %4323 = vdwg.mxu0
    %4324 = vst.msk [vmem:[#allocation2 + $0x2] sm:$0x1] %vm4106, %v4322
    %v4326 = vrot.slane %v4322, 1
    %4327 = vrot.lane.b32.xlu0 %v4326, 64
    %v4328 = vpop.permute.xlu0 %4327
    %4330 = vst.msk [vmem:[#allocation2 + $0x2] sm:$0x1] %vm4113, %v4328
    %v4331 = vrot.slane %v4322, 2
    %4333 = vst.msk [vmem:[#allocation2 + $0xa] sm:$0x1] %vm4106, %v4331
    %v4334 = vrot.slane %v4322, 3
    %4335 = vrot.lane.b32.xlu0 %v4334, 64
    %v4336 = vpop.permute.xlu0 %4335
    %4338 = vst.msk [vmem:[#allocation2 + $0xa] sm:$0x1] %vm4113, %v4336
    %v4339 = vrot.slane %v4322, 4
    %4341 = vst.msk [vmem:[#allocation2 + $0x12] sm:$0x1] %vm4106, %v4339
    %v4342 = vrot.slane %v4322, 5
    %4343 = vrot.lane.b32.xlu0 %v4342, 64
    %v4344 = vpop.permute.xlu0 %4343
    %4346 = vst.msk [vmem:[#allocation2 + $0x12] sm:$0x1] %vm4113, %v4344
    %v4347 = vrot.slane %v4322, 6
    %4349 = vst.msk [vmem:[#allocation2 + $0x1a] sm:$0x1] %vm4106, %v4347
    %v4350 = vrot.slane %v4322, 7
    %4351 = vrot.lane.b32.xlu0 %v4350, 64
    %v4352 = vpop.permute.xlu0 %4351
    %4354 = vst.msk [vmem:[#allocation2 + $0x1a] sm:$0x1] %vm4113, %v4352
    %4355 = vrot.lane.b32.xlu0 %v3502, 64
    %v4356 = vpop.permute.xlu0 %4355
    %4357 = vrot.lane.b32.xlu0 %v3710, 64
    %v4358 = vpop.permute.xlu0 %4357
    %v4359 = vsel %vm4025, %v4356, 0
    %v4361 = vsel %vm4025, %v4358, 0
    %4363 = vmatpush.xpose.msra.mxu0 0.0
    %4364 = vmatpush.xpose.msra.mxu0 0.0
    %4365 = vmatpush.xpose.msra.mxu0 0.0
    %4366 = vmatpush.xpose.msra.mxu0 0.0
    %4367 = vmatpush.xpose.msra.mxu0 0.0
    %4368 = vmatpush.xpose.msra.mxu0 0.0
    %4369 = vmatpush.xpose.msra.mxu0 0.0
    %4370 = vmatpush.xpose.msra.mxu0 0.0
    %4371 = vmatpush.xpose.msra.mxu0 0.0
    %4372 = vmatpush.xpose.msra.mxu0 0.0
    %4373 = vmatpush.xpose.msra.mxu0 0.0
    %4374 = vmatpush.xpose.msra.mxu0 0.0
    %4375 = vmatpush.xpose.msra.mxu0 0.0
    %4376 = vmatpush.xpose.msra.mxu0 0.0
    %4377 = vmatpush.xpose.msra.mxu0 0.0
    %4378 = vmatpush.xpose.msra.mxu0 %v4361
    %4379 = vmatmul.f32.gmra.mxu0 %v4359
    %v4380 = vpop.f32.mrf.mxu0
    %v4381 = vadd.f32 0.0, %v4380
    %4382 = vdwg.mxu0
    %v4383 = vsel %vm4056, -inf, %v4381
    %v4384 = vsel %vm4058, %v4383, -inf
    %4385 = vmax.xlane.f32.xlu0 %v4384
    %v4386 = vpop.xlane.xlu0 %4385
    %v4387 = vsub.f32 %v4383, %v4386
    %v4388 = vmul.f32 %v4387, 1.442695
    %v4389 = vpow.pop %v4388
    %v4390 = vsel %vm4058, %v4389, 0.0
    %4391 = vadd.xlane.f32.xlu0 %v4390
    %v4392 = vpop.xlane.xlu0 %4391
    %v4393 = vrcp.pop %v4392
    %v4394 = vmul.f32 %v4392, %v4393
    %v4395 = vsub.f32 1.0, %v4394
    %v4396 = vmul.f32 %v4393, %v4395
    %v4397 = vadd.f32 %v4393, %v4396
    %vm4398 = vweird.f32 %v4392
    %vm4399 = vweird.f32 %v4393
    %vm4400 = vmor %vm4398, %vm4399
    %v4401 = vsel %vm4400, %v4393, %v4397
    %v4402 = vand.u32 2147483647, %v4392
    %vm4403 = vcmp.eq.f32.partialorder %v4402, 8.507059e+37
    %v4404 = vand.u32 %v4392, 2147483648
    %v4405 = vor.u32 1.1754944e-38, %v4404
    %v4406 = vsel %vm4403, %v4405, %v4401
    %v4407 = vmul.f32 %v4389, %v4406
    %4409 = vrot.lane.b32.xlu0 %v3918, 64
    %v4410 = vpop.permute.xlu0 %4409
    %v4413 = vsel %vm4058, %v4407, 0
    %4415 = vmatpush.msra.mxu0 0.0
    %4416 = vmatpush.msra.mxu0 0.0
    %4417 = vmatpush.msra.mxu0 0.0
    %4418 = vmatpush.msra.mxu0 0.0
    %4419 = vmatpush.msra.mxu0 0.0
    %4420 = vmatpush.msra.mxu0 0.0
    %4421 = vmatpush.msra.mxu0 0.0
    %4422 = vmatpush.msra.mxu0 0.0
    %4423 = vmatpush.msra.mxu0 0.0
    %4424 = vmatpush.msra.mxu0 0.0
    %4425 = vmatpush.msra.mxu0 0.0
    %4426 = vmatpush.msra.mxu0 0.0
    %4427 = vmatpush.msra.mxu0 0.0
    %4428 = vmatpush.msra.mxu0 0.0
    %4429 = vmatpush.msra.mxu0 0.0
    %4430 = vmatpush.msra.mxu0 %v4410
    %4431 = vmatmul.f32.gmra.mxu0 %v4413
    %v4432 = vpop.f32.mrf.mxu0
    %v4433 = vadd.f32 0.0, %v4432
    %4434 = vdwg.mxu0
    %4435 = vst.msk [vmem:[#allocation2 + $0x3] sm:$0x1] %vm4106, %v4433
    %v4437 = vrot.slane %v4433, 1
    %4438 = vrot.lane.b32.xlu0 %v4437, 64
    %v4439 = vpop.permute.xlu0 %4438
    %4441 = vst.msk [vmem:[#allocation2 + $0x3] sm:$0x1] %vm4113, %v4439
    %v4442 = vrot.slane %v4433, 2
    %4444 = vst.msk [vmem:[#allocation2 + $0xb] sm:$0x1] %vm4106, %v4442
    %v4445 = vrot.slane %v4433, 3
    %4446 = vrot.lane.b32.xlu0 %v4445, 64
    %v4447 = vpop.permute.xlu0 %4446
    %4449 = vst.msk [vmem:[#allocation2 + $0xb] sm:$0x1] %vm4113, %v4447
    %v4450 = vrot.slane %v4433, 4
    %4452 = vst.msk [vmem:[#allocation2 + $0x13] sm:$0x1] %vm4106, %v4450
    %v4453 = vrot.slane %v4433, 5
    %4454 = vrot.lane.b32.xlu0 %v4453, 64
    %v4455 = vpop.permute.xlu0 %4454
    %4457 = vst.msk [vmem:[#allocation2 + $0x13] sm:$0x1] %vm4113, %v4455
    %v4458 = vrot.slane %v4433, 6
    %4460 = vst.msk [vmem:[#allocation2 + $0x1b] sm:$0x1] %vm4106, %v4458
    %v4461 = vrot.slane %v4433, 7
    %4462 = vrot.lane.b32.xlu0 %v4461, 64
    %v4463 = vpop.permute.xlu0 %4462
    %4465 = vst.msk [vmem:[#allocation2 + $0x1b] sm:$0x1] %vm4113, %v4463
    %v4467 = vsel %vm4025, %v3554, 0
    %v4470 = vsel %vm4025, %v3762, 0
    %4472 = vmatpush.xpose.msra.mxu0 0.0
    %4473 = vmatpush.xpose.msra.mxu0 0.0
    %4474 = vmatpush.xpose.msra.mxu0 0.0
    %4475 = vmatpush.xpose.msra.mxu0 0.0
    %4476 = vmatpush.xpose.msra.mxu0 0.0
    %4477 = vmatpush.xpose.msra.mxu0 0.0
    %4478 = vmatpush.xpose.msra.mxu0 0.0
    %4479 = vmatpush.xpose.msra.mxu0 0.0
    %4480 = vmatpush.xpose.msra.mxu0 0.0
    %4481 = vmatpush.xpose.msra.mxu0 0.0
    %4482 = vmatpush.xpose.msra.mxu0 0.0
    %4483 = vmatpush.xpose.msra.mxu0 0.0
    %4484 = vmatpush.xpose.msra.mxu0 0.0
    %4485 = vmatpush.xpose.msra.mxu0 0.0
    %4486 = vmatpush.xpose.msra.mxu0 0.0
    %4487 = vmatpush.xpose.msra.mxu0 %v4470
    %4488 = vmatmul.f32.gmra.mxu0 %v4467
    %v4489 = vpop.f32.mrf.mxu0
    %v4490 = vadd.f32 0.0, %v4489
    %4491 = vdwg.mxu0
    %v4492 = vsel %vm4056, -inf, %v4490
    %v4493 = vsel %vm4058, %v4492, -inf
    %4494 = vmax.xlane.f32.xlu0 %v4493
    %v4495 = vpop.xlane.xlu0 %4494
    %v4496 = vsub.f32 %v4492, %v4495
    %v4497 = vmul.f32 %v4496, 1.442695
    %v4498 = vpow.pop %v4497
    %v4499 = vsel %vm4058, %v4498, 0.0
    %4500 = vadd.xlane.f32.xlu0 %v4499
    %v4501 = vpop.xlane.xlu0 %4500
    %v4502 = vrcp.pop %v4501
    %v4503 = vmul.f32 %v4501, %v4502
    %v4504 = vsub.f32 1.0, %v4503
    %v4505 = vmul.f32 %v4502, %v4504
    %v4506 = vadd.f32 %v4502, %v4505
    %vm4507 = vweird.f32 %v4501
    %vm4508 = vweird.f32 %v4502
    %vm4509 = vmor %vm4507, %vm4508
    %v4510 = vsel %vm4509, %v4502, %v4506
    %v4511 = vand.u32 2147483647, %v4501
    %vm4512 = vcmp.eq.f32.partialorder %v4511, 8.507059e+37
    %v4513 = vand.u32 %v4501, 2147483648
    %v4514 = vor.u32 1.1754944e-38, %v4513
    %v4515 = vsel %vm4512, %v4514, %v4510
    %v4516 = vmul.f32 %v4498, %v4515
    %v4518 = vsel %vm4058, %v4516, 0
    %4520 = vmatpush.msra.mxu0 0.0
    %4521 = vmatpush.msra.mxu0 0.0
    %4522 = vmatpush.msra.mxu0 0.0
    %4523 = vmatpush.msra.mxu0 0.0
    %4524 = vmatpush.msra.mxu0 0.0
    %4525 = vmatpush.msra.mxu0 0.0
    %4526 = vmatpush.msra.mxu0 0.0
    %4527 = vmatpush.msra.mxu0 0.0
    %4528 = vmatpush.msra.mxu0 0.0
    %4529 = vmatpush.msra.mxu0 0.0
    %4530 = vmatpush.msra.mxu0 0.0
    %4531 = vmatpush.msra.mxu0 0.0
    %4532 = vmatpush.msra.mxu0 0.0
    %4533 = vmatpush.msra.mxu0 0.0
    %4534 = vmatpush.msra.mxu0 0.0
    %4535 = vmatpush.msra.mxu0 %v3970
    %4536 = vmatmul.f32.gmra.mxu0 %v4518
    %v4537 = vpop.f32.mrf.mxu0
    %v4538 = vadd.f32 0.0, %v4537
    %4539 = vdwg.mxu0
    %4540 = vst.msk [vmem:[#allocation2 + $0x4] sm:$0x1] %vm4106, %v4538
    %v4542 = vrot.slane %v4538, 1
    %4543 = vrot.lane.b32.xlu0 %v4542, 64
    %v4544 = vpop.permute.xlu0 %4543
    %4546 = vst.msk [vmem:[#allocation2 + $0x4] sm:$0x1] %vm4113, %v4544
    %v4547 = vrot.slane %v4538, 2
    %4549 = vst.msk [vmem:[#allocation2 + $0xc] sm:$0x1] %vm4106, %v4547
    %v4550 = vrot.slane %v4538, 3
    %4551 = vrot.lane.b32.xlu0 %v4550, 64
    %v4552 = vpop.permute.xlu0 %4551
    %4554 = vst.msk [vmem:[#allocation2 + $0xc] sm:$0x1] %vm4113, %v4552
    %v4555 = vrot.slane %v4538, 4
    %4557 = vst.msk [vmem:[#allocation2 + $0x14] sm:$0x1] %vm4106, %v4555
    %v4558 = vrot.slane %v4538, 5
    %4559 = vrot.lane.b32.xlu0 %v4558, 64
    %v4560 = vpop.permute.xlu0 %4559
    %4562 = vst.msk [vmem:[#allocation2 + $0x14] sm:$0x1] %vm4113, %v4560
    %v4563 = vrot.slane %v4538, 6
    %4565 = vst.msk [vmem:[#allocation2 + $0x1c] sm:$0x1] %vm4106, %v4563
    %v4566 = vrot.slane %v4538, 7
    %4567 = vrot.lane.b32.xlu0 %v4566, 64
    %v4568 = vpop.permute.xlu0 %4567
    %4570 = vst.msk [vmem:[#allocation2 + $0x1c] sm:$0x1] %vm4113, %v4568
    %4571 = vrot.lane.b32.xlu0 %v3554, 64
    %v4572 = vpop.permute.xlu0 %4571
    %4573 = vrot.lane.b32.xlu0 %v3762, 64
    %v4574 = vpop.permute.xlu0 %4573
    %v4575 = vsel %vm4025, %v4572, 0
    %v4577 = vsel %vm4025, %v4574, 0
    %4579 = vmatpush.xpose.msra.mxu0 0.0
    %4580 = vmatpush.xpose.msra.mxu0 0.0
    %4581 = vmatpush.xpose.msra.mxu0 0.0
    %4582 = vmatpush.xpose.msra.mxu0 0.0
    %4583 = vmatpush.xpose.msra.mxu0 0.0
    %4584 = vmatpush.xpose.msra.mxu0 0.0
    %4585 = vmatpush.xpose.msra.mxu0 0.0
    %4586 = vmatpush.xpose.msra.mxu0 0.0
    %4587 = vmatpush.xpose.msra.mxu0 0.0
    %4588 = vmatpush.xpose.msra.mxu0 0.0
    %4589 = vmatpush.xpose.msra.mxu0 0.0
    %4590 = vmatpush.xpose.msra.mxu0 0.0
    %4591 = vmatpush.xpose.msra.mxu0 0.0
    %4592 = vmatpush.xpose.msra.mxu0 0.0
    %4593 = vmatpush.xpose.msra.mxu0 0.0
    %4594 = vmatpush.xpose.msra.mxu0 %v4577
    %4595 = vmatmul.f32.gmra.mxu0 %v4575
    %v4596 = vpop.f32.mrf.mxu0
    %v4597 = vadd.f32 0.0, %v4596
    %4598 = vdwg.mxu0
    %v4599 = vsel %vm4056, -inf, %v4597
    %v4600 = vsel %vm4058, %v4599, -inf
    %4601 = vmax.xlane.f32.xlu0 %v4600
    %v4602 = vpop.xlane.xlu0 %4601
    %v4603 = vsub.f32 %v4599, %v4602
    %v4604 = vmul.f32 %v4603, 1.442695
    %v4605 = vpow.pop %v4604
    %v4606 = vsel %vm4058, %v4605, 0.0
    %4607 = vadd.xlane.f32.xlu0 %v4606
    %v4608 = vpop.xlane.xlu0 %4607
    %v4609 = vrcp.pop %v4608
    %v4610 = vmul.f32 %v4608, %v4609
    %v4611 = vsub.f32 1.0, %v4610
    %v4612 = vmul.f32 %v4609, %v4611
    %v4613 = vadd.f32 %v4609, %v4612
    %vm4614 = vweird.f32 %v4608
    %vm4615 = vweird.f32 %v4609
    %vm4616 = vmor %vm4614, %vm4615
    %v4617 = vsel %vm4616, %v4609, %v4613
    %v4618 = vand.u32 2147483647, %v4608
    %vm4619 = vcmp.eq.f32.partialorder %v4618, 8.507059e+37
    %v4620 = vand.u32 %v4608, 2147483648
    %v4621 = vor.u32 1.1754944e-38, %v4620
    %v4622 = vsel %vm4619, %v4621, %v4617
    %v4623 = vmul.f32 %v4605, %v4622
    %4625 = vrot.lane.b32.xlu0 %v3970, 64
    %v4626 = vpop.permute.xlu0 %4625
    %v4629 = vsel %vm4058, %v4623, 0
    %4631 = vmatpush.msra.mxu0 0.0
    %4632 = vmatpush.msra.mxu0 0.0
    %4633 = vmatpush.msra.mxu0 0.0
    %4634 = vmatpush.msra.mxu0 0.0
    %4635 = vmatpush.msra.mxu0 0.0
    %4636 = vmatpush.msra.mxu0 0.0
    %4637 = vmatpush.msra.mxu0 0.0
    %4638 = vmatpush.msra.mxu0 0.0
    %4639 = vmatpush.msra.mxu0 0.0
    %4640 = vmatpush.msra.mxu0 0.0
    %4641 = vmatpush.msra.mxu0 0.0
    %4642 = vmatpush.msra.mxu0 0.0
    %4643 = vmatpush.msra.mxu0 0.0
    %4644 = vmatpush.msra.mxu0 0.0
    %4645 = vmatpush.msra.mxu0 0.0
    %4646 = vmatpush.msra.mxu0 %v4626
    %4647 = vmatmul.f32.gmra.mxu0 %v4629
    %v4648 = vpop.f32.mrf.mxu0
    %v4649 = vadd.f32 0.0, %v4648
    %4650 = vdwg.mxu0
    %4651 = vst.msk [vmem:[#allocation2 + $0x5] sm:$0x1] %vm4106, %v4649
    %v4653 = vrot.slane %v4649, 1
    %4654 = vrot.lane.b32.xlu0 %v4653, 64
    %v4655 = vpop.permute.xlu0 %4654
    %4657 = vst.msk [vmem:[#allocation2 + $0x5] sm:$0x1] %vm4113, %v4655
    %v4658 = vrot.slane %v4649, 2
    %4660 = vst.msk [vmem:[#allocation2 + $0xd] sm:$0x1] %vm4106, %v4658
    %v4661 = vrot.slane %v4649, 3
    %4662 = vrot.lane.b32.xlu0 %v4661, 64
    %v4663 = vpop.permute.xlu0 %4662
    %4665 = vst.msk [vmem:[#allocation2 + $0xd] sm:$0x1] %vm4113, %v4663
    %v4666 = vrot.slane %v4649, 4
    %4668 = vst.msk [vmem:[#allocation2 + $0x15] sm:$0x1] %vm4106, %v4666
    %v4669 = vrot.slane %v4649, 5
    %4670 = vrot.lane.b32.xlu0 %v4669, 64
    %v4671 = vpop.permute.xlu0 %4670
    %4673 = vst.msk [vmem:[#allocation2 + $0x15] sm:$0x1] %vm4113, %v4671
    %v4674 = vrot.slane %v4649, 6
    %4676 = vst.msk [vmem:[#allocation2 + $0x1d] sm:$0x1] %vm4106, %v4674
    %v4677 = vrot.slane %v4649, 7
    %4678 = vrot.lane.b32.xlu0 %v4677, 64
    %v4679 = vpop.permute.xlu0 %4678
    %4681 = vst.msk [vmem:[#allocation2 + $0x1d] sm:$0x1] %vm4113, %v4679
    %v4683 = vsel %vm4025, %v3606, 0
    %v4686 = vsel %vm4025, %v3814, 0
    %4688 = vmatpush.xpose.msra.mxu0 0.0
    %4689 = vmatpush.xpose.msra.mxu0 0.0
    %4690 = vmatpush.xpose.msra.mxu0 0.0
    %4691 = vmatpush.xpose.msra.mxu0 0.0
    %4692 = vmatpush.xpose.msra.mxu0 0.0
    %4693 = vmatpush.xpose.msra.mxu0 0.0
    %4694 = vmatpush.xpose.msra.mxu0 0.0
    %4695 = vmatpush.xpose.msra.mxu0 0.0
    %4696 = vmatpush.xpose.msra.mxu0 0.0
    %4697 = vmatpush.xpose.msra.mxu0 0.0
    %4698 = vmatpush.xpose.msra.mxu0 0.0
    %4699 = vmatpush.xpose.msra.mxu0 0.0
    %4700 = vmatpush.xpose.msra.mxu0 0.0
    %4701 = vmatpush.xpose.msra.mxu0 0.0
    %4702 = vmatpush.xpose.msra.mxu0 0.0
    %4703 = vmatpush.xpose.msra.mxu0 %v4686
    %4704 = vmatmul.f32.gmra.mxu0 %v4683
    %v4705 = vpop.f32.mrf.mxu0
    %v4706 = vadd.f32 0.0, %v4705
    %4707 = vdwg.mxu0
    %v4708 = vsel %vm4056, -inf, %v4706
    %v4709 = vsel %vm4058, %v4708, -inf
    %4710 = vmax.xlane.f32.xlu0 %v4709
    %v4711 = vpop.xlane.xlu0 %4710
    %v4712 = vsub.f32 %v4708, %v4711
    %v4713 = vmul.f32 %v4712, 1.442695
    %v4714 = vpow.pop %v4713
    %v4715 = vsel %vm4058, %v4714, 0.0
    %4716 = vadd.xlane.f32.xlu0 %v4715
    %v4717 = vpop.xlane.xlu0 %4716
    %v4718 = vrcp.pop %v4717
    %v4719 = vmul.f32 %v4717, %v4718
    %v4720 = vsub.f32 1.0, %v4719
    %v4721 = vmul.f32 %v4718, %v4720
    %v4722 = vadd.f32 %v4718, %v4721
    %vm4723 = vweird.f32 %v4717
    %vm4724 = vweird.f32 %v4718
    %vm4725 = vmor %vm4723, %vm4724
    %v4726 = vsel %vm4725, %v4718, %v4722
    %v4727 = vand.u32 2147483647, %v4717
    %vm4728 = vcmp.eq.f32.partialorder %v4727, 8.507059e+37
    %v4729 = vand.u32 %v4717, 2147483648
    %v4730 = vor.u32 1.1754944e-38, %v4729
    %v4731 = vsel %vm4728, %v4730, %v4726
    %v4732 = vmul.f32 %v4714, %v4731
    %v4734 = vsel %vm4058, %v4732, 0
    %4736 = vmatpush.msra.mxu0 0.0
    %4737 = vmatpush.msra.mxu0 0.0
    %4738 = vmatpush.msra.mxu0 0.0
    %4739 = vmatpush.msra.mxu0 0.0
    %4740 = vmatpush.msra.mxu0 0.0
    %4741 = vmatpush.msra.mxu0 0.0
    %4742 = vmatpush.msra.mxu0 0.0
    %4743 = vmatpush.msra.mxu0 0.0
    %4744 = vmatpush.msra.mxu0 0.0
    %4745 = vmatpush.msra.mxu0 0.0
    %4746 = vmatpush.msra.mxu0 0.0
    %4747 = vmatpush.msra.mxu0 0.0
    %4748 = vmatpush.msra.mxu0 0.0
    %4749 = vmatpush.msra.mxu0 0.0
    %4750 = vmatpush.msra.mxu0 0.0
    %4751 = vmatpush.msra.mxu0 %v4022
    %4752 = vmatmul.f32.gmra.mxu0 %v4734
    %v4753 = vpop.f32.mrf.mxu0
    %v4754 = vadd.f32 0.0, %v4753
    %4755 = vdwg.mxu0
    %4756 = vst.msk [vmem:[#allocation2 + $0x6] sm:$0x1] %vm4106, %v4754
    %v4758 = vrot.slane %v4754, 1
    %4759 = vrot.lane.b32.xlu0 %v4758, 64
    %v4760 = vpop.permute.xlu0 %4759
    %4762 = vst.msk [vmem:[#allocation2 + $0x6] sm:$0x1] %vm4113, %v4760
    %v4763 = vrot.slane %v4754, 2
    %4765 = vst.msk [vmem:[#allocation2 + $0xe] sm:$0x1] %vm4106, %v4763
    %v4766 = vrot.slane %v4754, 3
    %4767 = vrot.lane.b32.xlu0 %v4766, 64
    %v4768 = vpop.permute.xlu0 %4767
    %4770 = vst.msk [vmem:[#allocation2 + $0xe] sm:$0x1] %vm4113, %v4768
    %v4771 = vrot.slane %v4754, 4
    %4773 = vst.msk [vmem:[#allocation2 + $0x16] sm:$0x1] %vm4106, %v4771
    %v4774 = vrot.slane %v4754, 5
    %4775 = vrot.lane.b32.xlu0 %v4774, 64
    %v4776 = vpop.permute.xlu0 %4775
    %4778 = vst.msk [vmem:[#allocation2 + $0x16] sm:$0x1] %vm4113, %v4776
    %v4779 = vrot.slane %v4754, 6
    %4781 = vst.msk [vmem:[#allocation2 + $0x1e] sm:$0x1] %vm4106, %v4779
    %v4782 = vrot.slane %v4754, 7
    %4783 = vrot.lane.b32.xlu0 %v4782, 64
    %v4784 = vpop.permute.xlu0 %4783
    %4786 = vst.msk [vmem:[#allocation2 + $0x1e] sm:$0x1] %vm4113, %v4784
    %4787 = vrot.lane.b32.xlu0 %v3606, 64
    %v4788 = vpop.permute.xlu0 %4787
    %4789 = vrot.lane.b32.xlu0 %v3814, 64
    %v4790 = vpop.permute.xlu0 %4789
    %v4791 = vsel %vm4025, %v4788, 0
    %v4793 = vsel %vm4025, %v4790, 0
    %4795 = vmatpush.xpose.msra.mxu0 0.0
    %4796 = vmatpush.xpose.msra.mxu0 0.0
    %4797 = vmatpush.xpose.msra.mxu0 0.0
    %4798 = vmatpush.xpose.msra.mxu0 0.0
    %4799 = vmatpush.xpose.msra.mxu0 0.0
    %4800 = vmatpush.xpose.msra.mxu0 0.0
    %4801 = vmatpush.xpose.msra.mxu0 0.0
    %4802 = vmatpush.xpose.msra.mxu0 0.0
    %4803 = vmatpush.xpose.msra.mxu0 0.0
    %4804 = vmatpush.xpose.msra.mxu0 0.0
    %4805 = vmatpush.xpose.msra.mxu0 0.0
    %4806 = vmatpush.xpose.msra.mxu0 0.0
    %4807 = vmatpush.xpose.msra.mxu0 0.0
    %4808 = vmatpush.xpose.msra.mxu0 0.0
    %4809 = vmatpush.xpose.msra.mxu0 0.0
    %4810 = vmatpush.xpose.msra.mxu0 %v4793
    %4811 = vmatmul.f32.gmra.mxu0 %v4791
    %v4812 = vpop.f32.mrf.mxu0
    %v4813 = vadd.f32 0.0, %v4812
    %4814 = vdwg.mxu0
    %v4815 = vsel %vm4056, -inf, %v4813
    %v4816 = vsel %vm4058, %v4815, -inf
    %4817 = vmax.xlane.f32.xlu0 %v4816
    %v4818 = vpop.xlane.xlu0 %4817
    %v4819 = vsub.f32 %v4815, %v4818
    %v4820 = vmul.f32 %v4819, 1.442695
    %v4821 = vpow.pop %v4820
    %v4822 = vsel %vm4058, %v4821, 0.0
    %4823 = vadd.xlane.f32.xlu0 %v4822
    %v4824 = vpop.xlane.xlu0 %4823
    %v4825 = vrcp.pop %v4824
    %v4826 = vmul.f32 %v4824, %v4825
    %v4827 = vsub.f32 1.0, %v4826
    %v4828 = vmul.f32 %v4825, %v4827
    %v4829 = vadd.f32 %v4825, %v4828
    %vm4830 = vweird.f32 %v4824
    %vm4831 = vweird.f32 %v4825
    %vm4832 = vmor %vm4830, %vm4831
    %v4833 = vsel %vm4832, %v4825, %v4829
    %v4834 = vand.u32 2147483647, %v4824
    %vm4835 = vcmp.eq.f32.partialorder %v4834, 8.507059e+37
    %v4836 = vand.u32 %v4824, 2147483648
    %v4837 = vor.u32 1.1754944e-38, %v4836
    %v4838 = vsel %vm4835, %v4837, %v4833
    %v4839 = vmul.f32 %v4821, %v4838
    %4841 = vrot.lane.b32.xlu0 %v4022, 64
    %v4842 = vpop.permute.xlu0 %4841
    %v4845 = vsel %vm4058, %v4839, 0
    %4847 = vmatpush.msra.mxu0 0.0
    %4848 = vmatpush.msra.mxu0 0.0
    %4849 = vmatpush.msra.mxu0 0.0
    %4850 = vmatpush.msra.mxu0 0.0
    %4851 = vmatpush.msra.mxu0 0.0
    %4852 = vmatpush.msra.mxu0 0.0
    %4853 = vmatpush.msra.mxu0 0.0
    %4854 = vmatpush.msra.mxu0 0.0
    %4855 = vmatpush.msra.mxu0 0.0
    %4856 = vmatpush.msra.mxu0 0.0
    %4857 = vmatpush.msra.mxu0 0.0
    %4858 = vmatpush.msra.mxu0 0.0
    %4859 = vmatpush.msra.mxu0 0.0
    %4860 = vmatpush.msra.mxu0 0.0
    %4861 = vmatpush.msra.mxu0 0.0
    %4862 = vmatpush.msra.mxu0 %v4842
    %4863 = vmatmul.f32.gmra.mxu0 %v4845
    %v4864 = vpop.f32.mrf.mxu0
    %v4865 = vadd.f32 0.0, %v4864
    %4866 = vdwg.mxu0
    %4867 = vst.msk [vmem:[#allocation2 + $0x7] sm:$0x1] %vm4106, %v4865
    %v4869 = vrot.slane %v4865, 1
    %4870 = vrot.lane.b32.xlu0 %v4869, 64
    %v4871 = vpop.permute.xlu0 %4870
    %4873 = vst.msk [vmem:[#allocation2 + $0x7] sm:$0x1] %vm4113, %v4871
    %v4874 = vrot.slane %v4865, 2
    %4876 = vst.msk [vmem:[#allocation2 + $0xf] sm:$0x1] %vm4106, %v4874
    %v4877 = vrot.slane %v4865, 3
    %4878 = vrot.lane.b32.xlu0 %v4877, 64
    %v4879 = vpop.permute.xlu0 %4878
    %4881 = vst.msk [vmem:[#allocation2 + $0xf] sm:$0x1] %vm4113, %v4879
    %v4882 = vrot.slane %v4865, 4
    %4884 = vst.msk [vmem:[#allocation2 + $0x17] sm:$0x1] %vm4106, %v4882
    %v4885 = vrot.slane %v4865, 5
    %4886 = vrot.lane.b32.xlu0 %v4885, 64
    %v4887 = vpop.permute.xlu0 %4886
    %4889 = vst.msk [vmem:[#allocation2 + $0x17] sm:$0x1] %vm4113, %v4887
    %v4890 = vrot.slane %v4865, 6
    %4892 = vst.msk [vmem:[#allocation2 + $0x1f] sm:$0x1] %vm4106, %v4890
    %v4893 = vrot.slane %v4865, 7
    %4894 = vrot.lane.b32.xlu0 %v4893, 64
    %v4895 = vpop.permute.xlu0 %4894
    %4897 = vst.msk [vmem:[#allocation2 + $0x1f] sm:$0x1] %vm4113, %v4895
    %s4898 = smul.u32 4, 64
    %s4899 = smul.u32 %s4898, 4
    %s4900 = sshll.u32 %s4899, 4
    %4901 = dma.done [#allocation6], %s4900
    %v4902 = vld [vmem:[#allocation2] sm:$0xff]
    %v4903 = vld [vmem:[#allocation2 + $0x8] sm:$0xff]
    %v4904 = vld [vmem:[#allocation2 + $0x10] sm:$0xff]
    %v4905 = vld [vmem:[#allocation2 + $0x18] sm:$0xff]
    %v4906 = vpack.c.bf16 %v4902, %v4902
    %v4907 = vpack.c.bf16 %v4903, %v4903
    %v4908 = vpack.c.bf16 %v4904, %v4904
    %v4909 = vpack.c.bf16 %v4905, %v4905
    %v4910 = vld [vmem:[#allocation3] sm:$0xff]
    %v4911 = vld [vmem:[#allocation3 + $0x8] sm:$0xff]
    %v4912 = vld [vmem:[#allocation3 + $0x10] sm:$0xff]
    %v4913 = vld [vmem:[#allocation3 + $0x18] sm:$0xff]
    %v4914 = vld [vmem:[#allocation3 + $0x20] sm:$0xff]
    %v4915 = vld [vmem:[#allocation3 + $0x28] sm:$0xff]
    %v4916 = vld [vmem:[#allocation3 + $0x30] sm:$0xff]
    %v4917 = vld [vmem:[#allocation3 + $0x38] sm:$0xff]
    %v4918 = vld [vmem:[#allocation3 + $0x40] sm:$0xff]
    %v4919 = vld [vmem:[#allocation3 + $0x48] sm:$0xff]
    %v4920 = vld [vmem:[#allocation3 + $0x50] sm:$0xff]
    %v4921 = vld [vmem:[#allocation3 + $0x58] sm:$0xff]
    %v4922 = vld [vmem:[#allocation3 + $0x60] sm:$0xff]
    %v4923 = vld [vmem:[#allocation3 + $0x68] sm:$0xff]
    %v4924 = vld [vmem:[#allocation3 + $0x70] sm:$0xff]
    %v4925 = vld [vmem:[#allocation3 + $0x78] sm:$0xff]
    %v4926 = vld [vmem:[#allocation3 + $0x80] sm:$0xff]
    %v4927 = vld [vmem:[#allocation3 + $0x88] sm:$0xff]
    %v4928 = vld [vmem:[#allocation3 + $0x90] sm:$0xff]
    %v4929 = vld [vmem:[#allocation3 + $0x98] sm:$0xff]
    %v4930 = vld [vmem:[#allocation3 + $0xa0] sm:$0xff]
    %v4931 = vld [vmem:[#allocation3 + $0xa8] sm:$0xff]
    %v4932 = vld [vmem:[#allocation3 + $0xb0] sm:$0xff]
    %v4933 = vld [vmem:[#allocation3 + $0xb8] sm:$0xff]
    %v4934 = vld [vmem:[#allocation3 + $0xc0] sm:$0xff]
    %v4935 = vld [vmem:[#allocation3 + $0xc8] sm:$0xff]
    %v4936 = vld [vmem:[#allocation3 + $0xd0] sm:$0xff]
    %v4937 = vld [vmem:[#allocation3 + $0xd8] sm:$0xff]
    %v4938 = vld [vmem:[#allocation3 + $0xe0] sm:$0xff]
    %v4939 = vld [vmem:[#allocation3 + $0xe8] sm:$0xff]
    %v4940 = vld [vmem:[#allocation3 + $0xf0] sm:$0xff]
    %v4941 = vld [vmem:[#allocation3 + $0xf8] sm:$0xff]
    %v4942 = vld [vmem:[#allocation3 + $0x100] sm:$0xff]
    %v4943 = vld [vmem:[#allocation3 + $0x108] sm:$0xff]
    %v4944 = vld [vmem:[#allocation3 + $0x110] sm:$0xff]
    %v4945 = vld [vmem:[#allocation3 + $0x118] sm:$0xff]
    %v4946 = vld [vmem:[#allocation3 + $0x120] sm:$0xff]
    %v4947 = vld [vmem:[#allocation3 + $0x128] sm:$0xff]
    %v4948 = vld [vmem:[#allocation3 + $0x130] sm:$0xff]
    %v4949 = vld [vmem:[#allocation3 + $0x138] sm:$0xff]
    %v4950 = vld [vmem:[#allocation3 + $0x140] sm:$0xff]
    %v4951 = vld [vmem:[#allocation3 + $0x148] sm:$0xff]
    %v4952 = vld [vmem:[#allocation3 + $0x150] sm:$0xff]
    %v4953 = vld [vmem:[#allocation3 + $0x158] sm:$0xff]
    %v4954 = vld [vmem:[#allocation3 + $0x160] sm:$0xff]
    %v4955 = vld [vmem:[#allocation3 + $0x168] sm:$0xff]
    %v4956 = vld [vmem:[#allocation3 + $0x170] sm:$0xff]
    %v4957 = vld [vmem:[#allocation3 + $0x178] sm:$0xff]
    %v4958 = vld [vmem:[#allocation3 + $0x180] sm:$0xff]
    %v4959 = vld [vmem:[#allocation3 + $0x188] sm:$0xff]
    %v4960 = vld [vmem:[#allocation3 + $0x190] sm:$0xff]
    %v4961 = vld [vmem:[#allocation3 + $0x198] sm:$0xff]
    %v4962 = vld [vmem:[#allocation3 + $0x1a0] sm:$0xff]
    %v4963 = vld [vmem:[#allocation3 + $0x1a8] sm:$0xff]
    %v4964 = vld [vmem:[#allocation3 + $0x1b0] sm:$0xff]
    %v4965 = vld [vmem:[#allocation3 + $0x1b8] sm:$0xff]
    %v4966 = vld [vmem:[#allocation3 + $0x1c0] sm:$0xff]
    %v4967 = vld [vmem:[#allocation3 + $0x1c8] sm:$0xff]
    %v4968 = vld [vmem:[#allocation3 + $0x1d0] sm:$0xff]
    %v4969 = vld [vmem:[#allocation3 + $0x1d8] sm:$0xff]
    %v4970 = vld [vmem:[#allocation3 + $0x1e0] sm:$0xff]
    %v4971 = vld [vmem:[#allocation3 + $0x1e8] sm:$0xff]
    %v4972 = vld [vmem:[#allocation3 + $0x1f0] sm:$0xff]
    %v4973 = vld [vmem:[#allocation3 + $0x1f8] sm:$0xff]
    %v4974 = vld [vmem:[#allocation3 + $0x200] sm:$0xff]
    %v4975 = vld [vmem:[#allocation3 + $0x208] sm:$0xff]
    %v4976 = vld [vmem:[#allocation3 + $0x210] sm:$0xff]
    %v4977 = vld [vmem:[#allocation3 + $0x218] sm:$0xff]
    %v4978 = vld [vmem:[#allocation3 + $0x220] sm:$0xff]
    %v4979 = vld [vmem:[#allocation3 + $0x228] sm:$0xff]
    %v4980 = vld [vmem:[#allocation3 + $0x230] sm:$0xff]
    %v4981 = vld [vmem:[#allocation3 + $0x238] sm:$0xff]
    %v4982 = vld [vmem:[#allocation3 + $0x240] sm:$0xff]
    %v4983 = vld [vmem:[#allocation3 + $0x248] sm:$0xff]
    %v4984 = vld [vmem:[#allocation3 + $0x250] sm:$0xff]
    %v4985 = vld [vmem:[#allocation3 + $0x258] sm:$0xff]
    %v4986 = vld [vmem:[#allocation3 + $0x260] sm:$0xff]
    %v4987 = vld [vmem:[#allocation3 + $0x268] sm:$0xff]
    %v4988 = vld [vmem:[#allocation3 + $0x270] sm:$0xff]
    %v4989 = vld [vmem:[#allocation3 + $0x278] sm:$0xff]
    %v4990 = vld [vmem:[#allocation3 + $0x280] sm:$0xff]
    %v4991 = vld [vmem:[#allocation3 + $0x288] sm:$0xff]
    %v4992 = vld [vmem:[#allocation3 + $0x290] sm:$0xff]
    %v4993 = vld [vmem:[#allocation3 + $0x298] sm:$0xff]
    %v4994 = vld [vmem:[#allocation3 + $0x2a0] sm:$0xff]
    %v4995 = vld [vmem:[#allocation3 + $0x2a8] sm:$0xff]
    %v4996 = vld [vmem:[#allocation3 + $0x2b0] sm:$0xff]
    %v4997 = vld [vmem:[#allocation3 + $0x2b8] sm:$0xff]
    %v4998 = vld [vmem:[#allocation3 + $0x2c0] sm:$0xff]
    %v4999 = vld [vmem:[#allocation3 + $0x2c8] sm:$0xff]
    %v5000 = vld [vmem:[#allocation3 + $0x2d0] sm:$0xff]
    %v5001 = vld [vmem:[#allocation3 + $0x2d8] sm:$0xff]
    %v5002 = vld [vmem:[#allocation3 + $0x2e0] sm:$0xff]
    %v5003 = vld [vmem:[#allocation3 + $0x2e8] sm:$0xff]
    %v5004 = vld [vmem:[#allocation3 + $0x2f0] sm:$0xff]
    %v5005 = vld [vmem:[#allocation3 + $0x2f8] sm:$0xff]
    %v5006 = vld [vmem:[#allocation3 + $0x300] sm:$0xff]
    %v5007 = vld [vmem:[#allocation3 + $0x308] sm:$0xff]
    %v5008 = vld [vmem:[#allocation3 + $0x310] sm:$0xff]
    %v5009 = vld [vmem:[#allocation3 + $0x318] sm:$0xff]
    %v5010 = vld [vmem:[#allocation3 + $0x320] sm:$0xff]
    %v5011 = vld [vmem:[#allocation3 + $0x328] sm:$0xff]
    %v5012 = vld [vmem:[#allocation3 + $0x330] sm:$0xff]
    %v5013 = vld [vmem:[#allocation3 + $0x338] sm:$0xff]
    %v5014 = vld [vmem:[#allocation3 + $0x340] sm:$0xff]
    %v5015 = vld [vmem:[#allocation3 + $0x348] sm:$0xff]
    %v5016 = vld [vmem:[#allocation3 + $0x350] sm:$0xff]
    %v5017 = vld [vmem:[#allocation3 + $0x358] sm:$0xff]
    %v5018 = vld [vmem:[#allocation3 + $0x360] sm:$0xff]
    %v5019 = vld [vmem:[#allocation3 + $0x368] sm:$0xff]
    %v5020 = vld [vmem:[#allocation3 + $0x370] sm:$0xff]
    %v5021 = vld [vmem:[#allocation3 + $0x378] sm:$0xff]
    %v5022 = vld [vmem:[#allocation3 + $0x380] sm:$0xff]
    %v5023 = vld [vmem:[#allocation3 + $0x388] sm:$0xff]
    %v5024 = vld [vmem:[#allocation3 + $0x390] sm:$0xff]
    %v5025 = vld [vmem:[#allocation3 + $0x398] sm:$0xff]
    %v5026 = vld [vmem:[#allocation3 + $0x3a0] sm:$0xff]
    %v5027 = vld [vmem:[#allocation3 + $0x3a8] sm:$0xff]
    %v5028 = vld [vmem:[#allocation3 + $0x3b0] sm:$0xff]
    %v5029 = vld [vmem:[#allocation3 + $0x3b8] sm:$0xff]
    %v5030 = vld [vmem:[#allocation3 + $0x3c0] sm:$0xff]
    %v5031 = vld [vmem:[#allocation3 + $0x3c8] sm:$0xff]
    %v5032 = vld [vmem:[#allocation3 + $0x3d0] sm:$0xff]
    %v5033 = vld [vmem:[#allocation3 + $0x3d8] sm:$0xff]
    %v5034 = vld [vmem:[#allocation3 + $0x3e0] sm:$0xff]
    %v5035 = vld [vmem:[#allocation3 + $0x3e8] sm:$0xff]
    %v5036 = vld [vmem:[#allocation3 + $0x3f0] sm:$0xff]
    %v5037 = vld [vmem:[#allocation3 + $0x3f8] sm:$0xff]
    %v5166 = vunpack.c.l.b16 %v4910
    %v5167 = vunpack.c.h.b16 %v4910
    %v5168 = vunpack.c.l.b16 %v4911
    %v5169 = vunpack.c.h.b16 %v4911
    %v5170 = vunpack.c.l.b16 %v4912
    %v5171 = vunpack.c.h.b16 %v4912
    %v5172 = vunpack.c.l.b16 %v4913
    %v5173 = vunpack.c.h.b16 %v4913
    %v5174 = vunpack.c.l.b16 %v4914
    %v5175 = vunpack.c.h.b16 %v4914
    %v5176 = vunpack.c.l.b16 %v4915
    %v5177 = vunpack.c.h.b16 %v4915
    %v5178 = vunpack.c.l.b16 %v4916
    %v5179 = vunpack.c.h.b16 %v4916
    %v5180 = vunpack.c.l.b16 %v4917
    %v5181 = vunpack.c.h.b16 %v4917
    %v5182 = vunpack.c.l.b16 %v4918
    %v5183 = vunpack.c.h.b16 %v4918
    %v5184 = vunpack.c.l.b16 %v4919
    %v5185 = vunpack.c.h.b16 %v4919
    %v5186 = vunpack.c.l.b16 %v4920
    %v5187 = vunpack.c.h.b16 %v4920
    %v5188 = vunpack.c.l.b16 %v4921
    %v5189 = vunpack.c.h.b16 %v4921
    %v5190 = vunpack.c.l.b16 %v4922
    %v5191 = vunpack.c.h.b16 %v4922
    %v5192 = vunpack.c.l.b16 %v4923
    %v5193 = vunpack.c.h.b16 %v4923
    %v5194 = vunpack.c.l.b16 %v4924
    %v5195 = vunpack.c.h.b16 %v4924
    %v5196 = vunpack.c.l.b16 %v4925
    %v5197 = vunpack.c.h.b16 %v4925
    %v5198 = vunpack.c.l.b16 %v4926
    %v5199 = vunpack.c.h.b16 %v4926
    %v5200 = vunpack.c.l.b16 %v4927
    %v5201 = vunpack.c.h.b16 %v4927
    %v5202 = vunpack.c.l.b16 %v4928
    %v5203 = vunpack.c.h.b16 %v4928
    %v5204 = vunpack.c.l.b16 %v4929
    %v5205 = vunpack.c.h.b16 %v4929
    %v5206 = vunpack.c.l.b16 %v4930
    %v5207 = vunpack.c.h.b16 %v4930
    %v5208 = vunpack.c.l.b16 %v4931
    %v5209 = vunpack.c.h.b16 %v4931
    %v5210 = vunpack.c.l.b16 %v4932
    %v5211 = vunpack.c.h.b16 %v4932
    %v5212 = vunpack.c.l.b16 %v4933
    %v5213 = vunpack.c.h.b16 %v4933
    %v5214 = vunpack.c.l.b16 %v4934
    %v5215 = vunpack.c.h.b16 %v4934
    %v5216 = vunpack.c.l.b16 %v4935
    %v5217 = vunpack.c.h.b16 %v4935
    %v5218 = vunpack.c.l.b16 %v4936
    %v5219 = vunpack.c.h.b16 %v4936
    %v5220 = vunpack.c.l.b16 %v4937
    %v5221 = vunpack.c.h.b16 %v4937
    %v5222 = vunpack.c.l.b16 %v4938
    %v5223 = vunpack.c.h.b16 %v4938
    %v5224 = vunpack.c.l.b16 %v4939
    %v5225 = vunpack.c.h.b16 %v4939
    %v5226 = vunpack.c.l.b16 %v4940
    %v5227 = vunpack.c.h.b16 %v4940
    %v5228 = vunpack.c.l.b16 %v4941
    %v5229 = vunpack.c.h.b16 %v4941
    %v5230 = vunpack.c.l.b16 %v4942
    %v5231 = vunpack.c.h.b16 %v4942
    %v5232 = vunpack.c.l.b16 %v4943
    %v5233 = vunpack.c.h.b16 %v4943
    %v5234 = vunpack.c.l.b16 %v4944
    %v5235 = vunpack.c.h.b16 %v4944
    %v5236 = vunpack.c.l.b16 %v4945
    %v5237 = vunpack.c.h.b16 %v4945
    %v5238 = vunpack.c.l.b16 %v4946
    %v5239 = vunpack.c.h.b16 %v4946
    %v5240 = vunpack.c.l.b16 %v4947
    %v5241 = vunpack.c.h.b16 %v4947
    %v5242 = vunpack.c.l.b16 %v4948
    %v5243 = vunpack.c.h.b16 %v4948
    %v5244 = vunpack.c.l.b16 %v4949
    %v5245 = vunpack.c.h.b16 %v4949
    %v5246 = vunpack.c.l.b16 %v4950
    %v5247 = vunpack.c.h.b16 %v4950
    %v5248 = vunpack.c.l.b16 %v4951
    %v5249 = vunpack.c.h.b16 %v4951
    %v5250 = vunpack.c.l.b16 %v4952
    %v5251 = vunpack.c.h.b16 %v4952
    %v5252 = vunpack.c.l.b16 %v4953
    %v5253 = vunpack.c.h.b16 %v4953
    %v5254 = vunpack.c.l.b16 %v4954
    %v5255 = vunpack.c.h.b16 %v4954
    %v5256 = vunpack.c.l.b16 %v4955
    %v5257 = vunpack.c.h.b16 %v4955
    %v5258 = vunpack.c.l.b16 %v4956
    %v5259 = vunpack.c.h.b16 %v4956
    %v5260 = vunpack.c.l.b16 %v4957
    %v5261 = vunpack.c.h.b16 %v4957
    %v5262 = vunpack.c.l.b16 %v4958
    %v5263 = vunpack.c.h.b16 %v4958
    %v5264 = vunpack.c.l.b16 %v4959
    %v5265 = vunpack.c.h.b16 %v4959
    %v5266 = vunpack.c.l.b16 %v4960
    %v5267 = vunpack.c.h.b16 %v4960
    %v5268 = vunpack.c.l.b16 %v4961
    %v5269 = vunpack.c.h.b16 %v4961
    %v5270 = vunpack.c.l.b16 %v4962
    %v5271 = vunpack.c.h.b16 %v4962
    %v5272 = vunpack.c.l.b16 %v4963
    %v5273 = vunpack.c.h.b16 %v4963
    %v5274 = vunpack.c.l.b16 %v4964
    %v5275 = vunpack.c.h.b16 %v4964
    %v5276 = vunpack.c.l.b16 %v4965
    %v5277 = vunpack.c.h.b16 %v4965
    %v5278 = vunpack.c.l.b16 %v4966
    %v5279 = vunpack.c.h.b16 %v4966
    %v5280 = vunpack.c.l.b16 %v4967
    %v5281 = vunpack.c.h.b16 %v4967
    %v5282 = vunpack.c.l.b16 %v4968
    %v5283 = vunpack.c.h.b16 %v4968
    %v5284 = vunpack.c.l.b16 %v4969
    %v5285 = vunpack.c.h.b16 %v4969
    %v5286 = vunpack.c.l.b16 %v4970
    %v5287 = vunpack.c.h.b16 %v4970
    %v5288 = vunpack.c.l.b16 %v4971
    %v5289 = vunpack.c.h.b16 %v4971
    %v5290 = vunpack.c.l.b16 %v4972
    %v5291 = vunpack.c.h.b16 %v4972
    %v5292 = vunpack.c.l.b16 %v4973
    %v5293 = vunpack.c.h.b16 %v4973
    %v5294 = vunpack.c.l.b16 %v4974
    %v5295 = vunpack.c.h.b16 %v4974
    %v5296 = vunpack.c.l.b16 %v4975
    %v5297 = vunpack.c.h.b16 %v4975
    %v5298 = vunpack.c.l.b16 %v4976
    %v5299 = vunpack.c.h.b16 %v4976
    %v5300 = vunpack.c.l.b16 %v4977
    %v5301 = vunpack.c.h.b16 %v4977
    %v5302 = vunpack.c.l.b16 %v4978
    %v5303 = vunpack.c.h.b16 %v4978
    %v5304 = vunpack.c.l.b16 %v4979
    %v5305 = vunpack.c.h.b16 %v4979
    %v5306 = vunpack.c.l.b16 %v4980
    %v5307 = vunpack.c.h.b16 %v4980
    %v5308 = vunpack.c.l.b16 %v4981
    %v5309 = vunpack.c.h.b16 %v4981
    %v5310 = vunpack.c.l.b16 %v4982
    %v5311 = vunpack.c.h.b16 %v4982
    %v5312 = vunpack.c.l.b16 %v4983
    %v5313 = vunpack.c.h.b16 %v4983
    %v5314 = vunpack.c.l.b16 %v4984
    %v5315 = vunpack.c.h.b16 %v4984
    %v5316 = vunpack.c.l.b16 %v4985
    %v5317 = vunpack.c.h.b16 %v4985
    %v5318 = vunpack.c.l.b16 %v4986
    %v5319 = vunpack.c.h.b16 %v4986
    %v5320 = vunpack.c.l.b16 %v4987
    %v5321 = vunpack.c.h.b16 %v4987
    %v5322 = vunpack.c.l.b16 %v4988
    %v5323 = vunpack.c.h.b16 %v4988
    %v5324 = vunpack.c.l.b16 %v4989
    %v5325 = vunpack.c.h.b16 %v4989
    %v5326 = vunpack.c.l.b16 %v4990
    %v5327 = vunpack.c.h.b16 %v4990
    %v5328 = vunpack.c.l.b16 %v4991
    %v5329 = vunpack.c.h.b16 %v4991
    %v5330 = vunpack.c.l.b16 %v4992
    %v5331 = vunpack.c.h.b16 %v4992
    %v5332 = vunpack.c.l.b16 %v4993
    %v5333 = vunpack.c.h.b16 %v4993
    %v5334 = vunpack.c.l.b16 %v4994
    %v5335 = vunpack.c.h.b16 %v4994
    %v5336 = vunpack.c.l.b16 %v4995
    %v5337 = vunpack.c.h.b16 %v4995
    %v5338 = vunpack.c.l.b16 %v4996
    %v5339 = vunpack.c.h.b16 %v4996
    %v5340 = vunpack.c.l.b16 %v4997
    %v5341 = vunpack.c.h.b16 %v4997
    %v5342 = vunpack.c.l.b16 %v4998
    %v5343 = vunpack.c.h.b16 %v4998
    %v5344 = vunpack.c.l.b16 %v4999
    %v5345 = vunpack.c.h.b16 %v4999
    %v5346 = vunpack.c.l.b16 %v5000
    %v5347 = vunpack.c.h.b16 %v5000
    %v5348 = vunpack.c.l.b16 %v5001
    %v5349 = vunpack.c.h.b16 %v5001
    %v5350 = vunpack.c.l.b16 %v5002
    %v5351 = vunpack.c.h.b16 %v5002
    %v5352 = vunpack.c.l.b16 %v5003
    %v5353 = vunpack.c.h.b16 %v5003
    %v5354 = vunpack.c.l.b16 %v5004
    %v5355 = vunpack.c.h.b16 %v5004
    %v5356 = vunpack.c.l.b16 %v5005
    %v5357 = vunpack.c.h.b16 %v5005
    %v5358 = vunpack.c.l.b16 %v5006
    %v5359 = vunpack.c.h.b16 %v5006
    %v5360 = vunpack.c.l.b16 %v5007
    %v5361 = vunpack.c.h.b16 %v5007
    %v5362 = vunpack.c.l.b16 %v5008
    %v5363 = vunpack.c.h.b16 %v5008
    %v5364 = vunpack.c.l.b16 %v5009
    %v5365 = vunpack.c.h.b16 %v5009
    %v5366 = vunpack.c.l.b16 %v5010
    %v5367 = vunpack.c.h.b16 %v5010
    %v5368 = vunpack.c.l.b16 %v5011
    %v5369 = vunpack.c.h.b16 %v5011
    %v5370 = vunpack.c.l.b16 %v5012
    %v5371 = vunpack.c.h.b16 %v5012
    %v5372 = vunpack.c.l.b16 %v5013
    %v5373 = vunpack.c.h.b16 %v5013
    %v5374 = vunpack.c.l.b16 %v5014
    %v5375 = vunpack.c.h.b16 %v5014
    %v5376 = vunpack.c.l.b16 %v5015
    %v5377 = vunpack.c.h.b16 %v5015
    %v5378 = vunpack.c.l.b16 %v5016
    %v5379 = vunpack.c.h.b16 %v5016
    %v5380 = vunpack.c.l.b16 %v5017
    %v5381 = vunpack.c.h.b16 %v5017
    %v5382 = vunpack.c.l.b16 %v5018
    %v5383 = vunpack.c.h.b16 %v5018
    %v5384 = vunpack.c.l.b16 %v5019
    %v5385 = vunpack.c.h.b16 %v5019
    %v5386 = vunpack.c.l.b16 %v5020
    %v5387 = vunpack.c.h.b16 %v5020
    %v5388 = vunpack.c.l.b16 %v5021
    %v5389 = vunpack.c.h.b16 %v5021
    %v5390 = vunpack.c.l.b16 %v5022
    %v5391 = vunpack.c.h.b16 %v5022
    %v5392 = vunpack.c.l.b16 %v5023
    %v5393 = vunpack.c.h.b16 %v5023
    %v5394 = vunpack.c.l.b16 %v5024
    %v5395 = vunpack.c.h.b16 %v5024
    %v5396 = vunpack.c.l.b16 %v5025
    %v5397 = vunpack.c.h.b16 %v5025
    %v5398 = vunpack.c.l.b16 %v5026
    %v5399 = vunpack.c.h.b16 %v5026
    %v5400 = vunpack.c.l.b16 %v5027
    %v5401 = vunpack.c.h.b16 %v5027
    %v5402 = vunpack.c.l.b16 %v5028
    %v5403 = vunpack.c.h.b16 %v5028
    %v5404 = vunpack.c.l.b16 %v5029
    %v5405 = vunpack.c.h.b16 %v5029
    %v5406 = vunpack.c.l.b16 %v5030
    %v5407 = vunpack.c.h.b16 %v5030
    %v5408 = vunpack.c.l.b16 %v5031
    %v5409 = vunpack.c.h.b16 %v5031
    %v5410 = vunpack.c.l.b16 %v5032
    %v5411 = vunpack.c.h.b16 %v5032
    %v5412 = vunpack.c.l.b16 %v5033
    %v5413 = vunpack.c.h.b16 %v5033
    %v5414 = vunpack.c.l.b16 %v5034
    %v5415 = vunpack.c.h.b16 %v5034
    %v5416 = vunpack.c.l.b16 %v5035
    %v5417 = vunpack.c.h.b16 %v5035
    %v5418 = vunpack.c.l.b16 %v5036
    %v5419 = vunpack.c.h.b16 %v5036
    %v5420 = vunpack.c.l.b16 %v5037
    %v5421 = vunpack.c.h.b16 %v5037
    %v5422 = vpack.c.b16 %v5170, %v5166
    %v5423 = vpack.c.b16 %v5171, %v5167
    %v5424 = vpack.c.b16 %v5172, %v5168
    %v5425 = vpack.c.b16 %v5173, %v5169
    %v5426 = vpack.c.b16 %v5178, %v5174
    %v5427 = vpack.c.b16 %v5179, %v5175
    %v5428 = vpack.c.b16 %v5180, %v5176
    %v5429 = vpack.c.b16 %v5181, %v5177
    %v5430 = vpack.c.b16 %v5186, %v5182
    %v5431 = vpack.c.b16 %v5187, %v5183
    %v5432 = vpack.c.b16 %v5188, %v5184
    %v5433 = vpack.c.b16 %v5189, %v5185
    %v5434 = vpack.c.b16 %v5194, %v5190
    %v5435 = vpack.c.b16 %v5195, %v5191
    %v5436 = vpack.c.b16 %v5196, %v5192
    %v5437 = vpack.c.b16 %v5197, %v5193
    %v5438 = vpack.c.b16 %v5202, %v5198
    %v5439 = vpack.c.b16 %v5203, %v5199
    %v5440 = vpack.c.b16 %v5204, %v5200
    %v5441 = vpack.c.b16 %v5205, %v5201
    %v5442 = vpack.c.b16 %v5210, %v5206
    %v5443 = vpack.c.b16 %v5211, %v5207
    %v5444 = vpack.c.b16 %v5212, %v5208
    %v5445 = vpack.c.b16 %v5213, %v5209
    %v5446 = vpack.c.b16 %v5218, %v5214
    %v5447 = vpack.c.b16 %v5219, %v5215
    %v5448 = vpack.c.b16 %v5220, %v5216
    %v5449 = vpack.c.b16 %v5221, %v5217
    %v5450 = vpack.c.b16 %v5226, %v5222
    %v5451 = vpack.c.b16 %v5227, %v5223
    %v5452 = vpack.c.b16 %v5228, %v5224
    %v5453 = vpack.c.b16 %v5229, %v5225
    %v5454 = vpack.c.b16 %v5234, %v5230
    %v5455 = vpack.c.b16 %v5235, %v5231
    %v5456 = vpack.c.b16 %v5236, %v5232
    %v5457 = vpack.c.b16 %v5237, %v5233
    %v5458 = vpack.c.b16 %v5242, %v5238
    %v5459 = vpack.c.b16 %v5243, %v5239
    %v5460 = vpack.c.b16 %v5244, %v5240
    %v5461 = vpack.c.b16 %v5245, %v5241
    %v5462 = vpack.c.b16 %v5250, %v5246
    %v5463 = vpack.c.b16 %v5251, %v5247
    %v5464 = vpack.c.b16 %v5252, %v5248
    %v5465 = vpack.c.b16 %v5253, %v5249
    %v5466 = vpack.c.b16 %v5258, %v5254
    %v5467 = vpack.c.b16 %v5259, %v5255
    %v5468 = vpack.c.b16 %v5260, %v5256
    %v5469 = vpack.c.b16 %v5261, %v5257
    %v5470 = vpack.c.b16 %v5266, %v5262
    %v5471 = vpack.c.b16 %v5267, %v5263
    %v5472 = vpack.c.b16 %v5268, %v5264
    %v5473 = vpack.c.b16 %v5269, %v5265
    %v5474 = vpack.c.b16 %v5274, %v5270
    %v5475 = vpack.c.b16 %v5275, %v5271
    %v5476 = vpack.c.b16 %v5276, %v5272
    %v5477 = vpack.c.b16 %v5277, %v5273
    %v5478 = vpack.c.b16 %v5282, %v5278
    %v5479 = vpack.c.b16 %v5283, %v5279
    %v5480 = vpack.c.b16 %v5284, %v5280
    %v5481 = vpack.c.b16 %v5285, %v5281
    %v5482 = vpack.c.b16 %v5290, %v5286
    %v5483 = vpack.c.b16 %v5291, %v5287
    %v5484 = vpack.c.b16 %v5292, %v5288
    %v5485 = vpack.c.b16 %v5293, %v5289
    %v5486 = vpack.c.b16 %v5298, %v5294
    %v5487 = vpack.c.b16 %v5299, %v5295
    %v5488 = vpack.c.b16 %v5300, %v5296
    %v5489 = vpack.c.b16 %v5301, %v5297
    %v5490 = vpack.c.b16 %v5306, %v5302
    %v5491 = vpack.c.b16 %v5307, %v5303
    %v5492 = vpack.c.b16 %v5308, %v5304
    %v5493 = vpack.c.b16 %v5309, %v5305
    %v5494 = vpack.c.b16 %v5314, %v5310
    %v5495 = vpack.c.b16 %v5315, %v5311
    %v5496 = vpack.c.b16 %v5316, %v5312
    %v5497 = vpack.c.b16 %v5317, %v5313
    %v5498 = vpack.c.b16 %v5322, %v5318
    %v5499 = vpack.c.b16 %v5323, %v5319
    %v5500 = vpack.c.b16 %v5324, %v5320
    %v5501 = vpack.c.b16 %v5325, %v5321
    %v5502 = vpack.c.b16 %v5330, %v5326
    %v5503 = vpack.c.b16 %v5331, %v5327
    %v5504 = vpack.c.b16 %v5332, %v5328
    %v5505 = vpack.c.b16 %v5333, %v5329
    %v5506 = vpack.c.b16 %v5338, %v5334
    %v5507 = vpack.c.b16 %v5339, %v5335
    %v5508 = vpack.c.b16 %v5340, %v5336
    %v5509 = vpack.c.b16 %v5341, %v5337
    %v5510 = vpack.c.b16 %v5346, %v5342
    %v5511 = vpack.c.b16 %v5347, %v5343
    %v5512 = vpack.c.b16 %v5348, %v5344
    %v5513 = vpack.c.b16 %v5349, %v5345
    %v5514 = vpack.c.b16 %v5354, %v5350
    %v5515 = vpack.c.b16 %v5355, %v5351
    %v5516 = vpack.c.b16 %v5356, %v5352
    %v5517 = vpack.c.b16 %v5357, %v5353
    %v5518 = vpack.c.b16 %v5362, %v5358
    %v5519 = vpack.c.b16 %v5363, %v5359
    %v5520 = vpack.c.b16 %v5364, %v5360
    %v5521 = vpack.c.b16 %v5365, %v5361
    %v5522 = vpack.c.b16 %v5370, %v5366
    %v5523 = vpack.c.b16 %v5371, %v5367
    %v5524 = vpack.c.b16 %v5372, %v5368
    %v5525 = vpack.c.b16 %v5373, %v5369
    %v5526 = vpack.c.b16 %v5378, %v5374
    %v5527 = vpack.c.b16 %v5379, %v5375
    %v5528 = vpack.c.b16 %v5380, %v5376
    %v5529 = vpack.c.b16 %v5381, %v5377
    %v5530 = vpack.c.b16 %v5386, %v5382
    %v5531 = vpack.c.b16 %v5387, %v5383
    %v5532 = vpack.c.b16 %v5388, %v5384
    %v5533 = vpack.c.b16 %v5389, %v5385
    %v5534 = vpack.c.b16 %v5394, %v5390
    %v5535 = vpack.c.b16 %v5395, %v5391
    %v5536 = vpack.c.b16 %v5396, %v5392
    %v5537 = vpack.c.b16 %v5397, %v5393
    %v5538 = vpack.c.b16 %v5402, %v5398
    %v5539 = vpack.c.b16 %v5403, %v5399
    %v5540 = vpack.c.b16 %v5404, %v5400
    %v5541 = vpack.c.b16 %v5405, %v5401
    %v5542 = vpack.c.b16 %v5410, %v5406
    %v5543 = vpack.c.b16 %v5411, %v5407
    %v5544 = vpack.c.b16 %v5412, %v5408
    %v5545 = vpack.c.b16 %v5413, %v5409
    %v5546 = vpack.c.b16 %v5418, %v5414
    %v5547 = vpack.c.b16 %v5419, %v5415
    %v5548 = vpack.c.b16 %v5420, %v5416
    %v5549 = vpack.c.b16 %v5421, %v5417
    %5678 = vmatpush.bf16.msra.mxu0 %v5450
    %5679 = vmatpush.bf16.msra.mxu0 %v5446
    %5680 = vmatpush.bf16.msra.mxu0 %v5442
    %5681 = vmatpush.bf16.msra.mxu0 %v5438
    %5682 = vmatpush.bf16.msra.mxu0 %v5434
    %5683 = vmatpush.bf16.msra.mxu0 %v5430
    %5684 = vmatpush.bf16.msra.mxu0 %v5426
    %5685 = vmatpush.bf16.msra.mxu0 %v5422
    %5686 = vmatmul.bf16.gmra.mxu0 %v4906
    %v5687 = vpop.f32.mrf.mxu0
    %v5688 = vadd.f32 0.0, %v5687
    %v5689 = vpop.f32.mrf.mxu0
    %5690 = vdwg.mxu0
    %5691 = vmatpush.bf16.msra.mxu0 %v5482
    %5692 = vmatpush.bf16.msra.mxu0 %v5478
    %5693 = vmatpush.bf16.msra.mxu0 %v5474
    %5694 = vmatpush.bf16.msra.mxu0 %v5470
    %5695 = vmatpush.bf16.msra.mxu0 %v5466
    %5696 = vmatpush.bf16.msra.mxu0 %v5462
    %5697 = vmatpush.bf16.msra.mxu0 %v5458
    %5698 = vmatpush.bf16.msra.mxu0 %v5454
    %5699 = vmatmul.bf16.gmra.mxu0 %v4907
    %v5700 = vpop.f32.mrf.mxu0
    %v5701 = vadd.f32 %v5688, %v5700
    %v5702 = vpop.f32.mrf.mxu0
    %5703 = vdwg.mxu0
    %5704 = vmatpush.bf16.msra.mxu0 %v5514
    %5705 = vmatpush.bf16.msra.mxu0 %v5510
    %5706 = vmatpush.bf16.msra.mxu0 %v5506
    %5707 = vmatpush.bf16.msra.mxu0 %v5502
    %5708 = vmatpush.bf16.msra.mxu0 %v5498
    %5709 = vmatpush.bf16.msra.mxu0 %v5494
    %5710 = vmatpush.bf16.msra.mxu0 %v5490
    %5711 = vmatpush.bf16.msra.mxu0 %v5486
    %5712 = vmatmul.bf16.gmra.mxu0 %v4908
    %v5713 = vpop.f32.mrf.mxu0
    %v5714 = vadd.f32 %v5701, %v5713
    %v5715 = vpop.f32.mrf.mxu0
    %5716 = vdwg.mxu0
    %5717 = vmatpush.bf16.msra.mxu0 %v5546
    %5718 = vmatpush.bf16.msra.mxu0 %v5542
    %5719 = vmatpush.bf16.msra.mxu0 %v5538
    %5720 = vmatpush.bf16.msra.mxu0 %v5534
    %5721 = vmatpush.bf16.msra.mxu0 %v5530
    %5722 = vmatpush.bf16.msra.mxu0 %v5526
    %5723 = vmatpush.bf16.msra.mxu0 %v5522
    %5724 = vmatpush.bf16.msra.mxu0 %v5518
    %5725 = vmatmul.bf16.gmra.mxu0 %v4909
    %v5726 = vpop.f32.mrf.mxu0
    %v5727 = vadd.f32 %v5714, %v5726
    %v5728 = vpop.f32.mrf.mxu0
    %5729 = vdwg.mxu0
    %5730 = vmatpush.bf16.msra.mxu0 %v5451
    %5731 = vmatpush.bf16.msra.mxu0 %v5447
    %5732 = vmatpush.bf16.msra.mxu0 %v5443
    %5733 = vmatpush.bf16.msra.mxu0 %v5439
    %5734 = vmatpush.bf16.msra.mxu0 %v5435
    %5735 = vmatpush.bf16.msra.mxu0 %v5431
    %5736 = vmatpush.bf16.msra.mxu0 %v5427
    %5737 = vmatpush.bf16.msra.mxu0 %v5423
    %5738 = vmatmul.bf16.gmra.mxu0 %v4906
    %v5739 = vpop.f32.mrf.mxu0
    %v5740 = vadd.f32 0.0, %v5739
    %v5741 = vpop.f32.mrf.mxu0
    %5742 = vdwg.mxu0
    %5743 = vmatpush.bf16.msra.mxu0 %v5483
    %5744 = vmatpush.bf16.msra.mxu0 %v5479
    %5745 = vmatpush.bf16.msra.mxu0 %v5475
    %5746 = vmatpush.bf16.msra.mxu0 %v5471
    %5747 = vmatpush.bf16.msra.mxu0 %v5467
    %5748 = vmatpush.bf16.msra.mxu0 %v5463
    %5749 = vmatpush.bf16.msra.mxu0 %v5459
    %5750 = vmatpush.bf16.msra.mxu0 %v5455
    %5751 = vmatmul.bf16.gmra.mxu0 %v4907
    %v5752 = vpop.f32.mrf.mxu0
    %v5753 = vadd.f32 %v5740, %v5752
    %v5754 = vpop.f32.mrf.mxu0
    %5755 = vdwg.mxu0
    %5756 = vmatpush.bf16.msra.mxu0 %v5515
    %5757 = vmatpush.bf16.msra.mxu0 %v5511
    %5758 = vmatpush.bf16.msra.mxu0 %v5507
    %5759 = vmatpush.bf16.msra.mxu0 %v5503
    %5760 = vmatpush.bf16.msra.mxu0 %v5499
    %5761 = vmatpush.bf16.msra.mxu0 %v5495
    %5762 = vmatpush.bf16.msra.mxu0 %v5491
    %5763 = vmatpush.bf16.msra.mxu0 %v5487
    %5764 = vmatmul.bf16.gmra.mxu0 %v4908
    %v5765 = vpop.f32.mrf.mxu0
    %v5766 = vadd.f32 %v5753, %v5765
    %v5767 = vpop.f32.mrf.mxu0
    %5768 = vdwg.mxu0
    %5769 = vmatpush.bf16.msra.mxu0 %v5547
    %5770 = vmatpush.bf16.msra.mxu0 %v5543
    %5771 = vmatpush.bf16.msra.mxu0 %v5539
    %5772 = vmatpush.bf16.msra.mxu0 %v5535
    %5773 = vmatpush.bf16.msra.mxu0 %v5531
    %5774 = vmatpush.bf16.msra.mxu0 %v5527
    %5775 = vmatpush.bf16.msra.mxu0 %v5523
    %5776 = vmatpush.bf16.msra.mxu0 %v5519
    %5777 = vmatmul.bf16.gmra.mxu0 %v4909
    %v5778 = vpop.f32.mrf.mxu0
    %v5779 = vadd.f32 %v5766, %v5778
    %v5780 = vpop.f32.mrf.mxu0
    %5781 = vdwg.mxu0
    %5782 = vmatpush.bf16.msra.mxu0 %v5452
    %5783 = vmatpush.bf16.msra.mxu0 %v5448
    %5784 = vmatpush.bf16.msra.mxu0 %v5444
    %5785 = vmatpush.bf16.msra.mxu0 %v5440
    %5786 = vmatpush.bf16.msra.mxu0 %v5436
    %5787 = vmatpush.bf16.msra.mxu0 %v5432
    %5788 = vmatpush.bf16.msra.mxu0 %v5428
    %5789 = vmatpush.bf16.msra.mxu0 %v5424
    %5790 = vmatmul.bf16.gmra.mxu0 %v4906
    %v5791 = vpop.f32.mrf.mxu0
    %v5792 = vadd.f32 0.0, %v5791
    %v5793 = vpop.f32.mrf.mxu0
    %5794 = vdwg.mxu0
    %5795 = vmatpush.bf16.msra.mxu0 %v5484
    %5796 = vmatpush.bf16.msra.mxu0 %v5480
    %5797 = vmatpush.bf16.msra.mxu0 %v5476
    %5798 = vmatpush.bf16.msra.mxu0 %v5472
    %5799 = vmatpush.bf16.msra.mxu0 %v5468
    %5800 = vmatpush.bf16.msra.mxu0 %v5464
    %5801 = vmatpush.bf16.msra.mxu0 %v5460
    %5802 = vmatpush.bf16.msra.mxu0 %v5456
    %5803 = vmatmul.bf16.gmra.mxu0 %v4907
    %v5804 = vpop.f32.mrf.mxu0
    %v5805 = vadd.f32 %v5792, %v5804
    %v5806 = vpop.f32.mrf.mxu0
    %5807 = vdwg.mxu0
    %5808 = vmatpush.bf16.msra.mxu0 %v5516
    %5809 = vmatpush.bf16.msra.mxu0 %v5512
    %5810 = vmatpush.bf16.msra.mxu0 %v5508
    %5811 = vmatpush.bf16.msra.mxu0 %v5504
    %5812 = vmatpush.bf16.msra.mxu0 %v5500
    %5813 = vmatpush.bf16.msra.mxu0 %v5496
    %5814 = vmatpush.bf16.msra.mxu0 %v5492
    %5815 = vmatpush.bf16.msra.mxu0 %v5488
    %5816 = vmatmul.bf16.gmra.mxu0 %v4908
    %v5817 = vpop.f32.mrf.mxu0
    %v5818 = vadd.f32 %v5805, %v5817
    %v5819 = vpop.f32.mrf.mxu0
    %5820 = vdwg.mxu0
    %5821 = vmatpush.bf16.msra.mxu0 %v5548
    %5822 = vmatpush.bf16.msra.mxu0 %v5544
    %5823 = vmatpush.bf16.msra.mxu0 %v5540
    %5824 = vmatpush.bf16.msra.mxu0 %v5536
    %5825 = vmatpush.bf16.msra.mxu0 %v5532
    %5826 = vmatpush.bf16.msra.mxu0 %v5528
    %5827 = vmatpush.bf16.msra.mxu0 %v5524
    %5828 = vmatpush.bf16.msra.mxu0 %v5520
    %5829 = vmatmul.bf16.gmra.mxu0 %v4909
    %v5830 = vpop.f32.mrf.mxu0
    %v5831 = vadd.f32 %v5818, %v5830
    %v5832 = vpop.f32.mrf.mxu0
    %5833 = vdwg.mxu0
    %5834 = vmatpush.bf16.msra.mxu0 %v5453
    %5835 = vmatpush.bf16.msra.mxu0 %v5449
    %5836 = vmatpush.bf16.msra.mxu0 %v5445
    %5837 = vmatpush.bf16.msra.mxu0 %v5441
    %5838 = vmatpush.bf16.msra.mxu0 %v5437
    %5839 = vmatpush.bf16.msra.mxu0 %v5433
    %5840 = vmatpush.bf16.msra.mxu0 %v5429
    %5841 = vmatpush.bf16.msra.mxu0 %v5425
    %5842 = vmatmul.bf16.gmra.mxu0 %v4906
    %v5843 = vpop.f32.mrf.mxu0
    %v5844 = vadd.f32 0.0, %v5843
    %v5845 = vpop.f32.mrf.mxu0
    %5846 = vdwg.mxu0
    %5847 = vmatpush.bf16.msra.mxu0 %v5485
    %5848 = vmatpush.bf16.msra.mxu0 %v5481
    %5849 = vmatpush.bf16.msra.mxu0 %v5477
    %5850 = vmatpush.bf16.msra.mxu0 %v5473
    %5851 = vmatpush.bf16.msra.mxu0 %v5469
    %5852 = vmatpush.bf16.msra.mxu0 %v5465
    %5853 = vmatpush.bf16.msra.mxu0 %v5461
    %5854 = vmatpush.bf16.msra.mxu0 %v5457
    %5855 = vmatmul.bf16.gmra.mxu0 %v4907
    %v5856 = vpop.f32.mrf.mxu0
    %v5857 = vadd.f32 %v5844, %v5856
    %v5858 = vpop.f32.mrf.mxu0
    %5859 = vdwg.mxu0
    %5860 = vmatpush.bf16.msra.mxu0 %v5517
    %5861 = vmatpush.bf16.msra.mxu0 %v5513
    %5862 = vmatpush.bf16.msra.mxu0 %v5509
    %5863 = vmatpush.bf16.msra.mxu0 %v5505
    %5864 = vmatpush.bf16.msra.mxu0 %v5501
    %5865 = vmatpush.bf16.msra.mxu0 %v5497
    %5866 = vmatpush.bf16.msra.mxu0 %v5493
    %5867 = vmatpush.bf16.msra.mxu0 %v5489
    %5868 = vmatmul.bf16.gmra.mxu0 %v4908
    %v5869 = vpop.f32.mrf.mxu0
    %v5870 = vadd.f32 %v5857, %v5869
    %v5871 = vpop.f32.mrf.mxu0
    %5872 = vdwg.mxu0
    %5873 = vmatpush.bf16.msra.mxu0 %v5549
    %5874 = vmatpush.bf16.msra.mxu0 %v5545
    %5875 = vmatpush.bf16.msra.mxu0 %v5541
    %5876 = vmatpush.bf16.msra.mxu0 %v5537
    %5877 = vmatpush.bf16.msra.mxu0 %v5533
    %5878 = vmatpush.bf16.msra.mxu0 %v5529
    %5879 = vmatpush.bf16.msra.mxu0 %v5525
    %5880 = vmatpush.bf16.msra.mxu0 %v5521
    %5881 = vmatmul.bf16.gmra.mxu0 %v4909
    %v5882 = vpop.f32.mrf.mxu0
    %v5883 = vadd.f32 %v5870, %v5882
    %v5884 = vpop.f32.mrf.mxu0
    %5885 = vdwg.mxu0
    %v5886 = vadd.f32 %v945, %v5727
    %v5887 = vadd.f32 %v984, %v5779
    %v5888 = vadd.f32 %v1023, %v5831
    %v5889 = vadd.f32 %v1062, %v5883
    %v5890 = vld [vmem:[#allocation15] sm:$0xf]
    %v5892 = vperm.slane %v5890, 0
    %v5893 = vperm.slane %v5890, 1
    %v5894 = vperm.slane %v5890, 2
    %v5895 = vperm.slane %v5890, 3
    %v5900 = vadd.f32 %v5886, %v5892
    %v5901 = vadd.f32 %v5887, %v5893
    %v5902 = vadd.f32 %v5888, %v5894
    %v5903 = vadd.f32 %v5889, %v5895
    %v5904 = vadd.f32 %v5900, %v5901
    %v5905 = vadd.f32 %v5904, %v5902
    %v5906 = vadd.f32 %v5905, %v5903
    %5907 = vadd.xlane.f32.xlu0 %v5906
    %v5908 = vpop.xlane.xlu0 %5907
    %v5909 = vrcp.pop 512.0
    %v5910 = vmul.f32 512.0, %v5909
    %v5911 = vsub.f32 1.0, %v5910
    %v5912 = vmul.f32 %v5909, %v5911
    %v5913 = vadd.f32 %v5909, %v5912
    %vm5914 = vweird.f32 %v5909
    %v5915 = vsel %vm5914, %v5909, %v5913
    %v5916 = vmul.f32 %v5908, %v5915
    %v5917 = vsub.f32 %v5900, %v5916
    %v5918 = vsub.f32 %v5901, %v5916
    %v5919 = vsub.f32 %v5902, %v5916
    %v5920 = vsub.f32 %v5903, %v5916
    %v5921 = vmul.f32 %v5917, %v5917
    %v5922 = vmul.f32 %v5918, %v5918
    %v5923 = vmul.f32 %v5919, %v5919
    %v5924 = vmul.f32 %v5920, %v5920
    %v5925 = vadd.f32 %v5921, %v5922
    %v5926 = vadd.f32 %v5925, %v5923
    %v5927 = vadd.f32 %v5926, %v5924
    %5928 = vadd.xlane.f32.xlu0 %v5927
    %v5929 = vpop.xlane.xlu0 %5928
    %v5930 = vmul.f32 %v5929, %v5915
    %v5931 = vadd.f32 %v5930, 1e-05
    %v5932 = vrsqrt.pop %v5931
    %v5933 = vmul.f32 %v5932, %v5931
    %v5934 = vmul.f32 %v5933, %v5932
    %v5935 = vmul.f32 0.5, %v5934
    %v5936 = vsub.f32 1.5, %v5935
    %v5937 = vmul.f32 %v5932, %v5936
    %vm5938 = vweird.f32 %v5931
    %vm5939 = vweird.f32 %v5932
    %vm5940 = vmor %vm5938, %vm5939
    %v5941 = vsel %vm5940, %v5932, %v5937
    %v5942 = vmul.f32 %v5917, %v5941
    %v5943 = vmul.f32 %v5918, %v5941
    %v5944 = vmul.f32 %v5919, %v5941
    %v5945 = vmul.f32 %v5920, %v5941
    %v5946 = vld [vmem:[#allocation17] sm:$0xf]
    %v5948 = vperm.slane %v5946, 0
    %v5949 = vperm.slane %v5946, 1
    %v5950 = vperm.slane %v5946, 2
    %v5951 = vperm.slane %v5946, 3
    %v5956 = vmul.f32 %v5942, %v5948
    %v5957 = vmul.f32 %v5943, %v5949
    %v5958 = vmul.f32 %v5944, %v5950
    %v5959 = vmul.f32 %v5945, %v5951
    %v5960 = vld [vmem:[#allocation18] sm:$0xf]
    %v5962 = vperm.slane %v5960, 0
    %v5963 = vperm.slane %v5960, 1
    %v5964 = vperm.slane %v5960, 2
    %v5965 = vperm.slane %v5960, 3
    %v5970 = vadd.f32 %v5956, %v5962
    %v5971 = vadd.f32 %v5957, %v5963
    %v5972 = vadd.f32 %v5958, %v5964
    %v5973 = vadd.f32 %v5959, %v5965
    %s5974 = smul.u32 %s4898, 8
    %s5975 = sshll.u32 %s5974, 4
    %5976 = dma.done %s380, %s5975
    %s5977 = smul.u32 4, 128
    %s5978 = smul.u32 %s5977, 4
    %s5979 = sshll.u32 %s5978, 4
    %5980 = dma.done %s394, %s5979
    %v5981 = vpack.c.bf16 %v5970, %v5970
    %v5982 = vpack.c.bf16 %v5971, %v5971
    %v5983 = vpack.c.bf16 %v5972, %v5972
    %v5984 = vpack.c.bf16 %v5973, %v5973
    %v5985 = vld [vmem:[#allocation4] sm:$0xff]
    %v5986 = vld [vmem:[#allocation4 + $0x8] sm:$0xff]
    %v5987 = vld [vmem:[#allocation4 + $0x10] sm:$0xff]
    %v5988 = vld [vmem:[#allocation4 + $0x18] sm:$0xff]
    %v5989 = vld [vmem:[#allocation4 + $0x20] sm:$0xff]
    %v5990 = vld [vmem:[#allocation4 + $0x28] sm:$0xff]
    %v5991 = vld [vmem:[#allocation4 + $0x30] sm:$0xff]
    %v5992 = vld [vmem:[#allocation4 + $0x38] sm:$0xff]
    %v5993 = vld [vmem:[#allocation4 + $0x40] sm:$0xff]
    %v5994 = vld [vmem:[#allocation4 + $0x48] sm:$0xff]
    %v5995 = vld [vmem:[#allocation4 + $0x50] sm:$0xff]
    %v5996 = vld [vmem:[#allocation4 + $0x58] sm:$0xff]
    %v5997 = vld [vmem:[#allocation4 + $0x60] sm:$0xff]
    %v5998 = vld [vmem:[#allocation4 + $0x68] sm:$0xff]
    %v5999 = vld [vmem:[#allocation4 + $0x70] sm:$0xff]
    %v6000 = vld [vmem:[#allocation4 + $0x78] sm:$0xff]
    %v6001 = vld [vmem:[#allocation4 + $0x80] sm:$0xff]
    %v6002 = vld [vmem:[#allocation4 + $0x88] sm:$0xff]
    %v6003 = vld [vmem:[#allocation4 + $0x90] sm:$0xff]
    %v6004 = vld [vmem:[#allocation4 + $0x98] sm:$0xff]
    %v6005 = vld [vmem:[#allocation4 + $0xa0] sm:$0xff]
    %v6006 = vld [vmem:[#allocation4 + $0xa8] sm:$0xff]
    %v6007 = vld [vmem:[#allocation4 + $0xb0] sm:$0xff]
    %v6008 = vld [vmem:[#allocation4 + $0xb8] sm:$0xff]
    %v6009 = vld [vmem:[#allocation4 + $0xc0] sm:$0xff]
    %v6010 = vld [vmem:[#allocation4 + $0xc8] sm:$0xff]
    %v6011 = vld [vmem:[#allocation4 + $0xd0] sm:$0xff]
    %v6012 = vld [vmem:[#allocation4 + $0xd8] sm:$0xff]
    %v6013 = vld [vmem:[#allocation4 + $0xe0] sm:$0xff]
    %v6014 = vld [vmem:[#allocation4 + $0xe8] sm:$0xff]
    %v6015 = vld [vmem:[#allocation4 + $0xf0] sm:$0xff]
    %v6016 = vld [vmem:[#allocation4 + $0xf8] sm:$0xff]
    %v6017 = vld [vmem:[#allocation4 + $0x100] sm:$0xff]
    %v6018 = vld [vmem:[#allocation4 + $0x108] sm:$0xff]
    %v6019 = vld [vmem:[#allocation4 + $0x110] sm:$0xff]
    %v6020 = vld [vmem:[#allocation4 + $0x118] sm:$0xff]
    %v6021 = vld [vmem:[#allocation4 + $0x120] sm:$0xff]
    %v6022 = vld [vmem:[#allocation4 + $0x128] sm:$0xff]
    %v6023 = vld [vmem:[#allocation4 + $0x130] sm:$0xff]
    %v6024 = vld [vmem:[#allocation4 + $0x138] sm:$0xff]
    %v6025 = vld [vmem:[#allocation4 + $0x140] sm:$0xff]
    %v6026 = vld [vmem:[#allocation4 + $0x148] sm:$0xff]
    %v6027 = vld [vmem:[#allocation4 + $0x150] sm:$0xff]
    %v6028 = vld [vmem:[#allocation4 + $0x158] sm:$0xff]
    %v6029 = vld [vmem:[#allocation4 + $0x160] sm:$0xff]
    %v6030 = vld [vmem:[#allocation4 + $0x168] sm:$0xff]
    %v6031 = vld [vmem:[#allocation4 + $0x170] sm:$0xff]
    %v6032 = vld [vmem:[#allocation4 + $0x178] sm:$0xff]
    %v6033 = vld [vmem:[#allocation4 + $0x180] sm:$0xff]
    %v6034 = vld [vmem:[#allocation4 + $0x188] sm:$0xff]
    %v6035 = vld [vmem:[#allocation4 + $0x190] sm:$0xff]
    %v6036 = vld [vmem:[#allocation4 + $0x198] sm:$0xff]
    %v6037 = vld [vmem:[#allocation4 + $0x1a0] sm:$0xff]
    %v6038 = vld [vmem:[#allocation4 + $0x1a8] sm:$0xff]
    %v6039 = vld [vmem:[#allocation4 + $0x1b0] sm:$0xff]
    %v6040 = vld [vmem:[#allocation4 + $0x1b8] sm:$0xff]
    %v6041 = vld [vmem:[#allocation4 + $0x1c0] sm:$0xff]
    %v6042 = vld [vmem:[#allocation4 + $0x1c8] sm:$0xff]
    %v6043 = vld [vmem:[#allocation4 + $0x1d0] sm:$0xff]
    %v6044 = vld [vmem:[#allocation4 + $0x1d8] sm:$0xff]
    %v6045 = vld [vmem:[#allocation4 + $0x1e0] sm:$0xff]
    %v6046 = vld [vmem:[#allocation4 + $0x1e8] sm:$0xff]
    %v6047 = vld [vmem:[#allocation4 + $0x1f0] sm:$0xff]
    %v6048 = vld [vmem:[#allocation4 + $0x1f8] sm:$0xff]
    %v6049 = vld [vmem:[#allocation4 + $0x200] sm:$0xff]
    %v6050 = vld [vmem:[#allocation4 + $0x208] sm:$0xff]
    %v6051 = vld [vmem:[#allocation4 + $0x210] sm:$0xff]
    %v6052 = vld [vmem:[#allocation4 + $0x218] sm:$0xff]
    %v6053 = vld [vmem:[#allocation4 + $0x220] sm:$0xff]
    %v6054 = vld [vmem:[#allocation4 + $0x228] sm:$0xff]
    %v6055 = vld [vmem:[#allocation4 + $0x230] sm:$0xff]
    %v6056 = vld [vmem:[#allocation4 + $0x238] sm:$0xff]
    %v6057 = vld [vmem:[#allocation4 + $0x240] sm:$0xff]
    %v6058 = vld [vmem:[#allocation4 + $0x248] sm:$0xff]
    %v6059 = vld [vmem:[#allocation4 + $0x250] sm:$0xff]
    %v6060 = vld [vmem:[#allocation4 + $0x258] sm:$0xff]
    %v6061 = vld [vmem:[#allocation4 + $0x260] sm:$0xff]
    %v6062 = vld [vmem:[#allocation4 + $0x268] sm:$0xff]
    %v6063 = vld [vmem:[#allocation4 + $0x270] sm:$0xff]
    %v6064 = vld [vmem:[#allocation4 + $0x278] sm:$0xff]
    %v6065 = vld [vmem:[#allocation4 + $0x280] sm:$0xff]
    %v6066 = vld [vmem:[#allocation4 + $0x288] sm:$0xff]
    %v6067 = vld [vmem:[#allocation4 + $0x290] sm:$0xff]
    %v6068 = vld [vmem:[#allocation4 + $0x298] sm:$0xff]
    %v6069 = vld [vmem:[#allocation4 + $0x2a0] sm:$0xff]
    %v6070 = vld [vmem:[#allocation4 + $0x2a8] sm:$0xff]
    %v6071 = vld [vmem:[#allocation4 + $0x2b0] sm:$0xff]
    %v6072 = vld [vmem:[#allocation4 + $0x2b8] sm:$0xff]
    %v6073 = vld [vmem:[#allocation4 + $0x2c0] sm:$0xff]
    %v6074 = vld [vmem:[#allocation4 + $0x2c8] sm:$0xff]
    %v6075 = vld [vmem:[#allocation4 + $0x2d0] sm:$0xff]
    %v6076 = vld [vmem:[#allocation4 + $0x2d8] sm:$0xff]
    %v6077 = vld [vmem:[#allocation4 + $0x2e0] sm:$0xff]
    %v6078 = vld [vmem:[#allocation4 + $0x2e8] sm:$0xff]
    %v6079 = vld [vmem:[#allocation4 + $0x2f0] sm:$0xff]
    %v6080 = vld [vmem:[#allocation4 + $0x2f8] sm:$0xff]
    %v6081 = vld [vmem:[#allocation4 + $0x300] sm:$0xff]
    %v6082 = vld [vmem:[#allocation4 + $0x308] sm:$0xff]
    %v6083 = vld [vmem:[#allocation4 + $0x310] sm:$0xff]
    %v6084 = vld [vmem:[#allocation4 + $0x318] sm:$0xff]
    %v6085 = vld [vmem:[#allocation4 + $0x320] sm:$0xff]
    %v6086 = vld [vmem:[#allocation4 + $0x328] sm:$0xff]
    %v6087 = vld [vmem:[#allocation4 + $0x330] sm:$0xff]
    %v6088 = vld [vmem:[#allocation4 + $0x338] sm:$0xff]
    %v6089 = vld [vmem:[#allocation4 + $0x340] sm:$0xff]
    %v6090 = vld [vmem:[#allocation4 + $0x348] sm:$0xff]
    %v6091 = vld [vmem:[#allocation4 + $0x350] sm:$0xff]
    %v6092 = vld [vmem:[#allocation4 + $0x358] sm:$0xff]
    %v6093 = vld [vmem:[#allocation4 + $0x360] sm:$0xff]
    %v6094 = vld [vmem:[#allocation4 + $0x368] sm:$0xff]
    %v6095 = vld [vmem:[#allocation4 + $0x370] sm:$0xff]
    %v6096 = vld [vmem:[#allocation4 + $0x378] sm:$0xff]
    %v6097 = vld [vmem:[#allocation4 + $0x380] sm:$0xff]
    %v6098 = vld [vmem:[#allocation4 + $0x388] sm:$0xff]
    %v6099 = vld [vmem:[#allocation4 + $0x390] sm:$0xff]
    %v6100 = vld [vmem:[#allocation4 + $0x398] sm:$0xff]
    %v6101 = vld [vmem:[#allocation4 + $0x3a0] sm:$0xff]
    %v6102 = vld [vmem:[#allocation4 + $0x3a8] sm:$0xff]
    %v6103 = vld [vmem:[#allocation4 + $0x3b0] sm:$0xff]
    %v6104 = vld [vmem:[#allocation4 + $0x3b8] sm:$0xff]
    %v6105 = vld [vmem:[#allocation4 + $0x3c0] sm:$0xff]
    %v6106 = vld [vmem:[#allocation4 + $0x3c8] sm:$0xff]
    %v6107 = vld [vmem:[#allocation4 + $0x3d0] sm:$0xff]
    %v6108 = vld [vmem:[#allocation4 + $0x3d8] sm:$0xff]
    %v6109 = vld [vmem:[#allocation4 + $0x3e0] sm:$0xff]
    %v6110 = vld [vmem:[#allocation4 + $0x3e8] sm:$0xff]
    %v6111 = vld [vmem:[#allocation4 + $0x3f0] sm:$0xff]
    %v6112 = vld [vmem:[#allocation4 + $0x3f8] sm:$0xff]
    %v6113 = vld [vmem:[#allocation4 + $0x400] sm:$0xff]
    %v6114 = vld [vmem:[#allocation4 + $0x408] sm:$0xff]
    %v6115 = vld [vmem:[#allocation4 + $0x410] sm:$0xff]
    %v6116 = vld [vmem:[#allocation4 + $0x418] sm:$0xff]
    %v6117 = vld [vmem:[#allocation4 + $0x420] sm:$0xff]
    %v6118 = vld [vmem:[#allocation4 + $0x428] sm:$0xff]
    %v6119 = vld [vmem:[#allocation4 + $0x430] sm:$0xff]
    %v6120 = vld [vmem:[#allocation4 + $0x438] sm:$0xff]
    %v6121 = vld [vmem:[#allocation4 + $0x440] sm:$0xff]
    %v6122 = vld [vmem:[#allocation4 + $0x448] sm:$0xff]
    %v6123 = vld [vmem:[#allocation4 + $0x450] sm:$0xff]
    %v6124 = vld [vmem:[#allocation4 + $0x458] sm:$0xff]
    %v6125 = vld [vmem:[#allocation4 + $0x460] sm:$0xff]
    %v6126 = vld [vmem:[#allocation4 + $0x468] sm:$0xff]
    %v6127 = vld [vmem:[#allocation4 + $0x470] sm:$0xff]
    %v6128 = vld [vmem:[#allocation4 + $0x478] sm:$0xff]
    %v6129 = vld [vmem:[#allocation4 + $0x480] sm:$0xff]
    %v6130 = vld [vmem:[#allocation4 + $0x488] sm:$0xff]
    %v6131 = vld [vmem:[#allocation4 + $0x490] sm:$0xff]
    %v6132 = vld [vmem:[#allocation4 + $0x498] sm:$0xff]
    %v6133 = vld [vmem:[#allocation4 + $0x4a0] sm:$0xff]
    %v6134 = vld [vmem:[#allocation4 + $0x4a8] sm:$0xff]
    %v6135 = vld [vmem:[#allocation4 + $0x4b0] sm:$0xff]
    %v6136 = vld [vmem:[#allocation4 + $0x4b8] sm:$0xff]
    %v6137 = vld [vmem:[#allocation4 + $0x4c0] sm:$0xff]
    %v6138 = vld [vmem:[#allocation4 + $0x4c8] sm:$0xff]
    %v6139 = vld [vmem:[#allocation4 + $0x4d0] sm:$0xff]
    %v6140 = vld [vmem:[#allocation4 + $0x4d8] sm:$0xff]
    %v6141 = vld [vmem:[#allocation4 + $0x4e0] sm:$0xff]
    %v6142 = vld [vmem:[#allocation4 + $0x4e8] sm:$0xff]
    %v6143 = vld [vmem:[#allocation4 + $0x4f0] sm:$0xff]
    %v6144 = vld [vmem:[#allocation4 + $0x4f8] sm:$0xff]
    %v6145 = vld [vmem:[#allocation4 + $0x500] sm:$0xff]
    %v6146 = vld [vmem:[#allocation4 + $0x508] sm:$0xff]
    %v6147 = vld [vmem:[#allocation4 + $0x510] sm:$0xff]
    %v6148 = vld [vmem:[#allocation4 + $0x518] sm:$0xff]
    %v6149 = vld [vmem:[#allocation4 + $0x520] sm:$0xff]
    %v6150 = vld [vmem:[#allocation4 + $0x528] sm:$0xff]
    %v6151 = vld [vmem:[#allocation4 + $0x530] sm:$0xff]
    %v6152 = vld [vmem:[#allocation4 + $0x538] sm:$0xff]
    %v6153 = vld [vmem:[#allocation4 + $0x540] sm:$0xff]
    %v6154 = vld [vmem:[#allocation4 + $0x548] sm:$0xff]
    %v6155 = vld [vmem:[#allocation4 + $0x550] sm:$0xff]
    %v6156 = vld [vmem:[#allocation4 + $0x558] sm:$0xff]
    %v6157 = vld [vmem:[#allocation4 + $0x560] sm:$0xff]
    %v6158 = vld [vmem:[#allocation4 + $0x568] sm:$0xff]
    %v6159 = vld [vmem:[#allocation4 + $0x570] sm:$0xff]
    %v6160 = vld [vmem:[#allocation4 + $0x578] sm:$0xff]
    %v6161 = vld [vmem:[#allocation4 + $0x580] sm:$0xff]
    %v6162 = vld [vmem:[#allocation4 + $0x588] sm:$0xff]
    %v6163 = vld [vmem:[#allocation4 + $0x590] sm:$0xff]
    %v6164 = vld [vmem:[#allocation4 + $0x598] sm:$0xff]
    %v6165 = vld [vmem:[#allocation4 + $0x5a0] sm:$0xff]
    %v6166 = vld [vmem:[#allocation4 + $0x5a8] sm:$0xff]
    %v6167 = vld [vmem:[#allocation4 + $0x5b0] sm:$0xff]
    %v6168 = vld [vmem:[#allocation4 + $0x5b8] sm:$0xff]
    %v6169 = vld [vmem:[#allocation4 + $0x5c0] sm:$0xff]
    %v6170 = vld [vmem:[#allocation4 + $0x5c8] sm:$0xff]
    %v6171 = vld [vmem:[#allocation4 + $0x5d0] sm:$0xff]
    %v6172 = vld [vmem:[#allocation4 + $0x5d8] sm:$0xff]
    %v6173 = vld [vmem:[#allocation4 + $0x5e0] sm:$0xff]
    %v6174 = vld [vmem:[#allocation4 + $0x5e8] sm:$0xff]
    %v6175 = vld [vmem:[#allocation4 + $0x5f0] sm:$0xff]
    %v6176 = vld [vmem:[#allocation4 + $0x5f8] sm:$0xff]
    %v6177 = vld [vmem:[#allocation4 + $0x600] sm:$0xff]
    %v6178 = vld [vmem:[#allocation4 + $0x608] sm:$0xff]
    %v6179 = vld [vmem:[#allocation4 + $0x610] sm:$0xff]
    %v6180 = vld [vmem:[#allocation4 + $0x618] sm:$0xff]
    %v6181 = vld [vmem:[#allocation4 + $0x620] sm:$0xff]
    %v6182 = vld [vmem:[#allocation4 + $0x628] sm:$0xff]
    %v6183 = vld [vmem:[#allocation4 + $0x630] sm:$0xff]
    %v6184 = vld [vmem:[#allocation4 + $0x638] sm:$0xff]
    %v6185 = vld [vmem:[#allocation4 + $0x640] sm:$0xff]
    %v6186 = vld [vmem:[#allocation4 + $0x648] sm:$0xff]
    %v6187 = vld [vmem:[#allocation4 + $0x650] sm:$0xff]
    %v6188 = vld [vmem:[#allocation4 + $0x658] sm:$0xff]
    %v6189 = vld [vmem:[#allocation4 + $0x660] sm:$0xff]
    %v6190 = vld [vmem:[#allocation4 + $0x668] sm:$0xff]
    %v6191 = vld [vmem:[#allocation4 + $0x670] sm:$0xff]
    %v6192 = vld [vmem:[#allocation4 + $0x678] sm:$0xff]
    %v6193 = vld [vmem:[#allocation4 + $0x680] sm:$0xff]
    %v6194 = vld [vmem:[#allocation4 + $0x688] sm:$0xff]
    %v6195 = vld [vmem:[#allocation4 + $0x690] sm:$0xff]
    %v6196 = vld [vmem:[#allocation4 + $0x698] sm:$0xff]
    %v6197 = vld [vmem:[#allocation4 + $0x6a0] sm:$0xff]
    %v6198 = vld [vmem:[#allocation4 + $0x6a8] sm:$0xff]
    %v6199 = vld [vmem:[#allocation4 + $0x6b0] sm:$0xff]
    %v6200 = vld [vmem:[#allocation4 + $0x6b8] sm:$0xff]
    %v6201 = vld [vmem:[#allocation4 + $0x6c0] sm:$0xff]
    %v6202 = vld [vmem:[#allocation4 + $0x6c8] sm:$0xff]
    %v6203 = vld [vmem:[#allocation4 + $0x6d0] sm:$0xff]
    %v6204 = vld [vmem:[#allocation4 + $0x6d8] sm:$0xff]
    %v6205 = vld [vmem:[#allocation4 + $0x6e0] sm:$0xff]
    %v6206 = vld [vmem:[#allocation4 + $0x6e8] sm:$0xff]
    %v6207 = vld [vmem:[#allocation4 + $0x6f0] sm:$0xff]
    %v6208 = vld [vmem:[#allocation4 + $0x6f8] sm:$0xff]
    %v6209 = vld [vmem:[#allocation4 + $0x700] sm:$0xff]
    %v6210 = vld [vmem:[#allocation4 + $0x708] sm:$0xff]
    %v6211 = vld [vmem:[#allocation4 + $0x710] sm:$0xff]
    %v6212 = vld [vmem:[#allocation4 + $0x718] sm:$0xff]
    %v6213 = vld [vmem:[#allocation4 + $0x720] sm:$0xff]
    %v6214 = vld [vmem:[#allocation4 + $0x728] sm:$0xff]
    %v6215 = vld [vmem:[#allocation4 + $0x730] sm:$0xff]
    %v6216 = vld [vmem:[#allocation4 + $0x738] sm:$0xff]
    %v6217 = vld [vmem:[#allocation4 + $0x740] sm:$0xff]
    %v6218 = vld [vmem:[#allocation4 + $0x748] sm:$0xff]
    %v6219 = vld [vmem:[#allocation4 + $0x750] sm:$0xff]
    %v6220 = vld [vmem:[#allocation4 + $0x758] sm:$0xff]
    %v6221 = vld [vmem:[#allocation4 + $0x760] sm:$0xff]
    %v6222 = vld [vmem:[#allocation4 + $0x768] sm:$0xff]
    %v6223 = vld [vmem:[#allocation4 + $0x770] sm:$0xff]
    %v6224 = vld [vmem:[#allocation4 + $0x778] sm:$0xff]
    %v6225 = vld [vmem:[#allocation4 + $0x780] sm:$0xff]
    %v6226 = vld [vmem:[#allocation4 + $0x788] sm:$0xff]
    %v6227 = vld [vmem:[#allocation4 + $0x790] sm:$0xff]
    %v6228 = vld [vmem:[#allocation4 + $0x798] sm:$0xff]
    %v6229 = vld [vmem:[#allocation4 + $0x7a0] sm:$0xff]
    %v6230 = vld [vmem:[#allocation4 + $0x7a8] sm:$0xff]
    %v6231 = vld [vmem:[#allocation4 + $0x7b0] sm:$0xff]
    %v6232 = vld [vmem:[#allocation4 + $0x7b8] sm:$0xff]
    %v6233 = vld [vmem:[#allocation4 + $0x7c0] sm:$0xff]
    %v6234 = vld [vmem:[#allocation4 + $0x7c8] sm:$0xff]
    %v6235 = vld [vmem:[#allocation4 + $0x7d0] sm:$0xff]
    %v6236 = vld [vmem:[#allocation4 + $0x7d8] sm:$0xff]
    %v6237 = vld [vmem:[#allocation4 + $0x7e0] sm:$0xff]
    %v6238 = vld [vmem:[#allocation4 + $0x7e8] sm:$0xff]
    %v6239 = vld [vmem:[#allocation4 + $0x7f0] sm:$0xff]
    %v6240 = vld [vmem:[#allocation4 + $0x7f8] sm:$0xff]
    %v6241 = vld [vmem:[#allocation20] sm:$0xff]
    %v6243 = vperm.slane %v6241, 0
    %v6244 = vperm.slane %v6241, 1
    %v6245 = vperm.slane %v6241, 2
    %v6246 = vperm.slane %v6241, 3
    %v6247 = vperm.slane %v6241, 4
    %v6248 = vperm.slane %v6241, 5
    %v6249 = vperm.slane %v6241, 6
    %v6250 = vperm.slane %v6241, 7
    %v6515 = vunpack.c.l.b16 %v5985
    %v6516 = vunpack.c.h.b16 %v5985
    %v6517 = vunpack.c.l.b16 %v5986
    %v6518 = vunpack.c.h.b16 %v5986
    %v6519 = vunpack.c.l.b16 %v5987
    %v6520 = vunpack.c.h.b16 %v5987
    %v6521 = vunpack.c.l.b16 %v5988
    %v6522 = vunpack.c.h.b16 %v5988
    %v6523 = vunpack.c.l.b16 %v5989
    %v6524 = vunpack.c.h.b16 %v5989
    %v6525 = vunpack.c.l.b16 %v5990
    %v6526 = vunpack.c.h.b16 %v5990
    %v6527 = vunpack.c.l.b16 %v5991
    %v6528 = vunpack.c.h.b16 %v5991
    %v6529 = vunpack.c.l.b16 %v5992
    %v6530 = vunpack.c.h.b16 %v5992
    %v6531 = vunpack.c.l.b16 %v5993
    %v6532 = vunpack.c.h.b16 %v5993
    %v6533 = vunpack.c.l.b16 %v5994
    %v6534 = vunpack.c.h.b16 %v5994
    %v6535 = vunpack.c.l.b16 %v5995
    %v6536 = vunpack.c.h.b16 %v5995
    %v6537 = vunpack.c.l.b16 %v5996
    %v6538 = vunpack.c.h.b16 %v5996
    %v6539 = vunpack.c.l.b16 %v5997
    %v6540 = vunpack.c.h.b16 %v5997
    %v6541 = vunpack.c.l.b16 %v5998
    %v6542 = vunpack.c.h.b16 %v5998
    %v6543 = vunpack.c.l.b16 %v5999
    %v6544 = vunpack.c.h.b16 %v5999
    %v6545 = vunpack.c.l.b16 %v6000
    %v6546 = vunpack.c.h.b16 %v6000
    %v6547 = vunpack.c.l.b16 %v6001
    %v6548 = vunpack.c.h.b16 %v6001
    %v6549 = vunpack.c.l.b16 %v6002
    %v6550 = vunpack.c.h.b16 %v6002
    %v6551 = vunpack.c.l.b16 %v6003
    %v6552 = vunpack.c.h.b16 %v6003
    %v6553 = vunpack.c.l.b16 %v6004
    %v6554 = vunpack.c.h.b16 %v6004
    %v6555 = vunpack.c.l.b16 %v6005
    %v6556 = vunpack.c.h.b16 %v6005
    %v6557 = vunpack.c.l.b16 %v6006
    %v6558 = vunpack.c.h.b16 %v6006
    %v6559 = vunpack.c.l.b16 %v6007
    %v6560 = vunpack.c.h.b16 %v6007
    %v6561 = vunpack.c.l.b16 %v6008
    %v6562 = vunpack.c.h.b16 %v6008
    %v6563 = vunpack.c.l.b16 %v6009
    %v6564 = vunpack.c.h.b16 %v6009
    %v6565 = vunpack.c.l.b16 %v6010
    %v6566 = vunpack.c.h.b16 %v6010
    %v6567 = vunpack.c.l.b16 %v6011
    %v6568 = vunpack.c.h.b16 %v6011
    %v6569 = vunpack.c.l.b16 %v6012
    %v6570 = vunpack.c.h.b16 %v6012
    %v6571 = vunpack.c.l.b16 %v6013
    %v6572 = vunpack.c.h.b16 %v6013
    %v6573 = vunpack.c.l.b16 %v6014
    %v6574 = vunpack.c.h.b16 %v6014
    %v6575 = vunpack.c.l.b16 %v6015
    %v6576 = vunpack.c.h.b16 %v6015
    %v6577 = vunpack.c.l.b16 %v6016
    %v6578 = vunpack.c.h.b16 %v6016
    %v6579 = vunpack.c.l.b16 %v6017
    %v6580 = vunpack.c.h.b16 %v6017
    %v6581 = vunpack.c.l.b16 %v6018
    %v6582 = vunpack.c.h.b16 %v6018
    %v6583 = vunpack.c.l.b16 %v6019
    %v6584 = vunpack.c.h.b16 %v6019
    %v6585 = vunpack.c.l.b16 %v6020
    %v6586 = vunpack.c.h.b16 %v6020
    %v6587 = vunpack.c.l.b16 %v6021
    %v6588 = vunpack.c.h.b16 %v6021
    %v6589 = vunpack.c.l.b16 %v6022
    %v6590 = vunpack.c.h.b16 %v6022
    %v6591 = vunpack.c.l.b16 %v6023
    %v6592 = vunpack.c.h.b16 %v6023
    %v6593 = vunpack.c.l.b16 %v6024
    %v6594 = vunpack.c.h.b16 %v6024
    %v6595 = vunpack.c.l.b16 %v6025
    %v6596 = vunpack.c.h.b16 %v6025
    %v6597 = vunpack.c.l.b16 %v6026
    %v6598 = vunpack.c.h.b16 %v6026
    %v6599 = vunpack.c.l.b16 %v6027
    %v6600 = vunpack.c.h.b16 %v6027
    %v6601 = vunpack.c.l.b16 %v6028
    %v6602 = vunpack.c.h.b16 %v6028
    %v6603 = vunpack.c.l.b16 %v6029
    %v6604 = vunpack.c.h.b16 %v6029
    %v6605 = vunpack.c.l.b16 %v6030
    %v6606 = vunpack.c.h.b16 %v6030
    %v6607 = vunpack.c.l.b16 %v6031
    %v6608 = vunpack.c.h.b16 %v6031
    %v6609 = vunpack.c.l.b16 %v6032
    %v6610 = vunpack.c.h.b16 %v6032
    %v6611 = vunpack.c.l.b16 %v6033
    %v6612 = vunpack.c.h.b16 %v6033
    %v6613 = vunpack.c.l.b16 %v6034
    %v6614 = vunpack.c.h.b16 %v6034
    %v6615 = vunpack.c.l.b16 %v6035
    %v6616 = vunpack.c.h.b16 %v6035
    %v6617 = vunpack.c.l.b16 %v6036
    %v6618 = vunpack.c.h.b16 %v6036
    %v6619 = vunpack.c.l.b16 %v6037
    %v6620 = vunpack.c.h.b16 %v6037
    %v6621 = vunpack.c.l.b16 %v6038
    %v6622 = vunpack.c.h.b16 %v6038
    %v6623 = vunpack.c.l.b16 %v6039
    %v6624 = vunpack.c.h.b16 %v6039
    %v6625 = vunpack.c.l.b16 %v6040
    %v6626 = vunpack.c.h.b16 %v6040
    %v6627 = vunpack.c.l.b16 %v6041
    %v6628 = vunpack.c.h.b16 %v6041
    %v6629 = vunpack.c.l.b16 %v6042
    %v6630 = vunpack.c.h.b16 %v6042
    %v6631 = vunpack.c.l.b16 %v6043
    %v6632 = vunpack.c.h.b16 %v6043
    %v6633 = vunpack.c.l.b16 %v6044
    %v6634 = vunpack.c.h.b16 %v6044
    %v6635 = vunpack.c.l.b16 %v6045
    %v6636 = vunpack.c.h.b16 %v6045
    %v6637 = vunpack.c.l.b16 %v6046
    %v6638 = vunpack.c.h.b16 %v6046
    %v6639 = vunpack.c.l.b16 %v6047
    %v6640 = vunpack.c.h.b16 %v6047
    %v6641 = vunpack.c.l.b16 %v6048
    %v6642 = vunpack.c.h.b16 %v6048
    %v6643 = vunpack.c.l.b16 %v6049
    %v6644 = vunpack.c.h.b16 %v6049
    %v6645 = vunpack.c.l.b16 %v6050
    %v6646 = vunpack.c.h.b16 %v6050
    %v6647 = vunpack.c.l.b16 %v6051
    %v6648 = vunpack.c.h.b16 %v6051
    %v6649 = vunpack.c.l.b16 %v6052
    %v6650 = vunpack.c.h.b16 %v6052
    %v6651 = vunpack.c.l.b16 %v6053
    %v6652 = vunpack.c.h.b16 %v6053
    %v6653 = vunpack.c.l.b16 %v6054
    %v6654 = vunpack.c.h.b16 %v6054
    %v6655 = vunpack.c.l.b16 %v6055
    %v6656 = vunpack.c.h.b16 %v6055
    %v6657 = vunpack.c.l.b16 %v6056
    %v6658 = vunpack.c.h.b16 %v6056
    %v6659 = vunpack.c.l.b16 %v6057
    %v6660 = vunpack.c.h.b16 %v6057
    %v6661 = vunpack.c.l.b16 %v6058
    %v6662 = vunpack.c.h.b16 %v6058
    %v6663 = vunpack.c.l.b16 %v6059
    %v6664 = vunpack.c.h.b16 %v6059
    %v6665 = vunpack.c.l.b16 %v6060
    %v6666 = vunpack.c.h.b16 %v6060
    %v6667 = vunpack.c.l.b16 %v6061
    %v6668 = vunpack.c.h.b16 %v6061
    %v6669 = vunpack.c.l.b16 %v6062
    %v6670 = vunpack.c.h.b16 %v6062
    %v6671 = vunpack.c.l.b16 %v6063
    %v6672 = vunpack.c.h.b16 %v6063
    %v6673 = vunpack.c.l.b16 %v6064
    %v6674 = vunpack.c.h.b16 %v6064
    %v6675 = vunpack.c.l.b16 %v6065
    %v6676 = vunpack.c.h.b16 %v6065
    %v6677 = vunpack.c.l.b16 %v6066
    %v6678 = vunpack.c.h.b16 %v6066
    %v6679 = vunpack.c.l.b16 %v6067
    %v6680 = vunpack.c.h.b16 %v6067
    %v6681 = vunpack.c.l.b16 %v6068
    %v6682 = vunpack.c.h.b16 %v6068
    %v6683 = vunpack.c.l.b16 %v6069
    %v6684 = vunpack.c.h.b16 %v6069
    %v6685 = vunpack.c.l.b16 %v6070
    %v6686 = vunpack.c.h.b16 %v6070
    %v6687 = vunpack.c.l.b16 %v6071
    %v6688 = vunpack.c.h.b16 %v6071
    %v6689 = vunpack.c.l.b16 %v6072
    %v6690 = vunpack.c.h.b16 %v6072
    %v6691 = vunpack.c.l.b16 %v6073
    %v6692 = vunpack.c.h.b16 %v6073
    %v6693 = vunpack.c.l.b16 %v6074
    %v6694 = vunpack.c.h.b16 %v6074
    %v6695 = vunpack.c.l.b16 %v6075
    %v6696 = vunpack.c.h.b16 %v6075
    %v6697 = vunpack.c.l.b16 %v6076
    %v6698 = vunpack.c.h.b16 %v6076
    %v6699 = vunpack.c.l.b16 %v6077
    %v6700 = vunpack.c.h.b16 %v6077
    %v6701 = vunpack.c.l.b16 %v6078
    %v6702 = vunpack.c.h.b16 %v6078
    %v6703 = vunpack.c.l.b16 %v6079
    %v6704 = vunpack.c.h.b16 %v6079
    %v6705 = vunpack.c.l.b16 %v6080
    %v6706 = vunpack.c.h.b16 %v6080
    %v6707 = vunpack.c.l.b16 %v6081
    %v6708 = vunpack.c.h.b16 %v6081
    %v6709 = vunpack.c.l.b16 %v6082
    %v6710 = vunpack.c.h.b16 %v6082
    %v6711 = vunpack.c.l.b16 %v6083
    %v6712 = vunpack.c.h.b16 %v6083
    %v6713 = vunpack.c.l.b16 %v6084
    %v6714 = vunpack.c.h.b16 %v6084
    %v6715 = vunpack.c.l.b16 %v6085
    %v6716 = vunpack.c.h.b16 %v6085
    %v6717 = vunpack.c.l.b16 %v6086
    %v6718 = vunpack.c.h.b16 %v6086
    %v6719 = vunpack.c.l.b16 %v6087
    %v6720 = vunpack.c.h.b16 %v6087
    %v6721 = vunpack.c.l.b16 %v6088
    %v6722 = vunpack.c.h.b16 %v6088
    %v6723 = vunpack.c.l.b16 %v6089
    %v6724 = vunpack.c.h.b16 %v6089
    %v6725 = vunpack.c.l.b16 %v6090
    %v6726 = vunpack.c.h.b16 %v6090
    %v6727 = vunpack.c.l.b16 %v6091
    %v6728 = vunpack.c.h.b16 %v6091
    %v6729 = vunpack.c.l.b16 %v6092
    %v6730 = vunpack.c.h.b16 %v6092
    %v6731 = vunpack.c.l.b16 %v6093
    %v6732 = vunpack.c.h.b16 %v6093
    %v6733 = vunpack.c.l.b16 %v6094
    %v6734 = vunpack.c.h.b16 %v6094
    %v6735 = vunpack.c.l.b16 %v6095
    %v6736 = vunpack.c.h.b16 %v6095
    %v6737 = vunpack.c.l.b16 %v6096
    %v6738 = vunpack.c.h.b16 %v6096
    %v6739 = vunpack.c.l.b16 %v6097
    %v6740 = vunpack.c.h.b16 %v6097
    %v6741 = vunpack.c.l.b16 %v6098
    %v6742 = vunpack.c.h.b16 %v6098
    %v6743 = vunpack.c.l.b16 %v6099
    %v6744 = vunpack.c.h.b16 %v6099
    %v6745 = vunpack.c.l.b16 %v6100
    %v6746 = vunpack.c.h.b16 %v6100
    %v6747 = vunpack.c.l.b16 %v6101
    %v6748 = vunpack.c.h.b16 %v6101
    %v6749 = vunpack.c.l.b16 %v6102
    %v6750 = vunpack.c.h.b16 %v6102
    %v6751 = vunpack.c.l.b16 %v6103
    %v6752 = vunpack.c.h.b16 %v6103
    %v6753 = vunpack.c.l.b16 %v6104
    %v6754 = vunpack.c.h.b16 %v6104
    %v6755 = vunpack.c.l.b16 %v6105
    %v6756 = vunpack.c.h.b16 %v6105
    %v6757 = vunpack.c.l.b16 %v6106
    %v6758 = vunpack.c.h.b16 %v6106
    %v6759 = vunpack.c.l.b16 %v6107
    %v6760 = vunpack.c.h.b16 %v6107
    %v6761 = vunpack.c.l.b16 %v6108
    %v6762 = vunpack.c.h.b16 %v6108
    %v6763 = vunpack.c.l.b16 %v6109
    %v6764 = vunpack.c.h.b16 %v6109
    %v6765 = vunpack.c.l.b16 %v6110
    %v6766 = vunpack.c.h.b16 %v6110
    %v6767 = vunpack.c.l.b16 %v6111
    %v6768 = vunpack.c.h.b16 %v6111
    %v6769 = vunpack.c.l.b16 %v6112
    %v6770 = vunpack.c.h.b16 %v6112
    %v6771 = vunpack.c.l.b16 %v6113
    %v6772 = vunpack.c.h.b16 %v6113
    %v6773 = vunpack.c.l.b16 %v6114
    %v6774 = vunpack.c.h.b16 %v6114
    %v6775 = vunpack.c.l.b16 %v6115
    %v6776 = vunpack.c.h.b16 %v6115
    %v6777 = vunpack.c.l.b16 %v6116
    %v6778 = vunpack.c.h.b16 %v6116
    %v6779 = vunpack.c.l.b16 %v6117
    %v6780 = vunpack.c.h.b16 %v6117
    %v6781 = vunpack.c.l.b16 %v6118
    %v6782 = vunpack.c.h.b16 %v6118
    %v6783 = vunpack.c.l.b16 %v6119
    %v6784 = vunpack.c.h.b16 %v6119
    %v6785 = vunpack.c.l.b16 %v6120
    %v6786 = vunpack.c.h.b16 %v6120
    %v6787 = vunpack.c.l.b16 %v6121
    %v6788 = vunpack.c.h.b16 %v6121
    %v6789 = vunpack.c.l.b16 %v6122
    %v6790 = vunpack.c.h.b16 %v6122
    %v6791 = vunpack.c.l.b16 %v6123
    %v6792 = vunpack.c.h.b16 %v6123
    %v6793 = vunpack.c.l.b16 %v6124
    %v6794 = vunpack.c.h.b16 %v6124
    %v6795 = vunpack.c.l.b16 %v6125
    %v6796 = vunpack.c.h.b16 %v6125
    %v6797 = vunpack.c.l.b16 %v6126
    %v6798 = vunpack.c.h.b16 %v6126
    %v6799 = vunpack.c.l.b16 %v6127
    %v6800 = vunpack.c.h.b16 %v6127
    %v6801 = vunpack.c.l.b16 %v6128
    %v6802 = vunpack.c.h.b16 %v6128
    %v6803 = vunpack.c.l.b16 %v6129
    %v6804 = vunpack.c.h.b16 %v6129
    %v6805 = vunpack.c.l.b16 %v6130
    %v6806 = vunpack.c.h.b16 %v6130
    %v6807 = vunpack.c.l.b16 %v6131
    %v6808 = vunpack.c.h.b16 %v6131
    %v6809 = vunpack.c.l.b16 %v6132
    %v6810 = vunpack.c.h.b16 %v6132
    %v6811 = vunpack.c.l.b16 %v6133
    %v6812 = vunpack.c.h.b16 %v6133
    %v6813 = vunpack.c.l.b16 %v6134
    %v6814 = vunpack.c.h.b16 %v6134
    %v6815 = vunpack.c.l.b16 %v6135
    %v6816 = vunpack.c.h.b16 %v6135
    %v6817 = vunpack.c.l.b16 %v6136
    %v6818 = vunpack.c.h.b16 %v6136
    %v6819 = vunpack.c.l.b16 %v6137
    %v6820 = vunpack.c.h.b16 %v6137
    %v6821 = vunpack.c.l.b16 %v6138
    %v6822 = vunpack.c.h.b16 %v6138
    %v6823 = vunpack.c.l.b16 %v6139
    %v6824 = vunpack.c.h.b16 %v6139
    %v6825 = vunpack.c.l.b16 %v6140
    %v6826 = vunpack.c.h.b16 %v6140
    %v6827 = vunpack.c.l.b16 %v6141
    %v6828 = vunpack.c.h.b16 %v6141
    %v6829 = vunpack.c.l.b16 %v6142
    %v6830 = vunpack.c.h.b16 %v6142
    %v6831 = vunpack.c.l.b16 %v6143
    %v6832 = vunpack.c.h.b16 %v6143
    %v6833 = vunpack.c.l.b16 %v6144
    %v6834 = vunpack.c.h.b16 %v6144
    %v6835 = vunpack.c.l.b16 %v6145
    %v6836 = vunpack.c.h.b16 %v6145
    %v6837 = vunpack.c.l.b16 %v6146
    %v6838 = vunpack.c.h.b16 %v6146
    %v6839 = vunpack.c.l.b16 %v6147
    %v6840 = vunpack.c.h.b16 %v6147
    %v6841 = vunpack.c.l.b16 %v6148
    %v6842 = vunpack.c.h.b16 %v6148
    %v6843 = vunpack.c.l.b16 %v6149
    %v6844 = vunpack.c.h.b16 %v6149
    %v6845 = vunpack.c.l.b16 %v6150
    %v6846 = vunpack.c.h.b16 %v6150
    %v6847 = vunpack.c.l.b16 %v6151
    %v6848 = vunpack.c.h.b16 %v6151
    %v6849 = vunpack.c.l.b16 %v6152
    %v6850 = vunpack.c.h.b16 %v6152
    %v6851 = vunpack.c.l.b16 %v6153
    %v6852 = vunpack.c.h.b16 %v6153
    %v6853 = vunpack.c.l.b16 %v6154
    %v6854 = vunpack.c.h.b16 %v6154
    %v6855 = vunpack.c.l.b16 %v6155
    %v6856 = vunpack.c.h.b16 %v6155
    %v6857 = vunpack.c.l.b16 %v6156
    %v6858 = vunpack.c.h.b16 %v6156
    %v6859 = vunpack.c.l.b16 %v6157
    %v6860 = vunpack.c.h.b16 %v6157
    %v6861 = vunpack.c.l.b16 %v6158
    %v6862 = vunpack.c.h.b16 %v6158
    %v6863 = vunpack.c.l.b16 %v6159
    %v6864 = vunpack.c.h.b16 %v6159
    %v6865 = vunpack.c.l.b16 %v6160
    %v6866 = vunpack.c.h.b16 %v6160
    %v6867 = vunpack.c.l.b16 %v6161
    %v6868 = vunpack.c.h.b16 %v6161
    %v6869 = vunpack.c.l.b16 %v6162
    %v6870 = vunpack.c.h.b16 %v6162
    %v6871 = vunpack.c.l.b16 %v6163
    %v6872 = vunpack.c.h.b16 %v6163
    %v6873 = vunpack.c.l.b16 %v6164
    %v6874 = vunpack.c.h.b16 %v6164
    %v6875 = vunpack.c.l.b16 %v6165
    %v6876 = vunpack.c.h.b16 %v6165
    %v6877 = vunpack.c.l.b16 %v6166
    %v6878 = vunpack.c.h.b16 %v6166
    %v6879 = vunpack.c.l.b16 %v6167
    %v6880 = vunpack.c.h.b16 %v6167
    %v6881 = vunpack.c.l.b16 %v6168
    %v6882 = vunpack.c.h.b16 %v6168
    %v6883 = vunpack.c.l.b16 %v6169
    %v6884 = vunpack.c.h.b16 %v6169
    %v6885 = vunpack.c.l.b16 %v6170
    %v6886 = vunpack.c.h.b16 %v6170
    %v6887 = vunpack.c.l.b16 %v6171
    %v6888 = vunpack.c.h.b16 %v6171
    %v6889 = vunpack.c.l.b16 %v6172
    %v6890 = vunpack.c.h.b16 %v6172
    %v6891 = vunpack.c.l.b16 %v6173
    %v6892 = vunpack.c.h.b16 %v6173
    %v6893 = vunpack.c.l.b16 %v6174
    %v6894 = vunpack.c.h.b16 %v6174
    %v6895 = vunpack.c.l.b16 %v6175
    %v6896 = vunpack.c.h.b16 %v6175
    %v6897 = vunpack.c.l.b16 %v6176
    %v6898 = vunpack.c.h.b16 %v6176
    %v6899 = vunpack.c.l.b16 %v6177
    %v6900 = vunpack.c.h.b16 %v6177
    %v6901 = vunpack.c.l.b16 %v6178
    %v6902 = vunpack.c.h.b16 %v6178
    %v6903 = vunpack.c.l.b16 %v6179
    %v6904 = vunpack.c.h.b16 %v6179
    %v6905 = vunpack.c.l.b16 %v6180
    %v6906 = vunpack.c.h.b16 %v6180
    %v6907 = vunpack.c.l.b16 %v6181
    %v6908 = vunpack.c.h.b16 %v6181
    %v6909 = vunpack.c.l.b16 %v6182
    %v6910 = vunpack.c.h.b16 %v6182
    %v6911 = vunpack.c.l.b16 %v6183
    %v6912 = vunpack.c.h.b16 %v6183
    %v6913 = vunpack.c.l.b16 %v6184
    %v6914 = vunpack.c.h.b16 %v6184
    %v6915 = vunpack.c.l.b16 %v6185
    %v6916 = vunpack.c.h.b16 %v6185
    %v6917 = vunpack.c.l.b16 %v6186
    %v6918 = vunpack.c.h.b16 %v6186
    %v6919 = vunpack.c.l.b16 %v6187
    %v6920 = vunpack.c.h.b16 %v6187
    %v6921 = vunpack.c.l.b16 %v6188
    %v6922 = vunpack.c.h.b16 %v6188
    %v6923 = vunpack.c.l.b16 %v6189
    %v6924 = vunpack.c.h.b16 %v6189
    %v6925 = vunpack.c.l.b16 %v6190
    %v6926 = vunpack.c.h.b16 %v6190
    %v6927 = vunpack.c.l.b16 %v6191
    %v6928 = vunpack.c.h.b16 %v6191
    %v6929 = vunpack.c.l.b16 %v6192
    %v6930 = vunpack.c.h.b16 %v6192
    %v6931 = vunpack.c.l.b16 %v6193
    %v6932 = vunpack.c.h.b16 %v6193
    %v6933 = vunpack.c.l.b16 %v6194
    %v6934 = vunpack.c.h.b16 %v6194
    %v6935 = vunpack.c.l.b16 %v6195
    %v6936 = vunpack.c.h.b16 %v6195
    %v6937 = vunpack.c.l.b16 %v6196
    %v6938 = vunpack.c.h.b16 %v6196
    %v6939 = vunpack.c.l.b16 %v6197
    %v6940 = vunpack.c.h.b16 %v6197
    %v6941 = vunpack.c.l.b16 %v6198
    %v6942 = vunpack.c.h.b16 %v6198
    %v6943 = vunpack.c.l.b16 %v6199
    %v6944 = vunpack.c.h.b16 %v6199
    %v6945 = vunpack.c.l.b16 %v6200
    %v6946 = vunpack.c.h.b16 %v6200
    %v6947 = vunpack.c.l.b16 %v6201
    %v6948 = vunpack.c.h.b16 %v6201
    %v6949 = vunpack.c.l.b16 %v6202
    %v6950 = vunpack.c.h.b16 %v6202
    %v6951 = vunpack.c.l.b16 %v6203
    %v6952 = vunpack.c.h.b16 %v6203
    %v6953 = vunpack.c.l.b16 %v6204
    %v6954 = vunpack.c.h.b16 %v6204
    %v6955 = vunpack.c.l.b16 %v6205
    %v6956 = vunpack.c.h.b16 %v6205
    %v6957 = vunpack.c.l.b16 %v6206
    %v6958 = vunpack.c.h.b16 %v6206
    %v6959 = vunpack.c.l.b16 %v6207
    %v6960 = vunpack.c.h.b16 %v6207
    %v6961 = vunpack.c.l.b16 %v6208
    %v6962 = vunpack.c.h.b16 %v6208
    %v6963 = vunpack.c.l.b16 %v6209
    %v6964 = vunpack.c.h.b16 %v6209
    %v6965 = vunpack.c.l.b16 %v6210
    %v6966 = vunpack.c.h.b16 %v6210
    %v6967 = vunpack.c.l.b16 %v6211
    %v6968 = vunpack.c.h.b16 %v6211
    %v6969 = vunpack.c.l.b16 %v6212
    %v6970 = vunpack.c.h.b16 %v6212
    %v6971 = vunpack.c.l.b16 %v6213
    %v6972 = vunpack.c.h.b16 %v6213
    %v6973 = vunpack.c.l.b16 %v6214
    %v6974 = vunpack.c.h.b16 %v6214
    %v6975 = vunpack.c.l.b16 %v6215
    %v6976 = vunpack.c.h.b16 %v6215
    %v6977 = vunpack.c.l.b16 %v6216
    %v6978 = vunpack.c.h.b16 %v6216
    %v6979 = vunpack.c.l.b16 %v6217
    %v6980 = vunpack.c.h.b16 %v6217
    %v6981 = vunpack.c.l.b16 %v6218
    %v6982 = vunpack.c.h.b16 %v6218
    %v6983 = vunpack.c.l.b16 %v6219
    %v6984 = vunpack.c.h.b16 %v6219
    %v6985 = vunpack.c.l.b16 %v6220
    %v6986 = vunpack.c.h.b16 %v6220
    %v6987 = vunpack.c.l.b16 %v6221
    %v6988 = vunpack.c.h.b16 %v6221
    %v6989 = vunpack.c.l.b16 %v6222
    %v6990 = vunpack.c.h.b16 %v6222
    %v6991 = vunpack.c.l.b16 %v6223
    %v6992 = vunpack.c.h.b16 %v6223
    %v6993 = vunpack.c.l.b16 %v6224
    %v6994 = vunpack.c.h.b16 %v6224
    %v6995 = vunpack.c.l.b16 %v6225
    %v6996 = vunpack.c.h.b16 %v6225
    %v6997 = vunpack.c.l.b16 %v6226
    %v6998 = vunpack.c.h.b16 %v6226
    %v6999 = vunpack.c.l.b16 %v6227
    %v7000 = vunpack.c.h.b16 %v6227
    %v7001 = vunpack.c.l.b16 %v6228
    %v7002 = vunpack.c.h.b16 %v6228
    %v7003 = vunpack.c.l.b16 %v6229
    %v7004 = vunpack.c.h.b16 %v6229
    %v7005 = vunpack.c.l.b16 %v6230
    %v7006 = vunpack.c.h.b16 %v6230
    %v7007 = vunpack.c.l.b16 %v6231
    %v7008 = vunpack.c.h.b16 %v6231
    %v7009 = vunpack.c.l.b16 %v6232
    %v7010 = vunpack.c.h.b16 %v6232
    %v7011 = vunpack.c.l.b16 %v6233
    %v7012 = vunpack.c.h.b16 %v6233
    %v7013 = vunpack.c.l.b16 %v6234
    %v7014 = vunpack.c.h.b16 %v6234
    %v7015 = vunpack.c.l.b16 %v6235
    %v7016 = vunpack.c.h.b16 %v6235
    %v7017 = vunpack.c.l.b16 %v6236
    %v7018 = vunpack.c.h.b16 %v6236
    %v7019 = vunpack.c.l.b16 %v6237
    %v7020 = vunpack.c.h.b16 %v6237
    %v7021 = vunpack.c.l.b16 %v6238
    %v7022 = vunpack.c.h.b16 %v6238
    %v7023 = vunpack.c.l.b16 %v6239
    %v7024 = vunpack.c.h.b16 %v6239
    %v7025 = vunpack.c.l.b16 %v6240
    %v7026 = vunpack.c.h.b16 %v6240
    %v7027 = vpack.c.b16 %v6523, %v6515
    %v7028 = vpack.c.b16 %v6524, %v6516
    %v7029 = vpack.c.b16 %v6525, %v6517
    %v7030 = vpack.c.b16 %v6526, %v6518
    %v7031 = vpack.c.b16 %v6527, %v6519
    %v7032 = vpack.c.b16 %v6528, %v6520
    %v7033 = vpack.c.b16 %v6529, %v6521
    %v7034 = vpack.c.b16 %v6530, %v6522
    %v7035 = vpack.c.b16 %v6539, %v6531
    %v7036 = vpack.c.b16 %v6540, %v6532
    %v7037 = vpack.c.b16 %v6541, %v6533
    %v7038 = vpack.c.b16 %v6542, %v6534
    %v7039 = vpack.c.b16 %v6543, %v6535
    %v7040 = vpack.c.b16 %v6544, %v6536
    %v7041 = vpack.c.b16 %v6545, %v6537
    %v7042 = vpack.c.b16 %v6546, %v6538
    %v7043 = vpack.c.b16 %v6555, %v6547
    %v7044 = vpack.c.b16 %v6556, %v6548
    %v7045 = vpack.c.b16 %v6557, %v6549
    %v7046 = vpack.c.b16 %v6558, %v6550
    %v7047 = vpack.c.b16 %v6559, %v6551
    %v7048 = vpack.c.b16 %v6560, %v6552
    %v7049 = vpack.c.b16 %v6561, %v6553
    %v7050 = vpack.c.b16 %v6562, %v6554
    %v7051 = vpack.c.b16 %v6571, %v6563
    %v7052 = vpack.c.b16 %v6572, %v6564
    %v7053 = vpack.c.b16 %v6573, %v6565
    %v7054 = vpack.c.b16 %v6574, %v6566
    %v7055 = vpack.c.b16 %v6575, %v6567
    %v7056 = vpack.c.b16 %v6576, %v6568
    %v7057 = vpack.c.b16 %v6577, %v6569
    %v7058 = vpack.c.b16 %v6578, %v6570
    %v7059 = vpack.c.b16 %v6587, %v6579
    %v7060 = vpack.c.b16 %v6588, %v6580
    %v7061 = vpack.c.b16 %v6589, %v6581
    %v7062 = vpack.c.b16 %v6590, %v6582
    %v7063 = vpack.c.b16 %v6591, %v6583
    %v7064 = vpack.c.b16 %v6592, %v6584
    %v7065 = vpack.c.b16 %v6593, %v6585
    %v7066 = vpack.c.b16 %v6594, %v6586
    %v7067 = vpack.c.b16 %v6603, %v6595
    %v7068 = vpack.c.b16 %v6604, %v6596
    %v7069 = vpack.c.b16 %v6605, %v6597
    %v7070 = vpack.c.b16 %v6606, %v6598
    %v7071 = vpack.c.b16 %v6607, %v6599
    %v7072 = vpack.c.b16 %v6608, %v6600
    %v7073 = vpack.c.b16 %v6609, %v6601
    %v7074 = vpack.c.b16 %v6610, %v6602
    %v7075 = vpack.c.b16 %v6619, %v6611
    %v7076 = vpack.c.b16 %v6620, %v6612
    %v7077 = vpack.c.b16 %v6621, %v6613
    %v7078 = vpack.c.b16 %v6622, %v6614
    %v7079 = vpack.c.b16 %v6623, %v6615
    %v7080 = vpack.c.b16 %v6624, %v6616
    %v7081 = vpack.c.b16 %v6625, %v6617
    %v7082 = vpack.c.b16 %v6626, %v6618
    %v7083 = vpack.c.b16 %v6635, %v6627
    %v7084 = vpack.c.b16 %v6636, %v6628
    %v7085 = vpack.c.b16 %v6637, %v6629
    %v7086 = vpack.c.b16 %v6638, %v6630
    %v7087 = vpack.c.b16 %v6639, %v6631
    %v7088 = vpack.c.b16 %v6640, %v6632
    %v7089 = vpack.c.b16 %v6641, %v6633
    %v7090 = vpack.c.b16 %v6642, %v6634
    %v7091 = vpack.c.b16 %v6651, %v6643
    %v7092 = vpack.c.b16 %v6652, %v6644
    %v7093 = vpack.c.b16 %v6653, %v6645
    %v7094 = vpack.c.b16 %v6654, %v6646
    %v7095 = vpack.c.b16 %v6655, %v6647
    %v7096 = vpack.c.b16 %v6656, %v6648
    %v7097 = vpack.c.b16 %v6657, %v6649
    %v7098 = vpack.c.b16 %v6658, %v6650
    %v7099 = vpack.c.b16 %v6667, %v6659
    %v7100 = vpack.c.b16 %v6668, %v6660
    %v7101 = vpack.c.b16 %v6669, %v6661
    %v7102 = vpack.c.b16 %v6670, %v6662
    %v7103 = vpack.c.b16 %v6671, %v6663
    %v7104 = vpack.c.b16 %v6672, %v6664
    %v7105 = vpack.c.b16 %v6673, %v6665
    %v7106 = vpack.c.b16 %v6674, %v6666
    %v7107 = vpack.c.b16 %v6683, %v6675
    %v7108 = vpack.c.b16 %v6684, %v6676
    %v7109 = vpack.c.b16 %v6685, %v6677
    %v7110 = vpack.c.b16 %v6686, %v6678
    %v7111 = vpack.c.b16 %v6687, %v6679
    %v7112 = vpack.c.b16 %v6688, %v6680
    %v7113 = vpack.c.b16 %v6689, %v6681
    %v7114 = vpack.c.b16 %v6690, %v6682
    %v7115 = vpack.c.b16 %v6699, %v6691
    %v7116 = vpack.c.b16 %v6700, %v6692
    %v7117 = vpack.c.b16 %v6701, %v6693
    %v7118 = vpack.c.b16 %v6702, %v6694
    %v7119 = vpack.c.b16 %v6703, %v6695
    %v7120 = vpack.c.b16 %v6704, %v6696
    %v7121 = vpack.c.b16 %v6705, %v6697
    %v7122 = vpack.c.b16 %v6706, %v6698
    %v7123 = vpack.c.b16 %v6715, %v6707
    %v7124 = vpack.c.b16 %v6716, %v6708
    %v7125 = vpack.c.b16 %v6717, %v6709
    %v7126 = vpack.c.b16 %v6718, %v6710
    %v7127 = vpack.c.b16 %v6719, %v6711
    %v7128 = vpack.c.b16 %v6720, %v6712
    %v7129 = vpack.c.b16 %v6721, %v6713
    %v7130 = vpack.c.b16 %v6722, %v6714
    %v7131 = vpack.c.b16 %v6731, %v6723
    %v7132 = vpack.c.b16 %v6732, %v6724
    %v7133 = vpack.c.b16 %v6733, %v6725
    %v7134 = vpack.c.b16 %v6734, %v6726
    %v7135 = vpack.c.b16 %v6735, %v6727
    %v7136 = vpack.c.b16 %v6736, %v6728
    %v7137 = vpack.c.b16 %v6737, %v6729
    %v7138 = vpack.c.b16 %v6738, %v6730
    %v7139 = vpack.c.b16 %v6747, %v6739
    %v7140 = vpack.c.b16 %v6748, %v6740
    %v7141 = vpack.c.b16 %v6749, %v6741
    %v7142 = vpack.c.b16 %v6750, %v6742
    %v7143 = vpack.c.b16 %v6751, %v6743
    %v7144 = vpack.c.b16 %v6752, %v6744
    %v7145 = vpack.c.b16 %v6753, %v6745
    %v7146 = vpack.c.b16 %v6754, %v6746
    %v7147 = vpack.c.b16 %v6763, %v6755
    %v7148 = vpack.c.b16 %v6764, %v6756
    %v7149 = vpack.c.b16 %v6765, %v6757
    %v7150 = vpack.c.b16 %v6766, %v6758
    %v7151 = vpack.c.b16 %v6767, %v6759
    %v7152 = vpack.c.b16 %v6768, %v6760
    %v7153 = vpack.c.b16 %v6769, %v6761
    %v7154 = vpack.c.b16 %v6770, %v6762
    %v7155 = vpack.c.b16 %v6779, %v6771
    %v7156 = vpack.c.b16 %v6780, %v6772
    %v7157 = vpack.c.b16 %v6781, %v6773
    %v7158 = vpack.c.b16 %v6782, %v6774
    %v7159 = vpack.c.b16 %v6783, %v6775
    %v7160 = vpack.c.b16 %v6784, %v6776
    %v7161 = vpack.c.b16 %v6785, %v6777
    %v7162 = vpack.c.b16 %v6786, %v6778
    %v7163 = vpack.c.b16 %v6795, %v6787
    %v7164 = vpack.c.b16 %v6796, %v6788
    %v7165 = vpack.c.b16 %v6797, %v6789
    %v7166 = vpack.c.b16 %v6798, %v6790
    %v7167 = vpack.c.b16 %v6799, %v6791
    %v7168 = vpack.c.b16 %v6800, %v6792
    %v7169 = vpack.c.b16 %v6801, %v6793
    %v7170 = vpack.c.b16 %v6802, %v6794
    %v7171 = vpack.c.b16 %v6811, %v6803
    %v7172 = vpack.c.b16 %v6812, %v6804
    %v7173 = vpack.c.b16 %v6813, %v6805
    %v7174 = vpack.c.b16 %v6814, %v6806
    %v7175 = vpack.c.b16 %v6815, %v6807
    %v7176 = vpack.c.b16 %v6816, %v6808
    %v7177 = vpack.c.b16 %v6817, %v6809
    %v7178 = vpack.c.b16 %v6818, %v6810
    %v7179 = vpack.c.b16 %v6827, %v6819
    %v7180 = vpack.c.b16 %v6828, %v6820
    %v7181 = vpack.c.b16 %v6829, %v6821
    %v7182 = vpack.c.b16 %v6830, %v6822
    %v7183 = vpack.c.b16 %v6831, %v6823
    %v7184 = vpack.c.b16 %v6832, %v6824
    %v7185 = vpack.c.b16 %v6833, %v6825
    %v7186 = vpack.c.b16 %v6834, %v6826
    %v7187 = vpack.c.b16 %v6843, %v6835
    %v7188 = vpack.c.b16 %v6844, %v6836
    %v7189 = vpack.c.b16 %v6845, %v6837
    %v7190 = vpack.c.b16 %v6846, %v6838
    %v7191 = vpack.c.b16 %v6847, %v6839
    %v7192 = vpack.c.b16 %v6848, %v6840
    %v7193 = vpack.c.b16 %v6849, %v6841
    %v7194 = vpack.c.b16 %v6850, %v6842
    %v7195 = vpack.c.b16 %v6859, %v6851
    %v7196 = vpack.c.b16 %v6860, %v6852
    %v7197 = vpack.c.b16 %v6861, %v6853
    %v7198 = vpack.c.b16 %v6862, %v6854
    %v7199 = vpack.c.b16 %v6863, %v6855
    %v7200 = vpack.c.b16 %v6864, %v6856
    %v7201 = vpack.c.b16 %v6865, %v6857
    %v7202 = vpack.c.b16 %v6866, %v6858
    %v7203 = vpack.c.b16 %v6875, %v6867
    %v7204 = vpack.c.b16 %v6876, %v6868
    %v7205 = vpack.c.b16 %v6877, %v6869
    %v7206 = vpack.c.b16 %v6878, %v6870
    %v7207 = vpack.c.b16 %v6879, %v6871
    %v7208 = vpack.c.b16 %v6880, %v6872
    %v7209 = vpack.c.b16 %v6881, %v6873
    %v7210 = vpack.c.b16 %v6882, %v6874
    %v7211 = vpack.c.b16 %v6891, %v6883
    %v7212 = vpack.c.b16 %v6892, %v6884
    %v7213 = vpack.c.b16 %v6893, %v6885
    %v7214 = vpack.c.b16 %v6894, %v6886
    %v7215 = vpack.c.b16 %v6895, %v6887
    %v7216 = vpack.c.b16 %v6896, %v6888
    %v7217 = vpack.c.b16 %v6897, %v6889
    %v7218 = vpack.c.b16 %v6898, %v6890
    %v7219 = vpack.c.b16 %v6907, %v6899
    %v7220 = vpack.c.b16 %v6908, %v6900
    %v7221 = vpack.c.b16 %v6909, %v6901
    %v7222 = vpack.c.b16 %v6910, %v6902
    %v7223 = vpack.c.b16 %v6911, %v6903
    %v7224 = vpack.c.b16 %v6912, %v6904
    %v7225 = vpack.c.b16 %v6913, %v6905
    %v7226 = vpack.c.b16 %v6914, %v6906
    %v7227 = vpack.c.b16 %v6923, %v6915
    %v7228 = vpack.c.b16 %v6924, %v6916
    %v7229 = vpack.c.b16 %v6925, %v6917
    %v7230 = vpack.c.b16 %v6926, %v6918
    %v7231 = vpack.c.b16 %v6927, %v6919
    %v7232 = vpack.c.b16 %v6928, %v6920
    %v7233 = vpack.c.b16 %v6929, %v6921
    %v7234 = vpack.c.b16 %v6930, %v6922
    %v7235 = vpack.c.b16 %v6939, %v6931
    %v7236 = vpack.c.b16 %v6940, %v6932
    %v7237 = vpack.c.b16 %v6941, %v6933
    %v7238 = vpack.c.b16 %v6942, %v6934
    %v7239 = vpack.c.b16 %v6943, %v6935
    %v7240 = vpack.c.b16 %v6944, %v6936
    %v7241 = vpack.c.b16 %v6945, %v6937
    %v7242 = vpack.c.b16 %v6946, %v6938
    %v7243 = vpack.c.b16 %v6955, %v6947
    %v7244 = vpack.c.b16 %v6956, %v6948
    %v7245 = vpack.c.b16 %v6957, %v6949
    %v7246 = vpack.c.b16 %v6958, %v6950
    %v7247 = vpack.c.b16 %v6959, %v6951
    %v7248 = vpack.c.b16 %v6960, %v6952
    %v7249 = vpack.c.b16 %v6961, %v6953
    %v7250 = vpack.c.b16 %v6962, %v6954
    %v7251 = vpack.c.b16 %v6971, %v6963
    %v7252 = vpack.c.b16 %v6972, %v6964
    %v7253 = vpack.c.b16 %v6973, %v6965
    %v7254 = vpack.c.b16 %v6974, %v6966
    %v7255 = vpack.c.b16 %v6975, %v6967
    %v7256 = vpack.c.b16 %v6976, %v6968
    %v7257 = vpack.c.b16 %v6977, %v6969
    %v7258 = vpack.c.b16 %v6978, %v6970
    %v7259 = vpack.c.b16 %v6987, %v6979
    %v7260 = vpack.c.b16 %v6988, %v6980
    %v7261 = vpack.c.b16 %v6989, %v6981
    %v7262 = vpack.c.b16 %v6990, %v6982
    %v7263 = vpack.c.b16 %v6991, %v6983
    %v7264 = vpack.c.b16 %v6992, %v6984
    %v7265 = vpack.c.b16 %v6993, %v6985
    %v7266 = vpack.c.b16 %v6994, %v6986
    %v7267 = vpack.c.b16 %v7003, %v6995
    %v7268 = vpack.c.b16 %v7004, %v6996
    %v7269 = vpack.c.b16 %v7005, %v6997
    %v7270 = vpack.c.b16 %v7006, %v6998
    %v7271 = vpack.c.b16 %v7007, %v6999
    %v7272 = vpack.c.b16 %v7008, %v7000
    %v7273 = vpack.c.b16 %v7009, %v7001
    %v7274 = vpack.c.b16 %v7010, %v7002
    %v7275 = vpack.c.b16 %v7019, %v7011
    %v7276 = vpack.c.b16 %v7020, %v7012
    %v7277 = vpack.c.b16 %v7021, %v7013
    %v7278 = vpack.c.b16 %v7022, %v7014
    %v7279 = vpack.c.b16 %v7023, %v7015
    %v7280 = vpack.c.b16 %v7024, %v7016
    %v7281 = vpack.c.b16 %v7025, %v7017
    %v7282 = vpack.c.b16 %v7026, %v7018
    %7539 = vmatpush.bf16.msra.mxu0 %v7083
    %7540 = vmatpush.bf16.msra.mxu0 %v7075
    %7541 = vmatpush.bf16.msra.mxu0 %v7067
    %7542 = vmatpush.bf16.msra.mxu0 %v7059
    %7543 = vmatpush.bf16.msra.mxu0 %v7051
    %7544 = vmatpush.bf16.msra.mxu0 %v7043
    %7545 = vmatpush.bf16.msra.mxu0 %v7035
    %7546 = vmatpush.bf16.msra.mxu0 %v7027
    %7547 = vmatmul.bf16.gmra.mxu0 %v5981
    %v7548 = vpop.f32.mrf.mxu0
    %v7549 = vadd.f32 %v6243, %v7548
    %v7550 = vpop.f32.mrf.mxu0
    %7551 = vdwg.mxu0
    %7552 = vmatpush.bf16.msra.mxu0 %v7147
    %7553 = vmatpush.bf16.msra.mxu0 %v7139
    %7554 = vmatpush.bf16.msra.mxu0 %v7131
    %7555 = vmatpush.bf16.msra.mxu0 %v7123
    %7556 = vmatpush.bf16.msra.mxu0 %v7115
    %7557 = vmatpush.bf16.msra.mxu0 %v7107
    %7558 = vmatpush.bf16.msra.mxu0 %v7099
    %7559 = vmatpush.bf16.msra.mxu0 %v7091
    %7560 = vmatmul.bf16.gmra.mxu0 %v5982
    %v7561 = vpop.f32.mrf.mxu0
    %v7562 = vadd.f32 %v7549, %v7561
    %v7563 = vpop.f32.mrf.mxu0
    %7564 = vdwg.mxu0
    %7565 = vmatpush.bf16.msra.mxu0 %v7211
    %7566 = vmatpush.bf16.msra.mxu0 %v7203
    %7567 = vmatpush.bf16.msra.mxu0 %v7195
    %7568 = vmatpush.bf16.msra.mxu0 %v7187
    %7569 = vmatpush.bf16.msra.mxu0 %v7179
    %7570 = vmatpush.bf16.msra.mxu0 %v7171
    %7571 = vmatpush.bf16.msra.mxu0 %v7163
    %7572 = vmatpush.bf16.msra.mxu0 %v7155
    %7573 = vmatmul.bf16.gmra.mxu0 %v5983
    %v7574 = vpop.f32.mrf.mxu0
    %v7575 = vadd.f32 %v7562, %v7574
    %v7576 = vpop.f32.mrf.mxu0
    %7577 = vdwg.mxu0
    %7578 = vmatpush.bf16.msra.mxu0 %v7275
    %7579 = vmatpush.bf16.msra.mxu0 %v7267
    %7580 = vmatpush.bf16.msra.mxu0 %v7259
    %7581 = vmatpush.bf16.msra.mxu0 %v7251
    %7582 = vmatpush.bf16.msra.mxu0 %v7243
    %7583 = vmatpush.bf16.msra.mxu0 %v7235
    %7584 = vmatpush.bf16.msra.mxu0 %v7227
    %7585 = vmatpush.bf16.msra.mxu0 %v7219
    %7586 = vmatmul.bf16.gmra.mxu0 %v5984
    %v7587 = vpop.f32.mrf.mxu0
    %v7588 = vadd.f32 %v7575, %v7587
    %v7589 = vpop.f32.mrf.mxu0
    %7590 = vdwg.mxu0
    %7591 = vmatpush.bf16.msra.mxu0 %v7084
    %7592 = vmatpush.bf16.msra.mxu0 %v7076
    %7593 = vmatpush.bf16.msra.mxu0 %v7068
    %7594 = vmatpush.bf16.msra.mxu0 %v7060
    %7595 = vmatpush.bf16.msra.mxu0 %v7052
    %7596 = vmatpush.bf16.msra.mxu0 %v7044
    %7597 = vmatpush.bf16.msra.mxu0 %v7036
    %7598 = vmatpush.bf16.msra.mxu0 %v7028
    %7599 = vmatmul.bf16.gmra.mxu0 %v5981
    %v7600 = vpop.f32.mrf.mxu0
    %v7601 = vadd.f32 %v6244, %v7600
    %v7602 = vpop.f32.mrf.mxu0
    %7603 = vdwg.mxu0
    %7604 = vmatpush.bf16.msra.mxu0 %v7148
    %7605 = vmatpush.bf16.msra.mxu0 %v7140
    %7606 = vmatpush.bf16.msra.mxu0 %v7132
    %7607 = vmatpush.bf16.msra.mxu0 %v7124
    %7608 = vmatpush.bf16.msra.mxu0 %v7116
    %7609 = vmatpush.bf16.msra.mxu0 %v7108
    %7610 = vmatpush.bf16.msra.mxu0 %v7100
    %7611 = vmatpush.bf16.msra.mxu0 %v7092
    %7612 = vmatmul.bf16.gmra.mxu0 %v5982
    %v7613 = vpop.f32.mrf.mxu0
    %v7614 = vadd.f32 %v7601, %v7613
    %v7615 = vpop.f32.mrf.mxu0
    %7616 = vdwg.mxu0
    %7617 = vmatpush.bf16.msra.mxu0 %v7212
    %7618 = vmatpush.bf16.msra.mxu0 %v7204
    %7619 = vmatpush.bf16.msra.mxu0 %v7196
    %7620 = vmatpush.bf16.msra.mxu0 %v7188
    %7621 = vmatpush.bf16.msra.mxu0 %v7180
    %7622 = vmatpush.bf16.msra.mxu0 %v7172
    %7623 = vmatpush.bf16.msra.mxu0 %v7164
    %7624 = vmatpush.bf16.msra.mxu0 %v7156
    %7625 = vmatmul.bf16.gmra.mxu0 %v5983
    %v7626 = vpop.f32.mrf.mxu0
    %v7627 = vadd.f32 %v7614, %v7626
    %v7628 = vpop.f32.mrf.mxu0
    %7629 = vdwg.mxu0
    %7630 = vmatpush.bf16.msra.mxu0 %v7276
    %7631 = vmatpush.bf16.msra.mxu0 %v7268
    %7632 = vmatpush.bf16.msra.mxu0 %v7260
    %7633 = vmatpush.bf16.msra.mxu0 %v7252
    %7634 = vmatpush.bf16.msra.mxu0 %v7244
    %7635 = vmatpush.bf16.msra.mxu0 %v7236
    %7636 = vmatpush.bf16.msra.mxu0 %v7228
    %7637 = vmatpush.bf16.msra.mxu0 %v7220
    %7638 = vmatmul.bf16.gmra.mxu0 %v5984
    %v7639 = vpop.f32.mrf.mxu0
    %v7640 = vadd.f32 %v7627, %v7639
    %v7641 = vpop.f32.mrf.mxu0
    %7642 = vdwg.mxu0
    %7643 = vmatpush.bf16.msra.mxu0 %v7085
    %7644 = vmatpush.bf16.msra.mxu0 %v7077
    %7645 = vmatpush.bf16.msra.mxu0 %v7069
    %7646 = vmatpush.bf16.msra.mxu0 %v7061
    %7647 = vmatpush.bf16.msra.mxu0 %v7053
    %7648 = vmatpush.bf16.msra.mxu0 %v7045
    %7649 = vmatpush.bf16.msra.mxu0 %v7037
    %7650 = vmatpush.bf16.msra.mxu0 %v7029
    %7651 = vmatmul.bf16.gmra.mxu0 %v5981
    %v7652 = vpop.f32.mrf.mxu0
    %v7653 = vadd.f32 %v6245, %v7652
    %v7654 = vpop.f32.mrf.mxu0
    %7655 = vdwg.mxu0
    %7656 = vmatpush.bf16.msra.mxu0 %v7149
    %7657 = vmatpush.bf16.msra.mxu0 %v7141
    %7658 = vmatpush.bf16.msra.mxu0 %v7133
    %7659 = vmatpush.bf16.msra.mxu0 %v7125
    %7660 = vmatpush.bf16.msra.mxu0 %v7117
    %7661 = vmatpush.bf16.msra.mxu0 %v7109
    %7662 = vmatpush.bf16.msra.mxu0 %v7101
    %7663 = vmatpush.bf16.msra.mxu0 %v7093
    %7664 = vmatmul.bf16.gmra.mxu0 %v5982
    %v7665 = vpop.f32.mrf.mxu0
    %v7666 = vadd.f32 %v7653, %v7665
    %v7667 = vpop.f32.mrf.mxu0
    %7668 = vdwg.mxu0
    %7669 = vmatpush.bf16.msra.mxu0 %v7213
    %7670 = vmatpush.bf16.msra.mxu0 %v7205
    %7671 = vmatpush.bf16.msra.mxu0 %v7197
    %7672 = vmatpush.bf16.msra.mxu0 %v7189
    %7673 = vmatpush.bf16.msra.mxu0 %v7181
    %7674 = vmatpush.bf16.msra.mxu0 %v7173
    %7675 = vmatpush.bf16.msra.mxu0 %v7165
    %7676 = vmatpush.bf16.msra.mxu0 %v7157
    %7677 = vmatmul.bf16.gmra.mxu0 %v5983
    %v7678 = vpop.f32.mrf.mxu0
    %v7679 = vadd.f32 %v7666, %v7678
    %v7680 = vpop.f32.mrf.mxu0
    %7681 = vdwg.mxu0
    %7682 = vmatpush.bf16.msra.mxu0 %v7277
    %7683 = vmatpush.bf16.msra.mxu0 %v7269
    %7684 = vmatpush.bf16.msra.mxu0 %v7261
    %7685 = vmatpush.bf16.msra.mxu0 %v7253
    %7686 = vmatpush.bf16.msra.mxu0 %v7245
    %7687 = vmatpush.bf16.msra.mxu0 %v7237
    %7688 = vmatpush.bf16.msra.mxu0 %v7229
    %7689 = vmatpush.bf16.msra.mxu0 %v7221
    %7690 = vmatmul.bf16.gmra.mxu0 %v5984
    %v7691 = vpop.f32.mrf.mxu0
    %v7692 = vadd.f32 %v7679, %v7691
    %v7693 = vpop.f32.mrf.mxu0
    %7694 = vdwg.mxu0
    %7695 = vmatpush.bf16.msra.mxu0 %v7086
    %7696 = vmatpush.bf16.msra.mxu0 %v7078
    %7697 = vmatpush.bf16.msra.mxu0 %v7070
    %7698 = vmatpush.bf16.msra.mxu0 %v7062
    %7699 = vmatpush.bf16.msra.mxu0 %v7054
    %7700 = vmatpush.bf16.msra.mxu0 %v7046
    %7701 = vmatpush.bf16.msra.mxu0 %v7038
    %7702 = vmatpush.bf16.msra.mxu0 %v7030
    %7703 = vmatmul.bf16.gmra.mxu0 %v5981
    %v7704 = vpop.f32.mrf.mxu0
    %v7705 = vadd.f32 %v6246, %v7704
    %v7706 = vpop.f32.mrf.mxu0
    %7707 = vdwg.mxu0
    %7708 = vmatpush.bf16.msra.mxu0 %v7150
    %7709 = vmatpush.bf16.msra.mxu0 %v7142
    %7710 = vmatpush.bf16.msra.mxu0 %v7134
    %7711 = vmatpush.bf16.msra.mxu0 %v7126
    %7712 = vmatpush.bf16.msra.mxu0 %v7118
    %7713 = vmatpush.bf16.msra.mxu0 %v7110
    %7714 = vmatpush.bf16.msra.mxu0 %v7102
    %7715 = vmatpush.bf16.msra.mxu0 %v7094
    %7716 = vmatmul.bf16.gmra.mxu0 %v5982
    %v7717 = vpop.f32.mrf.mxu0
    %v7718 = vadd.f32 %v7705, %v7717
    %v7719 = vpop.f32.mrf.mxu0
    %7720 = vdwg.mxu0
    %7721 = vmatpush.bf16.msra.mxu0 %v7214
    %7722 = vmatpush.bf16.msra.mxu0 %v7206
    %7723 = vmatpush.bf16.msra.mxu0 %v7198
    %7724 = vmatpush.bf16.msra.mxu0 %v7190
    %7725 = vmatpush.bf16.msra.mxu0 %v7182
    %7726 = vmatpush.bf16.msra.mxu0 %v7174
    %7727 = vmatpush.bf16.msra.mxu0 %v7166
    %7728 = vmatpush.bf16.msra.mxu0 %v7158
    %7729 = vmatmul.bf16.gmra.mxu0 %v5983
    %v7730 = vpop.f32.mrf.mxu0
    %v7731 = vadd.f32 %v7718, %v7730
    %v7732 = vpop.f32.mrf.mxu0
    %7733 = vdwg.mxu0
    %7734 = vmatpush.bf16.msra.mxu0 %v7278
    %7735 = vmatpush.bf16.msra.mxu0 %v7270
    %7736 = vmatpush.bf16.msra.mxu0 %v7262
    %7737 = vmatpush.bf16.msra.mxu0 %v7254
    %7738 = vmatpush.bf16.msra.mxu0 %v7246
    %7739 = vmatpush.bf16.msra.mxu0 %v7238
    %7740 = vmatpush.bf16.msra.mxu0 %v7230
    %7741 = vmatpush.bf16.msra.mxu0 %v7222
    %7742 = vmatmul.bf16.gmra.mxu0 %v5984
    %v7743 = vpop.f32.mrf.mxu0
    %v7744 = vadd.f32 %v7731, %v7743
    %v7745 = vpop.f32.mrf.mxu0
    %7746 = vdwg.mxu0
    %7747 = vmatpush.bf16.msra.mxu0 %v7087
    %7748 = vmatpush.bf16.msra.mxu0 %v7079
    %7749 = vmatpush.bf16.msra.mxu0 %v7071
    %7750 = vmatpush.bf16.msra.mxu0 %v7063
    %7751 = vmatpush.bf16.msra.mxu0 %v7055
    %7752 = vmatpush.bf16.msra.mxu0 %v7047
    %7753 = vmatpush.bf16.msra.mxu0 %v7039
    %7754 = vmatpush.bf16.msra.mxu0 %v7031
    %7755 = vmatmul.bf16.gmra.mxu0 %v5981
    %v7756 = vpop.f32.mrf.mxu0
    %v7757 = vadd.f32 %v6247, %v7756
    %v7758 = vpop.f32.mrf.mxu0
    %7759 = vdwg.mxu0
    %7760 = vmatpush.bf16.msra.mxu0 %v7151
    %7761 = vmatpush.bf16.msra.mxu0 %v7143
    %7762 = vmatpush.bf16.msra.mxu0 %v7135
    %7763 = vmatpush.bf16.msra.mxu0 %v7127
    %7764 = vmatpush.bf16.msra.mxu0 %v7119
    %7765 = vmatpush.bf16.msra.mxu0 %v7111
    %7766 = vmatpush.bf16.msra.mxu0 %v7103
    %7767 = vmatpush.bf16.msra.mxu0 %v7095
    %7768 = vmatmul.bf16.gmra.mxu0 %v5982
    %v7769 = vpop.f32.mrf.mxu0
    %v7770 = vadd.f32 %v7757, %v7769
    %v7771 = vpop.f32.mrf.mxu0
    %7772 = vdwg.mxu0
    %7773 = vmatpush.bf16.msra.mxu0 %v7215
    %7774 = vmatpush.bf16.msra.mxu0 %v7207
    %7775 = vmatpush.bf16.msra.mxu0 %v7199
    %7776 = vmatpush.bf16.msra.mxu0 %v7191
    %7777 = vmatpush.bf16.msra.mxu0 %v7183
    %7778 = vmatpush.bf16.msra.mxu0 %v7175
    %7779 = vmatpush.bf16.msra.mxu0 %v7167
    %7780 = vmatpush.bf16.msra.mxu0 %v7159
    %7781 = vmatmul.bf16.gmra.mxu0 %v5983
    %v7782 = vpop.f32.mrf.mxu0
    %v7783 = vadd.f32 %v7770, %v7782
    %v7784 = vpop.f32.mrf.mxu0
    %7785 = vdwg.mxu0
    %7786 = vmatpush.bf16.msra.mxu0 %v7279
    %7787 = vmatpush.bf16.msra.mxu0 %v7271
    %7788 = vmatpush.bf16.msra.mxu0 %v7263
    %7789 = vmatpush.bf16.msra.mxu0 %v7255
    %7790 = vmatpush.bf16.msra.mxu0 %v7247
    %7791 = vmatpush.bf16.msra.mxu0 %v7239
    %7792 = vmatpush.bf16.msra.mxu0 %v7231
    %7793 = vmatpush.bf16.msra.mxu0 %v7223
    %7794 = vmatmul.bf16.gmra.mxu0 %v5984
    %v7795 = vpop.f32.mrf.mxu0
    %v7796 = vadd.f32 %v7783, %v7795
    %v7797 = vpop.f32.mrf.mxu0
    %7798 = vdwg.mxu0
    %7799 = vmatpush.bf16.msra.mxu0 %v7088
    %7800 = vmatpush.bf16.msra.mxu0 %v7080
    %7801 = vmatpush.bf16.msra.mxu0 %v7072
    %7802 = vmatpush.bf16.msra.mxu0 %v7064
    %7803 = vmatpush.bf16.msra.mxu0 %v7056
    %7804 = vmatpush.bf16.msra.mxu0 %v7048
    %7805 = vmatpush.bf16.msra.mxu0 %v7040
    %7806 = vmatpush.bf16.msra.mxu0 %v7032
    %7807 = vmatmul.bf16.gmra.mxu0 %v5981
    %v7808 = vpop.f32.mrf.mxu0
    %v7809 = vadd.f32 %v6248, %v7808
    %v7810 = vpop.f32.mrf.mxu0
    %7811 = vdwg.mxu0
    %7812 = vmatpush.bf16.msra.mxu0 %v7152
    %7813 = vmatpush.bf16.msra.mxu0 %v7144
    %7814 = vmatpush.bf16.msra.mxu0 %v7136
    %7815 = vmatpush.bf16.msra.mxu0 %v7128
    %7816 = vmatpush.bf16.msra.mxu0 %v7120
    %7817 = vmatpush.bf16.msra.mxu0 %v7112
    %7818 = vmatpush.bf16.msra.mxu0 %v7104
    %7819 = vmatpush.bf16.msra.mxu0 %v7096
    %7820 = vmatmul.bf16.gmra.mxu0 %v5982
    %v7821 = vpop.f32.mrf.mxu0
    %v7822 = vadd.f32 %v7809, %v7821
    %v7823 = vpop.f32.mrf.mxu0
    %7824 = vdwg.mxu0
    %7825 = vmatpush.bf16.msra.mxu0 %v7216
    %7826 = vmatpush.bf16.msra.mxu0 %v7208
    %7827 = vmatpush.bf16.msra.mxu0 %v7200
    %7828 = vmatpush.bf16.msra.mxu0 %v7192
    %7829 = vmatpush.bf16.msra.mxu0 %v7184
    %7830 = vmatpush.bf16.msra.mxu0 %v7176
    %7831 = vmatpush.bf16.msra.mxu0 %v7168
    %7832 = vmatpush.bf16.msra.mxu0 %v7160
    %7833 = vmatmul.bf16.gmra.mxu0 %v5983
    %v7834 = vpop.f32.mrf.mxu0
    %v7835 = vadd.f32 %v7822, %v7834
    %v7836 = vpop.f32.mrf.mxu0
    %7837 = vdwg.mxu0
    %7838 = vmatpush.bf16.msra.mxu0 %v7280
    %7839 = vmatpush.bf16.msra.mxu0 %v7272
    %7840 = vmatpush.bf16.msra.mxu0 %v7264
    %7841 = vmatpush.bf16.msra.mxu0 %v7256
    %7842 = vmatpush.bf16.msra.mxu0 %v7248
    %7843 = vmatpush.bf16.msra.mxu0 %v7240
    %7844 = vmatpush.bf16.msra.mxu0 %v7232
    %7845 = vmatpush.bf16.msra.mxu0 %v7224
    %7846 = vmatmul.bf16.gmra.mxu0 %v5984
    %v7847 = vpop.f32.mrf.mxu0
    %v7848 = vadd.f32 %v7835, %v7847
    %v7849 = vpop.f32.mrf.mxu0
    %7850 = vdwg.mxu0
    %7851 = vmatpush.bf16.msra.mxu0 %v7089
    %7852 = vmatpush.bf16.msra.mxu0 %v7081
    %7853 = vmatpush.bf16.msra.mxu0 %v7073
    %7854 = vmatpush.bf16.msra.mxu0 %v7065
    %7855 = vmatpush.bf16.msra.mxu0 %v7057
    %7856 = vmatpush.bf16.msra.mxu0 %v7049
    %7857 = vmatpush.bf16.msra.mxu0 %v7041
    %7858 = vmatpush.bf16.msra.mxu0 %v7033
    %7859 = vmatmul.bf16.gmra.mxu0 %v5981
    %v7860 = vpop.f32.mrf.mxu0
    %v7861 = vadd.f32 %v6249, %v7860
    %v7862 = vpop.f32.mrf.mxu0
    %7863 = vdwg.mxu0
    %7864 = vmatpush.bf16.msra.mxu0 %v7153
    %7865 = vmatpush.bf16.msra.mxu0 %v7145
    %7866 = vmatpush.bf16.msra.mxu0 %v7137
    %7867 = vmatpush.bf16.msra.mxu0 %v7129
    %7868 = vmatpush.bf16.msra.mxu0 %v7121
    %7869 = vmatpush.bf16.msra.mxu0 %v7113
    %7870 = vmatpush.bf16.msra.mxu0 %v7105
    %7871 = vmatpush.bf16.msra.mxu0 %v7097
    %7872 = vmatmul.bf16.gmra.mxu0 %v5982
    %v7873 = vpop.f32.mrf.mxu0
    %v7874 = vadd.f32 %v7861, %v7873
    %v7875 = vpop.f32.mrf.mxu0
    %7876 = vdwg.mxu0
    %7877 = vmatpush.bf16.msra.mxu0 %v7217
    %7878 = vmatpush.bf16.msra.mxu0 %v7209
    %7879 = vmatpush.bf16.msra.mxu0 %v7201
    %7880 = vmatpush.bf16.msra.mxu0 %v7193
    %7881 = vmatpush.bf16.msra.mxu0 %v7185
    %7882 = vmatpush.bf16.msra.mxu0 %v7177
    %7883 = vmatpush.bf16.msra.mxu0 %v7169
    %7884 = vmatpush.bf16.msra.mxu0 %v7161
    %7885 = vmatmul.bf16.gmra.mxu0 %v5983
    %v7886 = vpop.f32.mrf.mxu0
    %v7887 = vadd.f32 %v7874, %v7886
    %v7888 = vpop.f32.mrf.mxu0
    %7889 = vdwg.mxu0
    %7890 = vmatpush.bf16.msra.mxu0 %v7281
    %7891 = vmatpush.bf16.msra.mxu0 %v7273
    %7892 = vmatpush.bf16.msra.mxu0 %v7265
    %7893 = vmatpush.bf16.msra.mxu0 %v7257
    %7894 = vmatpush.bf16.msra.mxu0 %v7249
    %7895 = vmatpush.bf16.msra.mxu0 %v7241
    %7896 = vmatpush.bf16.msra.mxu0 %v7233
    %7897 = vmatpush.bf16.msra.mxu0 %v7225
    %7898 = vmatmul.bf16.gmra.mxu0 %v5984
    %v7899 = vpop.f32.mrf.mxu0
    %v7900 = vadd.f32 %v7887, %v7899
    %v7901 = vpop.f32.mrf.mxu0
    %7902 = vdwg.mxu0
    %7903 = vmatpush.bf16.msra.mxu0 %v7090
    %7904 = vmatpush.bf16.msra.mxu0 %v7082
    %7905 = vmatpush.bf16.msra.mxu0 %v7074
    %7906 = vmatpush.bf16.msra.mxu0 %v7066
    %7907 = vmatpush.bf16.msra.mxu0 %v7058
    %7908 = vmatpush.bf16.msra.mxu0 %v7050
    %7909 = vmatpush.bf16.msra.mxu0 %v7042
    %7910 = vmatpush.bf16.msra.mxu0 %v7034
    %7911 = vmatmul.bf16.gmra.mxu0 %v5981
    %v7912 = vpop.f32.mrf.mxu0
    %v7913 = vadd.f32 %v6250, %v7912
    %v7914 = vpop.f32.mrf.mxu0
    %7915 = vdwg.mxu0
    %7916 = vmatpush.bf16.msra.mxu0 %v7154
    %7917 = vmatpush.bf16.msra.mxu0 %v7146
    %7918 = vmatpush.bf16.msra.mxu0 %v7138
    %7919 = vmatpush.bf16.msra.mxu0 %v7130
    %7920 = vmatpush.bf16.msra.mxu0 %v7122
    %7921 = vmatpush.bf16.msra.mxu0 %v7114
    %7922 = vmatpush.bf16.msra.mxu0 %v7106
    %7923 = vmatpush.bf16.msra.mxu0 %v7098
    %7924 = vmatmul.bf16.gmra.mxu0 %v5982
    %v7925 = vpop.f32.mrf.mxu0
    %v7926 = vadd.f32 %v7913, %v7925
    %v7927 = vpop.f32.mrf.mxu0
    %7928 = vdwg.mxu0
    %7929 = vmatpush.bf16.msra.mxu0 %v7218
    %7930 = vmatpush.bf16.msra.mxu0 %v7210
    %7931 = vmatpush.bf16.msra.mxu0 %v7202
    %7932 = vmatpush.bf16.msra.mxu0 %v7194
    %7933 = vmatpush.bf16.msra.mxu0 %v7186
    %7934 = vmatpush.bf16.msra.mxu0 %v7178
    %7935 = vmatpush.bf16.msra.mxu0 %v7170
    %7936 = vmatpush.bf16.msra.mxu0 %v7162
    %7937 = vmatmul.bf16.gmra.mxu0 %v5983
    %v7938 = vpop.f32.mrf.mxu0
    %v7939 = vadd.f32 %v7926, %v7938
    %v7940 = vpop.f32.mrf.mxu0
    %7941 = vdwg.mxu0
    %7942 = vmatpush.bf16.msra.mxu0 %v7282
    %7943 = vmatpush.bf16.msra.mxu0 %v7274
    %7944 = vmatpush.bf16.msra.mxu0 %v7266
    %7945 = vmatpush.bf16.msra.mxu0 %v7258
    %7946 = vmatpush.bf16.msra.mxu0 %v7250
    %7947 = vmatpush.bf16.msra.mxu0 %v7242
    %7948 = vmatpush.bf16.msra.mxu0 %v7234
    %7949 = vmatpush.bf16.msra.mxu0 %v7226
    %7950 = vmatmul.bf16.gmra.mxu0 %v5984
    %v7951 = vpop.f32.mrf.mxu0
    %v7952 = vadd.f32 %v7939, %v7951
    %v7953 = vpop.f32.mrf.mxu0
    %7954 = vdwg.mxu0
    %v7955 = vmax.f32 %v7588, 0.0
    %v7956 = vmax.f32 %v7640, 0.0
    %v7957 = vmax.f32 %v7692, 0.0
    %v7958 = vmax.f32 %v7744, 0.0
    %v7959 = vmax.f32 %v7796, 0.0
    %v7960 = vmax.f32 %v7848, 0.0
    %v7961 = vmax.f32 %v7900, 0.0
    %v7962 = vmax.f32 %v7952, 0.0
    %v7963 = vpack.c.bf16 %v7955, %v7955
    %v7964 = vpack.c.bf16 %v7956, %v7956
    %v7965 = vpack.c.bf16 %v7957, %v7957
    %v7966 = vpack.c.bf16 %v7958, %v7958
    %v7967 = vpack.c.bf16 %v7959, %v7959
    %v7968 = vpack.c.bf16 %v7960, %v7960
    %v7969 = vpack.c.bf16 %v7961, %v7961
    %v7970 = vpack.c.bf16 %v7962, %v7962
    %v7971 = vld [vmem:[#allocation5] sm:$0xff]
    %v7972 = vld [vmem:[#allocation5 + $0x8] sm:$0xff]
    %v7973 = vld [vmem:[#allocation5 + $0x10] sm:$0xff]
    %v7974 = vld [vmem:[#allocation5 + $0x18] sm:$0xff]
    %v7975 = vld [vmem:[#allocation5 + $0x20] sm:$0xff]
    %v7976 = vld [vmem:[#allocation5 + $0x28] sm:$0xff]
    %v7977 = vld [vmem:[#allocation5 + $0x30] sm:$0xff]
    %v7978 = vld [vmem:[#allocation5 + $0x38] sm:$0xff]
    %v7979 = vld [vmem:[#allocation5 + $0x40] sm:$0xff]
    %v7980 = vld [vmem:[#allocation5 + $0x48] sm:$0xff]
    %v7981 = vld [vmem:[#allocation5 + $0x50] sm:$0xff]
    %v7982 = vld [vmem:[#allocation5 + $0x58] sm:$0xff]
    %v7983 = vld [vmem:[#allocation5 + $0x60] sm:$0xff]
    %v7984 = vld [vmem:[#allocation5 + $0x68] sm:$0xff]
    %v7985 = vld [vmem:[#allocation5 + $0x70] sm:$0xff]
    %v7986 = vld [vmem:[#allocation5 + $0x78] sm:$0xff]
    %v7987 = vld [vmem:[#allocation5 + $0x80] sm:$0xff]
    %v7988 = vld [vmem:[#allocation5 + $0x88] sm:$0xff]
    %v7989 = vld [vmem:[#allocation5 + $0x90] sm:$0xff]
    %v7990 = vld [vmem:[#allocation5 + $0x98] sm:$0xff]
    %v7991 = vld [vmem:[#allocation5 + $0xa0] sm:$0xff]
    %v7992 = vld [vmem:[#allocation5 + $0xa8] sm:$0xff]
    %v7993 = vld [vmem:[#allocation5 + $0xb0] sm:$0xff]
    %v7994 = vld [vmem:[#allocation5 + $0xb8] sm:$0xff]
    %v7995 = vld [vmem:[#allocation5 + $0xc0] sm:$0xff]
    %v7996 = vld [vmem:[#allocation5 + $0xc8] sm:$0xff]
    %v7997 = vld [vmem:[#allocation5 + $0xd0] sm:$0xff]
    %v7998 = vld [vmem:[#allocation5 + $0xd8] sm:$0xff]
    %v7999 = vld [vmem:[#allocation5 + $0xe0] sm:$0xff]
    %v8000 = vld [vmem:[#allocation5 + $0xe8] sm:$0xff]
    %v8001 = vld [vmem:[#allocation5 + $0xf0] sm:$0xff]
    %v8002 = vld [vmem:[#allocation5 + $0xf8] sm:$0xff]
    %v8003 = vld [vmem:[#allocation5 + $0x100] sm:$0xff]
    %v8004 = vld [vmem:[#allocation5 + $0x108] sm:$0xff]
    %v8005 = vld [vmem:[#allocation5 + $0x110] sm:$0xff]
    %v8006 = vld [vmem:[#allocation5 + $0x118] sm:$0xff]
    %v8007 = vld [vmem:[#allocation5 + $0x120] sm:$0xff]
    %v8008 = vld [vmem:[#allocation5 + $0x128] sm:$0xff]
    %v8009 = vld [vmem:[#allocation5 + $0x130] sm:$0xff]
    %v8010 = vld [vmem:[#allocation5 + $0x138] sm:$0xff]
    %v8011 = vld [vmem:[#allocation5 + $0x140] sm:$0xff]
    %v8012 = vld [vmem:[#allocation5 + $0x148] sm:$0xff]
    %v8013 = vld [vmem:[#allocation5 + $0x150] sm:$0xff]
    %v8014 = vld [vmem:[#allocation5 + $0x158] sm:$0xff]
    %v8015 = vld [vmem:[#allocation5 + $0x160] sm:$0xff]
    %v8016 = vld [vmem:[#allocation5 + $0x168] sm:$0xff]
    %v8017 = vld [vmem:[#allocation5 + $0x170] sm:$0xff]
    %v8018 = vld [vmem:[#allocation5 + $0x178] sm:$0xff]
    %v8019 = vld [vmem:[#allocation5 + $0x180] sm:$0xff]
    %v8020 = vld [vmem:[#allocation5 + $0x188] sm:$0xff]
    %v8021 = vld [vmem:[#allocation5 + $0x190] sm:$0xff]
    %v8022 = vld [vmem:[#allocation5 + $0x198] sm:$0xff]
    %v8023 = vld [vmem:[#allocation5 + $0x1a0] sm:$0xff]
    %v8024 = vld [vmem:[#allocation5 + $0x1a8] sm:$0xff]
    %v8025 = vld [vmem:[#allocation5 + $0x1b0] sm:$0xff]
    %v8026 = vld [vmem:[#allocation5 + $0x1b8] sm:$0xff]
    %v8027 = vld [vmem:[#allocation5 + $0x1c0] sm:$0xff]
    %v8028 = vld [vmem:[#allocation5 + $0x1c8] sm:$0xff]
    %v8029 = vld [vmem:[#allocation5 + $0x1d0] sm:$0xff]
    %v8030 = vld [vmem:[#allocation5 + $0x1d8] sm:$0xff]
    %v8031 = vld [vmem:[#allocation5 + $0x1e0] sm:$0xff]
    %v8032 = vld [vmem:[#allocation5 + $0x1e8] sm:$0xff]
    %v8033 = vld [vmem:[#allocation5 + $0x1f0] sm:$0xff]
    %v8034 = vld [vmem:[#allocation5 + $0x1f8] sm:$0xff]
    %v8035 = vld [vmem:[#allocation5 + $0x200] sm:$0xff]
    %v8036 = vld [vmem:[#allocation5 + $0x208] sm:$0xff]
    %v8037 = vld [vmem:[#allocation5 + $0x210] sm:$0xff]
    %v8038 = vld [vmem:[#allocation5 + $0x218] sm:$0xff]
    %v8039 = vld [vmem:[#allocation5 + $0x220] sm:$0xff]
    %v8040 = vld [vmem:[#allocation5 + $0x228] sm:$0xff]
    %v8041 = vld [vmem:[#allocation5 + $0x230] sm:$0xff]
    %v8042 = vld [vmem:[#allocation5 + $0x238] sm:$0xff]
    %v8043 = vld [vmem:[#allocation5 + $0x240] sm:$0xff]
    %v8044 = vld [vmem:[#allocation5 + $0x248] sm:$0xff]
    %v8045 = vld [vmem:[#allocation5 + $0x250] sm:$0xff]
    %v8046 = vld [vmem:[#allocation5 + $0x258] sm:$0xff]
    %v8047 = vld [vmem:[#allocation5 + $0x260] sm:$0xff]
    %v8048 = vld [vmem:[#allocation5 + $0x268] sm:$0xff]
    %v8049 = vld [vmem:[#allocation5 + $0x270] sm:$0xff]
    %v8050 = vld [vmem:[#allocation5 + $0x278] sm:$0xff]
    %v8051 = vld [vmem:[#allocation5 + $0x280] sm:$0xff]
    %v8052 = vld [vmem:[#allocation5 + $0x288] sm:$0xff]
    %v8053 = vld [vmem:[#allocation5 + $0x290] sm:$0xff]
    %v8054 = vld [vmem:[#allocation5 + $0x298] sm:$0xff]
    %v8055 = vld [vmem:[#allocation5 + $0x2a0] sm:$0xff]
    %v8056 = vld [vmem:[#allocation5 + $0x2a8] sm:$0xff]
    %v8057 = vld [vmem:[#allocation5 + $0x2b0] sm:$0xff]
    %v8058 = vld [vmem:[#allocation5 + $0x2b8] sm:$0xff]
    %v8059 = vld [vmem:[#allocation5 + $0x2c0] sm:$0xff]
    %v8060 = vld [vmem:[#allocation5 + $0x2c8] sm:$0xff]
    %v8061 = vld [vmem:[#allocation5 + $0x2d0] sm:$0xff]
    %v8062 = vld [vmem:[#allocation5 + $0x2d8] sm:$0xff]
    %v8063 = vld [vmem:[#allocation5 + $0x2e0] sm:$0xff]
    %v8064 = vld [vmem:[#allocation5 + $0x2e8] sm:$0xff]
    %v8065 = vld [vmem:[#allocation5 + $0x2f0] sm:$0xff]
    %v8066 = vld [vmem:[#allocation5 + $0x2f8] sm:$0xff]
    %v8067 = vld [vmem:[#allocation5 + $0x300] sm:$0xff]
    %v8068 = vld [vmem:[#allocation5 + $0x308] sm:$0xff]
    %v8069 = vld [vmem:[#allocation5 + $0x310] sm:$0xff]
    %v8070 = vld [vmem:[#allocation5 + $0x318] sm:$0xff]
    %v8071 = vld [vmem:[#allocation5 + $0x320] sm:$0xff]
    %v8072 = vld [vmem:[#allocation5 + $0x328] sm:$0xff]
    %v8073 = vld [vmem:[#allocation5 + $0x330] sm:$0xff]
    %v8074 = vld [vmem:[#allocation5 + $0x338] sm:$0xff]
    %v8075 = vld [vmem:[#allocation5 + $0x340] sm:$0xff]
    %v8076 = vld [vmem:[#allocation5 + $0x348] sm:$0xff]
    %v8077 = vld [vmem:[#allocation5 + $0x350] sm:$0xff]
    %v8078 = vld [vmem:[#allocation5 + $0x358] sm:$0xff]
    %v8079 = vld [vmem:[#allocation5 + $0x360] sm:$0xff]
    %v8080 = vld [vmem:[#allocation5 + $0x368] sm:$0xff]
    %v8081 = vld [vmem:[#allocation5 + $0x370] sm:$0xff]
    %v8082 = vld [vmem:[#allocation5 + $0x378] sm:$0xff]
    %v8083 = vld [vmem:[#allocation5 + $0x380] sm:$0xff]
    %v8084 = vld [vmem:[#allocation5 + $0x388] sm:$0xff]
    %v8085 = vld [vmem:[#allocation5 + $0x390] sm:$0xff]
    %v8086 = vld [vmem:[#allocation5 + $0x398] sm:$0xff]
    %v8087 = vld [vmem:[#allocation5 + $0x3a0] sm:$0xff]
    %v8088 = vld [vmem:[#allocation5 + $0x3a8] sm:$0xff]
    %v8089 = vld [vmem:[#allocation5 + $0x3b0] sm:$0xff]
    %v8090 = vld [vmem:[#allocation5 + $0x3b8] sm:$0xff]
    %v8091 = vld [vmem:[#allocation5 + $0x3c0] sm:$0xff]
    %v8092 = vld [vmem:[#allocation5 + $0x3c8] sm:$0xff]
    %v8093 = vld [vmem:[#allocation5 + $0x3d0] sm:$0xff]
    %v8094 = vld [vmem:[#allocation5 + $0x3d8] sm:$0xff]
    %v8095 = vld [vmem:[#allocation5 + $0x3e0] sm:$0xff]
    %v8096 = vld [vmem:[#allocation5 + $0x3e8] sm:$0xff]
    %v8097 = vld [vmem:[#allocation5 + $0x3f0] sm:$0xff]
    %v8098 = vld [vmem:[#allocation5 + $0x3f8] sm:$0xff]
    %v8099 = vld [vmem:[#allocation5 + $0x400] sm:$0xff]
    %v8100 = vld [vmem:[#allocation5 + $0x408] sm:$0xff]
    %v8101 = vld [vmem:[#allocation5 + $0x410] sm:$0xff]
    %v8102 = vld [vmem:[#allocation5 + $0x418] sm:$0xff]
    %v8103 = vld [vmem:[#allocation5 + $0x420] sm:$0xff]
    %v8104 = vld [vmem:[#allocation5 + $0x428] sm:$0xff]
    %v8105 = vld [vmem:[#allocation5 + $0x430] sm:$0xff]
    %v8106 = vld [vmem:[#allocation5 + $0x438] sm:$0xff]
    %v8107 = vld [vmem:[#allocation5 + $0x440] sm:$0xff]
    %v8108 = vld [vmem:[#allocation5 + $0x448] sm:$0xff]
    %v8109 = vld [vmem:[#allocation5 + $0x450] sm:$0xff]
    %v8110 = vld [vmem:[#allocation5 + $0x458] sm:$0xff]
    %v8111 = vld [vmem:[#allocation5 + $0x460] sm:$0xff]
    %v8112 = vld [vmem:[#allocation5 + $0x468] sm:$0xff]
    %v8113 = vld [vmem:[#allocation5 + $0x470] sm:$0xff]
    %v8114 = vld [vmem:[#allocation5 + $0x478] sm:$0xff]
    %v8115 = vld [vmem:[#allocation5 + $0x480] sm:$0xff]
    %v8116 = vld [vmem:[#allocation5 + $0x488] sm:$0xff]
    %v8117 = vld [vmem:[#allocation5 + $0x490] sm:$0xff]
    %v8118 = vld [vmem:[#allocation5 + $0x498] sm:$0xff]
    %v8119 = vld [vmem:[#allocation5 + $0x4a0] sm:$0xff]
    %v8120 = vld [vmem:[#allocation5 + $0x4a8] sm:$0xff]
    %v8121 = vld [vmem:[#allocation5 + $0x4b0] sm:$0xff]
    %v8122 = vld [vmem:[#allocation5 + $0x4b8] sm:$0xff]
    %v8123 = vld [vmem:[#allocation5 + $0x4c0] sm:$0xff]
    %v8124 = vld [vmem:[#allocation5 + $0x4c8] sm:$0xff]
    %v8125 = vld [vmem:[#allocation5 + $0x4d0] sm:$0xff]
    %v8126 = vld [vmem:[#allocation5 + $0x4d8] sm:$0xff]
    %v8127 = vld [vmem:[#allocation5 + $0x4e0] sm:$0xff]
    %v8128 = vld [vmem:[#allocation5 + $0x4e8] sm:$0xff]
    %v8129 = vld [vmem:[#allocation5 + $0x4f0] sm:$0xff]
    %v8130 = vld [vmem:[#allocation5 + $0x4f8] sm:$0xff]
    %v8131 = vld [vmem:[#allocation5 + $0x500] sm:$0xff]
    %v8132 = vld [vmem:[#allocation5 + $0x508] sm:$0xff]
    %v8133 = vld [vmem:[#allocation5 + $0x510] sm:$0xff]
    %v8134 = vld [vmem:[#allocation5 + $0x518] sm:$0xff]
    %v8135 = vld [vmem:[#allocation5 + $0x520] sm:$0xff]
    %v8136 = vld [vmem:[#allocation5 + $0x528] sm:$0xff]
    %v8137 = vld [vmem:[#allocation5 + $0x530] sm:$0xff]
    %v8138 = vld [vmem:[#allocation5 + $0x538] sm:$0xff]
    %v8139 = vld [vmem:[#allocation5 + $0x540] sm:$0xff]
    %v8140 = vld [vmem:[#allocation5 + $0x548] sm:$0xff]
    %v8141 = vld [vmem:[#allocation5 + $0x550] sm:$0xff]
    %v8142 = vld [vmem:[#allocation5 + $0x558] sm:$0xff]
    %v8143 = vld [vmem:[#allocation5 + $0x560] sm:$0xff]
    %v8144 = vld [vmem:[#allocation5 + $0x568] sm:$0xff]
    %v8145 = vld [vmem:[#allocation5 + $0x570] sm:$0xff]
    %v8146 = vld [vmem:[#allocation5 + $0x578] sm:$0xff]
    %v8147 = vld [vmem:[#allocation5 + $0x580] sm:$0xff]
    %v8148 = vld [vmem:[#allocation5 + $0x588] sm:$0xff]
    %v8149 = vld [vmem:[#allocation5 + $0x590] sm:$0xff]
    %v8150 = vld [vmem:[#allocation5 + $0x598] sm:$0xff]
    %v8151 = vld [vmem:[#allocation5 + $0x5a0] sm:$0xff]
    %v8152 = vld [vmem:[#allocation5 + $0x5a8] sm:$0xff]
    %v8153 = vld [vmem:[#allocation5 + $0x5b0] sm:$0xff]
    %v8154 = vld [vmem:[#allocation5 + $0x5b8] sm:$0xff]
    %v8155 = vld [vmem:[#allocation5 + $0x5c0] sm:$0xff]
    %v8156 = vld [vmem:[#allocation5 + $0x5c8] sm:$0xff]
    %v8157 = vld [vmem:[#allocation5 + $0x5d0] sm:$0xff]
    %v8158 = vld [vmem:[#allocation5 + $0x5d8] sm:$0xff]
    %v8159 = vld [vmem:[#allocation5 + $0x5e0] sm:$0xff]
    %v8160 = vld [vmem:[#allocation5 + $0x5e8] sm:$0xff]
    %v8161 = vld [vmem:[#allocation5 + $0x5f0] sm:$0xff]
    %v8162 = vld [vmem:[#allocation5 + $0x5f8] sm:$0xff]
    %v8163 = vld [vmem:[#allocation5 + $0x600] sm:$0xff]
    %v8164 = vld [vmem:[#allocation5 + $0x608] sm:$0xff]
    %v8165 = vld [vmem:[#allocation5 + $0x610] sm:$0xff]
    %v8166 = vld [vmem:[#allocation5 + $0x618] sm:$0xff]
    %v8167 = vld [vmem:[#allocation5 + $0x620] sm:$0xff]
    %v8168 = vld [vmem:[#allocation5 + $0x628] sm:$0xff]
    %v8169 = vld [vmem:[#allocation5 + $0x630] sm:$0xff]
    %v8170 = vld [vmem:[#allocation5 + $0x638] sm:$0xff]
    %v8171 = vld [vmem:[#allocation5 + $0x640] sm:$0xff]
    %v8172 = vld [vmem:[#allocation5 + $0x648] sm:$0xff]
    %v8173 = vld [vmem:[#allocation5 + $0x650] sm:$0xff]
    %v8174 = vld [vmem:[#allocation5 + $0x658] sm:$0xff]
    %v8175 = vld [vmem:[#allocation5 + $0x660] sm:$0xff]
    %v8176 = vld [vmem:[#allocation5 + $0x668] sm:$0xff]
    %v8177 = vld [vmem:[#allocation5 + $0x670] sm:$0xff]
    %v8178 = vld [vmem:[#allocation5 + $0x678] sm:$0xff]
    %v8179 = vld [vmem:[#allocation5 + $0x680] sm:$0xff]
    %v8180 = vld [vmem:[#allocation5 + $0x688] sm:$0xff]
    %v8181 = vld [vmem:[#allocation5 + $0x690] sm:$0xff]
    %v8182 = vld [vmem:[#allocation5 + $0x698] sm:$0xff]
    %v8183 = vld [vmem:[#allocation5 + $0x6a0] sm:$0xff]
    %v8184 = vld [vmem:[#allocation5 + $0x6a8] sm:$0xff]
    %v8185 = vld [vmem:[#allocation5 + $0x6b0] sm:$0xff]
    %v8186 = vld [vmem:[#allocation5 + $0x6b8] sm:$0xff]
    %v8187 = vld [vmem:[#allocation5 + $0x6c0] sm:$0xff]
    %v8188 = vld [vmem:[#allocation5 + $0x6c8] sm:$0xff]
    %v8189 = vld [vmem:[#allocation5 + $0x6d0] sm:$0xff]
    %v8190 = vld [vmem:[#allocation5 + $0x6d8] sm:$0xff]
    %v8191 = vld [vmem:[#allocation5 + $0x6e0] sm:$0xff]
    %v8192 = vld [vmem:[#allocation5 + $0x6e8] sm:$0xff]
    %v8193 = vld [vmem:[#allocation5 + $0x6f0] sm:$0xff]
    %v8194 = vld [vmem:[#allocation5 + $0x6f8] sm:$0xff]
    %v8195 = vld [vmem:[#allocation5 + $0x700] sm:$0xff]
    %v8196 = vld [vmem:[#allocation5 + $0x708] sm:$0xff]
    %v8197 = vld [vmem:[#allocation5 + $0x710] sm:$0xff]
    %v8198 = vld [vmem:[#allocation5 + $0x718] sm:$0xff]
    %v8199 = vld [vmem:[#allocation5 + $0x720] sm:$0xff]
    %v8200 = vld [vmem:[#allocation5 + $0x728] sm:$0xff]
    %v8201 = vld [vmem:[#allocation5 + $0x730] sm:$0xff]
    %v8202 = vld [vmem:[#allocation5 + $0x738] sm:$0xff]
    %v8203 = vld [vmem:[#allocation5 + $0x740] sm:$0xff]
    %v8204 = vld [vmem:[#allocation5 + $0x748] sm:$0xff]
    %v8205 = vld [vmem:[#allocation5 + $0x750] sm:$0xff]
    %v8206 = vld [vmem:[#allocation5 + $0x758] sm:$0xff]
    %v8207 = vld [vmem:[#allocation5 + $0x760] sm:$0xff]
    %v8208 = vld [vmem:[#allocation5 + $0x768] sm:$0xff]
    %v8209 = vld [vmem:[#allocation5 + $0x770] sm:$0xff]
    %v8210 = vld [vmem:[#allocation5 + $0x778] sm:$0xff]
    %v8211 = vld [vmem:[#allocation5 + $0x780] sm:$0xff]
    %v8212 = vld [vmem:[#allocation5 + $0x788] sm:$0xff]
    %v8213 = vld [vmem:[#allocation5 + $0x790] sm:$0xff]
    %v8214 = vld [vmem:[#allocation5 + $0x798] sm:$0xff]
    %v8215 = vld [vmem:[#allocation5 + $0x7a0] sm:$0xff]
    %v8216 = vld [vmem:[#allocation5 + $0x7a8] sm:$0xff]
    %v8217 = vld [vmem:[#allocation5 + $0x7b0] sm:$0xff]
    %v8218 = vld [vmem:[#allocation5 + $0x7b8] sm:$0xff]
    %v8219 = vld [vmem:[#allocation5 + $0x7c0] sm:$0xff]
    %v8220 = vld [vmem:[#allocation5 + $0x7c8] sm:$0xff]
    %v8221 = vld [vmem:[#allocation5 + $0x7d0] sm:$0xff]
    %v8222 = vld [vmem:[#allocation5 + $0x7d8] sm:$0xff]
    %v8223 = vld [vmem:[#allocation5 + $0x7e0] sm:$0xff]
    %v8224 = vld [vmem:[#allocation5 + $0x7e8] sm:$0xff]
    %v8225 = vld [vmem:[#allocation5 + $0x7f0] sm:$0xff]
    %v8226 = vld [vmem:[#allocation5 + $0x7f8] sm:$0xff]
    %v8483 = vunpack.c.l.b16 %v7971
    %v8484 = vunpack.c.h.b16 %v7971
    %v8485 = vunpack.c.l.b16 %v7972
    %v8486 = vunpack.c.h.b16 %v7972
    %v8487 = vunpack.c.l.b16 %v7973
    %v8488 = vunpack.c.h.b16 %v7973
    %v8489 = vunpack.c.l.b16 %v7974
    %v8490 = vunpack.c.h.b16 %v7974
    %v8491 = vunpack.c.l.b16 %v7975
    %v8492 = vunpack.c.h.b16 %v7975
    %v8493 = vunpack.c.l.b16 %v7976
    %v8494 = vunpack.c.h.b16 %v7976
    %v8495 = vunpack.c.l.b16 %v7977
    %v8496 = vunpack.c.h.b16 %v7977
    %v8497 = vunpack.c.l.b16 %v7978
    %v8498 = vunpack.c.h.b16 %v7978
    %v8499 = vunpack.c.l.b16 %v7979
    %v8500 = vunpack.c.h.b16 %v7979
    %v8501 = vunpack.c.l.b16 %v7980
    %v8502 = vunpack.c.h.b16 %v7980
    %v8503 = vunpack.c.l.b16 %v7981
    %v8504 = vunpack.c.h.b16 %v7981
    %v8505 = vunpack.c.l.b16 %v7982
    %v8506 = vunpack.c.h.b16 %v7982
    %v8507 = vunpack.c.l.b16 %v7983
    %v8508 = vunpack.c.h.b16 %v7983
    %v8509 = vunpack.c.l.b16 %v7984
    %v8510 = vunpack.c.h.b16 %v7984
    %v8511 = vunpack.c.l.b16 %v7985
    %v8512 = vunpack.c.h.b16 %v7985
    %v8513 = vunpack.c.l.b16 %v7986
    %v8514 = vunpack.c.h.b16 %v7986
    %v8515 = vunpack.c.l.b16 %v7987
    %v8516 = vunpack.c.h.b16 %v7987
    %v8517 = vunpack.c.l.b16 %v7988
    %v8518 = vunpack.c.h.b16 %v7988
    %v8519 = vunpack.c.l.b16 %v7989
    %v8520 = vunpack.c.h.b16 %v7989
    %v8521 = vunpack.c.l.b16 %v7990
    %v8522 = vunpack.c.h.b16 %v7990
    %v8523 = vunpack.c.l.b16 %v7991
    %v8524 = vunpack.c.h.b16 %v7991
    %v8525 = vunpack.c.l.b16 %v7992
    %v8526 = vunpack.c.h.b16 %v7992
    %v8527 = vunpack.c.l.b16 %v7993
    %v8528 = vunpack.c.h.b16 %v7993
    %v8529 = vunpack.c.l.b16 %v7994
    %v8530 = vunpack.c.h.b16 %v7994
    %v8531 = vunpack.c.l.b16 %v7995
    %v8532 = vunpack.c.h.b16 %v7995
    %v8533 = vunpack.c.l.b16 %v7996
    %v8534 = vunpack.c.h.b16 %v7996
    %v8535 = vunpack.c.l.b16 %v7997
    %v8536 = vunpack.c.h.b16 %v7997
    %v8537 = vunpack.c.l.b16 %v7998
    %v8538 = vunpack.c.h.b16 %v7998
    %v8539 = vunpack.c.l.b16 %v7999
    %v8540 = vunpack.c.h.b16 %v7999
    %v8541 = vunpack.c.l.b16 %v8000
    %v8542 = vunpack.c.h.b16 %v8000
    %v8543 = vunpack.c.l.b16 %v8001
    %v8544 = vunpack.c.h.b16 %v8001
    %v8545 = vunpack.c.l.b16 %v8002
    %v8546 = vunpack.c.h.b16 %v8002
    %v8547 = vunpack.c.l.b16 %v8003
    %v8548 = vunpack.c.h.b16 %v8003
    %v8549 = vunpack.c.l.b16 %v8004
    %v8550 = vunpack.c.h.b16 %v8004
    %v8551 = vunpack.c.l.b16 %v8005
    %v8552 = vunpack.c.h.b16 %v8005
    %v8553 = vunpack.c.l.b16 %v8006
    %v8554 = vunpack.c.h.b16 %v8006
    %v8555 = vunpack.c.l.b16 %v8007
    %v8556 = vunpack.c.h.b16 %v8007
    %v8557 = vunpack.c.l.b16 %v8008
    %v8558 = vunpack.c.h.b16 %v8008
    %v8559 = vunpack.c.l.b16 %v8009
    %v8560 = vunpack.c.h.b16 %v8009
    %v8561 = vunpack.c.l.b16 %v8010
    %v8562 = vunpack.c.h.b16 %v8010
    %v8563 = vunpack.c.l.b16 %v8011
    %v8564 = vunpack.c.h.b16 %v8011
    %v8565 = vunpack.c.l.b16 %v8012
    %v8566 = vunpack.c.h.b16 %v8012
    %v8567 = vunpack.c.l.b16 %v8013
    %v8568 = vunpack.c.h.b16 %v8013
    %v8569 = vunpack.c.l.b16 %v8014
    %v8570 = vunpack.c.h.b16 %v8014
    %v8571 = vunpack.c.l.b16 %v8015
    %v8572 = vunpack.c.h.b16 %v8015
    %v8573 = vunpack.c.l.b16 %v8016
    %v8574 = vunpack.c.h.b16 %v8016
    %v8575 = vunpack.c.l.b16 %v8017
    %v8576 = vunpack.c.h.b16 %v8017
    %v8577 = vunpack.c.l.b16 %v8018
    %v8578 = vunpack.c.h.b16 %v8018
    %v8579 = vunpack.c.l.b16 %v8019
    %v8580 = vunpack.c.h.b16 %v8019
    %v8581 = vunpack.c.l.b16 %v8020
    %v8582 = vunpack.c.h.b16 %v8020
    %v8583 = vunpack.c.l.b16 %v8021
    %v8584 = vunpack.c.h.b16 %v8021
    %v8585 = vunpack.c.l.b16 %v8022
    %v8586 = vunpack.c.h.b16 %v8022
    %v8587 = vunpack.c.l.b16 %v8023
    %v8588 = vunpack.c.h.b16 %v8023
    %v8589 = vunpack.c.l.b16 %v8024
    %v8590 = vunpack.c.h.b16 %v8024
    %v8591 = vunpack.c.l.b16 %v8025
    %v8592 = vunpack.c.h.b16 %v8025
    %v8593 = vunpack.c.l.b16 %v8026
    %v8594 = vunpack.c.h.b16 %v8026
    %v8595 = vunpack.c.l.b16 %v8027
    %v8596 = vunpack.c.h.b16 %v8027
    %v8597 = vunpack.c.l.b16 %v8028
    %v8598 = vunpack.c.h.b16 %v8028
    %v8599 = vunpack.c.l.b16 %v8029
    %v8600 = vunpack.c.h.b16 %v8029
    %v8601 = vunpack.c.l.b16 %v8030
    %v8602 = vunpack.c.h.b16 %v8030
    %v8603 = vunpack.c.l.b16 %v8031
    %v8604 = vunpack.c.h.b16 %v8031
    %v8605 = vunpack.c.l.b16 %v8032
    %v8606 = vunpack.c.h.b16 %v8032
    %v8607 = vunpack.c.l.b16 %v8033
    %v8608 = vunpack.c.h.b16 %v8033
    %v8609 = vunpack.c.l.b16 %v8034
    %v8610 = vunpack.c.h.b16 %v8034
    %v8611 = vunpack.c.l.b16 %v8035
    %v8612 = vunpack.c.h.b16 %v8035
    %v8613 = vunpack.c.l.b16 %v8036
    %v8614 = vunpack.c.h.b16 %v8036
    %v8615 = vunpack.c.l.b16 %v8037
    %v8616 = vunpack.c.h.b16 %v8037
    %v8617 = vunpack.c.l.b16 %v8038
    %v8618 = vunpack.c.h.b16 %v8038
    %v8619 = vunpack.c.l.b16 %v8039
    %v8620 = vunpack.c.h.b16 %v8039
    %v8621 = vunpack.c.l.b16 %v8040
    %v8622 = vunpack.c.h.b16 %v8040
    %v8623 = vunpack.c.l.b16 %v8041
    %v8624 = vunpack.c.h.b16 %v8041
    %v8625 = vunpack.c.l.b16 %v8042
    %v8626 = vunpack.c.h.b16 %v8042
    %v8627 = vunpack.c.l.b16 %v8043
    %v8628 = vunpack.c.h.b16 %v8043
    %v8629 = vunpack.c.l.b16 %v8044
    %v8630 = vunpack.c.h.b16 %v8044
    %v8631 = vunpack.c.l.b16 %v8045
    %v8632 = vunpack.c.h.b16 %v8045
    %v8633 = vunpack.c.l.b16 %v8046
    %v8634 = vunpack.c.h.b16 %v8046
    %v8635 = vunpack.c.l.b16 %v8047
    %v8636 = vunpack.c.h.b16 %v8047
    %v8637 = vunpack.c.l.b16 %v8048
    %v8638 = vunpack.c.h.b16 %v8048
    %v8639 = vunpack.c.l.b16 %v8049
    %v8640 = vunpack.c.h.b16 %v8049
    %v8641 = vunpack.c.l.b16 %v8050
    %v8642 = vunpack.c.h.b16 %v8050
    %v8643 = vunpack.c.l.b16 %v8051
    %v8644 = vunpack.c.h.b16 %v8051
    %v8645 = vunpack.c.l.b16 %v8052
    %v8646 = vunpack.c.h.b16 %v8052
    %v8647 = vunpack.c.l.b16 %v8053
    %v8648 = vunpack.c.h.b16 %v8053
    %v8649 = vunpack.c.l.b16 %v8054
    %v8650 = vunpack.c.h.b16 %v8054
    %v8651 = vunpack.c.l.b16 %v8055
    %v8652 = vunpack.c.h.b16 %v8055
    %v8653 = vunpack.c.l.b16 %v8056
    %v8654 = vunpack.c.h.b16 %v8056
    %v8655 = vunpack.c.l.b16 %v8057
    %v8656 = vunpack.c.h.b16 %v8057
    %v8657 = vunpack.c.l.b16 %v8058
    %v8658 = vunpack.c.h.b16 %v8058
    %v8659 = vunpack.c.l.b16 %v8059
    %v8660 = vunpack.c.h.b16 %v8059
    %v8661 = vunpack.c.l.b16 %v8060
    %v8662 = vunpack.c.h.b16 %v8060
    %v8663 = vunpack.c.l.b16 %v8061
    %v8664 = vunpack.c.h.b16 %v8061
    %v8665 = vunpack.c.l.b16 %v8062
    %v8666 = vunpack.c.h.b16 %v8062
    %v8667 = vunpack.c.l.b16 %v8063
    %v8668 = vunpack.c.h.b16 %v8063
    %v8669 = vunpack.c.l.b16 %v8064
    %v8670 = vunpack.c.h.b16 %v8064
    %v8671 = vunpack.c.l.b16 %v8065
    %v8672 = vunpack.c.h.b16 %v8065
    %v8673 = vunpack.c.l.b16 %v8066
    %v8674 = vunpack.c.h.b16 %v8066
    %v8675 = vunpack.c.l.b16 %v8067
    %v8676 = vunpack.c.h.b16 %v8067
    %v8677 = vunpack.c.l.b16 %v8068
    %v8678 = vunpack.c.h.b16 %v8068
    %v8679 = vunpack.c.l.b16 %v8069
    %v8680 = vunpack.c.h.b16 %v8069
    %v8681 = vunpack.c.l.b16 %v8070
    %v8682 = vunpack.c.h.b16 %v8070
    %v8683 = vunpack.c.l.b16 %v8071
    %v8684 = vunpack.c.h.b16 %v8071
    %v8685 = vunpack.c.l.b16 %v8072
    %v8686 = vunpack.c.h.b16 %v8072
    %v8687 = vunpack.c.l.b16 %v8073
    %v8688 = vunpack.c.h.b16 %v8073
    %v8689 = vunpack.c.l.b16 %v8074
    %v8690 = vunpack.c.h.b16 %v8074
    %v8691 = vunpack.c.l.b16 %v8075
    %v8692 = vunpack.c.h.b16 %v8075
    %v8693 = vunpack.c.l.b16 %v8076
    %v8694 = vunpack.c.h.b16 %v8076
    %v8695 = vunpack.c.l.b16 %v8077
    %v8696 = vunpack.c.h.b16 %v8077
    %v8697 = vunpack.c.l.b16 %v8078
    %v8698 = vunpack.c.h.b16 %v8078
    %v8699 = vunpack.c.l.b16 %v8079
    %v8700 = vunpack.c.h.b16 %v8079
    %v8701 = vunpack.c.l.b16 %v8080
    %v8702 = vunpack.c.h.b16 %v8080
    %v8703 = vunpack.c.l.b16 %v8081
    %v8704 = vunpack.c.h.b16 %v8081
    %v8705 = vunpack.c.l.b16 %v8082
    %v8706 = vunpack.c.h.b16 %v8082
    %v8707 = vunpack.c.l.b16 %v8083
    %v8708 = vunpack.c.h.b16 %v8083
    %v8709 = vunpack.c.l.b16 %v8084
    %v8710 = vunpack.c.h.b16 %v8084
    %v8711 = vunpack.c.l.b16 %v8085
    %v8712 = vunpack.c.h.b16 %v8085
    %v8713 = vunpack.c.l.b16 %v8086
    %v8714 = vunpack.c.h.b16 %v8086
    %v8715 = vunpack.c.l.b16 %v8087
    %v8716 = vunpack.c.h.b16 %v8087
    %v8717 = vunpack.c.l.b16 %v8088
    %v8718 = vunpack.c.h.b16 %v8088
    %v8719 = vunpack.c.l.b16 %v8089
    %v8720 = vunpack.c.h.b16 %v8089
    %v8721 = vunpack.c.l.b16 %v8090
    %v8722 = vunpack.c.h.b16 %v8090
    %v8723 = vunpack.c.l.b16 %v8091
    %v8724 = vunpack.c.h.b16 %v8091
    %v8725 = vunpack.c.l.b16 %v8092
    %v8726 = vunpack.c.h.b16 %v8092
    %v8727 = vunpack.c.l.b16 %v8093
    %v8728 = vunpack.c.h.b16 %v8093
    %v8729 = vunpack.c.l.b16 %v8094
    %v8730 = vunpack.c.h.b16 %v8094
    %v8731 = vunpack.c.l.b16 %v8095
    %v8732 = vunpack.c.h.b16 %v8095
    %v8733 = vunpack.c.l.b16 %v8096
    %v8734 = vunpack.c.h.b16 %v8096
    %v8735 = vunpack.c.l.b16 %v8097
    %v8736 = vunpack.c.h.b16 %v8097
    %v8737 = vunpack.c.l.b16 %v8098
    %v8738 = vunpack.c.h.b16 %v8098
    %v8739 = vunpack.c.l.b16 %v8099
    %v8740 = vunpack.c.h.b16 %v8099
    %v8741 = vunpack.c.l.b16 %v8100
    %v8742 = vunpack.c.h.b16 %v8100
    %v8743 = vunpack.c.l.b16 %v8101
    %v8744 = vunpack.c.h.b16 %v8101
    %v8745 = vunpack.c.l.b16 %v8102
    %v8746 = vunpack.c.h.b16 %v8102
    %v8747 = vunpack.c.l.b16 %v8103
    %v8748 = vunpack.c.h.b16 %v8103
    %v8749 = vunpack.c.l.b16 %v8104
    %v8750 = vunpack.c.h.b16 %v8104
    %v8751 = vunpack.c.l.b16 %v8105
    %v8752 = vunpack.c.h.b16 %v8105
    %v8753 = vunpack.c.l.b16 %v8106
    %v8754 = vunpack.c.h.b16 %v8106
    %v8755 = vunpack.c.l.b16 %v8107
    %v8756 = vunpack.c.h.b16 %v8107
    %v8757 = vunpack.c.l.b16 %v8108
    %v8758 = vunpack.c.h.b16 %v8108
    %v8759 = vunpack.c.l.b16 %v8109
    %v8760 = vunpack.c.h.b16 %v8109
    %v8761 = vunpack.c.l.b16 %v8110
    %v8762 = vunpack.c.h.b16 %v8110
    %v8763 = vunpack.c.l.b16 %v8111
    %v8764 = vunpack.c.h.b16 %v8111
    %v8765 = vunpack.c.l.b16 %v8112
    %v8766 = vunpack.c.h.b16 %v8112
    %v8767 = vunpack.c.l.b16 %v8113
    %v8768 = vunpack.c.h.b16 %v8113
    %v8769 = vunpack.c.l.b16 %v8114
    %v8770 = vunpack.c.h.b16 %v8114
    %v8771 = vunpack.c.l.b16 %v8115
    %v8772 = vunpack.c.h.b16 %v8115
    %v8773 = vunpack.c.l.b16 %v8116
    %v8774 = vunpack.c.h.b16 %v8116
    %v8775 = vunpack.c.l.b16 %v8117
    %v8776 = vunpack.c.h.b16 %v8117
    %v8777 = vunpack.c.l.b16 %v8118
    %v8778 = vunpack.c.h.b16 %v8118
    %v8779 = vunpack.c.l.b16 %v8119
    %v8780 = vunpack.c.h.b16 %v8119
    %v8781 = vunpack.c.l.b16 %v8120
    %v8782 = vunpack.c.h.b16 %v8120
    %v8783 = vunpack.c.l.b16 %v8121
    %v8784 = vunpack.c.h.b16 %v8121
    %v8785 = vunpack.c.l.b16 %v8122
    %v8786 = vunpack.c.h.b16 %v8122
    %v8787 = vunpack.c.l.b16 %v8123
    %v8788 = vunpack.c.h.b16 %v8123
    %v8789 = vunpack.c.l.b16 %v8124
    %v8790 = vunpack.c.h.b16 %v8124
    %v8791 = vunpack.c.l.b16 %v8125
    %v8792 = vunpack.c.h.b16 %v8125
    %v8793 = vunpack.c.l.b16 %v8126
    %v8794 = vunpack.c.h.b16 %v8126
    %v8795 = vunpack.c.l.b16 %v8127
    %v8796 = vunpack.c.h.b16 %v8127
    %v8797 = vunpack.c.l.b16 %v8128
    %v8798 = vunpack.c.h.b16 %v8128
    %v8799 = vunpack.c.l.b16 %v8129
    %v8800 = vunpack.c.h.b16 %v8129
    %v8801 = vunpack.c.l.b16 %v8130
    %v8802 = vunpack.c.h.b16 %v8130
    %v8803 = vunpack.c.l.b16 %v8131
    %v8804 = vunpack.c.h.b16 %v8131
    %v8805 = vunpack.c.l.b16 %v8132
    %v8806 = vunpack.c.h.b16 %v8132
    %v8807 = vunpack.c.l.b16 %v8133
    %v8808 = vunpack.c.h.b16 %v8133
    %v8809 = vunpack.c.l.b16 %v8134
    %v8810 = vunpack.c.h.b16 %v8134
    %v8811 = vunpack.c.l.b16 %v8135
    %v8812 = vunpack.c.h.b16 %v8135
    %v8813 = vunpack.c.l.b16 %v8136
    %v8814 = vunpack.c.h.b16 %v8136
    %v8815 = vunpack.c.l.b16 %v8137
    %v8816 = vunpack.c.h.b16 %v8137
    %v8817 = vunpack.c.l.b16 %v8138
    %v8818 = vunpack.c.h.b16 %v8138
    %v8819 = vunpack.c.l.b16 %v8139
    %v8820 = vunpack.c.h.b16 %v8139
    %v8821 = vunpack.c.l.b16 %v8140
    %v8822 = vunpack.c.h.b16 %v8140
    %v8823 = vunpack.c.l.b16 %v8141
    %v8824 = vunpack.c.h.b16 %v8141
    %v8825 = vunpack.c.l.b16 %v8142
    %v8826 = vunpack.c.h.b16 %v8142
    %v8827 = vunpack.c.l.b16 %v8143
    %v8828 = vunpack.c.h.b16 %v8143
    %v8829 = vunpack.c.l.b16 %v8144
    %v8830 = vunpack.c.h.b16 %v8144
    %v8831 = vunpack.c.l.b16 %v8145
    %v8832 = vunpack.c.h.b16 %v8145
    %v8833 = vunpack.c.l.b16 %v8146
    %v8834 = vunpack.c.h.b16 %v8146
    %v8835 = vunpack.c.l.b16 %v8147
    %v8836 = vunpack.c.h.b16 %v8147
    %v8837 = vunpack.c.l.b16 %v8148
    %v8838 = vunpack.c.h.b16 %v8148
    %v8839 = vunpack.c.l.b16 %v8149
    %v8840 = vunpack.c.h.b16 %v8149
    %v8841 = vunpack.c.l.b16 %v8150
    %v8842 = vunpack.c.h.b16 %v8150
    %v8843 = vunpack.c.l.b16 %v8151
    %v8844 = vunpack.c.h.b16 %v8151
    %v8845 = vunpack.c.l.b16 %v8152
    %v8846 = vunpack.c.h.b16 %v8152
    %v8847 = vunpack.c.l.b16 %v8153
    %v8848 = vunpack.c.h.b16 %v8153
    %v8849 = vunpack.c.l.b16 %v8154
    %v8850 = vunpack.c.h.b16 %v8154
    %v8851 = vunpack.c.l.b16 %v8155
    %v8852 = vunpack.c.h.b16 %v8155
    %v8853 = vunpack.c.l.b16 %v8156
    %v8854 = vunpack.c.h.b16 %v8156
    %v8855 = vunpack.c.l.b16 %v8157
    %v8856 = vunpack.c.h.b16 %v8157
    %v8857 = vunpack.c.l.b16 %v8158
    %v8858 = vunpack.c.h.b16 %v8158
    %v8859 = vunpack.c.l.b16 %v8159
    %v8860 = vunpack.c.h.b16 %v8159
    %v8861 = vunpack.c.l.b16 %v8160
    %v8862 = vunpack.c.h.b16 %v8160
    %v8863 = vunpack.c.l.b16 %v8161
    %v8864 = vunpack.c.h.b16 %v8161
    %v8865 = vunpack.c.l.b16 %v8162
    %v8866 = vunpack.c.h.b16 %v8162
    %v8867 = vunpack.c.l.b16 %v8163
    %v8868 = vunpack.c.h.b16 %v8163
    %v8869 = vunpack.c.l.b16 %v8164
    %v8870 = vunpack.c.h.b16 %v8164
    %v8871 = vunpack.c.l.b16 %v8165
    %v8872 = vunpack.c.h.b16 %v8165
    %v8873 = vunpack.c.l.b16 %v8166
    %v8874 = vunpack.c.h.b16 %v8166
    %v8875 = vunpack.c.l.b16 %v8167
    %v8876 = vunpack.c.h.b16 %v8167
    %v8877 = vunpack.c.l.b16 %v8168
    %v8878 = vunpack.c.h.b16 %v8168
    %v8879 = vunpack.c.l.b16 %v8169
    %v8880 = vunpack.c.h.b16 %v8169
    %v8881 = vunpack.c.l.b16 %v8170
    %v8882 = vunpack.c.h.b16 %v8170
    %v8883 = vunpack.c.l.b16 %v8171
    %v8884 = vunpack.c.h.b16 %v8171
    %v8885 = vunpack.c.l.b16 %v8172
    %v8886 = vunpack.c.h.b16 %v8172
    %v8887 = vunpack.c.l.b16 %v8173
    %v8888 = vunpack.c.h.b16 %v8173
    %v8889 = vunpack.c.l.b16 %v8174
    %v8890 = vunpack.c.h.b16 %v8174
    %v8891 = vunpack.c.l.b16 %v8175
    %v8892 = vunpack.c.h.b16 %v8175
    %v8893 = vunpack.c.l.b16 %v8176
    %v8894 = vunpack.c.h.b16 %v8176
    %v8895 = vunpack.c.l.b16 %v8177
    %v8896 = vunpack.c.h.b16 %v8177
    %v8897 = vunpack.c.l.b16 %v8178
    %v8898 = vunpack.c.h.b16 %v8178
    %v8899 = vunpack.c.l.b16 %v8179
    %v8900 = vunpack.c.h.b16 %v8179
    %v8901 = vunpack.c.l.b16 %v8180
    %v8902 = vunpack.c.h.b16 %v8180
    %v8903 = vunpack.c.l.b16 %v8181
    %v8904 = vunpack.c.h.b16 %v8181
    %v8905 = vunpack.c.l.b16 %v8182
    %v8906 = vunpack.c.h.b16 %v8182
    %v8907 = vunpack.c.l.b16 %v8183
    %v8908 = vunpack.c.h.b16 %v8183
    %v8909 = vunpack.c.l.b16 %v8184
    %v8910 = vunpack.c.h.b16 %v8184
    %v8911 = vunpack.c.l.b16 %v8185
    %v8912 = vunpack.c.h.b16 %v8185
    %v8913 = vunpack.c.l.b16 %v8186
    %v8914 = vunpack.c.h.b16 %v8186
    %v8915 = vunpack.c.l.b16 %v8187
    %v8916 = vunpack.c.h.b16 %v8187
    %v8917 = vunpack.c.l.b16 %v8188
    %v8918 = vunpack.c.h.b16 %v8188
    %v8919 = vunpack.c.l.b16 %v8189
    %v8920 = vunpack.c.h.b16 %v8189
    %v8921 = vunpack.c.l.b16 %v8190
    %v8922 = vunpack.c.h.b16 %v8190
    %v8923 = vunpack.c.l.b16 %v8191
    %v8924 = vunpack.c.h.b16 %v8191
    %v8925 = vunpack.c.l.b16 %v8192
    %v8926 = vunpack.c.h.b16 %v8192
    %v8927 = vunpack.c.l.b16 %v8193
    %v8928 = vunpack.c.h.b16 %v8193
    %v8929 = vunpack.c.l.b16 %v8194
    %v8930 = vunpack.c.h.b16 %v8194
    %v8931 = vunpack.c.l.b16 %v8195
    %v8932 = vunpack.c.h.b16 %v8195
    %v8933 = vunpack.c.l.b16 %v8196
    %v8934 = vunpack.c.h.b16 %v8196
    %v8935 = vunpack.c.l.b16 %v8197
    %v8936 = vunpack.c.h.b16 %v8197
    %v8937 = vunpack.c.l.b16 %v8198
    %v8938 = vunpack.c.h.b16 %v8198
    %v8939 = vunpack.c.l.b16 %v8199
    %v8940 = vunpack.c.h.b16 %v8199
    %v8941 = vunpack.c.l.b16 %v8200
    %v8942 = vunpack.c.h.b16 %v8200
    %v8943 = vunpack.c.l.b16 %v8201
    %v8944 = vunpack.c.h.b16 %v8201
    %v8945 = vunpack.c.l.b16 %v8202
    %v8946 = vunpack.c.h.b16 %v8202
    %v8947 = vunpack.c.l.b16 %v8203
    %v8948 = vunpack.c.h.b16 %v8203
    %v8949 = vunpack.c.l.b16 %v8204
    %v8950 = vunpack.c.h.b16 %v8204
    %v8951 = vunpack.c.l.b16 %v8205
    %v8952 = vunpack.c.h.b16 %v8205
    %v8953 = vunpack.c.l.b16 %v8206
    %v8954 = vunpack.c.h.b16 %v8206
    %v8955 = vunpack.c.l.b16 %v8207
    %v8956 = vunpack.c.h.b16 %v8207
    %v8957 = vunpack.c.l.b16 %v8208
    %v8958 = vunpack.c.h.b16 %v8208
    %v8959 = vunpack.c.l.b16 %v8209
    %v8960 = vunpack.c.h.b16 %v8209
    %v8961 = vunpack.c.l.b16 %v8210
    %v8962 = vunpack.c.h.b16 %v8210
    %v8963 = vunpack.c.l.b16 %v8211
    %v8964 = vunpack.c.h.b16 %v8211
    %v8965 = vunpack.c.l.b16 %v8212
    %v8966 = vunpack.c.h.b16 %v8212
    %v8967 = vunpack.c.l.b16 %v8213
    %v8968 = vunpack.c.h.b16 %v8213
    %v8969 = vunpack.c.l.b16 %v8214
    %v8970 = vunpack.c.h.b16 %v8214
    %v8971 = vunpack.c.l.b16 %v8215
    %v8972 = vunpack.c.h.b16 %v8215
    %v8973 = vunpack.c.l.b16 %v8216
    %v8974 = vunpack.c.h.b16 %v8216
    %v8975 = vunpack.c.l.b16 %v8217
    %v8976 = vunpack.c.h.b16 %v8217
    %v8977 = vunpack.c.l.b16 %v8218
    %v8978 = vunpack.c.h.b16 %v8218
    %v8979 = vunpack.c.l.b16 %v8219
    %v8980 = vunpack.c.h.b16 %v8219
    %v8981 = vunpack.c.l.b16 %v8220
    %v8982 = vunpack.c.h.b16 %v8220
    %v8983 = vunpack.c.l.b16 %v8221
    %v8984 = vunpack.c.h.b16 %v8221
    %v8985 = vunpack.c.l.b16 %v8222
    %v8986 = vunpack.c.h.b16 %v8222
    %v8987 = vunpack.c.l.b16 %v8223
    %v8988 = vunpack.c.h.b16 %v8223
    %v8989 = vunpack.c.l.b16 %v8224
    %v8990 = vunpack.c.h.b16 %v8224
    %v8991 = vunpack.c.l.b16 %v8225
    %v8992 = vunpack.c.h.b16 %v8225
    %v8993 = vunpack.c.l.b16 %v8226
    %v8994 = vunpack.c.h.b16 %v8226
    %v8995 = vpack.c.b16 %v8487, %v8483
    %v8996 = vpack.c.b16 %v8488, %v8484
    %v8997 = vpack.c.b16 %v8489, %v8485
    %v8998 = vpack.c.b16 %v8490, %v8486
    %v8999 = vpack.c.b16 %v8495, %v8491
    %v9000 = vpack.c.b16 %v8496, %v8492
    %v9001 = vpack.c.b16 %v8497, %v8493
    %v9002 = vpack.c.b16 %v8498, %v8494
    %v9003 = vpack.c.b16 %v8503, %v8499
    %v9004 = vpack.c.b16 %v8504, %v8500
    %v9005 = vpack.c.b16 %v8505, %v8501
    %v9006 = vpack.c.b16 %v8506, %v8502
    %v9007 = vpack.c.b16 %v8511, %v8507
    %v9008 = vpack.c.b16 %v8512, %v8508
    %v9009 = vpack.c.b16 %v8513, %v8509
    %v9010 = vpack.c.b16 %v8514, %v8510
    %v9011 = vpack.c.b16 %v8519, %v8515
    %v9012 = vpack.c.b16 %v8520, %v8516
    %v9013 = vpack.c.b16 %v8521, %v8517
    %v9014 = vpack.c.b16 %v8522, %v8518
    %v9015 = vpack.c.b16 %v8527, %v8523
    %v9016 = vpack.c.b16 %v8528, %v8524
    %v9017 = vpack.c.b16 %v8529, %v8525
    %v9018 = vpack.c.b16 %v8530, %v8526
    %v9019 = vpack.c.b16 %v8535, %v8531
    %v9020 = vpack.c.b16 %v8536, %v8532
    %v9021 = vpack.c.b16 %v8537, %v8533
    %v9022 = vpack.c.b16 %v8538, %v8534
    %v9023 = vpack.c.b16 %v8543, %v8539
    %v9024 = vpack.c.b16 %v8544, %v8540
    %v9025 = vpack.c.b16 %v8545, %v8541
    %v9026 = vpack.c.b16 %v8546, %v8542
    %v9027 = vpack.c.b16 %v8551, %v8547
    %v9028 = vpack.c.b16 %v8552, %v8548
    %v9029 = vpack.c.b16 %v8553, %v8549
    %v9030 = vpack.c.b16 %v8554, %v8550
    %v9031 = vpack.c.b16 %v8559, %v8555
    %v9032 = vpack.c.b16 %v8560, %v8556
    %v9033 = vpack.c.b16 %v8561, %v8557
    %v9034 = vpack.c.b16 %v8562, %v8558
    %v9035 = vpack.c.b16 %v8567, %v8563
    %v9036 = vpack.c.b16 %v8568, %v8564
    %v9037 = vpack.c.b16 %v8569, %v8565
    %v9038 = vpack.c.b16 %v8570, %v8566
    %v9039 = vpack.c.b16 %v8575, %v8571
    %v9040 = vpack.c.b16 %v8576, %v8572
    %v9041 = vpack.c.b16 %v8577, %v8573
    %v9042 = vpack.c.b16 %v8578, %v8574
    %v9043 = vpack.c.b16 %v8583, %v8579
    %v9044 = vpack.c.b16 %v8584, %v8580
    %v9045 = vpack.c.b16 %v8585, %v8581
    %v9046 = vpack.c.b16 %v8586, %v8582
    %v9047 = vpack.c.b16 %v8591, %v8587
    %v9048 = vpack.c.b16 %v8592, %v8588
    %v9049 = vpack.c.b16 %v8593, %v8589
    %v9050 = vpack.c.b16 %v8594, %v8590
    %v9051 = vpack.c.b16 %v8599, %v8595
    %v9052 = vpack.c.b16 %v8600, %v8596
    %v9053 = vpack.c.b16 %v8601, %v8597
    %v9054 = vpack.c.b16 %v8602, %v8598
    %v9055 = vpack.c.b16 %v8607, %v8603
    %v9056 = vpack.c.b16 %v8608, %v8604
    %v9057 = vpack.c.b16 %v8609, %v8605
    %v9058 = vpack.c.b16 %v8610, %v8606
    %v9059 = vpack.c.b16 %v8615, %v8611
    %v9060 = vpack.c.b16 %v8616, %v8612
    %v9061 = vpack.c.b16 %v8617, %v8613
    %v9062 = vpack.c.b16 %v8618, %v8614
    %v9063 = vpack.c.b16 %v8623, %v8619
    %v9064 = vpack.c.b16 %v8624, %v8620
    %v9065 = vpack.c.b16 %v8625, %v8621
    %v9066 = vpack.c.b16 %v8626, %v8622
    %v9067 = vpack.c.b16 %v8631, %v8627
    %v9068 = vpack.c.b16 %v8632, %v8628
    %v9069 = vpack.c.b16 %v8633, %v8629
    %v9070 = vpack.c.b16 %v8634, %v8630
    %v9071 = vpack.c.b16 %v8639, %v8635
    %v9072 = vpack.c.b16 %v8640, %v8636
    %v9073 = vpack.c.b16 %v8641, %v8637
    %v9074 = vpack.c.b16 %v8642, %v8638
    %v9075 = vpack.c.b16 %v8647, %v8643
    %v9076 = vpack.c.b16 %v8648, %v8644
    %v9077 = vpack.c.b16 %v8649, %v8645
    %v9078 = vpack.c.b16 %v8650, %v8646
    %v9079 = vpack.c.b16 %v8655, %v8651
    %v9080 = vpack.c.b16 %v8656, %v8652
    %v9081 = vpack.c.b16 %v8657, %v8653
    %v9082 = vpack.c.b16 %v8658, %v8654
    %v9083 = vpack.c.b16 %v8663, %v8659
    %v9084 = vpack.c.b16 %v8664, %v8660
    %v9085 = vpack.c.b16 %v8665, %v8661
    %v9086 = vpack.c.b16 %v8666, %v8662
    %v9087 = vpack.c.b16 %v8671, %v8667
    %v9088 = vpack.c.b16 %v8672, %v8668
    %v9089 = vpack.c.b16 %v8673, %v8669
    %v9090 = vpack.c.b16 %v8674, %v8670
    %v9091 = vpack.c.b16 %v8679, %v8675
    %v9092 = vpack.c.b16 %v8680, %v8676
    %v9093 = vpack.c.b16 %v8681, %v8677
    %v9094 = vpack.c.b16 %v8682, %v8678
    %v9095 = vpack.c.b16 %v8687, %v8683
    %v9096 = vpack.c.b16 %v8688, %v8684
    %v9097 = vpack.c.b16 %v8689, %v8685
    %v9098 = vpack.c.b16 %v8690, %v8686
    %v9099 = vpack.c.b16 %v8695, %v8691
    %v9100 = vpack.c.b16 %v8696, %v8692
    %v9101 = vpack.c.b16 %v8697, %v8693
    %v9102 = vpack.c.b16 %v8698, %v8694
    %v9103 = vpack.c.b16 %v8703, %v8699
    %v9104 = vpack.c.b16 %v8704, %v8700
    %v9105 = vpack.c.b16 %v8705, %v8701
    %v9106 = vpack.c.b16 %v8706, %v8702
    %v9107 = vpack.c.b16 %v8711, %v8707
    %v9108 = vpack.c.b16 %v8712, %v8708
    %v9109 = vpack.c.b16 %v8713, %v8709
    %v9110 = vpack.c.b16 %v8714, %v8710
    %v9111 = vpack.c.b16 %v8719, %v8715
    %v9112 = vpack.c.b16 %v8720, %v8716
    %v9113 = vpack.c.b16 %v8721, %v8717
    %v9114 = vpack.c.b16 %v8722, %v8718
    %v9115 = vpack.c.b16 %v8727, %v8723
    %v9116 = vpack.c.b16 %v8728, %v8724
    %v9117 = vpack.c.b16 %v8729, %v8725
    %v9118 = vpack.c.b16 %v8730, %v8726
    %v9119 = vpack.c.b16 %v8735, %v8731
    %v9120 = vpack.c.b16 %v8736, %v8732
    %v9121 = vpack.c.b16 %v8737, %v8733
    %v9122 = vpack.c.b16 %v8738, %v8734
    %v9123 = vpack.c.b16 %v8743, %v8739
    %v9124 = vpack.c.b16 %v8744, %v8740
    %v9125 = vpack.c.b16 %v8745, %v8741
    %v9126 = vpack.c.b16 %v8746, %v8742
    %v9127 = vpack.c.b16 %v8751, %v8747
    %v9128 = vpack.c.b16 %v8752, %v8748
    %v9129 = vpack.c.b16 %v8753, %v8749
    %v9130 = vpack.c.b16 %v8754, %v8750
    %v9131 = vpack.c.b16 %v8759, %v8755
    %v9132 = vpack.c.b16 %v8760, %v8756
    %v9133 = vpack.c.b16 %v8761, %v8757
    %v9134 = vpack.c.b16 %v8762, %v8758
    %v9135 = vpack.c.b16 %v8767, %v8763
    %v9136 = vpack.c.b16 %v8768, %v8764
    %v9137 = vpack.c.b16 %v8769, %v8765
    %v9138 = vpack.c.b16 %v8770, %v8766
    %v9139 = vpack.c.b16 %v8775, %v8771
    %v9140 = vpack.c.b16 %v8776, %v8772
    %v9141 = vpack.c.b16 %v8777, %v8773
    %v9142 = vpack.c.b16 %v8778, %v8774
    %v9143 = vpack.c.b16 %v8783, %v8779
    %v9144 = vpack.c.b16 %v8784, %v8780
    %v9145 = vpack.c.b16 %v8785, %v8781
    %v9146 = vpack.c.b16 %v8786, %v8782
    %v9147 = vpack.c.b16 %v8791, %v8787
    %v9148 = vpack.c.b16 %v8792, %v8788
    %v9149 = vpack.c.b16 %v8793, %v8789
    %v9150 = vpack.c.b16 %v8794, %v8790
    %v9151 = vpack.c.b16 %v8799, %v8795
    %v9152 = vpack.c.b16 %v8800, %v8796
    %v9153 = vpack.c.b16 %v8801, %v8797
    %v9154 = vpack.c.b16 %v8802, %v8798
    %v9155 = vpack.c.b16 %v8807, %v8803
    %v9156 = vpack.c.b16 %v8808, %v8804
    %v9157 = vpack.c.b16 %v8809, %v8805
    %v9158 = vpack.c.b16 %v8810, %v8806
    %v9159 = vpack.c.b16 %v8815, %v8811
    %v9160 = vpack.c.b16 %v8816, %v8812
    %v9161 = vpack.c.b16 %v8817, %v8813
    %v9162 = vpack.c.b16 %v8818, %v8814
    %v9163 = vpack.c.b16 %v8823, %v8819
    %v9164 = vpack.c.b16 %v8824, %v8820
    %v9165 = vpack.c.b16 %v8825, %v8821
    %v9166 = vpack.c.b16 %v8826, %v8822
    %v9167 = vpack.c.b16 %v8831, %v8827
    %v9168 = vpack.c.b16 %v8832, %v8828
    %v9169 = vpack.c.b16 %v8833, %v8829
    %v9170 = vpack.c.b16 %v8834, %v8830
    %v9171 = vpack.c.b16 %v8839, %v8835
    %v9172 = vpack.c.b16 %v8840, %v8836
    %v9173 = vpack.c.b16 %v8841, %v8837
    %v9174 = vpack.c.b16 %v8842, %v8838
    %v9175 = vpack.c.b16 %v8847, %v8843
    %v9176 = vpack.c.b16 %v8848, %v8844
    %v9177 = vpack.c.b16 %v8849, %v8845
    %v9178 = vpack.c.b16 %v8850, %v8846
    %v9179 = vpack.c.b16 %v8855, %v8851
    %v9180 = vpack.c.b16 %v8856, %v8852
    %v9181 = vpack.c.b16 %v8857, %v8853
    %v9182 = vpack.c.b16 %v8858, %v8854
    %v9183 = vpack.c.b16 %v8863, %v8859
    %v9184 = vpack.c.b16 %v8864, %v8860
    %v9185 = vpack.c.b16 %v8865, %v8861
    %v9186 = vpack.c.b16 %v8866, %v8862
    %v9187 = vpack.c.b16 %v8871, %v8867
    %v9188 = vpack.c.b16 %v8872, %v8868
    %v9189 = vpack.c.b16 %v8873, %v8869
    %v9190 = vpack.c.b16 %v8874, %v8870
    %v9191 = vpack.c.b16 %v8879, %v8875
    %v9192 = vpack.c.b16 %v8880, %v8876
    %v9193 = vpack.c.b16 %v8881, %v8877
    %v9194 = vpack.c.b16 %v8882, %v8878
    %v9195 = vpack.c.b16 %v8887, %v8883
    %v9196 = vpack.c.b16 %v8888, %v8884
    %v9197 = vpack.c.b16 %v8889, %v8885
    %v9198 = vpack.c.b16 %v8890, %v8886
    %v9199 = vpack.c.b16 %v8895, %v8891
    %v9200 = vpack.c.b16 %v8896, %v8892
    %v9201 = vpack.c.b16 %v8897, %v8893
    %v9202 = vpack.c.b16 %v8898, %v8894
    %v9203 = vpack.c.b16 %v8903, %v8899
    %v9204 = vpack.c.b16 %v8904, %v8900
    %v9205 = vpack.c.b16 %v8905, %v8901
    %v9206 = vpack.c.b16 %v8906, %v8902
    %v9207 = vpack.c.b16 %v8911, %v8907
    %v9208 = vpack.c.b16 %v8912, %v8908
    %v9209 = vpack.c.b16 %v8913, %v8909
    %v9210 = vpack.c.b16 %v8914, %v8910
    %v9211 = vpack.c.b16 %v8919, %v8915
    %v9212 = vpack.c.b16 %v8920, %v8916
    %v9213 = vpack.c.b16 %v8921, %v8917
    %v9214 = vpack.c.b16 %v8922, %v8918
    %v9215 = vpack.c.b16 %v8927, %v8923
    %v9216 = vpack.c.b16 %v8928, %v8924
    %v9217 = vpack.c.b16 %v8929, %v8925
    %v9218 = vpack.c.b16 %v8930, %v8926
    %v9219 = vpack.c.b16 %v8935, %v8931
    %v9220 = vpack.c.b16 %v8936, %v8932
    %v9221 = vpack.c.b16 %v8937, %v8933
    %v9222 = vpack.c.b16 %v8938, %v8934
    %v9223 = vpack.c.b16 %v8943, %v8939
    %v9224 = vpack.c.b16 %v8944, %v8940
    %v9225 = vpack.c.b16 %v8945, %v8941
    %v9226 = vpack.c.b16 %v8946, %v8942
    %v9227 = vpack.c.b16 %v8951, %v8947
    %v9228 = vpack.c.b16 %v8952, %v8948
    %v9229 = vpack.c.b16 %v8953, %v8949
    %v9230 = vpack.c.b16 %v8954, %v8950
    %v9231 = vpack.c.b16 %v8959, %v8955
    %v9232 = vpack.c.b16 %v8960, %v8956
    %v9233 = vpack.c.b16 %v8961, %v8957
    %v9234 = vpack.c.b16 %v8962, %v8958
    %v9235 = vpack.c.b16 %v8967, %v8963
    %v9236 = vpack.c.b16 %v8968, %v8964
    %v9237 = vpack.c.b16 %v8969, %v8965
    %v9238 = vpack.c.b16 %v8970, %v8966
    %v9239 = vpack.c.b16 %v8975, %v8971
    %v9240 = vpack.c.b16 %v8976, %v8972
    %v9241 = vpack.c.b16 %v8977, %v8973
    %v9242 = vpack.c.b16 %v8978, %v8974
    %v9243 = vpack.c.b16 %v8983, %v8979
    %v9244 = vpack.c.b16 %v8984, %v8980
    %v9245 = vpack.c.b16 %v8985, %v8981
    %v9246 = vpack.c.b16 %v8986, %v8982
    %v9247 = vpack.c.b16 %v8991, %v8987
    %v9248 = vpack.c.b16 %v8992, %v8988
    %v9249 = vpack.c.b16 %v8993, %v8989
    %v9250 = vpack.c.b16 %v8994, %v8990
    %9507 = vmatpush.bf16.msra.mxu0 %v9023
    %9508 = vmatpush.bf16.msra.mxu0 %v9019
    %9509 = vmatpush.bf16.msra.mxu0 %v9015
    %9510 = vmatpush.bf16.msra.mxu0 %v9011
    %9511 = vmatpush.bf16.msra.mxu0 %v9007
    %9512 = vmatpush.bf16.msra.mxu0 %v9003
    %9513 = vmatpush.bf16.msra.mxu0 %v8999
    %9514 = vmatpush.bf16.msra.mxu0 %v8995
    %9515 = vmatmul.bf16.gmra.mxu0 %v7963
    %v9516 = vpop.f32.mrf.mxu0
    %v9517 = vadd.f32 0.0, %v9516
    %v9518 = vpop.f32.mrf.mxu0
    %9519 = vdwg.mxu0
    %9520 = vmatpush.bf16.msra.mxu0 %v9055
    %9521 = vmatpush.bf16.msra.mxu0 %v9051
    %9522 = vmatpush.bf16.msra.mxu0 %v9047
    %9523 = vmatpush.bf16.msra.mxu0 %v9043
    %9524 = vmatpush.bf16.msra.mxu0 %v9039
    %9525 = vmatpush.bf16.msra.mxu0 %v9035
    %9526 = vmatpush.bf16.msra.mxu0 %v9031
    %9527 = vmatpush.bf16.msra.mxu0 %v9027
    %9528 = vmatmul.bf16.gmra.mxu0 %v7964
    %v9529 = vpop.f32.mrf.mxu0
    %v9530 = vadd.f32 %v9517, %v9529
    %v9531 = vpop.f32.mrf.mxu0
    %9532 = vdwg.mxu0
    %9533 = vmatpush.bf16.msra.mxu0 %v9087
    %9534 = vmatpush.bf16.msra.mxu0 %v9083
    %9535 = vmatpush.bf16.msra.mxu0 %v9079
    %9536 = vmatpush.bf16.msra.mxu0 %v9075
    %9537 = vmatpush.bf16.msra.mxu0 %v9071
    %9538 = vmatpush.bf16.msra.mxu0 %v9067
    %9539 = vmatpush.bf16.msra.mxu0 %v9063
    %9540 = vmatpush.bf16.msra.mxu0 %v9059
    %9541 = vmatmul.bf16.gmra.mxu0 %v7965
    %v9542 = vpop.f32.mrf.mxu0
    %v9543 = vadd.f32 %v9530, %v9542
    %v9544 = vpop.f32.mrf.mxu0
    %9545 = vdwg.mxu0
    %9546 = vmatpush.bf16.msra.mxu0 %v9119
    %9547 = vmatpush.bf16.msra.mxu0 %v9115
    %9548 = vmatpush.bf16.msra.mxu0 %v9111
    %9549 = vmatpush.bf16.msra.mxu0 %v9107
    %9550 = vmatpush.bf16.msra.mxu0 %v9103
    %9551 = vmatpush.bf16.msra.mxu0 %v9099
    %9552 = vmatpush.bf16.msra.mxu0 %v9095
    %9553 = vmatpush.bf16.msra.mxu0 %v9091
    %9554 = vmatmul.bf16.gmra.mxu0 %v7966
    %v9555 = vpop.f32.mrf.mxu0
    %v9556 = vadd.f32 %v9543, %v9555
    %v9557 = vpop.f32.mrf.mxu0
    %9558 = vdwg.mxu0
    %9559 = vmatpush.bf16.msra.mxu0 %v9151
    %9560 = vmatpush.bf16.msra.mxu0 %v9147
    %9561 = vmatpush.bf16.msra.mxu0 %v9143
    %9562 = vmatpush.bf16.msra.mxu0 %v9139
    %9563 = vmatpush.bf16.msra.mxu0 %v9135
    %9564 = vmatpush.bf16.msra.mxu0 %v9131
    %9565 = vmatpush.bf16.msra.mxu0 %v9127
    %9566 = vmatpush.bf16.msra.mxu0 %v9123
    %9567 = vmatmul.bf16.gmra.mxu0 %v7967
    %v9568 = vpop.f32.mrf.mxu0
    %v9569 = vadd.f32 %v9556, %v9568
    %v9570 = vpop.f32.mrf.mxu0
    %9571 = vdwg.mxu0
    %9572 = vmatpush.bf16.msra.mxu0 %v9183
    %9573 = vmatpush.bf16.msra.mxu0 %v9179
    %9574 = vmatpush.bf16.msra.mxu0 %v9175
    %9575 = vmatpush.bf16.msra.mxu0 %v9171
    %9576 = vmatpush.bf16.msra.mxu0 %v9167
    %9577 = vmatpush.bf16.msra.mxu0 %v9163
    %9578 = vmatpush.bf16.msra.mxu0 %v9159
    %9579 = vmatpush.bf16.msra.mxu0 %v9155
    %9580 = vmatmul.bf16.gmra.mxu0 %v7968
    %v9581 = vpop.f32.mrf.mxu0
    %v9582 = vadd.f32 %v9569, %v9581
    %v9583 = vpop.f32.mrf.mxu0
    %9584 = vdwg.mxu0
    %9585 = vmatpush.bf16.msra.mxu0 %v9215
    %9586 = vmatpush.bf16.msra.mxu0 %v9211
    %9587 = vmatpush.bf16.msra.mxu0 %v9207
    %9588 = vmatpush.bf16.msra.mxu0 %v9203
    %9589 = vmatpush.bf16.msra.mxu0 %v9199
    %9590 = vmatpush.bf16.msra.mxu0 %v9195
    %9591 = vmatpush.bf16.msra.mxu0 %v9191
    %9592 = vmatpush.bf16.msra.mxu0 %v9187
    %9593 = vmatmul.bf16.gmra.mxu0 %v7969
    %v9594 = vpop.f32.mrf.mxu0
    %v9595 = vadd.f32 %v9582, %v9594
    %v9596 = vpop.f32.mrf.mxu0
    %9597 = vdwg.mxu0
    %9598 = vmatpush.bf16.msra.mxu0 %v9247
    %9599 = vmatpush.bf16.msra.mxu0 %v9243
    %9600 = vmatpush.bf16.msra.mxu0 %v9239
    %9601 = vmatpush.bf16.msra.mxu0 %v9235
    %9602 = vmatpush.bf16.msra.mxu0 %v9231
    %9603 = vmatpush.bf16.msra.mxu0 %v9227
    %9604 = vmatpush.bf16.msra.mxu0 %v9223
    %9605 = vmatpush.bf16.msra.mxu0 %v9219
    %9606 = vmatmul.bf16.gmra.mxu0 %v7970
    %v9607 = vpop.f32.mrf.mxu0
    %v9608 = vadd.f32 %v9595, %v9607
    %v9609 = vpop.f32.mrf.mxu0
    %9610 = vdwg.mxu0
    %9611 = vmatpush.bf16.msra.mxu0 %v9024
    %9612 = vmatpush.bf16.msra.mxu0 %v9020
    %9613 = vmatpush.bf16.msra.mxu0 %v9016
    %9614 = vmatpush.bf16.msra.mxu0 %v9012
    %9615 = vmatpush.bf16.msra.mxu0 %v9008
    %9616 = vmatpush.bf16.msra.mxu0 %v9004
    %9617 = vmatpush.bf16.msra.mxu0 %v9000
    %9618 = vmatpush.bf16.msra.mxu0 %v8996
    %9619 = vmatmul.bf16.gmra.mxu0 %v7963
    %v9620 = vpop.f32.mrf.mxu0
    %v9621 = vadd.f32 0.0, %v9620
    %v9622 = vpop.f32.mrf.mxu0
    %9623 = vdwg.mxu0
    %9624 = vmatpush.bf16.msra.mxu0 %v9056
    %9625 = vmatpush.bf16.msra.mxu0 %v9052
    %9626 = vmatpush.bf16.msra.mxu0 %v9048
    %9627 = vmatpush.bf16.msra.mxu0 %v9044
    %9628 = vmatpush.bf16.msra.mxu0 %v9040
    %9629 = vmatpush.bf16.msra.mxu0 %v9036
    %9630 = vmatpush.bf16.msra.mxu0 %v9032
    %9631 = vmatpush.bf16.msra.mxu0 %v9028
    %9632 = vmatmul.bf16.gmra.mxu0 %v7964
    %v9633 = vpop.f32.mrf.mxu0
    %v9634 = vadd.f32 %v9621, %v9633
    %v9635 = vpop.f32.mrf.mxu0
    %9636 = vdwg.mxu0
    %9637 = vmatpush.bf16.msra.mxu0 %v9088
    %9638 = vmatpush.bf16.msra.mxu0 %v9084
    %9639 = vmatpush.bf16.msra.mxu0 %v9080
    %9640 = vmatpush.bf16.msra.mxu0 %v9076
    %9641 = vmatpush.bf16.msra.mxu0 %v9072
    %9642 = vmatpush.bf16.msra.mxu0 %v9068
    %9643 = vmatpush.bf16.msra.mxu0 %v9064
    %9644 = vmatpush.bf16.msra.mxu0 %v9060
    %9645 = vmatmul.bf16.gmra.mxu0 %v7965
    %v9646 = vpop.f32.mrf.mxu0
    %v9647 = vadd.f32 %v9634, %v9646
    %v9648 = vpop.f32.mrf.mxu0
    %9649 = vdwg.mxu0
    %9650 = vmatpush.bf16.msra.mxu0 %v9120
    %9651 = vmatpush.bf16.msra.mxu0 %v9116
    %9652 = vmatpush.bf16.msra.mxu0 %v9112
    %9653 = vmatpush.bf16.msra.mxu0 %v9108
    %9654 = vmatpush.bf16.msra.mxu0 %v9104
    %9655 = vmatpush.bf16.msra.mxu0 %v9100
    %9656 = vmatpush.bf16.msra.mxu0 %v9096
    %9657 = vmatpush.bf16.msra.mxu0 %v9092
    %9658 = vmatmul.bf16.gmra.mxu0 %v7966
    %v9659 = vpop.f32.mrf.mxu0
    %v9660 = vadd.f32 %v9647, %v9659
    %v9661 = vpop.f32.mrf.mxu0
    %9662 = vdwg.mxu0
    %9663 = vmatpush.bf16.msra.mxu0 %v9152
    %9664 = vmatpush.bf16.msra.mxu0 %v9148
    %9665 = vmatpush.bf16.msra.mxu0 %v9144
    %9666 = vmatpush.bf16.msra.mxu0 %v9140
    %9667 = vmatpush.bf16.msra.mxu0 %v9136
    %9668 = vmatpush.bf16.msra.mxu0 %v9132
    %9669 = vmatpush.bf16.msra.mxu0 %v9128
    %9670 = vmatpush.bf16.msra.mxu0 %v9124
    %9671 = vmatmul.bf16.gmra.mxu0 %v7967
    %v9672 = vpop.f32.mrf.mxu0
    %v9673 = vadd.f32 %v9660, %v9672
    %v9674 = vpop.f32.mrf.mxu0
    %9675 = vdwg.mxu0
    %9676 = vmatpush.bf16.msra.mxu0 %v9184
    %9677 = vmatpush.bf16.msra.mxu0 %v9180
    %9678 = vmatpush.bf16.msra.mxu0 %v9176
    %9679 = vmatpush.bf16.msra.mxu0 %v9172
    %9680 = vmatpush.bf16.msra.mxu0 %v9168
    %9681 = vmatpush.bf16.msra.mxu0 %v9164
    %9682 = vmatpush.bf16.msra.mxu0 %v9160
    %9683 = vmatpush.bf16.msra.mxu0 %v9156
    %9684 = vmatmul.bf16.gmra.mxu0 %v7968
    %v9685 = vpop.f32.mrf.mxu0
    %v9686 = vadd.f32 %v9673, %v9685
    %v9687 = vpop.f32.mrf.mxu0
    %9688 = vdwg.mxu0
    %9689 = vmatpush.bf16.msra.mxu0 %v9216
    %9690 = vmatpush.bf16.msra.mxu0 %v9212
    %9691 = vmatpush.bf16.msra.mxu0 %v9208
    %9692 = vmatpush.bf16.msra.mxu0 %v9204
    %9693 = vmatpush.bf16.msra.mxu0 %v9200
    %9694 = vmatpush.bf16.msra.mxu0 %v9196
    %9695 = vmatpush.bf16.msra.mxu0 %v9192
    %9696 = vmatpush.bf16.msra.mxu0 %v9188
    %9697 = vmatmul.bf16.gmra.mxu0 %v7969
    %v9698 = vpop.f32.mrf.mxu0
    %v9699 = vadd.f32 %v9686, %v9698
    %v9700 = vpop.f32.mrf.mxu0
    %9701 = vdwg.mxu0
    %9702 = vmatpush.bf16.msra.mxu0 %v9248
    %9703 = vmatpush.bf16.msra.mxu0 %v9244
    %9704 = vmatpush.bf16.msra.mxu0 %v9240
    %9705 = vmatpush.bf16.msra.mxu0 %v9236
    %9706 = vmatpush.bf16.msra.mxu0 %v9232
    %9707 = vmatpush.bf16.msra.mxu0 %v9228
    %9708 = vmatpush.bf16.msra.mxu0 %v9224
    %9709 = vmatpush.bf16.msra.mxu0 %v9220
    %9710 = vmatmul.bf16.gmra.mxu0 %v7970
    %v9711 = vpop.f32.mrf.mxu0
    %v9712 = vadd.f32 %v9699, %v9711
    %v9713 = vpop.f32.mrf.mxu0
    %9714 = vdwg.mxu0
    %9715 = vmatpush.bf16.msra.mxu0 %v9025
    %9716 = vmatpush.bf16.msra.mxu0 %v9021
    %9717 = vmatpush.bf16.msra.mxu0 %v9017
    %9718 = vmatpush.bf16.msra.mxu0 %v9013
    %9719 = vmatpush.bf16.msra.mxu0 %v9009
    %9720 = vmatpush.bf16.msra.mxu0 %v9005
    %9721 = vmatpush.bf16.msra.mxu0 %v9001
    %9722 = vmatpush.bf16.msra.mxu0 %v8997
    %9723 = vmatmul.bf16.gmra.mxu0 %v7963
    %v9724 = vpop.f32.mrf.mxu0
    %v9725 = vadd.f32 0.0, %v9724
    %v9726 = vpop.f32.mrf.mxu0
    %9727 = vdwg.mxu0
    %9728 = vmatpush.bf16.msra.mxu0 %v9057
    %9729 = vmatpush.bf16.msra.mxu0 %v9053
    %9730 = vmatpush.bf16.msra.mxu0 %v9049
    %9731 = vmatpush.bf16.msra.mxu0 %v9045
    %9732 = vmatpush.bf16.msra.mxu0 %v9041
    %9733 = vmatpush.bf16.msra.mxu0 %v9037
    %9734 = vmatpush.bf16.msra.mxu0 %v9033
    %9735 = vmatpush.bf16.msra.mxu0 %v9029
    %9736 = vmatmul.bf16.gmra.mxu0 %v7964
    %v9737 = vpop.f32.mrf.mxu0
    %v9738 = vadd.f32 %v9725, %v9737
    %v9739 = vpop.f32.mrf.mxu0
    %9740 = vdwg.mxu0
    %9741 = vmatpush.bf16.msra.mxu0 %v9089
    %9742 = vmatpush.bf16.msra.mxu0 %v9085
    %9743 = vmatpush.bf16.msra.mxu0 %v9081
    %9744 = vmatpush.bf16.msra.mxu0 %v9077
    %9745 = vmatpush.bf16.msra.mxu0 %v9073
    %9746 = vmatpush.bf16.msra.mxu0 %v9069
    %9747 = vmatpush.bf16.msra.mxu0 %v9065
    %9748 = vmatpush.bf16.msra.mxu0 %v9061
    %9749 = vmatmul.bf16.gmra.mxu0 %v7965
    %v9750 = vpop.f32.mrf.mxu0
    %v9751 = vadd.f32 %v9738, %v9750
    %v9752 = vpop.f32.mrf.mxu0
    %9753 = vdwg.mxu0
    %9754 = vmatpush.bf16.msra.mxu0 %v9121
    %9755 = vmatpush.bf16.msra.mxu0 %v9117
    %9756 = vmatpush.bf16.msra.mxu0 %v9113
    %9757 = vmatpush.bf16.msra.mxu0 %v9109
    %9758 = vmatpush.bf16.msra.mxu0 %v9105
    %9759 = vmatpush.bf16.msra.mxu0 %v9101
    %9760 = vmatpush.bf16.msra.mxu0 %v9097
    %9761 = vmatpush.bf16.msra.mxu0 %v9093
    %9762 = vmatmul.bf16.gmra.mxu0 %v7966
    %v9763 = vpop.f32.mrf.mxu0
    %v9764 = vadd.f32 %v9751, %v9763
    %v9765 = vpop.f32.mrf.mxu0
    %9766 = vdwg.mxu0
    %9767 = vmatpush.bf16.msra.mxu0 %v9153
    %9768 = vmatpush.bf16.msra.mxu0 %v9149
    %9769 = vmatpush.bf16.msra.mxu0 %v9145
    %9770 = vmatpush.bf16.msra.mxu0 %v9141
    %9771 = vmatpush.bf16.msra.mxu0 %v9137
    %9772 = vmatpush.bf16.msra.mxu0 %v9133
    %9773 = vmatpush.bf16.msra.mxu0 %v9129
    %9774 = vmatpush.bf16.msra.mxu0 %v9125
    %9775 = vmatmul.bf16.gmra.mxu0 %v7967
    %v9776 = vpop.f32.mrf.mxu0
    %v9777 = vadd.f32 %v9764, %v9776
    %v9778 = vpop.f32.mrf.mxu0
    %9779 = vdwg.mxu0
    %9780 = vmatpush.bf16.msra.mxu0 %v9185
    %9781 = vmatpush.bf16.msra.mxu0 %v9181
    %9782 = vmatpush.bf16.msra.mxu0 %v9177
    %9783 = vmatpush.bf16.msra.mxu0 %v9173
    %9784 = vmatpush.bf16.msra.mxu0 %v9169
    %9785 = vmatpush.bf16.msra.mxu0 %v9165
    %9786 = vmatpush.bf16.msra.mxu0 %v9161
    %9787 = vmatpush.bf16.msra.mxu0 %v9157
    %9788 = vmatmul.bf16.gmra.mxu0 %v7968
    %v9789 = vpop.f32.mrf.mxu0
    %v9790 = vadd.f32 %v9777, %v9789
    %v9791 = vpop.f32.mrf.mxu0
    %9792 = vdwg.mxu0
    %9793 = vmatpush.bf16.msra.mxu0 %v9217
    %9794 = vmatpush.bf16.msra.mxu0 %v9213
    %9795 = vmatpush.bf16.msra.mxu0 %v9209
    %9796 = vmatpush.bf16.msra.mxu0 %v9205
    %9797 = vmatpush.bf16.msra.mxu0 %v9201
    %9798 = vmatpush.bf16.msra.mxu0 %v9197
    %9799 = vmatpush.bf16.msra.mxu0 %v9193
    %9800 = vmatpush.bf16.msra.mxu0 %v9189
    %9801 = vmatmul.bf16.gmra.mxu0 %v7969
    %v9802 = vpop.f32.mrf.mxu0
    %v9803 = vadd.f32 %v9790, %v9802
    %v9804 = vpop.f32.mrf.mxu0
    %9805 = vdwg.mxu0
    %9806 = vmatpush.bf16.msra.mxu0 %v9249
    %9807 = vmatpush.bf16.msra.mxu0 %v9245
    %9808 = vmatpush.bf16.msra.mxu0 %v9241
    %9809 = vmatpush.bf16.msra.mxu0 %v9237
    %9810 = vmatpush.bf16.msra.mxu0 %v9233
    %9811 = vmatpush.bf16.msra.mxu0 %v9229
    %9812 = vmatpush.bf16.msra.mxu0 %v9225
    %9813 = vmatpush.bf16.msra.mxu0 %v9221
    %9814 = vmatmul.bf16.gmra.mxu0 %v7970
    %v9815 = vpop.f32.mrf.mxu0
    %v9816 = vadd.f32 %v9803, %v9815
    %v9817 = vpop.f32.mrf.mxu0
    %9818 = vdwg.mxu0
    %9819 = vmatpush.bf16.msra.mxu0 %v9026
    %9820 = vmatpush.bf16.msra.mxu0 %v9022
    %9821 = vmatpush.bf16.msra.mxu0 %v9018
    %9822 = vmatpush.bf16.msra.mxu0 %v9014
    %9823 = vmatpush.bf16.msra.mxu0 %v9010
    %9824 = vmatpush.bf16.msra.mxu0 %v9006
    %9825 = vmatpush.bf16.msra.mxu0 %v9002
    %9826 = vmatpush.bf16.msra.mxu0 %v8998
    %9827 = vmatmul.bf16.gmra.mxu0 %v7963
    %v9828 = vpop.f32.mrf.mxu0
    %v9829 = vadd.f32 0.0, %v9828
    %v9830 = vpop.f32.mrf.mxu0
    %9831 = vdwg.mxu0
    %9832 = vmatpush.bf16.msra.mxu0 %v9058
    %9833 = vmatpush.bf16.msra.mxu0 %v9054
    %9834 = vmatpush.bf16.msra.mxu0 %v9050
    %9835 = vmatpush.bf16.msra.mxu0 %v9046
    %9836 = vmatpush.bf16.msra.mxu0 %v9042
    %9837 = vmatpush.bf16.msra.mxu0 %v9038
    %9838 = vmatpush.bf16.msra.mxu0 %v9034
    %9839 = vmatpush.bf16.msra.mxu0 %v9030
    %9840 = vmatmul.bf16.gmra.mxu0 %v7964
    %v9841 = vpop.f32.mrf.mxu0
    %v9842 = vadd.f32 %v9829, %v9841
    %v9843 = vpop.f32.mrf.mxu0
    %9844 = vdwg.mxu0
    %9845 = vmatpush.bf16.msra.mxu0 %v9090
    %9846 = vmatpush.bf16.msra.mxu0 %v9086
    %9847 = vmatpush.bf16.msra.mxu0 %v9082
    %9848 = vmatpush.bf16.msra.mxu0 %v9078
    %9849 = vmatpush.bf16.msra.mxu0 %v9074
    %9850 = vmatpush.bf16.msra.mxu0 %v9070
    %9851 = vmatpush.bf16.msra.mxu0 %v9066
    %9852 = vmatpush.bf16.msra.mxu0 %v9062
    %9853 = vmatmul.bf16.gmra.mxu0 %v7965
    %v9854 = vpop.f32.mrf.mxu0
    %v9855 = vadd.f32 %v9842, %v9854
    %v9856 = vpop.f32.mrf.mxu0
    %9857 = vdwg.mxu0
    %9858 = vmatpush.bf16.msra.mxu0 %v9122
    %9859 = vmatpush.bf16.msra.mxu0 %v9118
    %9860 = vmatpush.bf16.msra.mxu0 %v9114
    %9861 = vmatpush.bf16.msra.mxu0 %v9110
    %9862 = vmatpush.bf16.msra.mxu0 %v9106
    %9863 = vmatpush.bf16.msra.mxu0 %v9102
    %9864 = vmatpush.bf16.msra.mxu0 %v9098
    %9865 = vmatpush.bf16.msra.mxu0 %v9094
    %9866 = vmatmul.bf16.gmra.mxu0 %v7966
    %v9867 = vpop.f32.mrf.mxu0
    %v9868 = vadd.f32 %v9855, %v9867
    %v9869 = vpop.f32.mrf.mxu0
    %9870 = vdwg.mxu0
    %9871 = vmatpush.bf16.msra.mxu0 %v9154
    %9872 = vmatpush.bf16.msra.mxu0 %v9150
    %9873 = vmatpush.bf16.msra.mxu0 %v9146
    %9874 = vmatpush.bf16.msra.mxu0 %v9142
    %9875 = vmatpush.bf16.msra.mxu0 %v9138
    %9876 = vmatpush.bf16.msra.mxu0 %v9134
    %9877 = vmatpush.bf16.msra.mxu0 %v9130
    %9878 = vmatpush.bf16.msra.mxu0 %v9126
    %9879 = vmatmul.bf16.gmra.mxu0 %v7967
    %v9880 = vpop.f32.mrf.mxu0
    %v9881 = vadd.f32 %v9868, %v9880
    %v9882 = vpop.f32.mrf.mxu0
    %9883 = vdwg.mxu0
    %9884 = vmatpush.bf16.msra.mxu0 %v9186
    %9885 = vmatpush.bf16.msra.mxu0 %v9182
    %9886 = vmatpush.bf16.msra.mxu0 %v9178
    %9887 = vmatpush.bf16.msra.mxu0 %v9174
    %9888 = vmatpush.bf16.msra.mxu0 %v9170
    %9889 = vmatpush.bf16.msra.mxu0 %v9166
    %9890 = vmatpush.bf16.msra.mxu0 %v9162
    %9891 = vmatpush.bf16.msra.mxu0 %v9158
    %9892 = vmatmul.bf16.gmra.mxu0 %v7968
    %v9893 = vpop.f32.mrf.mxu0
    %v9894 = vadd.f32 %v9881, %v9893
    %v9895 = vpop.f32.mrf.mxu0
    %9896 = vdwg.mxu0
    %9897 = vmatpush.bf16.msra.mxu0 %v9218
    %9898 = vmatpush.bf16.msra.mxu0 %v9214
    %9899 = vmatpush.bf16.msra.mxu0 %v9210
    %9900 = vmatpush.bf16.msra.mxu0 %v9206
    %9901 = vmatpush.bf16.msra.mxu0 %v9202
    %9902 = vmatpush.bf16.msra.mxu0 %v9198
    %9903 = vmatpush.bf16.msra.mxu0 %v9194
    %9904 = vmatpush.bf16.msra.mxu0 %v9190
    %9905 = vmatmul.bf16.gmra.mxu0 %v7969
    %v9906 = vpop.f32.mrf.mxu0
    %v9907 = vadd.f32 %v9894, %v9906
    %v9908 = vpop.f32.mrf.mxu0
    %9909 = vdwg.mxu0
    %9910 = vmatpush.bf16.msra.mxu0 %v9250
    %9911 = vmatpush.bf16.msra.mxu0 %v9246
    %9912 = vmatpush.bf16.msra.mxu0 %v9242
    %9913 = vmatpush.bf16.msra.mxu0 %v9238
    %9914 = vmatpush.bf16.msra.mxu0 %v9234
    %9915 = vmatpush.bf16.msra.mxu0 %v9230
    %9916 = vmatpush.bf16.msra.mxu0 %v9226
    %9917 = vmatpush.bf16.msra.mxu0 %v9222
    %9918 = vmatmul.bf16.gmra.mxu0 %v7970
    %v9919 = vpop.f32.mrf.mxu0
    %v9920 = vadd.f32 %v9907, %v9919
    %v9921 = vpop.f32.mrf.mxu0
    %9922 = vdwg.mxu0
    %v9923 = vadd.f32 %v5970, %v9608
    %v9924 = vadd.f32 %v5971, %v9712
    %v9925 = vadd.f32 %v5972, %v9816
    %v9926 = vadd.f32 %v5973, %v9920
    %v9927 = vld [vmem:[#allocation21] sm:$0xf]
    %v9929 = vperm.slane %v9927, 0
    %v9930 = vperm.slane %v9927, 1
    %v9931 = vperm.slane %v9927, 2
    %v9932 = vperm.slane %v9927, 3
    %v9937 = vadd.f32 %v9923, %v9929
    %v9938 = vadd.f32 %v9924, %v9930
    %v9939 = vadd.f32 %v9925, %v9931
    %v9940 = vadd.f32 %v9926, %v9932
    %v9941 = vadd.f32 %v9937, %v9938
    %v9942 = vadd.f32 %v9941, %v9939
    %v9943 = vadd.f32 %v9942, %v9940
    %9944 = vadd.xlane.f32.xlu0 %v9943
    %v9945 = vpop.xlane.xlu0 %9944
    %v9946 = vmul.f32 %v9945, %v5915
    %v9947 = vsub.f32 %v9937, %v9946
    %v9948 = vsub.f32 %v9938, %v9946
    %v9949 = vsub.f32 %v9939, %v9946
    %v9950 = vsub.f32 %v9940, %v9946
    %v9951 = vmul.f32 %v9947, %v9947
    %v9952 = vmul.f32 %v9948, %v9948
    %v9953 = vmul.f32 %v9949, %v9949
    %v9954 = vmul.f32 %v9950, %v9950
    %v9955 = vadd.f32 %v9951, %v9952
    %v9956 = vadd.f32 %v9955, %v9953
    %v9957 = vadd.f32 %v9956, %v9954
    %9958 = vadd.xlane.f32.xlu0 %v9957
    %v9959 = vpop.xlane.xlu0 %9958
    %v9960 = vmul.f32 %v9959, %v5915
    %v9961 = vadd.f32 %v9960, 1e-05
    %v9962 = vrsqrt.pop %v9961
    %v9963 = vmul.f32 %v9962, %v9961
    %v9964 = vmul.f32 %v9963, %v9962
    %v9965 = vmul.f32 0.5, %v9964
    %v9966 = vsub.f32 1.5, %v9965
    %v9967 = vmul.f32 %v9962, %v9966
    %vm9968 = vweird.f32 %v9961
    %vm9969 = vweird.f32 %v9962
    %vm9970 = vmor %vm9968, %vm9969
    %v9971 = vsel %vm9970, %v9962, %v9967
    %v9972 = vmul.f32 %v9947, %v9971
    %v9973 = vmul.f32 %v9948, %v9971
    %v9974 = vmul.f32 %v9949, %v9971
    %v9975 = vmul.f32 %v9950, %v9971
    %v9976 = vld [vmem:[#allocation23] sm:$0xf]
    %v9978 = vperm.slane %v9976, 0
    %v9979 = vperm.slane %v9976, 1
    %v9980 = vperm.slane %v9976, 2
    %v9981 = vperm.slane %v9976, 3
    %v9986 = vmul.f32 %v9972, %v9978
    %v9987 = vmul.f32 %v9973, %v9979
    %v9988 = vmul.f32 %v9974, %v9980
    %v9989 = vmul.f32 %v9975, %v9981
    %v9990 = vld [vmem:[#allocation24] sm:$0xf]
    %v9992 = vperm.slane %v9990, 0
    %v9993 = vperm.slane %v9990, 1
    %v9994 = vperm.slane %v9990, 2
    %v9995 = vperm.slane %v9990, 3
    %v10000 = vadd.f32 %v9986, %v9992
    %v10001 = vadd.f32 %v9987, %v9993
    %v10002 = vadd.f32 %v9988, %v9994
    %v10003 = vadd.f32 %v9989, %v9995
    %v10004 = vpack.c.bf16 %v10000, %v10000
    %v10005 = vpack.c.bf16 %v10001, %v10001
    %v10006 = vpack.c.bf16 %v10002, %v10002
    %v10007 = vpack.c.bf16 %v10003, %v10003
    %v10008 = vld [vmem:[#allocation26] sm:$0xff]
    %v10009 = vld [vmem:[#allocation26 + $0x8] sm:$0xff]
    %v10010 = vld [vmem:[#allocation26 + $0x10] sm:$0xff]
    %v10011 = vld [vmem:[#allocation26 + $0x18] sm:$0xff]
    %v10012 = vld [vmem:[#allocation26 + $0x20] sm:$0xff]
    %v10013 = vld [vmem:[#allocation26 + $0x28] sm:$0xff]
    %v10014 = vld [vmem:[#allocation26 + $0x30] sm:$0xff]
    %v10015 = vld [vmem:[#allocation26 + $0x38] sm:$0xff]
    %v10016 = vld [vmem:[#allocation26 + $0x40] sm:$0xff]
    %v10017 = vld [vmem:[#allocation26 + $0x48] sm:$0xff]
    %v10018 = vld [vmem:[#allocation26 + $0x50] sm:$0xff]
    %v10019 = vld [vmem:[#allocation26 + $0x58] sm:$0xff]
    %v10020 = vld [vmem:[#allocation26 + $0x60] sm:$0xff]
    %v10021 = vld [vmem:[#allocation26 + $0x68] sm:$0xff]
    %v10022 = vld [vmem:[#allocation26 + $0x70] sm:$0xff]
    %v10023 = vld [vmem:[#allocation26 + $0x78] sm:$0xff]
    %v10024 = vld [vmem:[#allocation26 + $0x80] sm:$0xff]
    %v10025 = vld [vmem:[#allocation26 + $0x88] sm:$0xff]
    %v10026 = vld [vmem:[#allocation26 + $0x90] sm:$0xff]
    %v10027 = vld [vmem:[#allocation26 + $0x98] sm:$0xff]
    %v10028 = vld [vmem:[#allocation26 + $0xa0] sm:$0xff]
    %v10029 = vld [vmem:[#allocation26 + $0xa8] sm:$0xff]
    %v10030 = vld [vmem:[#allocation26 + $0xb0] sm:$0xff]
    %v10031 = vld [vmem:[#allocation26 + $0xb8] sm:$0xff]
    %v10032 = vld [vmem:[#allocation26 + $0xc0] sm:$0xff]
    %v10033 = vld [vmem:[#allocation26 + $0xc8] sm:$0xff]
    %v10034 = vld [vmem:[#allocation26 + $0xd0] sm:$0xff]
    %v10035 = vld [vmem:[#allocation26 + $0xd8] sm:$0xff]
    %v10036 = vld [vmem:[#allocation26 + $0xe0] sm:$0xff]
    %v10037 = vld [vmem:[#allocation26 + $0xe8] sm:$0xff]
    %v10038 = vld [vmem:[#allocation26 + $0xf0] sm:$0xff]
    %v10039 = vld [vmem:[#allocation26 + $0xf8] sm:$0xff]
    %v10040 = vld [vmem:[#allocation26 + $0x100] sm:$0xff]
    %v10041 = vld [vmem:[#allocation26 + $0x108] sm:$0xff]
    %v10042 = vld [vmem:[#allocation26 + $0x110] sm:$0xff]
    %v10043 = vld [vmem:[#allocation26 + $0x118] sm:$0xff]
    %v10044 = vld [vmem:[#allocation26 + $0x120] sm:$0xff]
    %v10045 = vld [vmem:[#allocation26 + $0x128] sm:$0xff]
    %v10046 = vld [vmem:[#allocation26 + $0x130] sm:$0xff]
    %v10047 = vld [vmem:[#allocation26 + $0x138] sm:$0xff]
    %v10048 = vld [vmem:[#allocation26 + $0x140] sm:$0xff]
    %v10049 = vld [vmem:[#allocation26 + $0x148] sm:$0xff]
    %v10050 = vld [vmem:[#allocation26 + $0x150] sm:$0xff]
    %v10051 = vld [vmem:[#allocation26 + $0x158] sm:$0xff]
    %v10052 = vld [vmem:[#allocation26 + $0x160] sm:$0xff]
    %v10053 = vld [vmem:[#allocation26 + $0x168] sm:$0xff]
    %v10054 = vld [vmem:[#allocation26 + $0x170] sm:$0xff]
    %v10055 = vld [vmem:[#allocation26 + $0x178] sm:$0xff]
    %v10056 = vld [vmem:[#allocation26 + $0x180] sm:$0xff]
    %v10057 = vld [vmem:[#allocation26 + $0x188] sm:$0xff]
    %v10058 = vld [vmem:[#allocation26 + $0x190] sm:$0xff]
    %v10059 = vld [vmem:[#allocation26 + $0x198] sm:$0xff]
    %v10060 = vld [vmem:[#allocation26 + $0x1a0] sm:$0xff]
    %v10061 = vld [vmem:[#allocation26 + $0x1a8] sm:$0xff]
    %v10062 = vld [vmem:[#allocation26 + $0x1b0] sm:$0xff]
    %v10063 = vld [vmem:[#allocation26 + $0x1b8] sm:$0xff]
    %v10064 = vld [vmem:[#allocation26 + $0x1c0] sm:$0xff]
    %v10065 = vld [vmem:[#allocation26 + $0x1c8] sm:$0xff]
    %v10066 = vld [vmem:[#allocation26 + $0x1d0] sm:$0xff]
    %v10067 = vld [vmem:[#allocation26 + $0x1d8] sm:$0xff]
    %v10068 = vld [vmem:[#allocation26 + $0x1e0] sm:$0xff]
    %v10069 = vld [vmem:[#allocation26 + $0x1e8] sm:$0xff]
    %v10070 = vld [vmem:[#allocation26 + $0x1f0] sm:$0xff]
    %v10071 = vld [vmem:[#allocation26 + $0x1f8] sm:$0xff]
    %v10072 = vld [vmem:[#allocation27] sm:$0x3]
    %v10074 = vperm.slane %v10072, 0
    %v10075 = vperm.slane %v10072, 1
    %v10142 = vunpack.c.l.b16 %v10008
    %v10143 = vunpack.c.h.b16 %v10008
    %v10144 = vunpack.c.l.b16 %v10009
    %v10145 = vunpack.c.h.b16 %v10009
    %v10146 = vunpack.c.l.b16 %v10010
    %v10147 = vunpack.c.h.b16 %v10010
    %v10148 = vunpack.c.l.b16 %v10011
    %v10149 = vunpack.c.h.b16 %v10011
    %v10150 = vunpack.c.l.b16 %v10012
    %v10151 = vunpack.c.h.b16 %v10012
    %v10152 = vunpack.c.l.b16 %v10013
    %v10153 = vunpack.c.h.b16 %v10013
    %v10154 = vunpack.c.l.b16 %v10014
    %v10155 = vunpack.c.h.b16 %v10014
    %v10156 = vunpack.c.l.b16 %v10015
    %v10157 = vunpack.c.h.b16 %v10015
    %v10158 = vunpack.c.l.b16 %v10016
    %v10159 = vunpack.c.h.b16 %v10016
    %v10160 = vunpack.c.l.b16 %v10017
    %v10161 = vunpack.c.h.b16 %v10017
    %v10162 = vunpack.c.l.b16 %v10018
    %v10163 = vunpack.c.h.b16 %v10018
    %v10164 = vunpack.c.l.b16 %v10019
    %v10165 = vunpack.c.h.b16 %v10019
    %v10166 = vunpack.c.l.b16 %v10020
    %v10167 = vunpack.c.h.b16 %v10020
    %v10168 = vunpack.c.l.b16 %v10021
    %v10169 = vunpack.c.h.b16 %v10021
    %v10170 = vunpack.c.l.b16 %v10022
    %v10171 = vunpack.c.h.b16 %v10022
    %v10172 = vunpack.c.l.b16 %v10023
    %v10173 = vunpack.c.h.b16 %v10023
    %v10174 = vunpack.c.l.b16 %v10024
    %v10175 = vunpack.c.h.b16 %v10024
    %v10176 = vunpack.c.l.b16 %v10025
    %v10177 = vunpack.c.h.b16 %v10025
    %v10178 = vunpack.c.l.b16 %v10026
    %v10179 = vunpack.c.h.b16 %v10026
    %v10180 = vunpack.c.l.b16 %v10027
    %v10181 = vunpack.c.h.b16 %v10027
    %v10182 = vunpack.c.l.b16 %v10028
    %v10183 = vunpack.c.h.b16 %v10028
    %v10184 = vunpack.c.l.b16 %v10029
    %v10185 = vunpack.c.h.b16 %v10029
    %v10186 = vunpack.c.l.b16 %v10030
    %v10187 = vunpack.c.h.b16 %v10030
    %v10188 = vunpack.c.l.b16 %v10031
    %v10189 = vunpack.c.h.b16 %v10031
    %v10190 = vunpack.c.l.b16 %v10032
    %v10191 = vunpack.c.h.b16 %v10032
    %v10192 = vunpack.c.l.b16 %v10033
    %v10193 = vunpack.c.h.b16 %v10033
    %v10194 = vunpack.c.l.b16 %v10034
    %v10195 = vunpack.c.h.b16 %v10034
    %v10196 = vunpack.c.l.b16 %v10035
    %v10197 = vunpack.c.h.b16 %v10035
    %v10198 = vunpack.c.l.b16 %v10036
    %v10199 = vunpack.c.h.b16 %v10036
    %v10200 = vunpack.c.l.b16 %v10037
    %v10201 = vunpack.c.h.b16 %v10037
    %v10202 = vunpack.c.l.b16 %v10038
    %v10203 = vunpack.c.h.b16 %v10038
    %v10204 = vunpack.c.l.b16 %v10039
    %v10205 = vunpack.c.h.b16 %v10039
    %v10206 = vunpack.c.l.b16 %v10040
    %v10207 = vunpack.c.h.b16 %v10040
    %v10208 = vunpack.c.l.b16 %v10041
    %v10209 = vunpack.c.h.b16 %v10041
    %v10210 = vunpack.c.l.b16 %v10042
    %v10211 = vunpack.c.h.b16 %v10042
    %v10212 = vunpack.c.l.b16 %v10043
    %v10213 = vunpack.c.h.b16 %v10043
    %v10214 = vunpack.c.l.b16 %v10044
    %v10215 = vunpack.c.h.b16 %v10044
    %v10216 = vunpack.c.l.b16 %v10045
    %v10217 = vunpack.c.h.b16 %v10045
    %v10218 = vunpack.c.l.b16 %v10046
    %v10219 = vunpack.c.h.b16 %v10046
    %v10220 = vunpack.c.l.b16 %v10047
    %v10221 = vunpack.c.h.b16 %v10047
    %v10222 = vunpack.c.l.b16 %v10048
    %v10223 = vunpack.c.h.b16 %v10048
    %v10224 = vunpack.c.l.b16 %v10049
    %v10225 = vunpack.c.h.b16 %v10049
    %v10226 = vunpack.c.l.b16 %v10050
    %v10227 = vunpack.c.h.b16 %v10050
    %v10228 = vunpack.c.l.b16 %v10051
    %v10229 = vunpack.c.h.b16 %v10051
    %v10230 = vunpack.c.l.b16 %v10052
    %v10231 = vunpack.c.h.b16 %v10052
    %v10232 = vunpack.c.l.b16 %v10053
    %v10233 = vunpack.c.h.b16 %v10053
    %v10234 = vunpack.c.l.b16 %v10054
    %v10235 = vunpack.c.h.b16 %v10054
    %v10236 = vunpack.c.l.b16 %v10055
    %v10237 = vunpack.c.h.b16 %v10055
    %v10238 = vunpack.c.l.b16 %v10056
    %v10239 = vunpack.c.h.b16 %v10056
    %v10240 = vunpack.c.l.b16 %v10057
    %v10241 = vunpack.c.h.b16 %v10057
    %v10242 = vunpack.c.l.b16 %v10058
    %v10243 = vunpack.c.h.b16 %v10058
    %v10244 = vunpack.c.l.b16 %v10059
    %v10245 = vunpack.c.h.b16 %v10059
    %v10246 = vunpack.c.l.b16 %v10060
    %v10247 = vunpack.c.h.b16 %v10060
    %v10248 = vunpack.c.l.b16 %v10061
    %v10249 = vunpack.c.h.b16 %v10061
    %v10250 = vunpack.c.l.b16 %v10062
    %v10251 = vunpack.c.h.b16 %v10062
    %v10252 = vunpack.c.l.b16 %v10063
    %v10253 = vunpack.c.h.b16 %v10063
    %v10254 = vunpack.c.l.b16 %v10064
    %v10255 = vunpack.c.h.b16 %v10064
    %v10256 = vunpack.c.l.b16 %v10065
    %v10257 = vunpack.c.h.b16 %v10065
    %v10258 = vunpack.c.l.b16 %v10066
    %v10259 = vunpack.c.h.b16 %v10066
    %v10260 = vunpack.c.l.b16 %v10067
    %v10261 = vunpack.c.h.b16 %v10067
    %v10262 = vunpack.c.l.b16 %v10068
    %v10263 = vunpack.c.h.b16 %v10068
    %v10264 = vunpack.c.l.b16 %v10069
    %v10265 = vunpack.c.h.b16 %v10069
    %v10266 = vunpack.c.l.b16 %v10070
    %v10267 = vunpack.c.h.b16 %v10070
    %v10268 = vunpack.c.l.b16 %v10071
    %v10269 = vunpack.c.h.b16 %v10071
    %v10270 = vpack.c.b16 %v10144, %v10142
    %v10271 = vpack.c.b16 %v10145, %v10143
    %v10272 = vpack.c.b16 %v10148, %v10146
    %v10273 = vpack.c.b16 %v10149, %v10147
    %v10274 = vpack.c.b16 %v10152, %v10150
    %v10275 = vpack.c.b16 %v10153, %v10151
    %v10276 = vpack.c.b16 %v10156, %v10154
    %v10277 = vpack.c.b16 %v10157, %v10155
    %v10278 = vpack.c.b16 %v10160, %v10158
    %v10279 = vpack.c.b16 %v10161, %v10159
    %v10280 = vpack.c.b16 %v10164, %v10162
    %v10281 = vpack.c.b16 %v10165, %v10163
    %v10282 = vpack.c.b16 %v10168, %v10166
    %v10283 = vpack.c.b16 %v10169, %v10167
    %v10284 = vpack.c.b16 %v10172, %v10170
    %v10285 = vpack.c.b16 %v10173, %v10171
    %v10286 = vpack.c.b16 %v10176, %v10174
    %v10287 = vpack.c.b16 %v10177, %v10175
    %v10288 = vpack.c.b16 %v10180, %v10178
    %v10289 = vpack.c.b16 %v10181, %v10179
    %v10290 = vpack.c.b16 %v10184, %v10182
    %v10291 = vpack.c.b16 %v10185, %v10183
    %v10292 = vpack.c.b16 %v10188, %v10186
    %v10293 = vpack.c.b16 %v10189, %v10187
    %v10294 = vpack.c.b16 %v10192, %v10190
    %v10295 = vpack.c.b16 %v10193, %v10191
    %v10296 = vpack.c.b16 %v10196, %v10194
    %v10297 = vpack.c.b16 %v10197, %v10195
    %v10298 = vpack.c.b16 %v10200, %v10198
    %v10299 = vpack.c.b16 %v10201, %v10199
    %v10300 = vpack.c.b16 %v10204, %v10202
    %v10301 = vpack.c.b16 %v10205, %v10203
    %v10302 = vpack.c.b16 %v10208, %v10206
    %v10303 = vpack.c.b16 %v10209, %v10207
    %v10304 = vpack.c.b16 %v10212, %v10210
    %v10305 = vpack.c.b16 %v10213, %v10211
    %v10306 = vpack.c.b16 %v10216, %v10214
    %v10307 = vpack.c.b16 %v10217, %v10215
    %v10308 = vpack.c.b16 %v10220, %v10218
    %v10309 = vpack.c.b16 %v10221, %v10219
    %v10310 = vpack.c.b16 %v10224, %v10222
    %v10311 = vpack.c.b16 %v10225, %v10223
    %v10312 = vpack.c.b16 %v10228, %v10226
    %v10313 = vpack.c.b16 %v10229, %v10227
    %v10314 = vpack.c.b16 %v10232, %v10230
    %v10315 = vpack.c.b16 %v10233, %v10231
    %v10316 = vpack.c.b16 %v10236, %v10234
    %v10317 = vpack.c.b16 %v10237, %v10235
    %v10318 = vpack.c.b16 %v10240, %v10238
    %v10319 = vpack.c.b16 %v10241, %v10239
    %v10320 = vpack.c.b16 %v10244, %v10242
    %v10321 = vpack.c.b16 %v10245, %v10243
    %v10322 = vpack.c.b16 %v10248, %v10246
    %v10323 = vpack.c.b16 %v10249, %v10247
    %v10324 = vpack.c.b16 %v10252, %v10250
    %v10325 = vpack.c.b16 %v10253, %v10251
    %v10326 = vpack.c.b16 %v10256, %v10254
    %v10327 = vpack.c.b16 %v10257, %v10255
    %v10328 = vpack.c.b16 %v10260, %v10258
    %v10329 = vpack.c.b16 %v10261, %v10259
    %v10330 = vpack.c.b16 %v10264, %v10262
    %v10331 = vpack.c.b16 %v10265, %v10263
    %v10332 = vpack.c.b16 %v10268, %v10266
    %v10333 = vpack.c.b16 %v10269, %v10267
    %10398 = vmatpush.bf16.msra.mxu0 %v10284
    %10399 = vmatpush.bf16.msra.mxu0 %v10282
    %10400 = vmatpush.bf16.msra.mxu0 %v10280
    %10401 = vmatpush.bf16.msra.mxu0 %v10278
    %10402 = vmatpush.bf16.msra.mxu0 %v10276
    %10403 = vmatpush.bf16.msra.mxu0 %v10274
    %10404 = vmatpush.bf16.msra.mxu0 %v10272
    %10405 = vmatpush.bf16.msra.mxu0 %v10270
    %10406 = vmatmul.bf16.gmra.mxu0 %v10004
    %v10407 = vpop.f32.mrf.mxu0
    %v10408 = vadd.f32 %v10074, %v10407
    %v10409 = vpop.f32.mrf.mxu0
    %10410 = vdwg.mxu0
    %10411 = vmatpush.bf16.msra.mxu0 %v10300
    %10412 = vmatpush.bf16.msra.mxu0 %v10298
    %10413 = vmatpush.bf16.msra.mxu0 %v10296
    %10414 = vmatpush.bf16.msra.mxu0 %v10294
    %10415 = vmatpush.bf16.msra.mxu0 %v10292
    %10416 = vmatpush.bf16.msra.mxu0 %v10290
    %10417 = vmatpush.bf16.msra.mxu0 %v10288
    %10418 = vmatpush.bf16.msra.mxu0 %v10286
    %10419 = vmatmul.bf16.gmra.mxu0 %v10005
    %v10420 = vpop.f32.mrf.mxu0
    %v10421 = vadd.f32 %v10408, %v10420
    %v10422 = vpop.f32.mrf.mxu0
    %10423 = vdwg.mxu0
    %10424 = vmatpush.bf16.msra.mxu0 %v10316
    %10425 = vmatpush.bf16.msra.mxu0 %v10314
    %10426 = vmatpush.bf16.msra.mxu0 %v10312
    %10427 = vmatpush.bf16.msra.mxu0 %v10310
    %10428 = vmatpush.bf16.msra.mxu0 %v10308
    %10429 = vmatpush.bf16.msra.mxu0 %v10306
    %10430 = vmatpush.bf16.msra.mxu0 %v10304
    %10431 = vmatpush.bf16.msra.mxu0 %v10302
    %10432 = vmatmul.bf16.gmra.mxu0 %v10006
    %v10433 = vpop.f32.mrf.mxu0
    %v10434 = vadd.f32 %v10421, %v10433
    %v10435 = vpop.f32.mrf.mxu0
    %10436 = vdwg.mxu0
    %10437 = vmatpush.bf16.msra.mxu0 %v10332
    %10438 = vmatpush.bf16.msra.mxu0 %v10330
    %10439 = vmatpush.bf16.msra.mxu0 %v10328
    %10440 = vmatpush.bf16.msra.mxu0 %v10326
    %10441 = vmatpush.bf16.msra.mxu0 %v10324
    %10442 = vmatpush.bf16.msra.mxu0 %v10322
    %10443 = vmatpush.bf16.msra.mxu0 %v10320
    %10444 = vmatpush.bf16.msra.mxu0 %v10318
    %10445 = vmatmul.bf16.gmra.mxu0 %v10007
    %v10446 = vpop.f32.mrf.mxu0
    %v10447 = vadd.f32 %v10434, %v10446
    %v10448 = vpop.f32.mrf.mxu0
    %10449 = vdwg.mxu0
    %10450 = vmatpush.bf16.msra.mxu0 %v10285
    %10451 = vmatpush.bf16.msra.mxu0 %v10283
    %10452 = vmatpush.bf16.msra.mxu0 %v10281
    %10453 = vmatpush.bf16.msra.mxu0 %v10279
    %10454 = vmatpush.bf16.msra.mxu0 %v10277
    %10455 = vmatpush.bf16.msra.mxu0 %v10275
    %10456 = vmatpush.bf16.msra.mxu0 %v10273
    %10457 = vmatpush.bf16.msra.mxu0 %v10271
    %10458 = vmatmul.bf16.gmra.mxu0 %v10004
    %v10459 = vpop.f32.mrf.mxu0
    %v10460 = vadd.f32 %v10075, %v10459
    %v10461 = vpop.f32.mrf.mxu0
    %10462 = vdwg.mxu0
    %10463 = vmatpush.bf16.msra.mxu0 %v10301
    %10464 = vmatpush.bf16.msra.mxu0 %v10299
    %10465 = vmatpush.bf16.msra.mxu0 %v10297
    %10466 = vmatpush.bf16.msra.mxu0 %v10295
    %10467 = vmatpush.bf16.msra.mxu0 %v10293
    %10468 = vmatpush.bf16.msra.mxu0 %v10291
    %10469 = vmatpush.bf16.msra.mxu0 %v10289
    %10470 = vmatpush.bf16.msra.mxu0 %v10287
    %10471 = vmatmul.bf16.gmra.mxu0 %v10005
    %v10472 = vpop.f32.mrf.mxu0
    %v10473 = vadd.f32 %v10460, %v10472
    %v10474 = vpop.f32.mrf.mxu0
    %10475 = vdwg.mxu0
    %10476 = vmatpush.bf16.msra.mxu0 %v10317
    %10477 = vmatpush.bf16.msra.mxu0 %v10315
    %10478 = vmatpush.bf16.msra.mxu0 %v10313
    %10479 = vmatpush.bf16.msra.mxu0 %v10311
    %10480 = vmatpush.bf16.msra.mxu0 %v10309
    %10481 = vmatpush.bf16.msra.mxu0 %v10307
    %10482 = vmatpush.bf16.msra.mxu0 %v10305
    %10483 = vmatpush.bf16.msra.mxu0 %v10303
    %10484 = vmatmul.bf16.gmra.mxu0 %v10006
    %v10485 = vpop.f32.mrf.mxu0
    %v10486 = vadd.f32 %v10473, %v10485
    %v10487 = vpop.f32.mrf.mxu0
    %10488 = vdwg.mxu0
    %10489 = vmatpush.bf16.msra.mxu0 %v10333
    %10490 = vmatpush.bf16.msra.mxu0 %v10331
    %10491 = vmatpush.bf16.msra.mxu0 %v10329
    %10492 = vmatpush.bf16.msra.mxu0 %v10327
    %10493 = vmatpush.bf16.msra.mxu0 %v10325
    %10494 = vmatpush.bf16.msra.mxu0 %v10323
    %10495 = vmatpush.bf16.msra.mxu0 %v10321
    %10496 = vmatpush.bf16.msra.mxu0 %v10319
    %10497 = vmatmul.bf16.gmra.mxu0 %v10007
    %v10498 = vpop.f32.mrf.mxu0
    %v10499 = vadd.f32 %v10486, %v10498
    %v10500 = vpop.f32.mrf.mxu0
    %10501 = vdwg.mxu0
    %v10502 = vld [vmem:[#allocation29] sm:$0x3]
    %v10504 = vperm.slane %v10502, 0
    %v10505 = vperm.slane %v10502, 1
    %v10508 = vmul.f32 %v10447, %v10504
    %v10509 = vmul.f32 %v10499, %v10505
    %v10510 = vld [vmem:[#allocation30] sm:$0x3]
    %v10512 = vperm.slane %v10510, 0
    %v10513 = vperm.slane %v10510, 1
    %v10516 = vadd.f32 %v10508, %v10512
    %v10517 = vadd.f32 %v10509, %v10513
    %v10518 = vmax.f32 %v10516, 0.0
    %v10519 = vmax.f32 %v10517, 0.0
    %v10520 = vpack.c.bf16 %v10518, %v10518
    %v10521 = vpack.c.bf16 %v10519, %v10519
    %v10522 = vld [vmem:[%s16] sm:$0xf]
    %v10523 = vld [vmem:[%s16 + $0x4] sm:$0xf]
    %v10524 = vld [vmem:[%s16 + $0x8] sm:$0xf]
    %v10525 = vld [vmem:[%s16 + $0xc] sm:$0xf]
    %v10526 = vld [vmem:[%s16 + $0x10] sm:$0xf]
    %v10527 = vld [vmem:[%s16 + $0x14] sm:$0xf]
    %v10528 = vld [vmem:[%s16 + $0x18] sm:$0xf]
    %v10529 = vld [vmem:[%s16 + $0x1c] sm:$0xf]
    %v10530 = vld [vmem:[%s16 + $0x20] sm:$0xf]
    %v10531 = vld [vmem:[%s16 + $0x24] sm:$0xf]
    %v10532 = vld [vmem:[%s16 + $0x28] sm:$0xf]
    %v10533 = vld [vmem:[%s16 + $0x2c] sm:$0xf]
    %v10534 = vld [vmem:[%s16 + $0x30] sm:$0xf]
    %v10535 = vld [vmem:[%s16 + $0x34] sm:$0xf]
    %v10536 = vld [vmem:[%s16 + $0x38] sm:$0xf]
    %v10537 = vld [vmem:[%s16 + $0x3c] sm:$0xf]
    %v10538 = vld [vmem:[%s16 + $0x40] sm:$0xf]
    %v10539 = vld [vmem:[%s16 + $0x44] sm:$0xf]
    %v10540 = vld [vmem:[%s16 + $0x48] sm:$0xf]
    %v10541 = vld [vmem:[%s16 + $0x4c] sm:$0xf]
    %v10542 = vld [vmem:[%s16 + $0x50] sm:$0xf]
    %v10543 = vld [vmem:[%s16 + $0x54] sm:$0xf]
    %v10544 = vld [vmem:[%s16 + $0x58] sm:$0xf]
    %v10545 = vld [vmem:[%s16 + $0x5c] sm:$0xf]
    %v10546 = vld [vmem:[%s16 + $0x60] sm:$0xf]
    %v10547 = vld [vmem:[%s16 + $0x64] sm:$0xf]
    %v10548 = vld [vmem:[%s16 + $0x68] sm:$0xf]
    %v10549 = vld [vmem:[%s16 + $0x6c] sm:$0xf]
    %v10550 = vld [vmem:[%s16 + $0x70] sm:$0xf]
    %v10551 = vld [vmem:[%s16 + $0x74] sm:$0xf]
    %v10552 = vld [vmem:[%s16 + $0x78] sm:$0xf]
    %v10553 = vld [vmem:[%s16 + $0x7c] sm:$0xf]
    %v10554 = vld [vmem:[#allocation32] sm:$0x1]
    %v10556 = vperm.slane %v10554, 0
    %v10590 = vunpack.c.l.b16 %v10522
    %v10591 = vunpack.c.l.b16 %v10523
    %v10592 = vunpack.c.l.b16 %v10524
    %v10593 = vunpack.c.l.b16 %v10525
    %v10594 = vunpack.c.l.b16 %v10526
    %v10595 = vunpack.c.l.b16 %v10527
    %v10596 = vunpack.c.l.b16 %v10528
    %v10597 = vunpack.c.l.b16 %v10529
    %v10598 = vunpack.c.l.b16 %v10530
    %v10599 = vunpack.c.l.b16 %v10531
    %v10600 = vunpack.c.l.b16 %v10532
    %v10601 = vunpack.c.l.b16 %v10533
    %v10602 = vunpack.c.l.b16 %v10534
    %v10603 = vunpack.c.l.b16 %v10535
    %v10604 = vunpack.c.l.b16 %v10536
    %v10605 = vunpack.c.l.b16 %v10537
    %v10606 = vunpack.c.l.b16 %v10538
    %v10607 = vunpack.c.l.b16 %v10539
    %v10608 = vunpack.c.l.b16 %v10540
    %v10609 = vunpack.c.l.b16 %v10541
    %v10610 = vunpack.c.l.b16 %v10542
    %v10611 = vunpack.c.l.b16 %v10543
    %v10612 = vunpack.c.l.b16 %v10544
    %v10613 = vunpack.c.l.b16 %v10545
    %v10614 = vunpack.c.l.b16 %v10546
    %v10615 = vunpack.c.l.b16 %v10547
    %v10616 = vunpack.c.l.b16 %v10548
    %v10617 = vunpack.c.l.b16 %v10549
    %v10618 = vunpack.c.l.b16 %v10550
    %v10619 = vunpack.c.l.b16 %v10551
    %v10620 = vunpack.c.l.b16 %v10552
    %v10621 = vunpack.c.l.b16 %v10553
    %v10622 = vpack.c.b16 %v10591, %v10590
    %v10623 = vpack.c.b16 %v10593, %v10592
    %v10624 = vpack.c.b16 %v10595, %v10594
    %v10625 = vpack.c.b16 %v10597, %v10596
    %v10626 = vpack.c.b16 %v10599, %v10598
    %v10627 = vpack.c.b16 %v10601, %v10600
    %v10628 = vpack.c.b16 %v10603, %v10602
    %v10629 = vpack.c.b16 %v10605, %v10604
    %v10630 = vpack.c.b16 %v10607, %v10606
    %v10631 = vpack.c.b16 %v10609, %v10608
    %v10632 = vpack.c.b16 %v10611, %v10610
    %v10633 = vpack.c.b16 %v10613, %v10612
    %v10634 = vpack.c.b16 %v10615, %v10614
    %v10635 = vpack.c.b16 %v10617, %v10616
    %v10636 = vpack.c.b16 %v10619, %v10618
    %v10637 = vpack.c.b16 %v10621, %v10620
    %10654 = vmatpush.bf16.msra.mxu0 %v10629
    %10655 = vmatpush.bf16.msra.mxu0 %v10628
    %10656 = vmatpush.bf16.msra.mxu0 %v10627
    %10657 = vmatpush.bf16.msra.mxu0 %v10626
    %10658 = vmatpush.bf16.msra.mxu0 %v10625
    %10659 = vmatpush.bf16.msra.mxu0 %v10624
    %10660 = vmatpush.bf16.msra.mxu0 %v10623
    %10661 = vmatpush.bf16.msra.mxu0 %v10622
    %10662 = vmatmul.bf16.gmra.mxu0 %v10520
    %v10663 = vpop.f32.mrf.mxu0
    %v10664 = vadd.f32 %v10556, %v10663
    %v10665 = vpop.f32.mrf.mxu0
    %10666 = vdwg.mxu0
    %10667 = vmatpush.bf16.msra.mxu0 %v10637
    %10668 = vmatpush.bf16.msra.mxu0 %v10636
    %10669 = vmatpush.bf16.msra.mxu0 %v10635
    %10670 = vmatpush.bf16.msra.mxu0 %v10634
    %10671 = vmatpush.bf16.msra.mxu0 %v10633
    %10672 = vmatpush.bf16.msra.mxu0 %v10632
    %10673 = vmatpush.bf16.msra.mxu0 %v10631
    %10674 = vmatpush.bf16.msra.mxu0 %v10630
    %10675 = vmatmul.bf16.gmra.mxu0 %v10521
    %v10676 = vpop.f32.mrf.mxu0
    %v10677 = vadd.f32 %v10664, %v10676
    %v10678 = vpop.f32.mrf.mxu0
    %10679 = vdwg.mxu0
    %v10680 = vld [vmem:[#allocation33] sm:$0x1]
    %v10682 = vperm.slane %v10680, 0
    %v10684 = vmul.f32 %v10677, %v10682
    %v10685 = vld [vmem:[#allocation35] sm:$0x1]
    %v10687 = vperm.slane %v10685, 0
    %v10689 = vadd.f32 %v10684, %v10687
    %v10690 = vmax.f32 %v10689, 0.0
    %v10691 = vpack.c.bf16 %v10690, %v10690
    %v10692 = vld [vmem:[#allocation36] sm:$0xf]
    %v10693 = vld [vmem:[#allocation36 + $0x4] sm:$0xf]
    %v10694 = vld [vmem:[#allocation36 + $0x8] sm:$0xf]
    %v10695 = vld [vmem:[#allocation36 + $0xc] sm:$0xf]
    %v10696 = vld [vmem:[#allocation36 + $0x10] sm:$0xf]
    %v10697 = vld [vmem:[#allocation36 + $0x14] sm:$0xf]
    %v10698 = vld [vmem:[#allocation36 + $0x18] sm:$0xf]
    %v10699 = vld [vmem:[#allocation36 + $0x1c] sm:$0xf]
    %v10700 = vld [vmem:[#allocation38] sm:$0x1]
    %v10702 = vperm.slane %v10700, 0
    %v10712 = vunpack.c.l.b16 %v10692
    %v10713 = vunpack.c.l.b16 %v10693
    %v10714 = vunpack.c.l.b16 %v10694
    %v10715 = vunpack.c.l.b16 %v10695
    %v10716 = vunpack.c.l.b16 %v10696
    %v10717 = vunpack.c.l.b16 %v10697
    %v10718 = vunpack.c.l.b16 %v10698
    %v10719 = vunpack.c.l.b16 %v10699
    %v10720 = vpack.c.b16 %v10713, %v10712
    %v10721 = vpack.c.b16 %v10715, %v10714
    %v10722 = vpack.c.b16 %v10717, %v10716
    %v10723 = vpack.c.b16 %v10719, %v10718
    %v10729 = vsel %vm4025, %v10691, 0
    %10731 = vmatpush.bf16.msra.mxu0 0
    %10732 = vmatpush.bf16.msra.mxu0 0
    %10733 = vmatpush.bf16.msra.mxu0 0
    %10734 = vmatpush.bf16.msra.mxu0 0
    %10735 = vmatpush.bf16.msra.mxu0 %v10723
    %10736 = vmatpush.bf16.msra.mxu0 %v10722
    %10737 = vmatpush.bf16.msra.mxu0 %v10721
    %10738 = vmatpush.bf16.msra.mxu0 %v10720
    %10739 = vmatmul.bf16.gmra.mxu0 %v10729
    %v10740 = vpop.f32.mrf.mxu0
    %v10741 = vadd.f32 %v10702, %v10740
    %v10742 = vpop.f32.mrf.mxu0
    %10743 = vdwg.mxu0
    %10744 = vst [vmem:[%s25] sm:$0xff] %v10741
    // Predicated region
    $region186: #{discriminator_forward.1} parent=1 // pred_check
      _
    $region187: #{discriminator_forward.1} parent=1 // pred_check_branch
      %10746 = sbr.rel (0) target = $region189
    $region188: #{discriminator_forward.1} parent=1 // pred_region
      _
    $region189: #{discriminator_forward.1} parent=1 // pred_fallthru
      _
    // Predicated region
    $region190: #{discriminator_forward.1} parent=1 // pred_check
      _
    $region191: #{discriminator_forward.1} parent=1 // pred_check_branch
      %10748 = sbr.rel (0) target = $region193
    $region192: #{discriminator_forward.1} parent=1 // pred_region
      _
    $region193: #{discriminator_forward.1} parent=1 // pred_fallthru
      _
    %10749 = vsyncpa [#allocation8], 1
    %10750 = vsyncpa [#allocation10], 1
    %10751 = vsyncpa [#allocation13], 1
    %10752 = vsyncpa [#allocation16], 1
    %10753 = vsyncpa [#allocation19], 1
    %10754 = vsyncpa [#allocation22], 1
    %10755 = vsyncpa [#allocation25], 1
    %10756 = vsyncpa [#allocation28], 1
    %10757 = vsyncpa [#allocation31], 1
    %10758 = vsyncpa [#allocation34], 1
    %10759 = vsyncpa [#allocation37], 1
  %10760 = vsyncmov [#allocation6]
  %s10761 = vpop.sfrf %10760
  %p10762 = scmp.eq.s32.totalorder %s10761, 0
  %p10763 = pneg %p10762
  %10765 = shalt.err (%p10763)
  %s10766 = scalar_lea.sflag [#allocation6], 1
  %10767 = vsyncmov %s10766
  %s10768 = vpop.sfrf %10767
  %p10769 = scmp.eq.s32.totalorder %s10768, 0
  %p10770 = pneg %p10769
  %10772 = shalt.err (%p10770)
  %s10773 = scalar_lea.sflag [#allocation6], 2
  %10774 = vsyncmov %s10773
  %s10775 = vpop.sfrf %10774
  %p10776 = scmp.eq.s32.totalorder %s10775, 0
  %p10777 = pneg %p10776
  %10779 = shalt.err (%p10777)

</llo_original>
